<compile_context>
chip_gen: v7x
topology: tpu7x:2x2x1
jax: 0.10.0
libtpu: 0.0.40
codegen_flags: <defaults>
</compile_context>

<pallas_src>
import functools

import jax
import jax.numpy as jnp
from jax.experimental import pallas as pl
from jax.experimental.pallas import tpu as pltpu

V_SIZE = 256          # bs_size of the Decoder
IM_CHANNELS = 3

_VMEM_LIMIT = 48 * 1024 * 1024   # < 64 MiB, valid on every TPU generation


def _round_up(x, m):
    return (x + m - 1) // m * m


# ----------------------------------------------------------------------------
# Kernel 1: fused  Linear(256->1024)+ReLU  ->  ConvTranspose2d#1 as a matmul
# (1x1 input => pure matmul), reduction over the 1024 dim chunked on the grid,
# bias + ReLU fused in the epilogue.  Output columns ordered (kh, kw, cout).
# ----------------------------------------------------------------------------
def _fc_d1_kernel(x_ref, fcw_ref, fcb_ref, w_ref, b_ref, o_ref,
                  h_ref, acc_ref, *, chunk):
    t = pl.program_id(0)

    @pl.when(t == 0)
    def _():
        h = jnp.dot(x_ref[...], fcw_ref[...], preferred_element_type=jnp.float32)
        h_ref[...] = jnp.maximum(h + fcb_ref[...], 0.0)
        acc_ref[...] = jnp.zeros_like(acc_ref)

    k0 = pl.multiple_of(t * chunk, chunk)
    acc_ref[...] += jnp.dot(h_ref[:, pl.ds(k0, chunk)], w_ref[...],
                            preferred_element_type=jnp.float32)

    @pl.when(t == pl.num_programs(0) - 1)
    def _():
        o_ref[...] = jnp.maximum(acc_ref[...] + b_ref[...], 0.0)


def fc_d1(x, fc_w, fc_b, d1_w, d1_b, *, n_chunks=2):
    """x: (B, 256) -> (B, 5, 5, 128) NHWC after fc+ReLU and ConvT1+ReLU."""
    B, Din = x.shape
    Cin1, C1, K1 = d1_w.shape[0], d1_w.shape[1], d1_w.shape[2]   # 1024, 128, 5
    N = K1 * K1 * C1                                             # 3200
    chunk = Cin1 // n_chunks                                     # 512

    Bp = _round_up(B, 8)
    xp = jnp.zeros((Bp, Din), jnp.float32).at[:B].set(x)

    # deconv of a 1x1 input is a pure matmul; weight columns ordered (kh, kw, co)
    w_mat = d1_w.transpose(0, 2, 3, 1).reshape(Cin1, N)
    bias = jnp.tile(d1_b, K1 * K1).reshape(1, N)                 # co fastest

    kernel = functools.partial(_fc_d1_kernel, chunk=chunk)
    out = pl.pallas_call(
        kernel,
        out_shape=jax.ShapeDtypeStruct((Bp, N), jnp.float32),
        grid_spec=pltpu.PrefetchScalarGridSpec(
            num_scalar_prefetch=0,
            grid=(n_chunks,),
            in_specs=[
                pl.BlockSpec((Bp, Din), lambda t: (0, 0)),
                pl.BlockSpec((Din, Cin1), lambda t: (0, 0)),
                pl.BlockSpec((1, Cin1), lambda t: (0, 0)),
                pl.BlockSpec((chunk, N), lambda t: (t, 0)),
                pl.BlockSpec((1, N), lambda t: (0, 0)),
            ],
            out_specs=pl.BlockSpec((Bp, N), lambda t: (0, 0)),
            scratch_shapes=[
                pltpu.VMEM((Bp, Cin1), jnp.float32),   # fc activations
                pltpu.VMEM((Bp, N), jnp.float32),      # accumulator
            ],
        ),
        compiler_params=pltpu.CompilerParams(
            dimension_semantics=("arbitrary",),
            vmem_limit_bytes=_VMEM_LIMIT,
        ),
    )(xp, fc_w, fc_b.reshape(1, Cin1), w_mat, bias)
    return out[:B].reshape(B, K1, K1, C1)


# ----------------------------------------------------------------------------
# Kernel 2: lane-dense contribution matmul for a deconv layer:
#   (M, Cin) x (Cin, K*K*Cout_pad)  with M tiled on a "parallel" grid axis.
# ----------------------------------------------------------------------------
def _contrib_matmul_kernel(x_ref, w_ref, o_ref):
    o_ref[...] = jnp.dot(x_ref[...], w_ref[...],
                         preferred_element_type=jnp.float32)


def contrib_matmul(x, w, *, tile_m):
    """x: (M, Cin), w: (Cin, N) -> (M, N) f32.  M % tile_m == 0."""
    M, Cin = x.shape
    N = w.shape[1]
    return pl.pallas_call(
        _contrib_matmul_kernel,
        out_shape=jax.ShapeDtypeStruct((M, N), jnp.float32),
        grid_spec=pltpu.PrefetchScalarGridSpec(
            num_scalar_prefetch=0,
            grid=(M // tile_m,),
            in_specs=[
                pl.BlockSpec((tile_m, Cin), lambda m: (m, 0)),
                pl.BlockSpec((Cin, N), lambda m: (0, 0)),
            ],
            out_specs=pl.BlockSpec((tile_m, N), lambda m: (m, 0)),
        ),
        compiler_params=pltpu.CompilerParams(
            dimension_semantics=("parallel",),
            vmem_limit_bytes=_VMEM_LIMIT,
        ),
    )(x, w)


# ----------------------------------------------------------------------------
# ConvTranspose2d (PyTorch semantics) = one Pallas matmul + col2im glue.
# ----------------------------------------------------------------------------
def deconv_layer(x_nhwc, w_pt, b, stride, act):
    """x_nhwc: (B,H,W,Cin); w_pt: PyTorch ConvTranspose2d weight (Cin,Cout,K,K)."""
    B, H, W, Cin = x_nhwc.shape
    Cout, K = w_pt.shape[1], w_pt.shape[2]
    OH = (H - 1) * stride + K
    OW = (W - 1) * stride + K

    M = B * H * W
    N = K * K * Cout
    Np = _round_up(N, 128)                 # lane-dense output columns

    Mp8 = _round_up(M, 8)                  # sublane-aligned rows
    tile_m = min(1024, Mp8)
    Mp = _round_up(Mp8, tile_m)

    x_flat = x_nhwc.reshape(M, Cin).astype(jnp.float32)
    xp = jnp.zeros((Mp, Cin), jnp.float32).at[:M].set(x_flat)

    # weight matrix with columns ordered (kh, kw, co); zero-pad to Np lanes
    w_mat = w_pt.transpose(0, 2, 3, 1).reshape(Cin, N)
    w_mat = jnp.zeros((Cin, Np), jnp.float32).at[:, :N].set(w_mat)

    contrib = contrib_matmul(xp, w_mat, tile_m=tile_m)[:M, :N]
    contrib = contrib.reshape(B, H, W, K, K, Cout)

    # col2im overlap-add: pure data rearrangement on tiny tensors (XLA glue),
    # then bias (added exactly once per output pixel) + activation.
    out = jnp.zeros((B, OH, OW, Cout), jnp.float32)
    for kh in range(K):
        for kw in range(K):
            out = out.at[:, kh:kh + (H - 1) * stride + 1:stride,
                            kw:kw + (W - 1) * stride + 1:stride, :].add(
                                contrib[:, :, :, kh, kw, :])
    out = out + b[None, None, None, :]
    if act == "relu":
        out = jnp.maximum(out, 0.0)
    elif act == "sigmoid":
        out = jax.nn.sigmoid(out)
    return out


# ----------------------------------------------------------------------------
# Decoder forward (Pallas)
# ----------------------------------------------------------------------------
@jax.jit
def decoder_forward(x, p):
    y = fc_d1(x, p["fc_w"], p["fc_b"], p["d1_w"], p["d1_b"])       # (B,5,5,128)
    y = deconv_layer(y, p["d2_w"], p["d2_b"], 2, "relu")           # (B,13,13,64)
    y = deconv_layer(y, p["d3_w"], p["d3_b"], 2, "relu")           # (B,30,30,32)
    y = deconv_layer(y, p["d4_w"], p["d4_b"], 2, "sigmoid")        # (B,64,64,3)
    return y.transpose(0, 3, 1, 2)                                 # NCHW


# ----------------------------------------------------------------------------
# Pure-JAX reference (PyTorch ConvTranspose2d scatter semantics, NCHW)
# ----------------------------------------------------------------------------
def _conv_transpose_ref(x, w, b, stride):
    B, Cin, H, W = x.shape
    Cout, K = w.shape[1], w.shape[2]
    OH = (H - 1) * stride + K
    OW = (W - 1) * stride + K
    contrib = jnp.einsum("bchw,cokl->bohwkl", x, w,
                         precision=jax.lax.Precision.HIGHEST)
    out = jnp.zeros((B, Cout, OH, OW), jnp.float32)
    for kh in range(K):
        for kw in range(K):
            out = out.at[:, :,
                         kh:kh + (H - 1) * stride + 1:stride,
                         kw:kw + (W - 1) * stride + 1:stride].add(
                             contrib[:, :, :, :, kh, kw])
    return out + b[None, :, None, None]


def decoder_ref(x, p):
    h = jnp.maximum(jnp.dot(x, p["fc_w"],
                            precision=jax.lax.Precision.HIGHEST) + p["fc_b"], 0.0)
    y = h.reshape(x.shape[0], 1024, 1, 1)
    y = jnp.maximum(_conv_transpose_ref(y, p["d1_w"], p["d1_b"], 2), 0.0)
    y = jnp.maximum(_conv_transpose_ref(y, p["d2_w"], p["d2_b"], 2), 0.0)
    y = jnp.maximum(_conv_transpose_ref(y, p["d3_w"], p["d3_b"], 2), 0.0)
    y = jax.nn.sigmoid(_conv_transpose_ref(y, p["d4_w"], p["d4_b"], 2))
    return y


# ----------------------------------------------------------------------------
# Deterministic parameter init (shapes from Decoder.__init__; synthetic values)
# ----------------------------------------------------------------------------
def init_params(key):
    ks = jax.random.split(key, 10)

    def w(k, shape, scale=0.05):
        return (scale * jax.random.normal(k, shape)).astype(jnp.float32)

    return {
        "fc_w": w(ks[0], (V_SIZE, 1024)),        # Linear(256, 1024) (in_dim, out_dim)
        "fc_b": w(ks[1], (1024,)),
        "d1_w": w(ks[2], (1024, 128, 5, 5)),     # ConvTranspose2d weight (Cin, Cout, K, K)
        "d1_b": w(ks[3], (128,)),
        "d2_w": w(ks[4], (128, 64, 5, 5)),
        "d2_b": w(ks[5], (64,)),
        "d3_w": w(ks[6], (64, 32, 6, 6)),
        "d3_b": w(ks[7], (32,)),
        "d4_w": w(ks[8], (32, IM_CHANNELS, 6, 6)),
        "d4_b": w(ks[9], (IM_CHANNELS,)),
    }


if __name__ == "__main__":
    key = jax.random.PRNGKey(0)
    kx, kp = jax.random.split(key)
    batch = 2
    x = jax.random.normal(kx, (batch, V_SIZE), jnp.float32)
    params = init_params(kp)

    out = decoder_forward(x, params)
    out = jax.block_until_ready(out)
    assert out.shape == (batch, IM_CHANNELS, 64, 64), out.shape

    ref = jax.block_until_ready(decoder_ref(x, params))
    max_err = float(jnp.max(jnp.abs(out - ref)))
    assert max_err < 5e-3, f"max abs error {max_err}"

    print("KERNEL_OK")
</pallas_src>

<mosaic_0001>
module attributes {stable_mosaic.version = 11 : i64} {
  func.func @_fc_d1_kernel(%arg0: i32, %arg1: memref<8x256xf32, #tpu.memory_space<vmem>>, %arg2: memref<256x1024xf32, #tpu.memory_space<vmem>>, %arg3: memref<1x1024xf32, #tpu.memory_space<vmem>>, %arg4: memref<512x3200xf32, #tpu.memory_space<vmem>>, %arg5: memref<1x3200xf32, #tpu.memory_space<vmem>>, %arg6: memref<8x3200xf32, #tpu.memory_space<vmem>>, %arg7: memref<8x1024xf32, #tpu.memory_space<vmem>>, %arg8: memref<8x3200xf32, #tpu.memory_space<vmem>>) attributes {dimension_semantics = [#tpu.dimension_semantics<arbitrary>], iteration_bounds = array<i64: 2>, scalar_prefetch = 0 : i64, scratch_operands = 2 : i64, tpu.core_type = #tpu.core_type<tc>, window_params = [{pipeline_mode = #tpu.pipeline_mode<synchronous>, transform_indices = @transform_0, window_bounds = array<i64: 8, 256>}, {pipeline_mode = #tpu.pipeline_mode<synchronous>, transform_indices = @transform_1, window_bounds = array<i64: 256, 1024>}, {pipeline_mode = #tpu.pipeline_mode<synchronous>, transform_indices = @transform_2, window_bounds = array<i64: 1, 1024>}, {transform_indices = @transform_3, window_bounds = array<i64: 512, 3200>}, {pipeline_mode = #tpu.pipeline_mode<synchronous>, transform_indices = @transform_4, window_bounds = array<i64: 1, 3200>}, {pipeline_mode = #tpu.pipeline_mode<synchronous>, transform_indices = @transform_5, window_bounds = array<i64: 8, 3200>}]} {
    %c0_i32 = arith.constant 0 : i32
    %0 = arith.cmpi eq, %arg0, %c0_i32 : i32
    %1 = arith.extui %0 : i1 to i32
    %c0_i32_0 = arith.constant 0 : i32
    %2 = arith.cmpi ne, %1, %c0_i32_0 : i32
    scf.if %2 {
      %c0_8 = arith.constant 0 : index
      %c0_9 = arith.constant 0 : index
      %15 = vector.load %arg1[%c0_8, %c0_9] : memref<8x256xf32, #tpu.memory_space<vmem>>, vector<8x256xf32>
      %c0_10 = arith.constant 0 : index
      %c0_11 = arith.constant 0 : index
      %16 = vector.load %arg2[%c0_10, %c0_11] : memref<256x1024xf32, #tpu.memory_space<vmem>>, vector<256x1024xf32>
      %cst_12 = arith.constant dense<0.000000e+00> : vector<8x1024xf32>
      %17 = tpu.matmul %15, %16, %cst_12 {dimension_numbers = #tpu.dot_dimension_numbers<[1], [0], [0], [1], [0, 0, 1, 1], [], []>} : vector<8x256xf32>, vector<256x1024xf32>, vector<8x1024xf32> -> vector<8x1024xf32>
      %c0_13 = arith.constant 0 : index
      %c0_14 = arith.constant 0 : index
      %18 = vector.load %arg3[%c0_13, %c0_14] : memref<1x1024xf32, #tpu.memory_space<vmem>>, vector<1x1024xf32>
      %19 = vector.broadcast %18 : vector<1x1024xf32> to vector<8x1024xf32>
      %20 = arith.addf %17, %19 : vector<8x1024xf32>
      %cst_15 = arith.constant 0.000000e+00 : f32
      %21 = vector.broadcast %cst_15 : f32 to vector<8x1024xf32>
      %22 = arith.maximumf %20, %21 : vector<8x1024xf32>
      %c0_16 = arith.constant 0 : index
      %c0_17 = arith.constant 0 : index
      %23 = vector.load %arg7[%c0_16, %c0_17] : memref<8x1024xf32, #tpu.memory_space<vmem>>, vector<8x1024xf32>
      tpu.vector_store %arg7[%c0_16, %c0_17], %22 {strides = array<i32>} : memref<8x1024xf32, #tpu.memory_space<vmem>>, vector<8x1024xf32>,
      %cst_18 = arith.constant 0.000000e+00 : f32
      %24 = vector.broadcast %cst_18 : f32 to vector<8x3200xf32>
      %c0_19 = arith.constant 0 : index
      %c0_20 = arith.constant 0 : index
      %25 = vector.load %arg8[%c0_19, %c0_20] : memref<8x3200xf32, #tpu.memory_space<vmem>>, vector<8x3200xf32>
      tpu.vector_store %arg8[%c0_19, %c0_20], %24 {strides = array<i32>} : memref<8x3200xf32, #tpu.memory_space<vmem>>, vector<8x3200xf32>,
    } else {
    }
    %c512_i32 = arith.constant 512 : i32
    %3 = arith.muli %arg0, %c512_i32 : i32
    %4 = tpu.assume_multiple %3, 512 : i32
    %c0 = arith.constant 0 : index
    %c0_1 = arith.constant 0 : index
    %5 = vector.load %arg8[%c0, %c0_1] : memref<8x3200xf32, #tpu.memory_space<vmem>>, vector<8x3200xf32>
    %c0_2 = arith.constant 0 : index
    %6 = arith.index_cast %4 : i32 to index
    %7 = vector.load %arg7[%c0_2, %6] : memref<8x1024xf32, #tpu.memory_space<vmem>>, vector<8x512xf32>
    %c0_3 = arith.constant 0 : index
    %c0_4 = arith.constant 0 : index
    %8 = vector.load %arg4[%c0_3, %c0_4] : memref<512x3200xf32, #tpu.memory_space<vmem>>, vector<512x3200xf32>
    %cst = arith.constant dense<0.000000e+00> : vector<8x3200xf32>
    %9 = tpu.matmul %7, %8, %cst {dimension_numbers = #tpu.dot_dimension_numbers<[1], [0], [0], [1], [0, 0, 1, 1], [], []>} : vector<8x512xf32>, vector<512x3200xf32>, vector<8x3200xf32> -> vector<8x3200xf32>
    %10 = arith.addf %5, %9 : vector<8x3200xf32>
    %c0_5 = arith.constant 0 : index
    %c0_6 = arith.constant 0 : index
    %11 = vector.load %arg8[%c0_5, %c0_6] : memref<8x3200xf32, #tpu.memory_space<vmem>>, vector<8x3200xf32>
    tpu.vector_store %arg8[%c0_5, %c0_6], %10 {strides = array<i32>} : memref<8x3200xf32, #tpu.memory_space<vmem>>, vector<8x3200xf32>,
    %c1_i32 = arith.constant 1 : i32
    %12 = arith.cmpi eq, %arg0, %c1_i32 : i32
    %13 = arith.extui %12 : i1 to i32
    %c0_i32_7 = arith.constant 0 : i32
    %14 = arith.cmpi ne, %13, %c0_i32_7 : i32
    scf.if %14 {
      %c0_8 = arith.constant 0 : index
      %c0_9 = arith.constant 0 : index
      %15 = vector.load %arg8[%c0_8, %c0_9] : memref<8x3200xf32, #tpu.memory_space<vmem>>, vector<8x3200xf32>
      %c0_10 = arith.constant 0 : index
      %c0_11 = arith.constant 0 : index
      %16 = vector.load %arg5[%c0_10, %c0_11] : memref<1x3200xf32, #tpu.memory_space<vmem>>, vector<1x3200xf32>
      %17 = vector.broadcast %16 : vector<1x3200xf32> to vector<8x3200xf32>
      %18 = arith.addf %15, %17 : vector<8x3200xf32>
      %cst_12 = arith.constant 0.000000e+00 : f32
      %19 = vector.broadcast %cst_12 : f32 to vector<8x3200xf32>
      %20 = arith.maximumf %18, %19 : vector<8x3200xf32>
      %c0_13 = arith.constant 0 : index
      %c0_14 = arith.constant 0 : index
      %21 = vector.load %arg6[%c0_13, %c0_14] : memref<8x3200xf32, #tpu.memory_space<vmem>>, vector<8x3200xf32>
      tpu.vector_store %arg6[%c0_13, %c0_14], %20 {strides = array<i32>} : memref<8x3200xf32, #tpu.memory_space<vmem>>, vector<8x3200xf32>,
    } else {
    }
    return
  }
  func.func @transform_0(%arg0: i32) -> (i32, i32) {
    %c0_i32 = arith.constant 0 : i32
    %c0_i32_0 = arith.constant 0 : i32
    %c0_i32_1 = arith.constant 0 : i32
    return %c0_i32, %c0_i32_0 : i32, i32
  }
  func.func @transform_1(%arg0: i32) -> (i32, i32) {
    %c0_i32 = arith.constant 0 : i32
    %c0_i32_0 = arith.constant 0 : i32
    %c0_i32_1 = arith.constant 0 : i32
    return %c0_i32, %c0_i32_0 : i32, i32
  }
  func.func @transform_2(%arg0: i32) -> (i32, i32) {
    %c0_i32 = arith.constant 0 : i32
    %c0_i32_0 = arith.constant 0 : i32
    %c0_i32_1 = arith.constant 0 : i32
    return %c0_i32, %c0_i32_0 : i32, i32
  }
  func.func @transform_3(%arg0: i32) -> (i32, i32) {
    %c0_i32 = arith.constant 0 : i32
    %c0_i32_0 = arith.constant 0 : i32
    return %arg0, %c0_i32 : i32, i32
  }
  func.func @transform_4(%arg0: i32) -> (i32, i32) {
    %c0_i32 = arith.constant 0 : i32
    %c0_i32_0 = arith.constant 0 : i32
    %c0_i32_1 = arith.constant 0 : i32
    return %c0_i32, %c0_i32_0 : i32, i32
  }
  func.func @transform_5(%arg0: i32) -> (i32, i32) {
    %c0_i32 = arith.constant 0 : i32
    %c0_i32_0 = arith.constant 0 : i32
    %c0_i32_1 = arith.constant 0 : i32
    return %c0_i32, %c0_i32_0 : i32, i32
  }
}

module attributes {stable_mosaic.version = 11 : i64} {
  func.func @_contrib_matmul_kernel(%arg0: i32, %arg1: memref<56x128xf32, #tpu.memory_space<vmem>>, %arg2: memref<128x1664xf32, #tpu.memory_space<vmem>>, %arg3: memref<56x1664xf32, #tpu.memory_space<vmem>>) attributes {dimension_semantics = [#tpu.dimension_semantics<parallel>], iteration_bounds = array<i64: 1>, scalar_prefetch = 0 : i64, scratch_operands = 0 : i64, tpu.core_type = #tpu.core_type<tc>, window_params = [{transform_indices = @transform_0, window_bounds = array<i64: 56, 128>}, {pipeline_mode = #tpu.pipeline_mode<synchronous>, transform_indices = @transform_1, window_bounds = array<i64: 128, 1664>}, {transform_indices = @transform_2, window_bounds = array<i64: 56, 1664>}]} {
    %c0 = arith.constant 0 : index
    %c0_0 = arith.constant 0 : index
    %0 = vector.load %arg1[%c0, %c0_0] : memref<56x128xf32, #tpu.memory_space<vmem>>, vector<56x128xf32>
    %c0_1 = arith.constant 0 : index
    %c0_2 = arith.constant 0 : index
    %1 = vector.load %arg2[%c0_1, %c0_2] : memref<128x1664xf32, #tpu.memory_space<vmem>>, vector<128x1664xf32>
    %cst = arith.constant dense<0.000000e+00> : vector<56x1664xf32>
    %2 = tpu.matmul %0, %1, %cst {dimension_numbers = #tpu.dot_dimension_numbers<[1], [0], [0], [1], [0, 0, 1, 1], [], []>} : vector<56x128xf32>, vector<128x1664xf32>, vector<56x1664xf32> -> vector<56x1664xf32>
    %c0_3 = arith.constant 0 : index
    %c0_4 = arith.constant 0 : index
    %3 = vector.load %arg3[%c0_3, %c0_4] : memref<56x1664xf32, #tpu.memory_space<vmem>>, vector<56x1664xf32>
    tpu.vector_store %arg3[%c0_3, %c0_4], %2 {strides = array<i32>} : memref<56x1664xf32, #tpu.memory_space<vmem>>, vector<56x1664xf32>,
    return
  }
  func.func @transform_0(%arg0: i32) -> (i32, i32) {
    %c0_i32 = arith.constant 0 : i32
    %c0_i32_0 = arith.constant 0 : i32
    return %arg0, %c0_i32 : i32, i32
  }
  func.func @transform_1(%arg0: i32) -> (i32, i32) {
    %c0_i32 = arith.constant 0 : i32
    %c0_i32_0 = arith.constant 0 : i32
    %c0_i32_1 = arith.constant 0 : i32
    return %c0_i32, %c0_i32_0 : i32, i32
  }
  func.func @transform_2(%arg0: i32) -> (i32, i32) {
    %c0_i32 = arith.constant 0 : i32
    %c0_i32_0 = arith.constant 0 : i32
    return %arg0, %c0_i32 : i32, i32
  }
}

module attributes {stable_mosaic.version = 11 : i64} {
  func.func @_contrib_matmul_kernel(%arg0: i32, %arg1: memref<344x64xf32, #tpu.memory_space<vmem>>, %arg2: memref<64x1152xf32, #tpu.memory_space<vmem>>, %arg3: memref<344x1152xf32, #tpu.memory_space<vmem>>) attributes {dimension_semantics = [#tpu.dimension_semantics<parallel>], iteration_bounds = array<i64: 1>, scalar_prefetch = 0 : i64, scratch_operands = 0 : i64, tpu.core_type = #tpu.core_type<tc>, window_params = [{transform_indices = @transform_0, window_bounds = array<i64: 344, 64>}, {pipeline_mode = #tpu.pipeline_mode<synchronous>, transform_indices = @transform_1, window_bounds = array<i64: 64, 1152>}, {transform_indices = @transform_2, window_bounds = array<i64: 344, 1152>}]} {
    %c0 = arith.constant 0 : index
    %c0_0 = arith.constant 0 : index
    %0 = vector.load %arg1[%c0, %c0_0] : memref<344x64xf32, #tpu.memory_space<vmem>>, vector<344x64xf32>
    %c0_1 = arith.constant 0 : index
    %c0_2 = arith.constant 0 : index
    %1 = vector.load %arg2[%c0_1, %c0_2] : memref<64x1152xf32, #tpu.memory_space<vmem>>, vector<64x1152xf32>
    %cst = arith.constant dense<0.000000e+00> : vector<344x1152xf32>
    %2 = tpu.matmul %0, %1, %cst {dimension_numbers = #tpu.dot_dimension_numbers<[1], [0], [0], [1], [0, 0, 1, 1], [], []>} : vector<344x64xf32>, vector<64x1152xf32>, vector<344x1152xf32> -> vector<344x1152xf32>
    %c0_3 = arith.constant 0 : index
    %c0_4 = arith.constant 0 : index
    %3 = vector.load %arg3[%c0_3, %c0_4] : memref<344x1152xf32, #tpu.memory_space<vmem>>, vector<344x1152xf32>
    tpu.vector_store %arg3[%c0_3, %c0_4], %2 {strides = array<i32>} : memref<344x1152xf32, #tpu.memory_space<vmem>>, vector<344x1152xf32>,
    return
  }
  func.func @transform_0(%arg0: i32) -> (i32, i32) {
    %c0_i32 = arith.constant 0 : i32
    %c0_i32_0 = arith.constant 0 : i32
    return %arg0, %c0_i32 : i32, i32
  }
  func.func @transform_1(%arg0: i32) -> (i32, i32) {
    %c0_i32 = arith.constant 0 : i32
    %c0_i32_0 = arith.constant 0 : i32
    %c0_i32_1 = arith.constant 0 : i32
    return %c0_i32, %c0_i32_0 : i32, i32
  }
  func.func @transform_2(%arg0: i32) -> (i32, i32) {
    %c0_i32 = arith.constant 0 : i32
    %c0_i32_0 = arith.constant 0 : i32
    return %arg0, %c0_i32 : i32, i32
  }
}

module attributes {stable_mosaic.version = 11 : i64} {
  func.func @_contrib_matmul_kernel(%arg0: i32, %arg1: memref<1024x32xf32, #tpu.memory_space<vmem>>, %arg2: memref<32x128xf32, #tpu.memory_space<vmem>>, %arg3: memref<1024x128xf32, #tpu.memory_space<vmem>>) attributes {dimension_semantics = [#tpu.dimension_semantics<parallel>], iteration_bounds = array<i64: 2>, scalar_prefetch = 0 : i64, scratch_operands = 0 : i64, tpu.core_type = #tpu.core_type<tc>, window_params = [{transform_indices = @transform_0, window_bounds = array<i64: 1024, 32>}, {pipeline_mode = #tpu.pipeline_mode<synchronous>, transform_indices = @transform_1, window_bounds = array<i64: 32, 128>}, {transform_indices = @transform_2, window_bounds = array<i64: 1024, 128>}]} {
    %c0 = arith.constant 0 : index
    %c0_0 = arith.constant 0 : index
    %0 = vector.load %arg1[%c0, %c0_0] : memref<1024x32xf32, #tpu.memory_space<vmem>>, vector<1024x32xf32>
    %c0_1 = arith.constant 0 : index
    %c0_2 = arith.constant 0 : index
    %1 = vector.load %arg2[%c0_1, %c0_2] : memref<32x128xf32, #tpu.memory_space<vmem>>, vector<32x128xf32>
    %cst = arith.constant dense<0.000000e+00> : vector<1024x128xf32>
    %2 = tpu.matmul %0, %1, %cst {dimension_numbers = #tpu.dot_dimension_numbers<[1], [0], [0], [1], [0, 0, 1, 1], [], []>} : vector<1024x32xf32>, vector<32x128xf32>, vector<1024x128xf32> -> vector<1024x128xf32>
    %c0_3 = arith.constant 0 : index
    %c0_4 = arith.constant 0 : index
    %3 = vector.load %arg3[%c0_3, %c0_4] : memref<1024x128xf32, #tpu.memory_space<vmem>>, vector<1024x128xf32>
    tpu.vector_store %arg3[%c0_3, %c0_4], %2 {strides = array<i32>} : memref<1024x128xf32, #tpu.memory_space<vmem>>, vector<1024x128xf32>,
    return
  }
  func.func @transform_0(%arg0: i32) -> (i32, i32) {
    %c0_i32 = arith.constant 0 : i32
    %c0_i32_0 = arith.constant 0 : i32
    return %arg0, %c0_i32 : i32, i32
  }
  func.func @transform_1(%arg0: i32) -> (i32, i32) {
    %c0_i32 = arith.constant 0 : i32
    %c0_i32_0 = arith.constant 0 : i32
    %c0_i32_1 = arith.constant 0 : i32
    return %c0_i32, %c0_i32_0 : i32, i32
  }
  func.func @transform_2(%arg0: i32) -> (i32, i32) {
    %c0_i32 = arith.constant 0 : i32
    %c0_i32_0 = arith.constant 0 : i32
    return %arg0, %c0_i32 : i32, i32
  }
}

</mosaic_0001>

<llo_original>
// kernel: decoder_forward.5
$region0: #{decoder_forward.5}
  #allocation0 [shape = 'u32[]', space=smem, size = 0x4, offset = 0x4, fixed_abs, tag = 'smem constant byte address 0x4 - core index']
  #allocation1 [shape = 'u32[144,128]{1,0:T(1,128)}', space=vmem, size = 0x12000, scoped, tag = 'internal scratch']
  %s0 = inlined_call_operand.vmem [shape: f32[56,128], index: 0, kind: input, shape index: {}]
  %s1 = inlined_call_operand.vmem [shape: f32[128,1664], index: 1, kind: input, shape index: {}]
  %s2 = inlined_call_operand.vmem [shape: f32[56,1664], index: 2, kind: output, shape index: {}]
  %s3 = sld [smem:[#allocation0]]
  $region18: #{decoder_forward.5} parent=0
    _
  %s5 = ssub.s32 1, %s3
  %s6 = scalar_select 0, %s5, %s3
  // Predicated region
  $region2: #{decoder_forward.5} parent=0 // pred_check
    _
  $region3: #{decoder_forward.5} parent=0 // pred_check_branch
    %8 = sbr.rel (0) target = $region5
  $region4: #{decoder_forward.5} parent=0 // pred_region
    _
  $region5: #{decoder_forward.5} parent=0 // pred_fallthru
    _
  // Predicated region
  $region6: #{decoder_forward.5} parent=0 // pred_check
    _
  $region7: #{decoder_forward.5} parent=0 // pred_check_branch
    %10 = sbr.rel (0) target = $region9
  $region8: #{decoder_forward.5} parent=0 // pred_region
    _
  $region9: #{decoder_forward.5} parent=0 // pred_fallthru
    _
  %v11 = vld [vmem:[%s0] sm:$0xff]
  %v12 = vld [vmem:[%s0 + $0x8] sm:$0xff]
  %v13 = vld [vmem:[%s0 + $0x10] sm:$0xff]
  %v14 = vld [vmem:[%s0 + $0x18] sm:$0xff]
  %v15 = vld [vmem:[%s0 + $0x20] sm:$0xff]
  %v16 = vld [vmem:[%s0 + $0x28] sm:$0xff]
  %v17 = vld [vmem:[%s0 + $0x30] sm:$0xff]
  %v18 = vld [vmem:[%s1] sm:$0xff]
  %v19 = vld [vmem:[%s1 + $0x8] sm:$0xff]
  %v20 = vld [vmem:[%s1 + $0x10] sm:$0xff]
  %v21 = vld [vmem:[%s1 + $0x18] sm:$0xff]
  %v22 = vld [vmem:[%s1 + $0x20] sm:$0xff]
  %v23 = vld [vmem:[%s1 + $0x28] sm:$0xff]
  %v24 = vld [vmem:[%s1 + $0x30] sm:$0xff]
  %v25 = vld [vmem:[%s1 + $0x38] sm:$0xff]
  %v26 = vld [vmem:[%s1 + $0x40] sm:$0xff]
  %v27 = vld [vmem:[%s1 + $0x48] sm:$0xff]
  %v28 = vld [vmem:[%s1 + $0x50] sm:$0xff]
  %v29 = vld [vmem:[%s1 + $0x58] sm:$0xff]
  %v30 = vld [vmem:[%s1 + $0x60] sm:$0xff]
  %v31 = vld [vmem:[%s1 + $0x68] sm:$0xff]
  %v32 = vld [vmem:[%s1 + $0x70] sm:$0xff]
  %v33 = vld [vmem:[%s1 + $0x78] sm:$0xff]
  %v34 = vld [vmem:[%s1 + $0x80] sm:$0xff]
  %v35 = vld [vmem:[%s1 + $0x88] sm:$0xff]
  %v36 = vld [vmem:[%s1 + $0x90] sm:$0xff]
  %v37 = vld [vmem:[%s1 + $0x98] sm:$0xff]
  %v38 = vld [vmem:[%s1 + $0xa0] sm:$0xff]
  %v39 = vld [vmem:[%s1 + $0xa8] sm:$0xff]
  %v40 = vld [vmem:[%s1 + $0xb0] sm:$0xff]
  %v41 = vld [vmem:[%s1 + $0xb8] sm:$0xff]
  %v42 = vld [vmem:[%s1 + $0xc0] sm:$0xff]
  %v43 = vld [vmem:[%s1 + $0xc8] sm:$0xff]
  %v44 = vld [vmem:[%s1 + $0xd0] sm:$0xff]
  %v45 = vld [vmem:[%s1 + $0xd8] sm:$0xff]
  %v46 = vld [vmem:[%s1 + $0xe0] sm:$0xff]
  %v47 = vld [vmem:[%s1 + $0xe8] sm:$0xff]
  %v48 = vld [vmem:[%s1 + $0xf0] sm:$0xff]
  %v49 = vld [vmem:[%s1 + $0xf8] sm:$0xff]
  %v50 = vld [vmem:[%s1 + $0x100] sm:$0xff]
  %v51 = vld [vmem:[%s1 + $0x108] sm:$0xff]
  %v52 = vld [vmem:[%s1 + $0x110] sm:$0xff]
  %v53 = vld [vmem:[%s1 + $0x118] sm:$0xff]
  %v54 = vld [vmem:[%s1 + $0x120] sm:$0xff]
  %v55 = vld [vmem:[%s1 + $0x128] sm:$0xff]
  %v56 = vld [vmem:[%s1 + $0x130] sm:$0xff]
  %v57 = vld [vmem:[%s1 + $0x138] sm:$0xff]
  %v58 = vld [vmem:[%s1 + $0x140] sm:$0xff]
  %v59 = vld [vmem:[%s1 + $0x148] sm:$0xff]
  %v60 = vld [vmem:[%s1 + $0x150] sm:$0xff]
  %v61 = vld [vmem:[%s1 + $0x158] sm:$0xff]
  %v62 = vld [vmem:[%s1 + $0x160] sm:$0xff]
  %v63 = vld [vmem:[%s1 + $0x168] sm:$0xff]
  %v64 = vld [vmem:[%s1 + $0x170] sm:$0xff]
  %v65 = vld [vmem:[%s1 + $0x178] sm:$0xff]
  %v66 = vld [vmem:[%s1 + $0x180] sm:$0xff]
  %v67 = vld [vmem:[%s1 + $0x188] sm:$0xff]
  %v68 = vld [vmem:[%s1 + $0x190] sm:$0xff]
  %v69 = vld [vmem:[%s1 + $0x198] sm:$0xff]
  %v70 = vld [vmem:[%s1 + $0x1a0] sm:$0xff]
  %v71 = vld [vmem:[%s1 + $0x1a8] sm:$0xff]
  %v72 = vld [vmem:[%s1 + $0x1b0] sm:$0xff]
  %v73 = vld [vmem:[%s1 + $0x1b8] sm:$0xff]
  %v74 = vld [vmem:[%s1 + $0x1c0] sm:$0xff]
  %v75 = vld [vmem:[%s1 + $0x1c8] sm:$0xff]
  %v76 = vld [vmem:[%s1 + $0x1d0] sm:$0xff]
  %v77 = vld [vmem:[%s1 + $0x1d8] sm:$0xff]
  %v78 = vld [vmem:[%s1 + $0x1e0] sm:$0xff]
  %v79 = vld [vmem:[%s1 + $0x1e8] sm:$0xff]
  %v80 = vld [vmem:[%s1 + $0x1f0] sm:$0xff]
  %v81 = vld [vmem:[%s1 + $0x1f8] sm:$0xff]
  %v82 = vld [vmem:[%s1 + $0x200] sm:$0xff]
  %v83 = vld [vmem:[%s1 + $0x208] sm:$0xff]
  %v84 = vld [vmem:[%s1 + $0x210] sm:$0xff]
  %v85 = vld [vmem:[%s1 + $0x218] sm:$0xff]
  %v86 = vld [vmem:[%s1 + $0x220] sm:$0xff]
  %v87 = vld [vmem:[%s1 + $0x228] sm:$0xff]
  %v88 = vld [vmem:[%s1 + $0x230] sm:$0xff]
  %v89 = vld [vmem:[%s1 + $0x238] sm:$0xff]
  %v90 = vld [vmem:[%s1 + $0x240] sm:$0xff]
  %v91 = vld [vmem:[%s1 + $0x248] sm:$0xff]
  %v92 = vld [vmem:[%s1 + $0x250] sm:$0xff]
  %v93 = vld [vmem:[%s1 + $0x258] sm:$0xff]
  %v94 = vld [vmem:[%s1 + $0x260] sm:$0xff]
  %v95 = vld [vmem:[%s1 + $0x268] sm:$0xff]
  %v96 = vld [vmem:[%s1 + $0x270] sm:$0xff]
  %v97 = vld [vmem:[%s1 + $0x278] sm:$0xff]
  %v98 = vld [vmem:[%s1 + $0x280] sm:$0xff]
  %v99 = vld [vmem:[%s1 + $0x288] sm:$0xff]
  %v100 = vld [vmem:[%s1 + $0x290] sm:$0xff]
  %v101 = vld [vmem:[%s1 + $0x298] sm:$0xff]
  %v102 = vld [vmem:[%s1 + $0x2a0] sm:$0xff]
  %v103 = vld [vmem:[%s1 + $0x2a8] sm:$0xff]
  %v104 = vld [vmem:[%s1 + $0x2b0] sm:$0xff]
  %v105 = vld [vmem:[%s1 + $0x2b8] sm:$0xff]
  %v106 = vld [vmem:[%s1 + $0x2c0] sm:$0xff]
  %v107 = vld [vmem:[%s1 + $0x2c8] sm:$0xff]
  %v108 = vld [vmem:[%s1 + $0x2d0] sm:$0xff]
  %v109 = vld [vmem:[%s1 + $0x2d8] sm:$0xff]
  %v110 = vld [vmem:[%s1 + $0x2e0] sm:$0xff]
  %v111 = vld [vmem:[%s1 + $0x2e8] sm:$0xff]
  %v112 = vld [vmem:[%s1 + $0x2f0] sm:$0xff]
  %v113 = vld [vmem:[%s1 + $0x2f8] sm:$0xff]
  %v114 = vld [vmem:[%s1 + $0x300] sm:$0xff]
  %v115 = vld [vmem:[%s1 + $0x308] sm:$0xff]
  %v116 = vld [vmem:[%s1 + $0x310] sm:$0xff]
  %v117 = vld [vmem:[%s1 + $0x318] sm:$0xff]
  %v118 = vld [vmem:[%s1 + $0x320] sm:$0xff]
  %v119 = vld [vmem:[%s1 + $0x328] sm:$0xff]
  %v120 = vld [vmem:[%s1 + $0x330] sm:$0xff]
  %v121 = vld [vmem:[%s1 + $0x338] sm:$0xff]
  %v122 = vld [vmem:[%s1 + $0x340] sm:$0xff]
  %v123 = vld [vmem:[%s1 + $0x348] sm:$0xff]
  %v124 = vld [vmem:[%s1 + $0x350] sm:$0xff]
  %v125 = vld [vmem:[%s1 + $0x358] sm:$0xff]
  %v126 = vld [vmem:[%s1 + $0x360] sm:$0xff]
  %v127 = vld [vmem:[%s1 + $0x368] sm:$0xff]
  %v128 = vld [vmem:[%s1 + $0x370] sm:$0xff]
  %v129 = vld [vmem:[%s1 + $0x378] sm:$0xff]
  %v130 = vld [vmem:[%s1 + $0x380] sm:$0xff]
  %v131 = vld [vmem:[%s1 + $0x388] sm:$0xff]
  %v132 = vld [vmem:[%s1 + $0x390] sm:$0xff]
  %v133 = vld [vmem:[%s1 + $0x398] sm:$0xff]
  %v134 = vld [vmem:[%s1 + $0x3a0] sm:$0xff]
  %v135 = vld [vmem:[%s1 + $0x3a8] sm:$0xff]
  %v136 = vld [vmem:[%s1 + $0x3b0] sm:$0xff]
  %v137 = vld [vmem:[%s1 + $0x3b8] sm:$0xff]
  %v138 = vld [vmem:[%s1 + $0x3c0] sm:$0xff]
  %v139 = vld [vmem:[%s1 + $0x3c8] sm:$0xff]
  %v140 = vld [vmem:[%s1 + $0x3d0] sm:$0xff]
  %v141 = vld [vmem:[%s1 + $0x3d8] sm:$0xff]
  %v142 = vld [vmem:[%s1 + $0x3e0] sm:$0xff]
  %v143 = vld [vmem:[%s1 + $0x3e8] sm:$0xff]
  %v144 = vld [vmem:[%s1 + $0x3f0] sm:$0xff]
  %v145 = vld [vmem:[%s1 + $0x3f8] sm:$0xff]
  %v146 = vld [vmem:[%s1 + $0x400] sm:$0xff]
  %v147 = vld [vmem:[%s1 + $0x408] sm:$0xff]
  %v148 = vld [vmem:[%s1 + $0x410] sm:$0xff]
  %v149 = vld [vmem:[%s1 + $0x418] sm:$0xff]
  %v150 = vld [vmem:[%s1 + $0x420] sm:$0xff]
  %v151 = vld [vmem:[%s1 + $0x428] sm:$0xff]
  %v152 = vld [vmem:[%s1 + $0x430] sm:$0xff]
  %v153 = vld [vmem:[%s1 + $0x438] sm:$0xff]
  %v154 = vld [vmem:[%s1 + $0x440] sm:$0xff]
  %v155 = vld [vmem:[%s1 + $0x448] sm:$0xff]
  %v156 = vld [vmem:[%s1 + $0x450] sm:$0xff]
  %v157 = vld [vmem:[%s1 + $0x458] sm:$0xff]
  %v158 = vld [vmem:[%s1 + $0x460] sm:$0xff]
  %v159 = vld [vmem:[%s1 + $0x468] sm:$0xff]
  %v160 = vld [vmem:[%s1 + $0x470] sm:$0xff]
  %v161 = vld [vmem:[%s1 + $0x478] sm:$0xff]
  %v162 = vld [vmem:[%s1 + $0x480] sm:$0xff]
  %v163 = vld [vmem:[%s1 + $0x488] sm:$0xff]
  %v164 = vld [vmem:[%s1 + $0x490] sm:$0xff]
  %v165 = vld [vmem:[%s1 + $0x498] sm:$0xff]
  %v166 = vld [vmem:[%s1 + $0x4a0] sm:$0xff]
  %v167 = vld [vmem:[%s1 + $0x4a8] sm:$0xff]
  %v168 = vld [vmem:[%s1 + $0x4b0] sm:$0xff]
  %v169 = vld [vmem:[%s1 + $0x4b8] sm:$0xff]
  %v170 = vld [vmem:[%s1 + $0x4c0] sm:$0xff]
  %v171 = vld [vmem:[%s1 + $0x4c8] sm:$0xff]
  %v172 = vld [vmem:[%s1 + $0x4d0] sm:$0xff]
  %v173 = vld [vmem:[%s1 + $0x4d8] sm:$0xff]
  %v174 = vld [vmem:[%s1 + $0x4e0] sm:$0xff]
  %v175 = vld [vmem:[%s1 + $0x4e8] sm:$0xff]
  %v176 = vld [vmem:[%s1 + $0x4f0] sm:$0xff]
  %v177 = vld [vmem:[%s1 + $0x4f8] sm:$0xff]
  %v178 = vld [vmem:[%s1 + $0x500] sm:$0xff]
  %v179 = vld [vmem:[%s1 + $0x508] sm:$0xff]
  %v180 = vld [vmem:[%s1 + $0x510] sm:$0xff]
  %v181 = vld [vmem:[%s1 + $0x518] sm:$0xff]
  %v182 = vld [vmem:[%s1 + $0x520] sm:$0xff]
  %v183 = vld [vmem:[%s1 + $0x528] sm:$0xff]
  %v184 = vld [vmem:[%s1 + $0x530] sm:$0xff]
  %v185 = vld [vmem:[%s1 + $0x538] sm:$0xff]
  %v186 = vld [vmem:[%s1 + $0x540] sm:$0xff]
  %v187 = vld [vmem:[%s1 + $0x548] sm:$0xff]
  %v188 = vld [vmem:[%s1 + $0x550] sm:$0xff]
  %v189 = vld [vmem:[%s1 + $0x558] sm:$0xff]
  %v190 = vld [vmem:[%s1 + $0x560] sm:$0xff]
  %v191 = vld [vmem:[%s1 + $0x568] sm:$0xff]
  %v192 = vld [vmem:[%s1 + $0x570] sm:$0xff]
  %v193 = vld [vmem:[%s1 + $0x578] sm:$0xff]
  %v194 = vld [vmem:[%s1 + $0x580] sm:$0xff]
  %v195 = vld [vmem:[%s1 + $0x588] sm:$0xff]
  %v196 = vld [vmem:[%s1 + $0x590] sm:$0xff]
  %v197 = vld [vmem:[%s1 + $0x598] sm:$0xff]
  %v198 = vld [vmem:[%s1 + $0x5a0] sm:$0xff]
  %v199 = vld [vmem:[%s1 + $0x5a8] sm:$0xff]
  %v200 = vld [vmem:[%s1 + $0x5b0] sm:$0xff]
  %v201 = vld [vmem:[%s1 + $0x5b8] sm:$0xff]
  %v202 = vld [vmem:[%s1 + $0x5c0] sm:$0xff]
  %v203 = vld [vmem:[%s1 + $0x5c8] sm:$0xff]
  %v204 = vld [vmem:[%s1 + $0x5d0] sm:$0xff]
  %v205 = vld [vmem:[%s1 + $0x5d8] sm:$0xff]
  %v206 = vld [vmem:[%s1 + $0x5e0] sm:$0xff]
  %v207 = vld [vmem:[%s1 + $0x5e8] sm:$0xff]
  %v208 = vld [vmem:[%s1 + $0x5f0] sm:$0xff]
  %v209 = vld [vmem:[%s1 + $0x5f8] sm:$0xff]
  %v210 = vld [vmem:[%s1 + $0x600] sm:$0xff]
  %v211 = vld [vmem:[%s1 + $0x608] sm:$0xff]
  %v212 = vld [vmem:[%s1 + $0x610] sm:$0xff]
  %v213 = vld [vmem:[%s1 + $0x618] sm:$0xff]
  %v214 = vld [vmem:[%s1 + $0x620] sm:$0xff]
  %v215 = vld [vmem:[%s1 + $0x628] sm:$0xff]
  %v216 = vld [vmem:[%s1 + $0x630] sm:$0xff]
  %v217 = vld [vmem:[%s1 + $0x638] sm:$0xff]
  %v218 = vld [vmem:[%s1 + $0x640] sm:$0xff]
  %v219 = vld [vmem:[%s1 + $0x648] sm:$0xff]
  %v220 = vld [vmem:[%s1 + $0x650] sm:$0xff]
  %v221 = vld [vmem:[%s1 + $0x658] sm:$0xff]
  %v222 = vld [vmem:[%s1 + $0x660] sm:$0xff]
  %v223 = vld [vmem:[%s1 + $0x668] sm:$0xff]
  %v224 = vld [vmem:[%s1 + $0x670] sm:$0xff]
  %v225 = vld [vmem:[%s1 + $0x678] sm:$0xff]
  %226 = vmatprep.subr.mxu0 %v19
  %227 = vmatpush1.msra.mxu0 %v18
  %228 = vmatprep.subr.mxu0 %v32
  %229 = vmatpush1.msra.mxu0 %v31
  %230 = vmatprep.subr.mxu0 %v45
  %231 = vmatpush1.msra.mxu0 %v44
  %232 = vmatprep.subr.mxu0 %v58
  %233 = vmatpush1.msra.mxu0 %v57
  %234 = vmatprep.subr.mxu0 %v71
  %235 = vmatpush1.msra.mxu0 %v70
  %236 = vmatprep.subr.mxu0 %v84
  %237 = vmatpush1.msra.mxu0 %v83
  %238 = vmatprep.subr.mxu0 %v97
  %239 = vmatpush1.msra.mxu0 %v96
  %240 = vmatprep.subr.mxu0 %v110
  %241 = vmatpush1.msra.mxu0 %v109
  %242 = vmatprep.subr.mxu0 %v123
  %243 = vmatpush1.msra.mxu0 %v122
  %244 = vmatprep.subr.mxu0 %v136
  %245 = vmatpush1.msra.mxu0 %v135
  %246 = vmatprep.subr.mxu0 %v149
  %247 = vmatpush1.msra.mxu0 %v148
  %248 = vmatprep.subr.mxu0 %v162
  %249 = vmatpush1.msra.mxu0 %v161
  %250 = vmatprep.subr.mxu0 %v175
  %251 = vmatpush1.msra.mxu0 %v174
  %252 = vmatprep.subr.mxu0 %v188
  %253 = vmatpush1.msra.mxu0 %v187
  %254 = vmatprep.subr.mxu0 %v201
  %255 = vmatpush1.msra.mxu0 %v200
  %256 = vmatprep.subr.mxu0 %v214
  %257 = vmatpush1.msra.mxu0 %v213
  %258 = vmatprep.subr.mxu0 0.0
  %259 = vmatpush1.msra.mxu0 0.0
  %260 = vmatprep.subr.mxu0 0.0
  %261 = vmatpush1.msra.mxu0 0.0
  %262 = vmatprep.subr.mxu0 0.0
  %263 = vmatpush1.msra.mxu0 0.0
  %264 = vmatprep.subr.mxu0 0.0
  %265 = vmatpush1.msra.mxu0 0.0
  %266 = vmatprep.subr.mxu0 0.0
  %267 = vmatpush1.msra.mxu0 0.0
  %268 = vmatprep.subr.mxu0 0.0
  %269 = vmatpush1.msra.mxu0 0.0
  %270 = vmatprep.subr.mxu0 0.0
  %271 = vmatpush1.msra.mxu0 0.0
  %272 = vmatprep.subr.mxu0 0.0
  %273 = vmatpush1.msra.mxu0 0.0
  %274 = vmatprep.subr.mxu0 0.0
  %275 = vmatpush1.msra.mxu0 0.0
  %276 = vmatprep.subr.mxu0 0.0
  %277 = vmatpush1.msra.mxu0 0.0
  %278 = vmatprep.subr.mxu0 0.0
  %279 = vmatpush1.msra.mxu0 0.0
  %280 = vmatprep.subr.mxu0 0.0
  %281 = vmatpush1.msra.mxu0 0.0
  %282 = vmatprep.subr.mxu0 0.0
  %283 = vmatpush1.msra.mxu0 0.0
  %284 = vmatprep.subr.mxu0 0.0
  %285 = vmatpush1.msra.mxu0 0.0
  %286 = vmatprep.subr.mxu0 0.0
  %287 = vmatpush1.msra.mxu0 0.0
  %288 = vmatprep.subr.mxu0 0.0
  %289 = vmatpush1.msra.mxu0 0.0
  %290 = vmatprep.mubr.f32.mxu0 0.0
  %291 = vmatmul.mubr.f32.gmra.mrb[0].mxu0 %v11
  %v292 = vpop.f32.mrb[0].mxu0
  %v293 = vadd.f32 0.0, %v292
  %v294 = vpop.f32.mrb[0].mxu0
  %v295 = vadd.f32 0.0, %v294
  %296 = vmatprep.mubr.f32.mxu0 0.0
  %297 = vmatmul.mubr.f32.gmra.mrb[0].mxu0 %v12
  %v298 = vpop.f32.mrb[0].mxu0
  %v299 = vadd.f32 0.0, %v298
  %v300 = vpop.f32.mrb[0].mxu0
  %v301 = vadd.f32 0.0, %v300
  %302 = vmatprep.mubr.f32.mxu0 0.0
  %303 = vmatmul.mubr.f32.gmra.mrb[0].mxu0 %v13
  %v304 = vpop.f32.mrb[0].mxu0
  %v305 = vadd.f32 0.0, %v304
  %v306 = vpop.f32.mrb[0].mxu0
  %v307 = vadd.f32 0.0, %v306
  %308 = vmatprep.mubr.f32.mxu0 0.0
  %309 = vmatmul.mubr.f32.gmra.mrb[0].mxu0 %v14
  %v310 = vpop.f32.mrb[0].mxu0
  %v311 = vadd.f32 0.0, %v310
  %v312 = vpop.f32.mrb[0].mxu0
  %v313 = vadd.f32 0.0, %v312
  %314 = vmatprep.mubr.f32.mxu0 0.0
  %315 = vmatmul.mubr.f32.gmra.mrb[0].mxu0 %v15
  %v316 = vpop.f32.mrb[0].mxu0
  %v317 = vadd.f32 0.0, %v316
  %v318 = vpop.f32.mrb[0].mxu0
  %v319 = vadd.f32 0.0, %v318
  %320 = vmatprep.mubr.f32.mxu0 0.0
  %321 = vmatmul.mubr.f32.gmra.mrb[0].mxu0 %v16
  %v322 = vpop.f32.mrb[0].mxu0
  %v323 = vadd.f32 0.0, %v322
  %v324 = vpop.f32.mrb[0].mxu0
  %v325 = vadd.f32 0.0, %v324
  %326 = vmatprep.mubr.f32.mxu0 0.0
  %327 = vmatmul.mubr.f32.gmra.mrb[0].mxu0 %v17
  %v328 = vpop.f32.mrb[0].mxu0
  %v329 = vadd.f32 0.0, %v328
  %v330 = vpop.f32.mrb[0].mxu0
  %v331 = vadd.f32 0.0, %v330
  %332 = vdwg.mxu0
  %333 = vmatprep.subr.mxu0 %v21
  %334 = vmatpush1.msra.mxu0 %v20
  %335 = vmatprep.subr.mxu0 %v34
  %336 = vmatpush1.msra.mxu0 %v33
  %337 = vmatprep.subr.mxu0 %v47
  %338 = vmatpush1.msra.mxu0 %v46
  %339 = vmatprep.subr.mxu0 %v60
  %340 = vmatpush1.msra.mxu0 %v59
  %341 = vmatprep.subr.mxu0 %v73
  %342 = vmatpush1.msra.mxu0 %v72
  %343 = vmatprep.subr.mxu0 %v86
  %344 = vmatpush1.msra.mxu0 %v85
  %345 = vmatprep.subr.mxu0 %v99
  %346 = vmatpush1.msra.mxu0 %v98
  %347 = vmatprep.subr.mxu0 %v112
  %348 = vmatpush1.msra.mxu0 %v111
  %349 = vmatprep.subr.mxu0 %v125
  %350 = vmatpush1.msra.mxu0 %v124
  %351 = vmatprep.subr.mxu0 %v138
  %352 = vmatpush1.msra.mxu0 %v137
  %353 = vmatprep.subr.mxu0 %v151
  %354 = vmatpush1.msra.mxu0 %v150
  %355 = vmatprep.subr.mxu0 %v164
  %356 = vmatpush1.msra.mxu0 %v163
  %357 = vmatprep.subr.mxu0 %v177
  %358 = vmatpush1.msra.mxu0 %v176
  %359 = vmatprep.subr.mxu0 %v190
  %360 = vmatpush1.msra.mxu0 %v189
  %361 = vmatprep.subr.mxu0 %v203
  %362 = vmatpush1.msra.mxu0 %v202
  %363 = vmatprep.subr.mxu0 %v216
  %364 = vmatpush1.msra.mxu0 %v215
  %365 = vmatprep.subr.mxu0 0.0
  %366 = vmatpush1.msra.mxu0 0.0
  %367 = vmatprep.subr.mxu0 0.0
  %368 = vmatpush1.msra.mxu0 0.0
  %369 = vmatprep.subr.mxu0 0.0
  %370 = vmatpush1.msra.mxu0 0.0
  %371 = vmatprep.subr.mxu0 0.0
  %372 = vmatpush1.msra.mxu0 0.0
  %373 = vmatprep.subr.mxu0 0.0
  %374 = vmatpush1.msra.mxu0 0.0
  %375 = vmatprep.subr.mxu0 0.0
  %376 = vmatpush1.msra.mxu0 0.0
  %377 = vmatprep.subr.mxu0 0.0
  %378 = vmatpush1.msra.mxu0 0.0
  %379 = vmatprep.subr.mxu0 0.0
  %380 = vmatpush1.msra.mxu0 0.0
  %381 = vmatprep.subr.mxu0 0.0
  %382 = vmatpush1.msra.mxu0 0.0
  %383 = vmatprep.subr.mxu0 0.0
  %384 = vmatpush1.msra.mxu0 0.0
  %385 = vmatprep.subr.mxu0 0.0
  %386 = vmatpush1.msra.mxu0 0.0
  %387 = vmatprep.subr.mxu0 0.0
  %388 = vmatpush1.msra.mxu0 0.0
  %389 = vmatprep.subr.mxu0 0.0
  %390 = vmatpush1.msra.mxu0 0.0
  %391 = vmatprep.subr.mxu0 0.0
  %392 = vmatpush1.msra.mxu0 0.0
  %393 = vmatprep.subr.mxu0 0.0
  %394 = vmatpush1.msra.mxu0 0.0
  %395 = vmatprep.subr.mxu0 0.0
  %396 = vmatpush1.msra.mxu0 0.0
  %397 = vmatprep.mubr.f32.mxu0 0.0
  %398 = vmatmul.mubr.f32.gmra.mrb[0].mxu0 %v11
  %v399 = vpop.f32.mrb[0].mxu0
  %v400 = vadd.f32 0.0, %v399
  %v401 = vpop.f32.mrb[0].mxu0
  %v402 = vadd.f32 0.0, %v401
  %403 = vmatprep.mubr.f32.mxu0 0.0
  %404 = vmatmul.mubr.f32.gmra.mrb[0].mxu0 %v12
  %v405 = vpop.f32.mrb[0].mxu0
  %v406 = vadd.f32 0.0, %v405
  %v407 = vpop.f32.mrb[0].mxu0
  %v408 = vadd.f32 0.0, %v407
  %409 = vmatprep.mubr.f32.mxu0 0.0
  %410 = vmatmul.mubr.f32.gmra.mrb[0].mxu0 %v13
  %v411 = vpop.f32.mrb[0].mxu0
  %v412 = vadd.f32 0.0, %v411
  %v413 = vpop.f32.mrb[0].mxu0
  %v414 = vadd.f32 0.0, %v413
  %415 = vmatprep.mubr.f32.mxu0 0.0
  %416 = vmatmul.mubr.f32.gmra.mrb[0].mxu0 %v14
  %v417 = vpop.f32.mrb[0].mxu0
  %v418 = vadd.f32 0.0, %v417
  %v419 = vpop.f32.mrb[0].mxu0
  %v420 = vadd.f32 0.0, %v419
  %421 = vmatprep.mubr.f32.mxu0 0.0
  %422 = vmatmul.mubr.f32.gmra.mrb[0].mxu0 %v15
  %v423 = vpop.f32.mrb[0].mxu0
  %v424 = vadd.f32 0.0, %v423
  %v425 = vpop.f32.mrb[0].mxu0
  %v426 = vadd.f32 0.0, %v425
  %427 = vmatprep.mubr.f32.mxu0 0.0
  %428 = vmatmul.mubr.f32.gmra.mrb[0].mxu0 %v16
  %v429 = vpop.f32.mrb[0].mxu0
  %v430 = vadd.f32 0.0, %v429
  %v431 = vpop.f32.mrb[0].mxu0
  %v432 = vadd.f32 0.0, %v431
  %433 = vmatprep.mubr.f32.mxu0 0.0
  %434 = vmatmul.mubr.f32.gmra.mrb[0].mxu0 %v17
  %v435 = vpop.f32.mrb[0].mxu0
  %v436 = vadd.f32 0.0, %v435
  %v437 = vpop.f32.mrb[0].mxu0
  %v438 = vadd.f32 0.0, %v437
  %439 = vdwg.mxu0
  %440 = vmatprep.subr.mxu0 %v23
  %441 = vmatpush1.msra.mxu0 %v22
  %442 = vmatprep.subr.mxu0 %v36
  %443 = vmatpush1.msra.mxu0 %v35
  %444 = vmatprep.subr.mxu0 %v49
  %445 = vmatpush1.msra.mxu0 %v48
  %446 = vmatprep.subr.mxu0 %v62
  %447 = vmatpush1.msra.mxu0 %v61
  %448 = vmatprep.subr.mxu0 %v75
  %449 = vmatpush1.msra.mxu0 %v74
  %450 = vmatprep.subr.mxu0 %v88
  %451 = vmatpush1.msra.mxu0 %v87
  %452 = vmatprep.subr.mxu0 %v101
  %453 = vmatpush1.msra.mxu0 %v100
  %454 = vmatprep.subr.mxu0 %v114
  %455 = vmatpush1.msra.mxu0 %v113
  %456 = vmatprep.subr.mxu0 %v127
  %457 = vmatpush1.msra.mxu0 %v126
  %458 = vmatprep.subr.mxu0 %v140
  %459 = vmatpush1.msra.mxu0 %v139
  %460 = vmatprep.subr.mxu0 %v153
  %461 = vmatpush1.msra.mxu0 %v152
  %462 = vmatprep.subr.mxu0 %v166
  %463 = vmatpush1.msra.mxu0 %v165
  %464 = vmatprep.subr.mxu0 %v179
  %465 = vmatpush1.msra.mxu0 %v178
  %466 = vmatprep.subr.mxu0 %v192
  %467 = vmatpush1.msra.mxu0 %v191
  %468 = vmatprep.subr.mxu0 %v205
  %469 = vmatpush1.msra.mxu0 %v204
  %470 = vmatprep.subr.mxu0 %v218
  %471 = vmatpush1.msra.mxu0 %v217
  %472 = vmatprep.subr.mxu0 0.0
  %473 = vmatpush1.msra.mxu0 0.0
  %474 = vmatprep.subr.mxu0 0.0
  %475 = vmatpush1.msra.mxu0 0.0
  %476 = vmatprep.subr.mxu0 0.0
  %477 = vmatpush1.msra.mxu0 0.0
  %478 = vmatprep.subr.mxu0 0.0
  %479 = vmatpush1.msra.mxu0 0.0
  %480 = vmatprep.subr.mxu0 0.0
  %481 = vmatpush1.msra.mxu0 0.0
  %482 = vmatprep.subr.mxu0 0.0
  %483 = vmatpush1.msra.mxu0 0.0
  %484 = vmatprep.subr.mxu0 0.0
  %485 = vmatpush1.msra.mxu0 0.0
  %486 = vmatprep.subr.mxu0 0.0
  %487 = vmatpush1.msra.mxu0 0.0
  %488 = vmatprep.subr.mxu0 0.0
  %489 = vmatpush1.msra.mxu0 0.0
  %490 = vmatprep.subr.mxu0 0.0
  %491 = vmatpush1.msra.mxu0 0.0
  %492 = vmatprep.subr.mxu0 0.0
  %493 = vmatpush1.msra.mxu0 0.0
  %494 = vmatprep.subr.mxu0 0.0
  %495 = vmatpush1.msra.mxu0 0.0
  %496 = vmatprep.subr.mxu0 0.0
  %497 = vmatpush1.msra.mxu0 0.0
  %498 = vmatprep.subr.mxu0 0.0
  %499 = vmatpush1.msra.mxu0 0.0
  %500 = vmatprep.subr.mxu0 0.0
  %501 = vmatpush1.msra.mxu0 0.0
  %502 = vmatprep.subr.mxu0 0.0
  %503 = vmatpush1.msra.mxu0 0.0
  %504 = vmatprep.mubr.f32.mxu0 0.0
  %505 = vmatmul.mubr.f32.gmra.mrb[0].mxu0 %v11
  %v506 = vpop.f32.mrb[0].mxu0
  %v507 = vadd.f32 0.0, %v506
  %v508 = vpop.f32.mrb[0].mxu0
  %v509 = vadd.f32 0.0, %v508
  %510 = vmatprep.mubr.f32.mxu0 0.0
  %511 = vmatmul.mubr.f32.gmra.mrb[0].mxu0 %v12
  %v512 = vpop.f32.mrb[0].mxu0
  %v513 = vadd.f32 0.0, %v512
  %v514 = vpop.f32.mrb[0].mxu0
  %v515 = vadd.f32 0.0, %v514
  %516 = vmatprep.mubr.f32.mxu0 0.0
  %517 = vmatmul.mubr.f32.gmra.mrb[0].mxu0 %v13
  %v518 = vpop.f32.mrb[0].mxu0
  %v519 = vadd.f32 0.0, %v518
  %v520 = vpop.f32.mrb[0].mxu0
  %v521 = vadd.f32 0.0, %v520
  %522 = vmatprep.mubr.f32.mxu0 0.0
  %523 = vmatmul.mubr.f32.gmra.mrb[0].mxu0 %v14
  %v524 = vpop.f32.mrb[0].mxu0
  %v525 = vadd.f32 0.0, %v524
  %v526 = vpop.f32.mrb[0].mxu0
  %v527 = vadd.f32 0.0, %v526
  %528 = vmatprep.mubr.f32.mxu0 0.0
  %529 = vmatmul.mubr.f32.gmra.mrb[0].mxu0 %v15
  %v530 = vpop.f32.mrb[0].mxu0
  %v531 = vadd.f32 0.0, %v530
  %v532 = vpop.f32.mrb[0].mxu0
  %v533 = vadd.f32 0.0, %v532
  %534 = vmatprep.mubr.f32.mxu0 0.0
  %535 = vmatmul.mubr.f32.gmra.mrb[0].mxu0 %v16
  %v536 = vpop.f32.mrb[0].mxu0
  %v537 = vadd.f32 0.0, %v536
  %v538 = vpop.f32.mrb[0].mxu0
  %v539 = vadd.f32 0.0, %v538
  %540 = vmatprep.mubr.f32.mxu0 0.0
  %541 = vmatmul.mubr.f32.gmra.mrb[0].mxu0 %v17
  %v542 = vpop.f32.mrb[0].mxu0
  %v543 = vadd.f32 0.0, %v542
  %v544 = vpop.f32.mrb[0].mxu0
  %v545 = vadd.f32 0.0, %v544
  %546 = vdwg.mxu0
  %547 = vmatprep.subr.mxu0 %v25
  %548 = vmatpush1.msra.mxu0 %v24
  %549 = vmatprep.subr.mxu0 %v38
  %550 = vmatpush1.msra.mxu0 %v37
  %551 = vmatprep.subr.mxu0 %v51
  %552 = vmatpush1.msra.mxu0 %v50
  %553 = vmatprep.subr.mxu0 %v64
  %554 = vmatpush1.msra.mxu0 %v63
  %555 = vmatprep.subr.mxu0 %v77
  %556 = vmatpush1.msra.mxu0 %v76
  %557 = vmatprep.subr.mxu0 %v90
  %558 = vmatpush1.msra.mxu0 %v89
  %559 = vmatprep.subr.mxu0 %v103
  %560 = vmatpush1.msra.mxu0 %v102
  %561 = vmatprep.subr.mxu0 %v116
  %562 = vmatpush1.msra.mxu0 %v115
  %563 = vmatprep.subr.mxu0 %v129
  %564 = vmatpush1.msra.mxu0 %v128
  %565 = vmatprep.subr.mxu0 %v142
  %566 = vmatpush1.msra.mxu0 %v141
  %567 = vmatprep.subr.mxu0 %v155
  %568 = vmatpush1.msra.mxu0 %v154
  %569 = vmatprep.subr.mxu0 %v168
  %570 = vmatpush1.msra.mxu0 %v167
  %571 = vmatprep.subr.mxu0 %v181
  %572 = vmatpush1.msra.mxu0 %v180
  %573 = vmatprep.subr.mxu0 %v194
  %574 = vmatpush1.msra.mxu0 %v193
  %575 = vmatprep.subr.mxu0 %v207
  %576 = vmatpush1.msra.mxu0 %v206
  %577 = vmatprep.subr.mxu0 %v220
  %578 = vmatpush1.msra.mxu0 %v219
  %579 = vmatprep.subr.mxu0 0.0
  %580 = vmatpush1.msra.mxu0 0.0
  %581 = vmatprep.subr.mxu0 0.0
  %582 = vmatpush1.msra.mxu0 0.0
  %583 = vmatprep.subr.mxu0 0.0
  %584 = vmatpush1.msra.mxu0 0.0
  %585 = vmatprep.subr.mxu0 0.0
  %586 = vmatpush1.msra.mxu0 0.0
  %587 = vmatprep.subr.mxu0 0.0
  %588 = vmatpush1.msra.mxu0 0.0
  %589 = vmatprep.subr.mxu0 0.0
  %590 = vmatpush1.msra.mxu0 0.0
  %591 = vmatprep.subr.mxu0 0.0
  %592 = vmatpush1.msra.mxu0 0.0
  %593 = vmatprep.subr.mxu0 0.0
  %594 = vmatpush1.msra.mxu0 0.0
  %595 = vmatprep.subr.mxu0 0.0
  %596 = vmatpush1.msra.mxu0 0.0
  %597 = vmatprep.subr.mxu0 0.0
  %598 = vmatpush1.msra.mxu0 0.0
  %599 = vmatprep.subr.mxu0 0.0
  %600 = vmatpush1.msra.mxu0 0.0
  %601 = vmatprep.subr.mxu0 0.0
  %602 = vmatpush1.msra.mxu0 0.0
  %603 = vmatprep.subr.mxu0 0.0
  %604 = vmatpush1.msra.mxu0 0.0
  %605 = vmatprep.subr.mxu0 0.0
  %606 = vmatpush1.msra.mxu0 0.0
  %607 = vmatprep.subr.mxu0 0.0
  %608 = vmatpush1.msra.mxu0 0.0
  %609 = vmatprep.subr.mxu0 0.0
  %610 = vmatpush1.msra.mxu0 0.0
  %611 = vmatprep.mubr.f32.mxu0 0.0
  %612 = vmatmul.mubr.f32.gmra.mrb[0].mxu0 %v11
  %v613 = vpop.f32.mrb[0].mxu0
  %v614 = vadd.f32 0.0, %v613
  %v615 = vpop.f32.mrb[0].mxu0
  %v616 = vadd.f32 0.0, %v615
  %617 = vmatprep.mubr.f32.mxu0 0.0
  %618 = vmatmul.mubr.f32.gmra.mrb[0].mxu0 %v12
  %v619 = vpop.f32.mrb[0].mxu0
  %v620 = vadd.f32 0.0, %v619
  %v621 = vpop.f32.mrb[0].mxu0
  %v622 = vadd.f32 0.0, %v621
  %623 = vmatprep.mubr.f32.mxu0 0.0
  %624 = vmatmul.mubr.f32.gmra.mrb[0].mxu0 %v13
  %v625 = vpop.f32.mrb[0].mxu0
  %v626 = vadd.f32 0.0, %v625
  %v627 = vpop.f32.mrb[0].mxu0
  %v628 = vadd.f32 0.0, %v627
  %629 = vmatprep.mubr.f32.mxu0 0.0
  %630 = vmatmul.mubr.f32.gmra.mrb[0].mxu0 %v14
  %v631 = vpop.f32.mrb[0].mxu0
  %v632 = vadd.f32 0.0, %v631
  %v633 = vpop.f32.mrb[0].mxu0
  %v634 = vadd.f32 0.0, %v633
  %635 = vmatprep.mubr.f32.mxu0 0.0
  %636 = vmatmul.mubr.f32.gmra.mrb[0].mxu0 %v15
  %v637 = vpop.f32.mrb[0].mxu0
  %v638 = vadd.f32 0.0, %v637
  %v639 = vpop.f32.mrb[0].mxu0
  %v640 = vadd.f32 0.0, %v639
  %641 = vmatprep.mubr.f32.mxu0 0.0
  %642 = vmatmul.mubr.f32.gmra.mrb[0].mxu0 %v16
  %v643 = vpop.f32.mrb[0].mxu0
  %v644 = vadd.f32 0.0, %v643
  %v645 = vpop.f32.mrb[0].mxu0
  %v646 = vadd.f32 0.0, %v645
  %647 = vmatprep.mubr.f32.mxu0 0.0
  %648 = vmatmul.mubr.f32.gmra.mrb[0].mxu0 %v17
  %v649 = vpop.f32.mrb[0].mxu0
  %v650 = vadd.f32 0.0, %v649
  %v651 = vpop.f32.mrb[0].mxu0
  %v652 = vadd.f32 0.0, %v651
  %653 = vdwg.mxu0
  %654 = vmatprep.subr.mxu0 %v27
  %655 = vmatpush1.msra.mxu0 %v26
  %656 = vmatprep.subr.mxu0 %v40
  %657 = vmatpush1.msra.mxu0 %v39
  %658 = vmatprep.subr.mxu0 %v53
  %659 = vmatpush1.msra.mxu0 %v52
  %660 = vmatprep.subr.mxu0 %v66
  %661 = vmatpush1.msra.mxu0 %v65
  %662 = vmatprep.subr.mxu0 %v79
  %663 = vmatpush1.msra.mxu0 %v78
  %664 = vmatprep.subr.mxu0 %v92
  %665 = vmatpush1.msra.mxu0 %v91
  %666 = vmatprep.subr.mxu0 %v105
  %667 = vmatpush1.msra.mxu0 %v104
  %668 = vmatprep.subr.mxu0 %v118
  %669 = vmatpush1.msra.mxu0 %v117
  %670 = vmatprep.subr.mxu0 %v131
  %671 = vmatpush1.msra.mxu0 %v130
  %672 = vmatprep.subr.mxu0 %v144
  %673 = vmatpush1.msra.mxu0 %v143
  %674 = vmatprep.subr.mxu0 %v157
  %675 = vmatpush1.msra.mxu0 %v156
  %676 = vmatprep.subr.mxu0 %v170
  %677 = vmatpush1.msra.mxu0 %v169
  %678 = vmatprep.subr.mxu0 %v183
  %679 = vmatpush1.msra.mxu0 %v182
  %680 = vmatprep.subr.mxu0 %v196
  %681 = vmatpush1.msra.mxu0 %v195
  %682 = vmatprep.subr.mxu0 %v209
  %683 = vmatpush1.msra.mxu0 %v208
  %684 = vmatprep.subr.mxu0 %v222
  %685 = vmatpush1.msra.mxu0 %v221
  %686 = vmatprep.subr.mxu0 0.0
  %687 = vmatpush1.msra.mxu0 0.0
  %688 = vmatprep.subr.mxu0 0.0
  %689 = vmatpush1.msra.mxu0 0.0
  %690 = vmatprep.subr.mxu0 0.0
  %691 = vmatpush1.msra.mxu0 0.0
  %692 = vmatprep.subr.mxu0 0.0
  %693 = vmatpush1.msra.mxu0 0.0
  %694 = vmatprep.subr.mxu0 0.0
  %695 = vmatpush1.msra.mxu0 0.0
  %696 = vmatprep.subr.mxu0 0.0
  %697 = vmatpush1.msra.mxu0 0.0
  %698 = vmatprep.subr.mxu0 0.0
  %699 = vmatpush1.msra.mxu0 0.0
  %700 = vmatprep.subr.mxu0 0.0
  %701 = vmatpush1.msra.mxu0 0.0
  %702 = vmatprep.subr.mxu0 0.0
  %703 = vmatpush1.msra.mxu0 0.0
  %704 = vmatprep.subr.mxu0 0.0
  %705 = vmatpush1.msra.mxu0 0.0
  %706 = vmatprep.subr.mxu0 0.0
  %707 = vmatpush1.msra.mxu0 0.0
  %708 = vmatprep.subr.mxu0 0.0
  %709 = vmatpush1.msra.mxu0 0.0
  %710 = vmatprep.subr.mxu0 0.0
  %711 = vmatpush1.msra.mxu0 0.0
  %712 = vmatprep.subr.mxu0 0.0
  %713 = vmatpush1.msra.mxu0 0.0
  %714 = vmatprep.subr.mxu0 0.0
  %715 = vmatpush1.msra.mxu0 0.0
  %716 = vmatprep.subr.mxu0 0.0
  %717 = vmatpush1.msra.mxu0 0.0
  %718 = vmatprep.mubr.f32.mxu0 0.0
  %719 = vmatmul.mubr.f32.gmra.mrb[0].mxu0 %v11
  %v720 = vpop.f32.mrb[0].mxu0
  %v721 = vadd.f32 0.0, %v720
  %v722 = vpop.f32.mrb[0].mxu0
  %v723 = vadd.f32 0.0, %v722
  %724 = vmatprep.mubr.f32.mxu0 0.0
  %725 = vmatmul.mubr.f32.gmra.mrb[0].mxu0 %v12
  %v726 = vpop.f32.mrb[0].mxu0
  %v727 = vadd.f32 0.0, %v726
  %v728 = vpop.f32.mrb[0].mxu0
  %v729 = vadd.f32 0.0, %v728
  %730 = vmatprep.mubr.f32.mxu0 0.0
  %731 = vmatmul.mubr.f32.gmra.mrb[0].mxu0 %v13
  %v732 = vpop.f32.mrb[0].mxu0
  %v733 = vadd.f32 0.0, %v732
  %v734 = vpop.f32.mrb[0].mxu0
  %v735 = vadd.f32 0.0, %v734
  %736 = vmatprep.mubr.f32.mxu0 0.0
  %737 = vmatmul.mubr.f32.gmra.mrb[0].mxu0 %v14
  %v738 = vpop.f32.mrb[0].mxu0
  %v739 = vadd.f32 0.0, %v738
  %v740 = vpop.f32.mrb[0].mxu0
  %v741 = vadd.f32 0.0, %v740
  %742 = vmatprep.mubr.f32.mxu0 0.0
  %743 = vmatmul.mubr.f32.gmra.mrb[0].mxu0 %v15
  %v744 = vpop.f32.mrb[0].mxu0
  %v745 = vadd.f32 0.0, %v744
  %v746 = vpop.f32.mrb[0].mxu0
  %v747 = vadd.f32 0.0, %v746
  %748 = vmatprep.mubr.f32.mxu0 0.0
  %749 = vmatmul.mubr.f32.gmra.mrb[0].mxu0 %v16
  %v750 = vpop.f32.mrb[0].mxu0
  %v751 = vadd.f32 0.0, %v750
  %v752 = vpop.f32.mrb[0].mxu0
  %v753 = vadd.f32 0.0, %v752
  %754 = vmatprep.mubr.f32.mxu0 0.0
  %755 = vmatmul.mubr.f32.gmra.mrb[0].mxu0 %v17
  %v756 = vpop.f32.mrb[0].mxu0
  %v757 = vadd.f32 0.0, %v756
  %v758 = vpop.f32.mrb[0].mxu0
  %v759 = vadd.f32 0.0, %v758
  %760 = vdwg.mxu0
  %761 = vmatprep.subr.mxu0 %v29
  %762 = vmatpush1.msra.mxu0 %v28
  %763 = vmatprep.subr.mxu0 %v42
  %764 = vmatpush1.msra.mxu0 %v41
  %765 = vmatprep.subr.mxu0 %v55
  %766 = vmatpush1.msra.mxu0 %v54
  %767 = vmatprep.subr.mxu0 %v68
  %768 = vmatpush1.msra.mxu0 %v67
  %769 = vmatprep.subr.mxu0 %v81
  %770 = vmatpush1.msra.mxu0 %v80
  %771 = vmatprep.subr.mxu0 %v94
  %772 = vmatpush1.msra.mxu0 %v93
  %773 = vmatprep.subr.mxu0 %v107
  %774 = vmatpush1.msra.mxu0 %v106
  %775 = vmatprep.subr.mxu0 %v120
  %776 = vmatpush1.msra.mxu0 %v119
  %777 = vmatprep.subr.mxu0 %v133
  %778 = vmatpush1.msra.mxu0 %v132
  %779 = vmatprep.subr.mxu0 %v146
  %780 = vmatpush1.msra.mxu0 %v145
  %781 = vmatprep.subr.mxu0 %v159
  %782 = vmatpush1.msra.mxu0 %v158
  %783 = vmatprep.subr.mxu0 %v172
  %784 = vmatpush1.msra.mxu0 %v171
  %785 = vmatprep.subr.mxu0 %v185
  %786 = vmatpush1.msra.mxu0 %v184
  %787 = vmatprep.subr.mxu0 %v198
  %788 = vmatpush1.msra.mxu0 %v197
  %789 = vmatprep.subr.mxu0 %v211
  %790 = vmatpush1.msra.mxu0 %v210
  %791 = vmatprep.subr.mxu0 %v224
  %792 = vmatpush1.msra.mxu0 %v223
  %793 = vmatprep.subr.mxu0 0.0
  %794 = vmatpush1.msra.mxu0 0.0
  %795 = vmatprep.subr.mxu0 0.0
  %796 = vmatpush1.msra.mxu0 0.0
  %797 = vmatprep.subr.mxu0 0.0
  %798 = vmatpush1.msra.mxu0 0.0
  %799 = vmatprep.subr.mxu0 0.0
  %800 = vmatpush1.msra.mxu0 0.0
  %801 = vmatprep.subr.mxu0 0.0
  %802 = vmatpush1.msra.mxu0 0.0
  %803 = vmatprep.subr.mxu0 0.0
  %804 = vmatpush1.msra.mxu0 0.0
  %805 = vmatprep.subr.mxu0 0.0
  %806 = vmatpush1.msra.mxu0 0.0
  %807 = vmatprep.subr.mxu0 0.0
  %808 = vmatpush1.msra.mxu0 0.0
  %809 = vmatprep.subr.mxu0 0.0
  %810 = vmatpush1.msra.mxu0 0.0
  %811 = vmatprep.subr.mxu0 0.0
  %812 = vmatpush1.msra.mxu0 0.0
  %813 = vmatprep.subr.mxu0 0.0
  %814 = vmatpush1.msra.mxu0 0.0
  %815 = vmatprep.subr.mxu0 0.0
  %816 = vmatpush1.msra.mxu0 0.0
  %817 = vmatprep.subr.mxu0 0.0
  %818 = vmatpush1.msra.mxu0 0.0
  %819 = vmatprep.subr.mxu0 0.0
  %820 = vmatpush1.msra.mxu0 0.0
  %821 = vmatprep.subr.mxu0 0.0
  %822 = vmatpush1.msra.mxu0 0.0
  %823 = vmatprep.subr.mxu0 0.0
  %824 = vmatpush1.msra.mxu0 0.0
  %825 = vmatprep.mubr.f32.mxu0 0.0
  %826 = vmatmul.mubr.f32.gmra.mrb[0].mxu0 %v11
  %v827 = vpop.f32.mrb[0].mxu0
  %v828 = vadd.f32 0.0, %v827
  %v829 = vpop.f32.mrb[0].mxu0
  %v830 = vadd.f32 0.0, %v829
  %831 = vmatprep.mubr.f32.mxu0 0.0
  %832 = vmatmul.mubr.f32.gmra.mrb[0].mxu0 %v12
  %v833 = vpop.f32.mrb[0].mxu0
  %v834 = vadd.f32 0.0, %v833
  %v835 = vpop.f32.mrb[0].mxu0
  %v836 = vadd.f32 0.0, %v835
  %837 = vmatprep.mubr.f32.mxu0 0.0
  %838 = vmatmul.mubr.f32.gmra.mrb[0].mxu0 %v13
  %v839 = vpop.f32.mrb[0].mxu0
  %v840 = vadd.f32 0.0, %v839
  %v841 = vpop.f32.mrb[0].mxu0
  %v842 = vadd.f32 0.0, %v841
  %843 = vmatprep.mubr.f32.mxu0 0.0
  %844 = vmatmul.mubr.f32.gmra.mrb[0].mxu0 %v14
  %v845 = vpop.f32.mrb[0].mxu0
  %v846 = vadd.f32 0.0, %v845
  %v847 = vpop.f32.mrb[0].mxu0
  %v848 = vadd.f32 0.0, %v847
  %849 = vmatprep.mubr.f32.mxu0 0.0
  %850 = vmatmul.mubr.f32.gmra.mrb[0].mxu0 %v15
  %v851 = vpop.f32.mrb[0].mxu0
  %v852 = vadd.f32 0.0, %v851
  %v853 = vpop.f32.mrb[0].mxu0
  %v854 = vadd.f32 0.0, %v853
  %855 = vmatprep.mubr.f32.mxu0 0.0
  %856 = vmatmul.mubr.f32.gmra.mrb[0].mxu0 %v16
  %v857 = vpop.f32.mrb[0].mxu0
  %v858 = vadd.f32 0.0, %v857
  %v859 = vpop.f32.mrb[0].mxu0
  %v860 = vadd.f32 0.0, %v859
  %861 = vmatprep.mubr.f32.mxu0 0.0
  %862 = vmatmul.mubr.f32.gmra.mrb[0].mxu0 %v17
  %v863 = vpop.f32.mrb[0].mxu0
  %v864 = vadd.f32 0.0, %v863
  %v865 = vpop.f32.mrb[0].mxu0
  %v866 = vadd.f32 0.0, %v865
  %867 = vdwg.mxu0
  %868 = vmatprep.subr.mxu0 0.0
  %869 = vmatpush1.msra.mxu0 %v30
  %870 = vmatprep.subr.mxu0 0.0
  %871 = vmatpush1.msra.mxu0 %v43
  %872 = vmatprep.subr.mxu0 0.0
  %873 = vmatpush1.msra.mxu0 %v56
  %874 = vmatprep.subr.mxu0 0.0
  %875 = vmatpush1.msra.mxu0 %v69
  %876 = vmatprep.subr.mxu0 0.0
  %877 = vmatpush1.msra.mxu0 %v82
  %878 = vmatprep.subr.mxu0 0.0
  %879 = vmatpush1.msra.mxu0 %v95
  %880 = vmatprep.subr.mxu0 0.0
  %881 = vmatpush1.msra.mxu0 %v108
  %882 = vmatprep.subr.mxu0 0.0
  %883 = vmatpush1.msra.mxu0 %v121
  %884 = vmatprep.subr.mxu0 0.0
  %885 = vmatpush1.msra.mxu0 %v134
  %886 = vmatprep.subr.mxu0 0.0
  %887 = vmatpush1.msra.mxu0 %v147
  %888 = vmatprep.subr.mxu0 0.0
  %889 = vmatpush1.msra.mxu0 %v160
  %890 = vmatprep.subr.mxu0 0.0
  %891 = vmatpush1.msra.mxu0 %v173
  %892 = vmatprep.subr.mxu0 0.0
  %893 = vmatpush1.msra.mxu0 %v186
  %894 = vmatprep.subr.mxu0 0.0
  %895 = vmatpush1.msra.mxu0 %v199
  %896 = vmatprep.subr.mxu0 0.0
  %897 = vmatpush1.msra.mxu0 %v212
  %898 = vmatprep.subr.mxu0 0.0
  %899 = vmatpush1.msra.mxu0 %v225
  %900 = vmatprep.subr.mxu0 0.0
  %901 = vmatpush1.msra.mxu0 0.0
  %902 = vmatprep.subr.mxu0 0.0
  %903 = vmatpush1.msra.mxu0 0.0
  %904 = vmatprep.subr.mxu0 0.0
  %905 = vmatpush1.msra.mxu0 0.0
  %906 = vmatprep.subr.mxu0 0.0
  %907 = vmatpush1.msra.mxu0 0.0
  %908 = vmatprep.subr.mxu0 0.0
  %909 = vmatpush1.msra.mxu0 0.0
  %910 = vmatprep.subr.mxu0 0.0
  %911 = vmatpush1.msra.mxu0 0.0
  %912 = vmatprep.subr.mxu0 0.0
  %913 = vmatpush1.msra.mxu0 0.0
  %914 = vmatprep.subr.mxu0 0.0
  %915 = vmatpush1.msra.mxu0 0.0
  %916 = vmatprep.subr.mxu0 0.0
  %917 = vmatpush1.msra.mxu0 0.0
  %918 = vmatprep.subr.mxu0 0.0
  %919 = vmatpush1.msra.mxu0 0.0
  %920 = vmatprep.subr.mxu0 0.0
  %921 = vmatpush1.msra.mxu0 0.0
  %922 = vmatprep.subr.mxu0 0.0
  %923 = vmatpush1.msra.mxu0 0.0
  %924 = vmatprep.subr.mxu0 0.0
  %925 = vmatpush1.msra.mxu0 0.0
  %926 = vmatprep.subr.mxu0 0.0
  %927 = vmatpush1.msra.mxu0 0.0
  %928 = vmatprep.subr.mxu0 0.0
  %929 = vmatpush1.msra.mxu0 0.0
  %930 = vmatprep.subr.mxu0 0.0
  %931 = vmatpush1.msra.mxu0 0.0
  %932 = vmatprep.mubr.f32.mxu0 0.0
  %933 = vmatmul.mubr.f32.gmra.mrb[0].mxu0 %v11
  %v934 = vpop.f32.mrb[0].mxu0
  %v935 = vadd.f32 0.0, %v934
  %v936 = vpop.f32.mrb[0].mxu0
  %937 = vmatprep.mubr.f32.mxu0 0.0
  %938 = vmatmul.mubr.f32.gmra.mrb[0].mxu0 %v12
  %v939 = vpop.f32.mrb[0].mxu0
  %v940 = vadd.f32 0.0, %v939
  %v941 = vpop.f32.mrb[0].mxu0
  %942 = vmatprep.mubr.f32.mxu0 0.0
  %943 = vmatmul.mubr.f32.gmra.mrb[0].mxu0 %v13
  %v944 = vpop.f32.mrb[0].mxu0
  %v945 = vadd.f32 0.0, %v944
  %v946 = vpop.f32.mrb[0].mxu0
  %947 = vmatprep.mubr.f32.mxu0 0.0
  %948 = vmatmul.mubr.f32.gmra.mrb[0].mxu0 %v14
  %v949 = vpop.f32.mrb[0].mxu0
  %v950 = vadd.f32 0.0, %v949
  %v951 = vpop.f32.mrb[0].mxu0
  %952 = vmatprep.mubr.f32.mxu0 0.0
  %953 = vmatmul.mubr.f32.gmra.mrb[0].mxu0 %v15
  %v954 = vpop.f32.mrb[0].mxu0
  %v955 = vadd.f32 0.0, %v954
  %v956 = vpop.f32.mrb[0].mxu0
  %957 = vmatprep.mubr.f32.mxu0 0.0
  %958 = vmatmul.mubr.f32.gmra.mrb[0].mxu0 %v16
  %v959 = vpop.f32.mrb[0].mxu0
  %v960 = vadd.f32 0.0, %v959
  %v961 = vpop.f32.mrb[0].mxu0
  %962 = vmatprep.mubr.f32.mxu0 0.0
  %963 = vmatmul.mubr.f32.gmra.mrb[0].mxu0 %v17
  %v964 = vpop.f32.mrb[0].mxu0
  %v965 = vadd.f32 0.0, %v964
  %v966 = vpop.f32.mrb[0].mxu0
  %967 = vdwg.mxu0
  %968 = vst [vmem:[%s2] sm:$0xff] %v293
  %969 = vst [vmem:[%s2 + $0x8] sm:$0xff] %v295
  %970 = vst [vmem:[%s2 + $0x10] sm:$0xff] %v400
  %971 = vst [vmem:[%s2 + $0x18] sm:$0xff] %v402
  %972 = vst [vmem:[%s2 + $0x20] sm:$0xff] %v507
  %973 = vst [vmem:[%s2 + $0x28] sm:$0xff] %v509
  %974 = vst [vmem:[%s2 + $0x30] sm:$0xff] %v614
  %975 = vst [vmem:[%s2 + $0x38] sm:$0xff] %v616
  %976 = vst [vmem:[%s2 + $0x40] sm:$0xff] %v721
  %977 = vst [vmem:[%s2 + $0x48] sm:$0xff] %v723
  %978 = vst [vmem:[%s2 + $0x50] sm:$0xff] %v828
  %979 = vst [vmem:[%s2 + $0x58] sm:$0xff] %v830
  %980 = vst [vmem:[%s2 + $0x60] sm:$0xff] %v935
  %981 = vst [vmem:[%s2 + $0x68] sm:$0xff] %v299
  %982 = vst [vmem:[%s2 + $0x70] sm:$0xff] %v301
  %983 = vst [vmem:[%s2 + $0x78] sm:$0xff] %v406
  %984 = vst [vmem:[%s2 + $0x80] sm:$0xff] %v408
  %985 = vst [vmem:[%s2 + $0x88] sm:$0xff] %v513
  %986 = vst [vmem:[%s2 + $0x90] sm:$0xff] %v515
  %987 = vst [vmem:[%s2 + $0x98] sm:$0xff] %v620
  %988 = vst [vmem:[%s2 + $0xa0] sm:$0xff] %v622
  %989 = vst [vmem:[%s2 + $0xa8] sm:$0xff] %v727
  %990 = vst [vmem:[%s2 + $0xb0] sm:$0xff] %v729
  %991 = vst [vmem:[%s2 + $0xb8] sm:$0xff] %v834
  %992 = vst [vmem:[%s2 + $0xc0] sm:$0xff] %v836
  %993 = vst [vmem:[%s2 + $0xc8] sm:$0xff] %v940
  %994 = vst [vmem:[%s2 + $0xd0] sm:$0xff] %v305
  %995 = vst [vmem:[%s2 + $0xd8] sm:$0xff] %v307
  %996 = vst [vmem:[%s2 + $0xe0] sm:$0xff] %v412
  %997 = vst [vmem:[%s2 + $0xe8] sm:$0xff] %v414
  %998 = vst [vmem:[%s2 + $0xf0] sm:$0xff] %v519
  %999 = vst [vmem:[%s2 + $0xf8] sm:$0xff] %v521
  %1000 = vst [vmem:[%s2 + $0x100] sm:$0xff] %v626
  %1001 = vst [vmem:[%s2 + $0x108] sm:$0xff] %v628
  %1002 = vst [vmem:[%s2 + $0x110] sm:$0xff] %v733
  %1003 = vst [vmem:[%s2 + $0x118] sm:$0xff] %v735
  %1004 = vst [vmem:[%s2 + $0x120] sm:$0xff] %v840
  %1005 = vst [vmem:[%s2 + $0x128] sm:$0xff] %v842
  %1006 = vst [vmem:[%s2 + $0x130] sm:$0xff] %v945
  %1007 = vst [vmem:[%s2 + $0x138] sm:$0xff] %v311
  %1008 = vst [vmem:[%s2 + $0x140] sm:$0xff] %v313
  %1009 = vst [vmem:[%s2 + $0x148] sm:$0xff] %v418
  %1010 = vst [vmem:[%s2 + $0x150] sm:$0xff] %v420
  %1011 = vst [vmem:[%s2 + $0x158] sm:$0xff] %v525
  %1012 = vst [vmem:[%s2 + $0x160] sm:$0xff] %v527
  %1013 = vst [vmem:[%s2 + $0x168] sm:$0xff] %v632
  %1014 = vst [vmem:[%s2 + $0x170] sm:$0xff] %v634
  %1015 = vst [vmem:[%s2 + $0x178] sm:$0xff] %v739
  %1016 = vst [vmem:[%s2 + $0x180] sm:$0xff] %v741
  %1017 = vst [vmem:[%s2 + $0x188] sm:$0xff] %v846
  %1018 = vst [vmem:[%s2 + $0x190] sm:$0xff] %v848
  %1019 = vst [vmem:[%s2 + $0x198] sm:$0xff] %v950
  %1020 = vst [vmem:[%s2 + $0x1a0] sm:$0xff] %v317
  %1021 = vst [vmem:[%s2 + $0x1a8] sm:$0xff] %v319
  %1022 = vst [vmem:[%s2 + $0x1b0] sm:$0xff] %v424
  %1023 = vst [vmem:[%s2 + $0x1b8] sm:$0xff] %v426
  %1024 = vst [vmem:[%s2 + $0x1c0] sm:$0xff] %v531
  %1025 = vst [vmem:[%s2 + $0x1c8] sm:$0xff] %v533
  %1026 = vst [vmem:[%s2 + $0x1d0] sm:$0xff] %v638
  %1027 = vst [vmem:[%s2 + $0x1d8] sm:$0xff] %v640
  %1028 = vst [vmem:[%s2 + $0x1e0] sm:$0xff] %v745
  %1029 = vst [vmem:[%s2 + $0x1e8] sm:$0xff] %v747
  %1030 = vst [vmem:[%s2 + $0x1f0] sm:$0xff] %v852
  %1031 = vst [vmem:[%s2 + $0x1f8] sm:$0xff] %v854
  %1032 = vst [vmem:[%s2 + $0x200] sm:$0xff] %v955
  %1033 = vst [vmem:[%s2 + $0x208] sm:$0xff] %v323
  %1034 = vst [vmem:[%s2 + $0x210] sm:$0xff] %v325
  %1035 = vst [vmem:[%s2 + $0x218] sm:$0xff] %v430
  %1036 = vst [vmem:[%s2 + $0x220] sm:$0xff] %v432
  %1037 = vst [vmem:[%s2 + $0x228] sm:$0xff] %v537
  %1038 = vst [vmem:[%s2 + $0x230] sm:$0xff] %v539
  %1039 = vst [vmem:[%s2 + $0x238] sm:$0xff] %v644
  %1040 = vst [vmem:[%s2 + $0x240] sm:$0xff] %v646
  %1041 = vst [vmem:[%s2 + $0x248] sm:$0xff] %v751
  %1042 = vst [vmem:[%s2 + $0x250] sm:$0xff] %v753
  %1043 = vst [vmem:[%s2 + $0x258] sm:$0xff] %v858
  %1044 = vst [vmem:[%s2 + $0x260] sm:$0xff] %v860
  %1045 = vst [vmem:[%s2 + $0x268] sm:$0xff] %v960
  %1046 = vst [vmem:[%s2 + $0x270] sm:$0xff] %v329
  %1047 = vst [vmem:[%s2 + $0x278] sm:$0xff] %v331
  %1048 = vst [vmem:[%s2 + $0x280] sm:$0xff] %v436
  %1049 = vst [vmem:[%s2 + $0x288] sm:$0xff] %v438
  %1050 = vst [vmem:[%s2 + $0x290] sm:$0xff] %v543
  %1051 = vst [vmem:[%s2 + $0x298] sm:$0xff] %v545
  %1052 = vst [vmem:[%s2 + $0x2a0] sm:$0xff] %v650
  %1053 = vst [vmem:[%s2 + $0x2a8] sm:$0xff] %v652
  %1054 = vst [vmem:[%s2 + $0x2b0] sm:$0xff] %v757
  %1055 = vst [vmem:[%s2 + $0x2b8] sm:$0xff] %v759
  %1056 = vst [vmem:[%s2 + $0x2c0] sm:$0xff] %v864
  %1057 = vst [vmem:[%s2 + $0x2c8] sm:$0xff] %v866
  %1058 = vst [vmem:[%s2 + $0x2d0] sm:$0xff] %v965
  // Predicated region
  $region10: #{decoder_forward.5} parent=0 // pred_check
    _
  $region11: #{decoder_forward.5} parent=0 // pred_check_branch
    %1060 = sbr.rel (0) target = $region13
  $region12: #{decoder_forward.5} parent=0 // pred_region
    _
  $region13: #{decoder_forward.5} parent=0 // pred_fallthru
    _
  // Predicated region
  $region14: #{decoder_forward.5} parent=0 // pred_check
    _
  $region15: #{decoder_forward.5} parent=0 // pred_check_branch
    %1062 = sbr.rel (0) target = $region17
  $region16: #{decoder_forward.5} parent=0 // pred_region
    _
  $region17: #{decoder_forward.5} parent=0 // pred_fallthru
    _

// kernel: decoder_forward.4
$region0: #{decoder_forward.4}
  #allocation0 [shape = 'u32[]', space=smem, size = 0x4, offset = 0x4, fixed_abs, tag = 'smem constant byte address 0x4 - core index']
  #allocation1 [shape = 'u32[144,128]{1,0:T(1,128)}', space=vmem, size = 0x12000, scoped, tag = 'internal scratch']
  #allocation2 [shape = 'f32[8,1024]{1,0:T(8,128)}', space=vmem, size = 0x8000, scoped, tag = 'scratch operand']
  #allocation3 [shape = 'f32[8,3200]{1,0:T(8,128)}', space=vmem, size = 0x19000, scoped, tag = 'scratch operand']
  %s0 = inlined_call_operand.vmem [shape: f32[8,256], index: 0, kind: input, shape index: {}]
  %s1 = inlined_call_operand.vmem [shape: f32[256,1024], index: 1, kind: input, shape index: {}]
  %s2 = inlined_call_operand.vmem [shape: f32[1,1024], index: 2, kind: input, shape index: {}]
  %s3 = inlined_call_operand.vmem [shape: f32[1024,3200], index: 3, kind: input, shape index: {}]
  %s4 = inlined_call_operand.vmem [shape: f32[1,3200], index: 4, kind: input, shape index: {}]
  %s5 = inlined_call_operand.vmem [shape: f32[8,3200], index: 5, kind: output, shape index: {}]
  %s6 = sld [smem:[#allocation0]]
  $region61: #{decoder_forward.4} parent=0
    _
  %s8 = ssub.s32 1, %s6
  %s9 = scalar_select 0, %s8, %s6
  loop: start=0, step=1, limit=4
  $region2: #{decoder_forward.4} parent=0 // loop_pre_header
    _
  $region3: #{decoder_forward.4} parent=0 // loop_header
    %s11 = sphi 0, %s15
    %p12 = scmp.ge.s32.totalorder %s11, 4
    %s19 = sphi 0, %s19
    %s21 = sphi 0, %s19
    %s22 = sphi 0, %s21
    %s36 = sphi 0, %s22
    %s40 = sphi 0, %s40
    %s42 = sphi 0, %s40
    %s43 = sphi 0, %s42
    %s57 = sphi 0, %s43
    %s61 = sphi 0, %s61
    %s63 = sphi 0, %s61
    %s64 = sphi 0, %s63
    %s78 = sphi 0, %s64
    %s84 = sphi 0, %s86
    %s87 = sphi 0, %s84
    %s88 = sphi 0, %s87
    %s104 = sphi 0, %s88
    %s108 = sphi 0, %s108
    %s110 = sphi 0, %s108
    %s111 = sphi 0, %s110
    %s125 = sphi 0, %s111
    %s129 = sphi 0, %s129
    %s131 = sphi 0, %s129
    %s132 = sphi 0, %s131
    %s146 = sphi 0, %s132
  $region4: #{decoder_forward.4} parent=0 // loop_header_branch
    %14 = sbr.rel (%p12) target = $region8
  $region5: #{decoder_forward.4} parent=0 // loop_body
    %s16 = ssub.s32 %s11, 1
    %s17 = ssub.s32 %s11, 2
    %s18 = sadd.s32 %s11, 1
    %s20 = sadd.s32 %s19, 1
    %p23 = scmp.eq.s32.totalorder %s11, 1
    %p24 = scmp.ne.s32.totalorder %s19, %s21
    %p25 = scmp.eq.s32.totalorder %s11, 0
    %p26 = por %p24, %p25
    %p27 = scmp.ne.s32.totalorder %s19, %s21
    %p28 = scmp.eq.s32.totalorder %s16, 1
    %p29 = por %p27, %p28
    %p30 = scmp.ne.s32.totalorder %s21, %s22
    %p31 = scmp.eq.s32.totalorder %s16, 0
    %p32 = por %p30, %p31
    %p33 = scmp.ne.s32.totalorder %s21, %s22
    %p34 = scmp.eq.s32.totalorder %s17, 1
    %p35 = por %p33, %p34
    %p37 = scmp.ne.s32.totalorder %s22, %s36
    %p38 = scmp.eq.s32.totalorder %s17, 0
    %p39 = por %p37, %p38
    %s41 = sadd.s32 %s40, 1
    %p44 = scmp.eq.s32.totalorder %s11, 1
    %p45 = scmp.ne.s32.totalorder %s40, %s42
    %p46 = scmp.eq.s32.totalorder %s11, 0
    %p47 = por %p45, %p46
    %p48 = scmp.ne.s32.totalorder %s40, %s42
    %p49 = scmp.eq.s32.totalorder %s16, 1
    %p50 = por %p48, %p49
    %p51 = scmp.ne.s32.totalorder %s42, %s43
    %p52 = scmp.eq.s32.totalorder %s16, 0
    %p53 = por %p51, %p52
    %p54 = scmp.ne.s32.totalorder %s42, %s43
    %p55 = scmp.eq.s32.totalorder %s17, 1
    %p56 = por %p54, %p55
    %p58 = scmp.ne.s32.totalorder %s43, %s57
    %p59 = scmp.eq.s32.totalorder %s17, 0
    %p60 = por %p58, %p59
    %s62 = sadd.s32 %s61, 1
    %p65 = scmp.eq.s32.totalorder %s11, 1
    %p66 = scmp.ne.s32.totalorder %s61, %s63
    %p67 = scmp.eq.s32.totalorder %s11, 0
    %p68 = por %p66, %p67
    %p69 = scmp.ne.s32.totalorder %s61, %s63
    %p70 = scmp.eq.s32.totalorder %s16, 1
    %p71 = por %p69, %p70
    %p72 = scmp.ne.s32.totalorder %s63, %s64
    %p73 = scmp.eq.s32.totalorder %s16, 0
    %p74 = por %p72, %p73
    %p75 = scmp.ne.s32.totalorder %s63, %s64
    %p76 = scmp.eq.s32.totalorder %s17, 1
    %p77 = por %p75, %p76
    %p79 = scmp.ne.s32.totalorder %s64, %s78
    %p80 = scmp.eq.s32.totalorder %s17, 0
    %p81 = por %p79, %p80
    %s82 = ssub.s32 %s11, %s18
    %p83 = scmp.eq.s32.totalorder %s82, 0
    %s85 = sadd.s32 %s84, 1
    %s86 = scalar_select %p83, %s84, %s85
    %p89 = pneg %p83
    %p90 = scmp.eq.s32.totalorder %s11, 1
    %p91 = por %p89, %p90
    %p92 = scmp.ne.s32.totalorder %s84, %s87
    %p93 = scmp.eq.s32.totalorder %s11, 0
    %p94 = por %p92, %p93
    %p95 = scmp.ne.s32.totalorder %s84, %s87
    %p96 = scmp.eq.s32.totalorder %s16, 1
    %p97 = por %p95, %p96
    %p98 = scmp.ne.s32.totalorder %s87, %s88
    %p99 = scmp.eq.s32.totalorder %s16, 0
    %p100 = por %p98, %p99
    %p101 = scmp.ne.s32.totalorder %s87, %s88
    %p102 = scmp.eq.s32.totalorder %s17, 1
    %p103 = por %p101, %p102
    %p105 = scmp.ne.s32.totalorder %s88, %s104
    %p106 = scmp.eq.s32.totalorder %s17, 0
    %p107 = por %p105, %p106
    %s109 = sadd.s32 %s108, 1
    %p112 = scmp.eq.s32.totalorder %s11, 1
    %p113 = scmp.ne.s32.totalorder %s108, %s110
    %p114 = scmp.eq.s32.totalorder %s11, 0
    %p115 = por %p113, %p114
    %p116 = scmp.ne.s32.totalorder %s108, %s110
    %p117 = scmp.eq.s32.totalorder %s16, 1
    %p118 = por %p116, %p117
    %p119 = scmp.ne.s32.totalorder %s110, %s111
    %p120 = scmp.eq.s32.totalorder %s16, 0
    %p121 = por %p119, %p120
    %p122 = scmp.ne.s32.totalorder %s110, %s111
    %p123 = scmp.eq.s32.totalorder %s17, 1
    %p124 = por %p122, %p123
    %p126 = scmp.ne.s32.totalorder %s111, %s125
    %p127 = scmp.eq.s32.totalorder %s17, 0
    %p128 = por %p126, %p127
    %s130 = sadd.s32 %s129, 1
    %p133 = scmp.eq.s32.totalorder %s11, 1
    %p134 = scmp.ne.s32.totalorder %s129, %s131
    %p135 = scmp.eq.s32.totalorder %s11, 0
    %p136 = por %p134, %p135
    %p137 = scmp.ne.s32.totalorder %s129, %s131
    %p138 = scmp.eq.s32.totalorder %s16, 1
    %p139 = por %p137, %p138
    %p140 = scmp.ne.s32.totalorder %s131, %s132
    %p141 = scmp.eq.s32.totalorder %s16, 0
    %p142 = por %p140, %p141
    %p143 = scmp.ne.s32.totalorder %s131, %s132
    %p144 = scmp.eq.s32.totalorder %s17, 1
    %p145 = por %p143, %p144
    %p147 = scmp.ne.s32.totalorder %s132, %s146
    %p148 = scmp.eq.s32.totalorder %s17, 0
    %p149 = por %p147, %p148
    %p150 = scmp.le.s32.totalorder 1, %s11
    %p151 = scmp.lt.s32.totalorder %s11, 3
    %p152 = pnand %p150, %p151
    %p153 = pneg %p152
    // Predicated region
    $region9: #{decoder_forward.4} parent=5 // pred_check
      _
    $region10: #{decoder_forward.4} parent=5 // pred_check_branch
      %155 = sbr.rel (%p152) target = $region12
    $region11: #{decoder_forward.4} parent=5 // pred_region
      %s156 = ssub.s32 %s11, 1
      // Predicated region
      $region13: #{decoder_forward.4} parent=11 // pred_check
        %p157 = pneg %p32
      $region14: #{decoder_forward.4} parent=11 // pred_check_branch
        %159 = sbr.rel (%p157) target = $region16
      $region15: #{decoder_forward.4} parent=11 // pred_region
        _
      $region16: #{decoder_forward.4} parent=11 // pred_fallthru
        _
      // Predicated region
      $region17: #{decoder_forward.4} parent=11 // pred_check
        %p160 = pneg %p53
      $region18: #{decoder_forward.4} parent=11 // pred_check_branch
        %162 = sbr.rel (%p160) target = $region20
      $region19: #{decoder_forward.4} parent=11 // pred_region
        _
      $region20: #{decoder_forward.4} parent=11 // pred_fallthru
        _
      // Predicated region
      $region21: #{decoder_forward.4} parent=11 // pred_check
        %p163 = pneg %p74
      $region22: #{decoder_forward.4} parent=11 // pred_check_branch
        %165 = sbr.rel (%p163) target = $region24
      $region23: #{decoder_forward.4} parent=11 // pred_region
        _
      $region24: #{decoder_forward.4} parent=11 // pred_fallthru
        _
      // Predicated region
      $region25: #{decoder_forward.4} parent=11 // pred_check
        %p166 = pneg %p121
      $region26: #{decoder_forward.4} parent=11 // pred_check_branch
        %168 = sbr.rel (%p166) target = $region28
      $region27: #{decoder_forward.4} parent=11 // pred_region
        _
      $region28: #{decoder_forward.4} parent=11 // pred_fallthru
        _
    $region12: #{decoder_forward.4} parent=5 // pred_fallthru
      _
    %p169 = scmp.lt.s32.totalorder %s11, 2
    // Predicated region
    $region29: #{decoder_forward.4} parent=5 // pred_check
      %p170 = pneg %p169
    $region30: #{decoder_forward.4} parent=5 // pred_check_branch
      %172 = sbr.rel (%p170) target = $region32
    $region31: #{decoder_forward.4} parent=5 // pred_region
      // Predicated region
      $region33: #{decoder_forward.4} parent=31 // pred_check
        %p173 = pneg %p94
      $region34: #{decoder_forward.4} parent=31 // pred_check_branch
        %175 = sbr.rel (%p173) target = $region36
      $region35: #{decoder_forward.4} parent=31 // pred_region
        %s176 = smul.u32 64, %s11
        %p177 = scmp.lt.s32.totalorder %s176, 127
        %s178 = scalar_select %p177, %s176, 127
        %s179 = smul.addr %s178, 25
        %s180 = smul.addr %s179, 8
        %s181 = scalar_lea.vmem %s3, %s180
        %s182 = smul.u32 64, %s11
      $region36: #{decoder_forward.4} parent=31 // pred_fallthru
        _
    $region32: #{decoder_forward.4} parent=5 // pred_fallthru
      _
    %p183 = scmp.le.s32.totalorder 1, %s11
    %p184 = scmp.lt.s32.totalorder %s11, 3
    %p185 = pnand %p183, %p184
    %p186 = pneg %p185
    // Predicated region
    $region37: #{decoder_forward.4} parent=5 // pred_check
      _
    $region38: #{decoder_forward.4} parent=5 // pred_check_branch
      %188 = sbr.rel (%p185) target = $region40
    $region39: #{decoder_forward.4} parent=5 // pred_region
      %s189 = ssub.s32 %s11, 1
      %p190 = pneg %p32
      %p191 = pneg %p29
      %p192 = pneg %p53
      %p193 = pneg %p50
      %p194 = pneg %p74
      %p195 = pneg %p71
      %s196 = smul.u32 64, %s16
      %p197 = scmp.lt.s32.totalorder %s196, 127
      %s198 = scalar_select %p197, %s196, 127
      %s199 = smul.addr %s198, 25
      %s200 = smul.addr %s199, 8
      %s201 = scalar_lea.vmem %s3, %s200
      %p202 = pneg %p100
      %p203 = pneg %p97
      %p204 = pneg %p121
      %p205 = pneg %p118
      %p206 = pneg %p142
      %p207 = pneg %p139
      %s208 = smul.u32 64, %s16
      %p209 = scmp.lt.s32.totalorder %s208, 127
      %s210 = scalar_select %p209, %s208, 127
      %s211 = smul.addr %s210, 25
      %s212 = smul.addr %s211, 8
      %s213 = scalar_lea.vmem %s3, %s212
      %s214 = smul.u32 64, %s16
      %p215 = scmp.eq.s32.totalorder %s16, 0
      // Predicated region
      $region41: #{decoder_forward.4} parent=39 // pred_check
        %p216 = pneg %p215
      $region42: #{decoder_forward.4} parent=39 // pred_check_branch
        %218 = sbr.rel (%p216) target = $region44
      $region43: #{decoder_forward.4} parent=39 // pred_region
        %v219 = vld [vmem:[%s0] sm:$0xff]
        %v220 = vld [vmem:[%s0 + $0x8] sm:$0xff]
        %v221 = vld [vmem:[%s1] sm:$0xff]
        %v222 = vld [vmem:[%s1 + $0x8] sm:$0xff]
        %v223 = vld [vmem:[%s1 + $0x10] sm:$0xff]
        %v224 = vld [vmem:[%s1 + $0x18] sm:$0xff]
        %v225 = vld [vmem:[%s1 + $0x20] sm:$0xff]
        %v226 = vld [vmem:[%s1 + $0x28] sm:$0xff]
        %v227 = vld [vmem:[%s1 + $0x30] sm:$0xff]
        %v228 = vld [vmem:[%s1 + $0x38] sm:$0xff]
        %v229 = vld [vmem:[%s1 + $0x40] sm:$0xff]
        %v230 = vld [vmem:[%s1 + $0x48] sm:$0xff]
        %v231 = vld [vmem:[%s1 + $0x50] sm:$0xff]
        %v232 = vld [vmem:[%s1 + $0x58] sm:$0xff]
        %v233 = vld [vmem:[%s1 + $0x60] sm:$0xff]
        %v234 = vld [vmem:[%s1 + $0x68] sm:$0xff]
        %v235 = vld [vmem:[%s1 + $0x70] sm:$0xff]
        %v236 = vld [vmem:[%s1 + $0x78] sm:$0xff]
        %v237 = vld [vmem:[%s1 + $0x80] sm:$0xff]
        %v238 = vld [vmem:[%s1 + $0x88] sm:$0xff]
        %v239 = vld [vmem:[%s1 + $0x90] sm:$0xff]
        %v240 = vld [vmem:[%s1 + $0x98] sm:$0xff]
        %v241 = vld [vmem:[%s1 + $0xa0] sm:$0xff]
        %v242 = vld [vmem:[%s1 + $0xa8] sm:$0xff]
        %v243 = vld [vmem:[%s1 + $0xb0] sm:$0xff]
        %v244 = vld [vmem:[%s1 + $0xb8] sm:$0xff]
        %v245 = vld [vmem:[%s1 + $0xc0] sm:$0xff]
        %v246 = vld [vmem:[%s1 + $0xc8] sm:$0xff]
        %v247 = vld [vmem:[%s1 + $0xd0] sm:$0xff]
        %v248 = vld [vmem:[%s1 + $0xd8] sm:$0xff]
        %v249 = vld [vmem:[%s1 + $0xe0] sm:$0xff]
        %v250 = vld [vmem:[%s1 + $0xe8] sm:$0xff]
        %v251 = vld [vmem:[%s1 + $0xf0] sm:$0xff]
        %v252 = vld [vmem:[%s1 + $0xf8] sm:$0xff]
        %v253 = vld [vmem:[%s1 + $0x100] sm:$0xff]
        %v254 = vld [vmem:[%s1 + $0x108] sm:$0xff]
        %v255 = vld [vmem:[%s1 + $0x110] sm:$0xff]
        %v256 = vld [vmem:[%s1 + $0x118] sm:$0xff]
        %v257 = vld [vmem:[%s1 + $0x120] sm:$0xff]
        %v258 = vld [vmem:[%s1 + $0x128] sm:$0xff]
        %v259 = vld [vmem:[%s1 + $0x130] sm:$0xff]
        %v260 = vld [vmem:[%s1 + $0x138] sm:$0xff]
        %v261 = vld [vmem:[%s1 + $0x140] sm:$0xff]
        %v262 = vld [vmem:[%s1 + $0x148] sm:$0xff]
        %v263 = vld [vmem:[%s1 + $0x150] sm:$0xff]
        %v264 = vld [vmem:[%s1 + $0x158] sm:$0xff]
        %v265 = vld [vmem:[%s1 + $0x160] sm:$0xff]
        %v266 = vld [vmem:[%s1 + $0x168] sm:$0xff]
        %v267 = vld [vmem:[%s1 + $0x170] sm:$0xff]
        %v268 = vld [vmem:[%s1 + $0x178] sm:$0xff]
        %v269 = vld [vmem:[%s1 + $0x180] sm:$0xff]
        %v270 = vld [vmem:[%s1 + $0x188] sm:$0xff]
        %v271 = vld [vmem:[%s1 + $0x190] sm:$0xff]
        %v272 = vld [vmem:[%s1 + $0x198] sm:$0xff]
        %v273 = vld [vmem:[%s1 + $0x1a0] sm:$0xff]
        %v274 = vld [vmem:[%s1 + $0x1a8] sm:$0xff]
        %v275 = vld [vmem:[%s1 + $0x1b0] sm:$0xff]
        %v276 = vld [vmem:[%s1 + $0x1b8] sm:$0xff]
        %v277 = vld [vmem:[%s1 + $0x1c0] sm:$0xff]
        %v278 = vld [vmem:[%s1 + $0x1c8] sm:$0xff]
        %v279 = vld [vmem:[%s1 + $0x1d0] sm:$0xff]
        %v280 = vld [vmem:[%s1 + $0x1d8] sm:$0xff]
        %v281 = vld [vmem:[%s1 + $0x1e0] sm:$0xff]
        %v282 = vld [vmem:[%s1 + $0x1e8] sm:$0xff]
        %v283 = vld [vmem:[%s1 + $0x1f0] sm:$0xff]
        %v284 = vld [vmem:[%s1 + $0x1f8] sm:$0xff]
        %v285 = vld [vmem:[%s1 + $0x200] sm:$0xff]
        %v286 = vld [vmem:[%s1 + $0x208] sm:$0xff]
        %v287 = vld [vmem:[%s1 + $0x210] sm:$0xff]
        %v288 = vld [vmem:[%s1 + $0x218] sm:$0xff]
        %v289 = vld [vmem:[%s1 + $0x220] sm:$0xff]
        %v290 = vld [vmem:[%s1 + $0x228] sm:$0xff]
        %v291 = vld [vmem:[%s1 + $0x230] sm:$0xff]
        %v292 = vld [vmem:[%s1 + $0x238] sm:$0xff]
        %v293 = vld [vmem:[%s1 + $0x240] sm:$0xff]
        %v294 = vld [vmem:[%s1 + $0x248] sm:$0xff]
        %v295 = vld [vmem:[%s1 + $0x250] sm:$0xff]
        %v296 = vld [vmem:[%s1 + $0x258] sm:$0xff]
        %v297 = vld [vmem:[%s1 + $0x260] sm:$0xff]
        %v298 = vld [vmem:[%s1 + $0x268] sm:$0xff]
        %v299 = vld [vmem:[%s1 + $0x270] sm:$0xff]
        %v300 = vld [vmem:[%s1 + $0x278] sm:$0xff]
        %v301 = vld [vmem:[%s1 + $0x280] sm:$0xff]
        %v302 = vld [vmem:[%s1 + $0x288] sm:$0xff]
        %v303 = vld [vmem:[%s1 + $0x290] sm:$0xff]
        %v304 = vld [vmem:[%s1 + $0x298] sm:$0xff]
        %v305 = vld [vmem:[%s1 + $0x2a0] sm:$0xff]
        %v306 = vld [vmem:[%s1 + $0x2a8] sm:$0xff]
        %v307 = vld [vmem:[%s1 + $0x2b0] sm:$0xff]
        %v308 = vld [vmem:[%s1 + $0x2b8] sm:$0xff]
        %v309 = vld [vmem:[%s1 + $0x2c0] sm:$0xff]
        %v310 = vld [vmem:[%s1 + $0x2c8] sm:$0xff]
        %v311 = vld [vmem:[%s1 + $0x2d0] sm:$0xff]
        %v312 = vld [vmem:[%s1 + $0x2d8] sm:$0xff]
        %v313 = vld [vmem:[%s1 + $0x2e0] sm:$0xff]
        %v314 = vld [vmem:[%s1 + $0x2e8] sm:$0xff]
        %v315 = vld [vmem:[%s1 + $0x2f0] sm:$0xff]
        %v316 = vld [vmem:[%s1 + $0x2f8] sm:$0xff]
        %v317 = vld [vmem:[%s1 + $0x300] sm:$0xff]
        %v318 = vld [vmem:[%s1 + $0x308] sm:$0xff]
        %v319 = vld [vmem:[%s1 + $0x310] sm:$0xff]
        %v320 = vld [vmem:[%s1 + $0x318] sm:$0xff]
        %v321 = vld [vmem:[%s1 + $0x320] sm:$0xff]
        %v322 = vld [vmem:[%s1 + $0x328] sm:$0xff]
        %v323 = vld [vmem:[%s1 + $0x330] sm:$0xff]
        %v324 = vld [vmem:[%s1 + $0x338] sm:$0xff]
        %v325 = vld [vmem:[%s1 + $0x340] sm:$0xff]
        %v326 = vld [vmem:[%s1 + $0x348] sm:$0xff]
        %v327 = vld [vmem:[%s1 + $0x350] sm:$0xff]
        %v328 = vld [vmem:[%s1 + $0x358] sm:$0xff]
        %v329 = vld [vmem:[%s1 + $0x360] sm:$0xff]
        %v330 = vld [vmem:[%s1 + $0x368] sm:$0xff]
        %v331 = vld [vmem:[%s1 + $0x370] sm:$0xff]
        %v332 = vld [vmem:[%s1 + $0x378] sm:$0xff]
        %v333 = vld [vmem:[%s1 + $0x380] sm:$0xff]
        %v334 = vld [vmem:[%s1 + $0x388] sm:$0xff]
        %v335 = vld [vmem:[%s1 + $0x390] sm:$0xff]
        %v336 = vld [vmem:[%s1 + $0x398] sm:$0xff]
        %v337 = vld [vmem:[%s1 + $0x3a0] sm:$0xff]
        %v338 = vld [vmem:[%s1 + $0x3a8] sm:$0xff]
        %v339 = vld [vmem:[%s1 + $0x3b0] sm:$0xff]
        %v340 = vld [vmem:[%s1 + $0x3b8] sm:$0xff]
        %v341 = vld [vmem:[%s1 + $0x3c0] sm:$0xff]
        %v342 = vld [vmem:[%s1 + $0x3c8] sm:$0xff]
        %v343 = vld [vmem:[%s1 + $0x3d0] sm:$0xff]
        %v344 = vld [vmem:[%s1 + $0x3d8] sm:$0xff]
        %v345 = vld [vmem:[%s1 + $0x3e0] sm:$0xff]
        %v346 = vld [vmem:[%s1 + $0x3e8] sm:$0xff]
        %v347 = vld [vmem:[%s1 + $0x3f0] sm:$0xff]
        %v348 = vld [vmem:[%s1 + $0x3f8] sm:$0xff]
        %v349 = vld [vmem:[%s1 + $0x400] sm:$0xff]
        %v350 = vld [vmem:[%s1 + $0x408] sm:$0xff]
        %v351 = vld [vmem:[%s1 + $0x410] sm:$0xff]
        %v352 = vld [vmem:[%s1 + $0x418] sm:$0xff]
        %v353 = vld [vmem:[%s1 + $0x420] sm:$0xff]
        %v354 = vld [vmem:[%s1 + $0x428] sm:$0xff]
        %v355 = vld [vmem:[%s1 + $0x430] sm:$0xff]
        %v356 = vld [vmem:[%s1 + $0x438] sm:$0xff]
        %v357 = vld [vmem:[%s1 + $0x440] sm:$0xff]
        %v358 = vld [vmem:[%s1 + $0x448] sm:$0xff]
        %v359 = vld [vmem:[%s1 + $0x450] sm:$0xff]
        %v360 = vld [vmem:[%s1 + $0x458] sm:$0xff]
        %v361 = vld [vmem:[%s1 + $0x460] sm:$0xff]
        %v362 = vld [vmem:[%s1 + $0x468] sm:$0xff]
        %v363 = vld [vmem:[%s1 + $0x470] sm:$0xff]
        %v364 = vld [vmem:[%s1 + $0x478] sm:$0xff]
        %v365 = vld [vmem:[%s1 + $0x480] sm:$0xff]
        %v366 = vld [vmem:[%s1 + $0x488] sm:$0xff]
        %v367 = vld [vmem:[%s1 + $0x490] sm:$0xff]
        %v368 = vld [vmem:[%s1 + $0x498] sm:$0xff]
        %v369 = vld [vmem:[%s1 + $0x4a0] sm:$0xff]
        %v370 = vld [vmem:[%s1 + $0x4a8] sm:$0xff]
        %v371 = vld [vmem:[%s1 + $0x4b0] sm:$0xff]
        %v372 = vld [vmem:[%s1 + $0x4b8] sm:$0xff]
        %v373 = vld [vmem:[%s1 + $0x4c0] sm:$0xff]
        %v374 = vld [vmem:[%s1 + $0x4c8] sm:$0xff]
        %v375 = vld [vmem:[%s1 + $0x4d0] sm:$0xff]
        %v376 = vld [vmem:[%s1 + $0x4d8] sm:$0xff]
        %v377 = vld [vmem:[%s1 + $0x4e0] sm:$0xff]
        %v378 = vld [vmem:[%s1 + $0x4e8] sm:$0xff]
        %v379 = vld [vmem:[%s1 + $0x4f0] sm:$0xff]
        %v380 = vld [vmem:[%s1 + $0x4f8] sm:$0xff]
        %v381 = vld [vmem:[%s1 + $0x500] sm:$0xff]
        %v382 = vld [vmem:[%s1 + $0x508] sm:$0xff]
        %v383 = vld [vmem:[%s1 + $0x510] sm:$0xff]
        %v384 = vld [vmem:[%s1 + $0x518] sm:$0xff]
        %v385 = vld [vmem:[%s1 + $0x520] sm:$0xff]
        %v386 = vld [vmem:[%s1 + $0x528] sm:$0xff]
        %v387 = vld [vmem:[%s1 + $0x530] sm:$0xff]
        %v388 = vld [vmem:[%s1 + $0x538] sm:$0xff]
        %v389 = vld [vmem:[%s1 + $0x540] sm:$0xff]
        %v390 = vld [vmem:[%s1 + $0x548] sm:$0xff]
        %v391 = vld [vmem:[%s1 + $0x550] sm:$0xff]
        %v392 = vld [vmem:[%s1 + $0x558] sm:$0xff]
        %v393 = vld [vmem:[%s1 + $0x560] sm:$0xff]
        %v394 = vld [vmem:[%s1 + $0x568] sm:$0xff]
        %v395 = vld [vmem:[%s1 + $0x570] sm:$0xff]
        %v396 = vld [vmem:[%s1 + $0x578] sm:$0xff]
        %v397 = vld [vmem:[%s1 + $0x580] sm:$0xff]
        %v398 = vld [vmem:[%s1 + $0x588] sm:$0xff]
        %v399 = vld [vmem:[%s1 + $0x590] sm:$0xff]
        %v400 = vld [vmem:[%s1 + $0x598] sm:$0xff]
        %v401 = vld [vmem:[%s1 + $0x5a0] sm:$0xff]
        %v402 = vld [vmem:[%s1 + $0x5a8] sm:$0xff]
        %v403 = vld [vmem:[%s1 + $0x5b0] sm:$0xff]
        %v404 = vld [vmem:[%s1 + $0x5b8] sm:$0xff]
        %v405 = vld [vmem:[%s1 + $0x5c0] sm:$0xff]
        %v406 = vld [vmem:[%s1 + $0x5c8] sm:$0xff]
        %v407 = vld [vmem:[%s1 + $0x5d0] sm:$0xff]
        %v408 = vld [vmem:[%s1 + $0x5d8] sm:$0xff]
        %v409 = vld [vmem:[%s1 + $0x5e0] sm:$0xff]
        %v410 = vld [vmem:[%s1 + $0x5e8] sm:$0xff]
        %v411 = vld [vmem:[%s1 + $0x5f0] sm:$0xff]
        %v412 = vld [vmem:[%s1 + $0x5f8] sm:$0xff]
        %v413 = vld [vmem:[%s1 + $0x600] sm:$0xff]
        %v414 = vld [vmem:[%s1 + $0x608] sm:$0xff]
        %v415 = vld [vmem:[%s1 + $0x610] sm:$0xff]
        %v416 = vld [vmem:[%s1 + $0x618] sm:$0xff]
        %v417 = vld [vmem:[%s1 + $0x620] sm:$0xff]
        %v418 = vld [vmem:[%s1 + $0x628] sm:$0xff]
        %v419 = vld [vmem:[%s1 + $0x630] sm:$0xff]
        %v420 = vld [vmem:[%s1 + $0x638] sm:$0xff]
        %v421 = vld [vmem:[%s1 + $0x640] sm:$0xff]
        %v422 = vld [vmem:[%s1 + $0x648] sm:$0xff]
        %v423 = vld [vmem:[%s1 + $0x650] sm:$0xff]
        %v424 = vld [vmem:[%s1 + $0x658] sm:$0xff]
        %v425 = vld [vmem:[%s1 + $0x660] sm:$0xff]
        %v426 = vld [vmem:[%s1 + $0x668] sm:$0xff]
        %v427 = vld [vmem:[%s1 + $0x670] sm:$0xff]
        %v428 = vld [vmem:[%s1 + $0x678] sm:$0xff]
        %v429 = vld [vmem:[%s1 + $0x680] sm:$0xff]
        %v430 = vld [vmem:[%s1 + $0x688] sm:$0xff]
        %v431 = vld [vmem:[%s1 + $0x690] sm:$0xff]
        %v432 = vld [vmem:[%s1 + $0x698] sm:$0xff]
        %v433 = vld [vmem:[%s1 + $0x6a0] sm:$0xff]
        %v434 = vld [vmem:[%s1 + $0x6a8] sm:$0xff]
        %v435 = vld [vmem:[%s1 + $0x6b0] sm:$0xff]
        %v436 = vld [vmem:[%s1 + $0x6b8] sm:$0xff]
        %v437 = vld [vmem:[%s1 + $0x6c0] sm:$0xff]
        %v438 = vld [vmem:[%s1 + $0x6c8] sm:$0xff]
        %v439 = vld [vmem:[%s1 + $0x6d0] sm:$0xff]
        %v440 = vld [vmem:[%s1 + $0x6d8] sm:$0xff]
        %v441 = vld [vmem:[%s1 + $0x6e0] sm:$0xff]
        %v442 = vld [vmem:[%s1 + $0x6e8] sm:$0xff]
        %v443 = vld [vmem:[%s1 + $0x6f0] sm:$0xff]
        %v444 = vld [vmem:[%s1 + $0x6f8] sm:$0xff]
        %v445 = vld [vmem:[%s1 + $0x700] sm:$0xff]
        %v446 = vld [vmem:[%s1 + $0x708] sm:$0xff]
        %v447 = vld [vmem:[%s1 + $0x710] sm:$0xff]
        %v448 = vld [vmem:[%s1 + $0x718] sm:$0xff]
        %v449 = vld [vmem:[%s1 + $0x720] sm:$0xff]
        %v450 = vld [vmem:[%s1 + $0x728] sm:$0xff]
        %v451 = vld [vmem:[%s1 + $0x730] sm:$0xff]
        %v452 = vld [vmem:[%s1 + $0x738] sm:$0xff]
        %v453 = vld [vmem:[%s1 + $0x740] sm:$0xff]
        %v454 = vld [vmem:[%s1 + $0x748] sm:$0xff]
        %v455 = vld [vmem:[%s1 + $0x750] sm:$0xff]
        %v456 = vld [vmem:[%s1 + $0x758] sm:$0xff]
        %v457 = vld [vmem:[%s1 + $0x760] sm:$0xff]
        %v458 = vld [vmem:[%s1 + $0x768] sm:$0xff]
        %v459 = vld [vmem:[%s1 + $0x770] sm:$0xff]
        %v460 = vld [vmem:[%s1 + $0x778] sm:$0xff]
        %v461 = vld [vmem:[%s1 + $0x780] sm:$0xff]
        %v462 = vld [vmem:[%s1 + $0x788] sm:$0xff]
        %v463 = vld [vmem:[%s1 + $0x790] sm:$0xff]
        %v464 = vld [vmem:[%s1 + $0x798] sm:$0xff]
        %v465 = vld [vmem:[%s1 + $0x7a0] sm:$0xff]
        %v466 = vld [vmem:[%s1 + $0x7a8] sm:$0xff]
        %v467 = vld [vmem:[%s1 + $0x7b0] sm:$0xff]
        %v468 = vld [vmem:[%s1 + $0x7b8] sm:$0xff]
        %v469 = vld [vmem:[%s1 + $0x7c0] sm:$0xff]
        %v470 = vld [vmem:[%s1 + $0x7c8] sm:$0xff]
        %v471 = vld [vmem:[%s1 + $0x7d0] sm:$0xff]
        %v472 = vld [vmem:[%s1 + $0x7d8] sm:$0xff]
        %v473 = vld [vmem:[%s1 + $0x7e0] sm:$0xff]
        %v474 = vld [vmem:[%s1 + $0x7e8] sm:$0xff]
        %v475 = vld [vmem:[%s1 + $0x7f0] sm:$0xff]
        %v476 = vld [vmem:[%s1 + $0x7f8] sm:$0xff]
        %v477 = vld [vmem:[%s2] sm:$0xff]
        %v479 = vlaneseq
        %v480 = vshrl.u32 %v479, 7
        %v481 = vsub.s32 0, %v480
        %v482 = vrot.slane %v477, %v481
        %v483 = vlaneseq
        %v484 = vshrl.u32 %v483, 7
        %v485 = vsub.s32 1, %v484
        %v486 = vrot.slane %v477, %v485
        %v487 = vlaneseq
        %v488 = vshrl.u32 %v487, 7
        %v489 = vsub.s32 2, %v488
        %v490 = vrot.slane %v477, %v489
        %v491 = vlaneseq
        %v492 = vshrl.u32 %v491, 7
        %v493 = vsub.s32 3, %v492
        %v494 = vrot.slane %v477, %v493
        %v495 = vlaneseq
        %v496 = vshrl.u32 %v495, 7
        %v497 = vsub.s32 4, %v496
        %v498 = vrot.slane %v477, %v497
        %v499 = vlaneseq
        %v500 = vshrl.u32 %v499, 7
        %v501 = vsub.s32 5, %v500
        %v502 = vrot.slane %v477, %v501
        %v503 = vlaneseq
        %v504 = vshrl.u32 %v503, 7
        %v505 = vsub.s32 6, %v504
        %v506 = vrot.slane %v477, %v505
        %v507 = vlaneseq
        %v508 = vshrl.u32 %v507, 7
        %v509 = vsub.s32 7, %v508
        %v510 = vrot.slane %v477, %v509
        %519 = vmatprep.subr.mxu0 %v222
        %520 = vmatpush1.msra.mxu0 %v221
        %521 = vmatprep.subr.mxu0 %v230
        %522 = vmatpush1.msra.mxu0 %v229
        %523 = vmatprep.subr.mxu0 %v238
        %524 = vmatpush1.msra.mxu0 %v237
        %525 = vmatprep.subr.mxu0 %v246
        %526 = vmatpush1.msra.mxu0 %v245
        %527 = vmatprep.subr.mxu0 %v254
        %528 = vmatpush1.msra.mxu0 %v253
        %529 = vmatprep.subr.mxu0 %v262
        %530 = vmatpush1.msra.mxu0 %v261
        %531 = vmatprep.subr.mxu0 %v270
        %532 = vmatpush1.msra.mxu0 %v269
        %533 = vmatprep.subr.mxu0 %v278
        %534 = vmatpush1.msra.mxu0 %v277
        %535 = vmatprep.subr.mxu0 %v286
        %536 = vmatpush1.msra.mxu0 %v285
        %537 = vmatprep.subr.mxu0 %v294
        %538 = vmatpush1.msra.mxu0 %v293
        %539 = vmatprep.subr.mxu0 %v302
        %540 = vmatpush1.msra.mxu0 %v301
        %541 = vmatprep.subr.mxu0 %v310
        %542 = vmatpush1.msra.mxu0 %v309
        %543 = vmatprep.subr.mxu0 %v318
        %544 = vmatpush1.msra.mxu0 %v317
        %545 = vmatprep.subr.mxu0 %v326
        %546 = vmatpush1.msra.mxu0 %v325
        %547 = vmatprep.subr.mxu0 %v334
        %548 = vmatpush1.msra.mxu0 %v333
        %549 = vmatprep.subr.mxu0 %v342
        %550 = vmatpush1.msra.mxu0 %v341
        %551 = vmatprep.subr.mxu0 %v350
        %552 = vmatpush1.msra.mxu0 %v349
        %553 = vmatprep.subr.mxu0 %v358
        %554 = vmatpush1.msra.mxu0 %v357
        %555 = vmatprep.subr.mxu0 %v366
        %556 = vmatpush1.msra.mxu0 %v365
        %557 = vmatprep.subr.mxu0 %v374
        %558 = vmatpush1.msra.mxu0 %v373
        %559 = vmatprep.subr.mxu0 %v382
        %560 = vmatpush1.msra.mxu0 %v381
        %561 = vmatprep.subr.mxu0 %v390
        %562 = vmatpush1.msra.mxu0 %v389
        %563 = vmatprep.subr.mxu0 %v398
        %564 = vmatpush1.msra.mxu0 %v397
        %565 = vmatprep.subr.mxu0 %v406
        %566 = vmatpush1.msra.mxu0 %v405
        %567 = vmatprep.subr.mxu0 %v414
        %568 = vmatpush1.msra.mxu0 %v413
        %569 = vmatprep.subr.mxu0 %v422
        %570 = vmatpush1.msra.mxu0 %v421
        %571 = vmatprep.subr.mxu0 %v430
        %572 = vmatpush1.msra.mxu0 %v429
        %573 = vmatprep.subr.mxu0 %v438
        %574 = vmatpush1.msra.mxu0 %v437
        %575 = vmatprep.subr.mxu0 %v446
        %576 = vmatpush1.msra.mxu0 %v445
        %577 = vmatprep.subr.mxu0 %v454
        %578 = vmatpush1.msra.mxu0 %v453
        %579 = vmatprep.subr.mxu0 %v462
        %580 = vmatpush1.msra.mxu0 %v461
        %581 = vmatprep.subr.mxu0 %v470
        %582 = vmatpush1.msra.mxu0 %v469
        %583 = vmatprep.mubr.f32.mxu0 %v220
        %584 = vmatmul.mubr.f32.gmra.mrb[0].mxu0 %v219
        %v585 = vpop.f32.mrb[0].mxu0
        %v586 = vadd.f32 %v482, %v585
        %v587 = vpop.f32.mrb[0].mxu0
        %v588 = vadd.f32 %v486, %v587
        %589 = vdwg.mxu0
        %590 = vmatprep.subr.mxu0 %v224
        %591 = vmatpush1.msra.mxu0 %v223
        %592 = vmatprep.subr.mxu0 %v232
        %593 = vmatpush1.msra.mxu0 %v231
        %594 = vmatprep.subr.mxu0 %v240
        %595 = vmatpush1.msra.mxu0 %v239
        %596 = vmatprep.subr.mxu0 %v248
        %597 = vmatpush1.msra.mxu0 %v247
        %598 = vmatprep.subr.mxu0 %v256
        %599 = vmatpush1.msra.mxu0 %v255
        %600 = vmatprep.subr.mxu0 %v264
        %601 = vmatpush1.msra.mxu0 %v263
        %602 = vmatprep.subr.mxu0 %v272
        %603 = vmatpush1.msra.mxu0 %v271
        %604 = vmatprep.subr.mxu0 %v280
        %605 = vmatpush1.msra.mxu0 %v279
        %606 = vmatprep.subr.mxu0 %v288
        %607 = vmatpush1.msra.mxu0 %v287
        %608 = vmatprep.subr.mxu0 %v296
        %609 = vmatpush1.msra.mxu0 %v295
        %610 = vmatprep.subr.mxu0 %v304
        %611 = vmatpush1.msra.mxu0 %v303
        %612 = vmatprep.subr.mxu0 %v312
        %613 = vmatpush1.msra.mxu0 %v311
        %614 = vmatprep.subr.mxu0 %v320
        %615 = vmatpush1.msra.mxu0 %v319
        %616 = vmatprep.subr.mxu0 %v328
        %617 = vmatpush1.msra.mxu0 %v327
        %618 = vmatprep.subr.mxu0 %v336
        %619 = vmatpush1.msra.mxu0 %v335
        %620 = vmatprep.subr.mxu0 %v344
        %621 = vmatpush1.msra.mxu0 %v343
        %622 = vmatprep.subr.mxu0 %v352
        %623 = vmatpush1.msra.mxu0 %v351
        %624 = vmatprep.subr.mxu0 %v360
        %625 = vmatpush1.msra.mxu0 %v359
        %626 = vmatprep.subr.mxu0 %v368
        %627 = vmatpush1.msra.mxu0 %v367
        %628 = vmatprep.subr.mxu0 %v376
        %629 = vmatpush1.msra.mxu0 %v375
        %630 = vmatprep.subr.mxu0 %v384
        %631 = vmatpush1.msra.mxu0 %v383
        %632 = vmatprep.subr.mxu0 %v392
        %633 = vmatpush1.msra.mxu0 %v391
        %634 = vmatprep.subr.mxu0 %v400
        %635 = vmatpush1.msra.mxu0 %v399
        %636 = vmatprep.subr.mxu0 %v408
        %637 = vmatpush1.msra.mxu0 %v407
        %638 = vmatprep.subr.mxu0 %v416
        %639 = vmatpush1.msra.mxu0 %v415
        %640 = vmatprep.subr.mxu0 %v424
        %641 = vmatpush1.msra.mxu0 %v423
        %642 = vmatprep.subr.mxu0 %v432
        %643 = vmatpush1.msra.mxu0 %v431
        %644 = vmatprep.subr.mxu0 %v440
        %645 = vmatpush1.msra.mxu0 %v439
        %646 = vmatprep.subr.mxu0 %v448
        %647 = vmatpush1.msra.mxu0 %v447
        %648 = vmatprep.subr.mxu0 %v456
        %649 = vmatpush1.msra.mxu0 %v455
        %650 = vmatprep.subr.mxu0 %v464
        %651 = vmatpush1.msra.mxu0 %v463
        %652 = vmatprep.subr.mxu0 %v472
        %653 = vmatpush1.msra.mxu0 %v471
        %654 = vmatprep.mubr.f32.mxu0 %v220
        %655 = vmatmul.mubr.f32.gmra.mrb[0].mxu0 %v219
        %v656 = vpop.f32.mrb[0].mxu0
        %v657 = vadd.f32 %v490, %v656
        %v658 = vpop.f32.mrb[0].mxu0
        %v659 = vadd.f32 %v494, %v658
        %660 = vdwg.mxu0
        %661 = vmatprep.subr.mxu0 %v226
        %662 = vmatpush1.msra.mxu0 %v225
        %663 = vmatprep.subr.mxu0 %v234
        %664 = vmatpush1.msra.mxu0 %v233
        %665 = vmatprep.subr.mxu0 %v242
        %666 = vmatpush1.msra.mxu0 %v241
        %667 = vmatprep.subr.mxu0 %v250
        %668 = vmatpush1.msra.mxu0 %v249
        %669 = vmatprep.subr.mxu0 %v258
        %670 = vmatpush1.msra.mxu0 %v257
        %671 = vmatprep.subr.mxu0 %v266
        %672 = vmatpush1.msra.mxu0 %v265
        %673 = vmatprep.subr.mxu0 %v274
        %674 = vmatpush1.msra.mxu0 %v273
        %675 = vmatprep.subr.mxu0 %v282
        %676 = vmatpush1.msra.mxu0 %v281
        %677 = vmatprep.subr.mxu0 %v290
        %678 = vmatpush1.msra.mxu0 %v289
        %679 = vmatprep.subr.mxu0 %v298
        %680 = vmatpush1.msra.mxu0 %v297
        %681 = vmatprep.subr.mxu0 %v306
        %682 = vmatpush1.msra.mxu0 %v305
        %683 = vmatprep.subr.mxu0 %v314
        %684 = vmatpush1.msra.mxu0 %v313
        %685 = vmatprep.subr.mxu0 %v322
        %686 = vmatpush1.msra.mxu0 %v321
        %687 = vmatprep.subr.mxu0 %v330
        %688 = vmatpush1.msra.mxu0 %v329
        %689 = vmatprep.subr.mxu0 %v338
        %690 = vmatpush1.msra.mxu0 %v337
        %691 = vmatprep.subr.mxu0 %v346
        %692 = vmatpush1.msra.mxu0 %v345
        %693 = vmatprep.subr.mxu0 %v354
        %694 = vmatpush1.msra.mxu0 %v353
        %695 = vmatprep.subr.mxu0 %v362
        %696 = vmatpush1.msra.mxu0 %v361
        %697 = vmatprep.subr.mxu0 %v370
        %698 = vmatpush1.msra.mxu0 %v369
        %699 = vmatprep.subr.mxu0 %v378
        %700 = vmatpush1.msra.mxu0 %v377
        %701 = vmatprep.subr.mxu0 %v386
        %702 = vmatpush1.msra.mxu0 %v385
        %703 = vmatprep.subr.mxu0 %v394
        %704 = vmatpush1.msra.mxu0 %v393
        %705 = vmatprep.subr.mxu0 %v402
        %706 = vmatpush1.msra.mxu0 %v401
        %707 = vmatprep.subr.mxu0 %v410
        %708 = vmatpush1.msra.mxu0 %v409
        %709 = vmatprep.subr.mxu0 %v418
        %710 = vmatpush1.msra.mxu0 %v417
        %711 = vmatprep.subr.mxu0 %v426
        %712 = vmatpush1.msra.mxu0 %v425
        %713 = vmatprep.subr.mxu0 %v434
        %714 = vmatpush1.msra.mxu0 %v433
        %715 = vmatprep.subr.mxu0 %v442
        %716 = vmatpush1.msra.mxu0 %v441
        %717 = vmatprep.subr.mxu0 %v450
        %718 = vmatpush1.msra.mxu0 %v449
        %719 = vmatprep.subr.mxu0 %v458
        %720 = vmatpush1.msra.mxu0 %v457
        %721 = vmatprep.subr.mxu0 %v466
        %722 = vmatpush1.msra.mxu0 %v465
        %723 = vmatprep.subr.mxu0 %v474
        %724 = vmatpush1.msra.mxu0 %v473
        %725 = vmatprep.mubr.f32.mxu0 %v220
        %726 = vmatmul.mubr.f32.gmra.mrb[0].mxu0 %v219
        %v727 = vpop.f32.mrb[0].mxu0
        %v728 = vadd.f32 %v498, %v727
        %v729 = vpop.f32.mrb[0].mxu0
        %v730 = vadd.f32 %v502, %v729
        %731 = vdwg.mxu0
        %732 = vmatprep.subr.mxu0 %v228
        %733 = vmatpush1.msra.mxu0 %v227
        %734 = vmatprep.subr.mxu0 %v236
        %735 = vmatpush1.msra.mxu0 %v235
        %736 = vmatprep.subr.mxu0 %v244
        %737 = vmatpush1.msra.mxu0 %v243
        %738 = vmatprep.subr.mxu0 %v252
        %739 = vmatpush1.msra.mxu0 %v251
        %740 = vmatprep.subr.mxu0 %v260
        %741 = vmatpush1.msra.mxu0 %v259
        %742 = vmatprep.subr.mxu0 %v268
        %743 = vmatpush1.msra.mxu0 %v267
        %744 = vmatprep.subr.mxu0 %v276
        %745 = vmatpush1.msra.mxu0 %v275
        %746 = vmatprep.subr.mxu0 %v284
        %747 = vmatpush1.msra.mxu0 %v283
        %748 = vmatprep.subr.mxu0 %v292
        %749 = vmatpush1.msra.mxu0 %v291
        %750 = vmatprep.subr.mxu0 %v300
        %751 = vmatpush1.msra.mxu0 %v299
        %752 = vmatprep.subr.mxu0 %v308
        %753 = vmatpush1.msra.mxu0 %v307
        %754 = vmatprep.subr.mxu0 %v316
        %755 = vmatpush1.msra.mxu0 %v315
        %756 = vmatprep.subr.mxu0 %v324
        %757 = vmatpush1.msra.mxu0 %v323
        %758 = vmatprep.subr.mxu0 %v332
        %759 = vmatpush1.msra.mxu0 %v331
        %760 = vmatprep.subr.mxu0 %v340
        %761 = vmatpush1.msra.mxu0 %v339
        %762 = vmatprep.subr.mxu0 %v348
        %763 = vmatpush1.msra.mxu0 %v347
        %764 = vmatprep.subr.mxu0 %v356
        %765 = vmatpush1.msra.mxu0 %v355
        %766 = vmatprep.subr.mxu0 %v364
        %767 = vmatpush1.msra.mxu0 %v363
        %768 = vmatprep.subr.mxu0 %v372
        %769 = vmatpush1.msra.mxu0 %v371
        %770 = vmatprep.subr.mxu0 %v380
        %771 = vmatpush1.msra.mxu0 %v379
        %772 = vmatprep.subr.mxu0 %v388
        %773 = vmatpush1.msra.mxu0 %v387
        %774 = vmatprep.subr.mxu0 %v396
        %775 = vmatpush1.msra.mxu0 %v395
        %776 = vmatprep.subr.mxu0 %v404
        %777 = vmatpush1.msra.mxu0 %v403
        %778 = vmatprep.subr.mxu0 %v412
        %779 = vmatpush1.msra.mxu0 %v411
        %780 = vmatprep.subr.mxu0 %v420
        %781 = vmatpush1.msra.mxu0 %v419
        %782 = vmatprep.subr.mxu0 %v428
        %783 = vmatpush1.msra.mxu0 %v427
        %784 = vmatprep.subr.mxu0 %v436
        %785 = vmatpush1.msra.mxu0 %v435
        %786 = vmatprep.subr.mxu0 %v444
        %787 = vmatpush1.msra.mxu0 %v443
        %788 = vmatprep.subr.mxu0 %v452
        %789 = vmatpush1.msra.mxu0 %v451
        %790 = vmatprep.subr.mxu0 %v460
        %791 = vmatpush1.msra.mxu0 %v459
        %792 = vmatprep.subr.mxu0 %v468
        %793 = vmatpush1.msra.mxu0 %v467
        %794 = vmatprep.subr.mxu0 %v476
        %795 = vmatpush1.msra.mxu0 %v475
        %796 = vmatprep.mubr.f32.mxu0 %v220
        %797 = vmatmul.mubr.f32.gmra.mrb[0].mxu0 %v219
        %v798 = vpop.f32.mrb[0].mxu0
        %v799 = vadd.f32 %v506, %v798
        %v800 = vpop.f32.mrb[0].mxu0
        %v801 = vadd.f32 %v510, %v800
        %802 = vdwg.mxu0
        %v803 = vmax.f32 %v586, 0.0
        %v804 = vmax.f32 %v588, 0.0
        %v805 = vmax.f32 %v657, 0.0
        %v806 = vmax.f32 %v659, 0.0
        %v807 = vmax.f32 %v728, 0.0
        %v808 = vmax.f32 %v730, 0.0
        %v809 = vmax.f32 %v799, 0.0
        %v810 = vmax.f32 %v801, 0.0
        %811 = vst [vmem:[#allocation2] sm:$0xff] %v803
        %812 = vst [vmem:[#allocation2 + $0x8] sm:$0xff] %v804
        %813 = vst [vmem:[#allocation2 + $0x10] sm:$0xff] %v805
        %814 = vst [vmem:[#allocation2 + $0x18] sm:$0xff] %v806
        %815 = vst [vmem:[#allocation2 + $0x20] sm:$0xff] %v807
        %816 = vst [vmem:[#allocation2 + $0x28] sm:$0xff] %v808
        %817 = vst [vmem:[#allocation2 + $0x30] sm:$0xff] %v809
        %818 = vst [vmem:[#allocation2 + $0x38] sm:$0xff] %v810
        %819 = vst [vmem:[#allocation3] sm:$0xff] 0.0
        %820 = vst [vmem:[#allocation3 + $0x8] sm:$0xff] 0.0
        %821 = vst [vmem:[#allocation3 + $0x10] sm:$0xff] 0.0
        %822 = vst [vmem:[#allocation3 + $0x18] sm:$0xff] 0.0
        %823 = vst [vmem:[#allocation3 + $0x20] sm:$0xff] 0.0
        %824 = vst [vmem:[#allocation3 + $0x28] sm:$0xff] 0.0
        %825 = vst [vmem:[#allocation3 + $0x30] sm:$0xff] 0.0
        %826 = vst [vmem:[#allocation3 + $0x38] sm:$0xff] 0.0
        %827 = vst [vmem:[#allocation3 + $0x40] sm:$0xff] 0.0
        %828 = vst [vmem:[#allocation3 + $0x48] sm:$0xff] 0.0
        %829 = vst [vmem:[#allocation3 + $0x50] sm:$0xff] 0.0
        %830 = vst [vmem:[#allocation3 + $0x58] sm:$0xff] 0.0
        %831 = vst [vmem:[#allocation3 + $0x60] sm:$0xff] 0.0
        %832 = vst [vmem:[#allocation3 + $0x68] sm:$0xff] 0.0
        %833 = vst [vmem:[#allocation3 + $0x70] sm:$0xff] 0.0
        %834 = vst [vmem:[#allocation3 + $0x78] sm:$0xff] 0.0
        %835 = vst [vmem:[#allocation3 + $0x80] sm:$0xff] 0.0
        %836 = vst [vmem:[#allocation3 + $0x88] sm:$0xff] 0.0
        %837 = vst [vmem:[#allocation3 + $0x90] sm:$0xff] 0.0
        %838 = vst [vmem:[#allocation3 + $0x98] sm:$0xff] 0.0
        %839 = vst [vmem:[#allocation3 + $0xa0] sm:$0xff] 0.0
        %840 = vst [vmem:[#allocation3 + $0xa8] sm:$0xff] 0.0
        %841 = vst [vmem:[#allocation3 + $0xb0] sm:$0xff] 0.0
        %842 = vst [vmem:[#allocation3 + $0xb8] sm:$0xff] 0.0
        %843 = vst [vmem:[#allocation3 + $0xc0] sm:$0xff] 0.0
      $region44: #{decoder_forward.4} parent=39 // pred_fallthru
        _
      %s844 = smul.u32 %s16, 512
      %v845 = vld [vmem:[#allocation3] sm:$0xff]
      %v846 = vld [vmem:[#allocation3 + $0x8] sm:$0xff]
      %v847 = vld [vmem:[#allocation3 + $0x10] sm:$0xff]
      %v848 = vld [vmem:[#allocation3 + $0x18] sm:$0xff]
      %v849 = vld [vmem:[#allocation3 + $0x20] sm:$0xff]
      %v850 = vld [vmem:[#allocation3 + $0x28] sm:$0xff]
      %v851 = vld [vmem:[#allocation3 + $0x30] sm:$0xff]
      %v852 = vld [vmem:[#allocation3 + $0x38] sm:$0xff]
      %v853 = vld [vmem:[#allocation3 + $0x40] sm:$0xff]
      %v854 = vld [vmem:[#allocation3 + $0x48] sm:$0xff]
      %v855 = vld [vmem:[#allocation3 + $0x50] sm:$0xff]
      %v856 = vld [vmem:[#allocation3 + $0x58] sm:$0xff]
      %v857 = vld [vmem:[#allocation3 + $0x60] sm:$0xff]
      %v858 = vld [vmem:[#allocation3 + $0x68] sm:$0xff]
      %v859 = vld [vmem:[#allocation3 + $0x70] sm:$0xff]
      %v860 = vld [vmem:[#allocation3 + $0x78] sm:$0xff]
      %v861 = vld [vmem:[#allocation3 + $0x80] sm:$0xff]
      %v862 = vld [vmem:[#allocation3 + $0x88] sm:$0xff]
      %v863 = vld [vmem:[#allocation3 + $0x90] sm:$0xff]
      %v864 = vld [vmem:[#allocation3 + $0x98] sm:$0xff]
      %v865 = vld [vmem:[#allocation3 + $0xa0] sm:$0xff]
      %v866 = vld [vmem:[#allocation3 + $0xa8] sm:$0xff]
      %v867 = vld [vmem:[#allocation3 + $0xb0] sm:$0xff]
      %v868 = vld [vmem:[#allocation3 + $0xb8] sm:$0xff]
      %v869 = vld [vmem:[#allocation3 + $0xc0] sm:$0xff]
      %s870 = sshra.s32 %s844, 7
      %s871 = sand.u32 %s844, 127
      %s872 = smul.addr %s870, 8
      %s873 = scalar_lea.vmem [#allocation2], %s872
      %v874 = vld [vmem:[%s873] sm:$0xff]
      %v875 = vld [vmem:[%s873 + $0x8] sm:$0xff]
      %v876 = vld [vmem:[%s873 + $0x10] sm:$0xff]
      %v877 = vld [vmem:[%s873 + $0x18] sm:$0xff]
      %v878 = vld [vmem:[%s213] sm:$0xff]
      %v879 = vld [vmem:[%s213 + $0x8] sm:$0xff]
      %v880 = vld [vmem:[%s213 + $0x10] sm:$0xff]
      %v881 = vld [vmem:[%s213 + $0x18] sm:$0xff]
      %v882 = vld [vmem:[%s213 + $0x20] sm:$0xff]
      %v883 = vld [vmem:[%s213 + $0x28] sm:$0xff]
      %v884 = vld [vmem:[%s213 + $0x30] sm:$0xff]
      %v885 = vld [vmem:[%s213 + $0x38] sm:$0xff]
      %v886 = vld [vmem:[%s213 + $0x40] sm:$0xff]
      %v887 = vld [vmem:[%s213 + $0x48] sm:$0xff]
      %v888 = vld [vmem:[%s213 + $0x50] sm:$0xff]
      %v889 = vld [vmem:[%s213 + $0x58] sm:$0xff]
      %v890 = vld [vmem:[%s213 + $0x60] sm:$0xff]
      %v891 = vld [vmem:[%s213 + $0x68] sm:$0xff]
      %v892 = vld [vmem:[%s213 + $0x70] sm:$0xff]
      %v893 = vld [vmem:[%s213 + $0x78] sm:$0xff]
      %v894 = vld [vmem:[%s213 + $0x80] sm:$0xff]
      %v895 = vld [vmem:[%s213 + $0x88] sm:$0xff]
      %v896 = vld [vmem:[%s213 + $0x90] sm:$0xff]
      %v897 = vld [vmem:[%s213 + $0x98] sm:$0xff]
      %v898 = vld [vmem:[%s213 + $0xa0] sm:$0xff]
      %v899 = vld [vmem:[%s213 + $0xa8] sm:$0xff]
      %v900 = vld [vmem:[%s213 + $0xb0] sm:$0xff]
      %v901 = vld [vmem:[%s213 + $0xb8] sm:$0xff]
      %v902 = vld [vmem:[%s213 + $0xc0] sm:$0xff]
      %v903 = vld [vmem:[%s213 + $0xc8] sm:$0xff]
      %v904 = vld [vmem:[%s213 + $0xd0] sm:$0xff]
      %v905 = vld [vmem:[%s213 + $0xd8] sm:$0xff]
      %v906 = vld [vmem:[%s213 + $0xe0] sm:$0xff]
      %v907 = vld [vmem:[%s213 + $0xe8] sm:$0xff]
      %v908 = vld [vmem:[%s213 + $0xf0] sm:$0xff]
      %v909 = vld [vmem:[%s213 + $0xf8] sm:$0xff]
      %v910 = vld [vmem:[%s213 + $0x100] sm:$0xff]
      %v911 = vld [vmem:[%s213 + $0x108] sm:$0xff]
      %v912 = vld [vmem:[%s213 + $0x110] sm:$0xff]
      %v913 = vld [vmem:[%s213 + $0x118] sm:$0xff]
      %v914 = vld [vmem:[%s213 + $0x120] sm:$0xff]
      %v915 = vld [vmem:[%s213 + $0x128] sm:$0xff]
      %v916 = vld [vmem:[%s213 + $0x130] sm:$0xff]
      %v917 = vld [vmem:[%s213 + $0x138] sm:$0xff]
      %v918 = vld [vmem:[%s213 + $0x140] sm:$0xff]
      %v919 = vld [vmem:[%s213 + $0x148] sm:$0xff]
      %v920 = vld [vmem:[%s213 + $0x150] sm:$0xff]
      %v921 = vld [vmem:[%s213 + $0x158] sm:$0xff]
      %v922 = vld [vmem:[%s213 + $0x160] sm:$0xff]
      %v923 = vld [vmem:[%s213 + $0x168] sm:$0xff]
      %v924 = vld [vmem:[%s213 + $0x170] sm:$0xff]
      %v925 = vld [vmem:[%s213 + $0x178] sm:$0xff]
      %v926 = vld [vmem:[%s213 + $0x180] sm:$0xff]
      %v927 = vld [vmem:[%s213 + $0x188] sm:$0xff]
      %v928 = vld [vmem:[%s213 + $0x190] sm:$0xff]
      %v929 = vld [vmem:[%s213 + $0x198] sm:$0xff]
      %v930 = vld [vmem:[%s213 + $0x1a0] sm:$0xff]
      %v931 = vld [vmem:[%s213 + $0x1a8] sm:$0xff]
      %v932 = vld [vmem:[%s213 + $0x1b0] sm:$0xff]
      %v933 = vld [vmem:[%s213 + $0x1b8] sm:$0xff]
      %v934 = vld [vmem:[%s213 + $0x1c0] sm:$0xff]
      %v935 = vld [vmem:[%s213 + $0x1c8] sm:$0xff]
      %v936 = vld [vmem:[%s213 + $0x1d0] sm:$0xff]
      %v937 = vld [vmem:[%s213 + $0x1d8] sm:$0xff]
      %v938 = vld [vmem:[%s213 + $0x1e0] sm:$0xff]
      %v939 = vld [vmem:[%s213 + $0x1e8] sm:$0xff]
      %v940 = vld [vmem:[%s213 + $0x1f0] sm:$0xff]
      %v941 = vld [vmem:[%s213 + $0x1f8] sm:$0xff]
      %v942 = vld [vmem:[%s213 + $0x200] sm:$0xff]
      %v943 = vld [vmem:[%s213 + $0x208] sm:$0xff]
      %v944 = vld [vmem:[%s213 + $0x210] sm:$0xff]
      %v945 = vld [vmem:[%s213 + $0x218] sm:$0xff]
      %v946 = vld [vmem:[%s213 + $0x220] sm:$0xff]
      %v947 = vld [vmem:[%s213 + $0x228] sm:$0xff]
      %v948 = vld [vmem:[%s213 + $0x230] sm:$0xff]
      %v949 = vld [vmem:[%s213 + $0x238] sm:$0xff]
      %v950 = vld [vmem:[%s213 + $0x240] sm:$0xff]
      %v951 = vld [vmem:[%s213 + $0x248] sm:$0xff]
      %v952 = vld [vmem:[%s213 + $0x250] sm:$0xff]
      %v953 = vld [vmem:[%s213 + $0x258] sm:$0xff]
      %v954 = vld [vmem:[%s213 + $0x260] sm:$0xff]
      %v955 = vld [vmem:[%s213 + $0x268] sm:$0xff]
      %v956 = vld [vmem:[%s213 + $0x270] sm:$0xff]
      %v957 = vld [vmem:[%s213 + $0x278] sm:$0xff]
      %v958 = vld [vmem:[%s213 + $0x280] sm:$0xff]
      %v959 = vld [vmem:[%s213 + $0x288] sm:$0xff]
      %v960 = vld [vmem:[%s213 + $0x290] sm:$0xff]
      %v961 = vld [vmem:[%s213 + $0x298] sm:$0xff]
      %v962 = vld [vmem:[%s213 + $0x2a0] sm:$0xff]
      %v963 = vld [vmem:[%s213 + $0x2a8] sm:$0xff]
      %v964 = vld [vmem:[%s213 + $0x2b0] sm:$0xff]
      %v965 = vld [vmem:[%s213 + $0x2b8] sm:$0xff]
      %v966 = vld [vmem:[%s213 + $0x2c0] sm:$0xff]
      %v967 = vld [vmem:[%s213 + $0x2c8] sm:$0xff]
      %v968 = vld [vmem:[%s213 + $0x2d0] sm:$0xff]
      %v969 = vld [vmem:[%s213 + $0x2d8] sm:$0xff]
      %v970 = vld [vmem:[%s213 + $0x2e0] sm:$0xff]
      %v971 = vld [vmem:[%s213 + $0x2e8] sm:$0xff]
      %v972 = vld [vmem:[%s213 + $0x2f0] sm:$0xff]
      %v973 = vld [vmem:[%s213 + $0x2f8] sm:$0xff]
      %v974 = vld [vmem:[%s213 + $0x300] sm:$0xff]
      %v975 = vld [vmem:[%s213 + $0x308] sm:$0xff]
      %v976 = vld [vmem:[%s213 + $0x310] sm:$0xff]
      %v977 = vld [vmem:[%s213 + $0x318] sm:$0xff]
      %v978 = vld [vmem:[%s213 + $0x320] sm:$0xff]
      %v979 = vld [vmem:[%s213 + $0x328] sm:$0xff]
      %v980 = vld [vmem:[%s213 + $0x330] sm:$0xff]
      %v981 = vld [vmem:[%s213 + $0x338] sm:$0xff]
      %v982 = vld [vmem:[%s213 + $0x340] sm:$0xff]
      %v983 = vld [vmem:[%s213 + $0x348] sm:$0xff]
      %v984 = vld [vmem:[%s213 + $0x350] sm:$0xff]
      %v985 = vld [vmem:[%s213 + $0x358] sm:$0xff]
      %v986 = vld [vmem:[%s213 + $0x360] sm:$0xff]
      %v987 = vld [vmem:[%s213 + $0x368] sm:$0xff]
      %v988 = vld [vmem:[%s213 + $0x370] sm:$0xff]
      %v989 = vld [vmem:[%s213 + $0x378] sm:$0xff]
      %v990 = vld [vmem:[%s213 + $0x380] sm:$0xff]
      %v991 = vld [vmem:[%s213 + $0x388] sm:$0xff]
      %v992 = vld [vmem:[%s213 + $0x390] sm:$0xff]
      %v993 = vld [vmem:[%s213 + $0x398] sm:$0xff]
      %v994 = vld [vmem:[%s213 + $0x3a0] sm:$0xff]
      %v995 = vld [vmem:[%s213 + $0x3a8] sm:$0xff]
      %v996 = vld [vmem:[%s213 + $0x3b0] sm:$0xff]
      %v997 = vld [vmem:[%s213 + $0x3b8] sm:$0xff]
      %v998 = vld [vmem:[%s213 + $0x3c0] sm:$0xff]
      %v999 = vld [vmem:[%s213 + $0x3c8] sm:$0xff]
      %v1000 = vld [vmem:[%s213 + $0x3d0] sm:$0xff]
      %v1001 = vld [vmem:[%s213 + $0x3d8] sm:$0xff]
      %v1002 = vld [vmem:[%s213 + $0x3e0] sm:$0xff]
      %v1003 = vld [vmem:[%s213 + $0x3e8] sm:$0xff]
      %v1004 = vld [vmem:[%s213 + $0x3f0] sm:$0xff]
      %v1005 = vld [vmem:[%s213 + $0x3f8] sm:$0xff]
      %v1006 = vld [vmem:[%s213 + $0x400] sm:$0xff]
      %v1007 = vld [vmem:[%s213 + $0x408] sm:$0xff]
      %v1008 = vld [vmem:[%s213 + $0x410] sm:$0xff]
      %v1009 = vld [vmem:[%s213 + $0x418] sm:$0xff]
      %v1010 = vld [vmem:[%s213 + $0x420] sm:$0xff]
      %v1011 = vld [vmem:[%s213 + $0x428] sm:$0xff]
      %v1012 = vld [vmem:[%s213 + $0x430] sm:$0xff]
      %v1013 = vld [vmem:[%s213 + $0x438] sm:$0xff]
      %v1014 = vld [vmem:[%s213 + $0x440] sm:$0xff]
      %v1015 = vld [vmem:[%s213 + $0x448] sm:$0xff]
      %v1016 = vld [vmem:[%s213 + $0x450] sm:$0xff]
      %v1017 = vld [vmem:[%s213 + $0x458] sm:$0xff]
      %v1018 = vld [vmem:[%s213 + $0x460] sm:$0xff]
      %v1019 = vld [vmem:[%s213 + $0x468] sm:$0xff]
      %v1020 = vld [vmem:[%s213 + $0x470] sm:$0xff]
      %v1021 = vld [vmem:[%s213 + $0x478] sm:$0xff]
      %v1022 = vld [vmem:[%s213 + $0x480] sm:$0xff]
      %v1023 = vld [vmem:[%s213 + $0x488] sm:$0xff]
      %v1024 = vld [vmem:[%s213 + $0x490] sm:$0xff]
      %v1025 = vld [vmem:[%s213 + $0x498] sm:$0xff]
      %v1026 = vld [vmem:[%s213 + $0x4a0] sm:$0xff]
      %v1027 = vld [vmem:[%s213 + $0x4a8] sm:$0xff]
      %v1028 = vld [vmem:[%s213 + $0x4b0] sm:$0xff]
      %v1029 = vld [vmem:[%s213 + $0x4b8] sm:$0xff]
      %v1030 = vld [vmem:[%s213 + $0x4c0] sm:$0xff]
      %v1031 = vld [vmem:[%s213 + $0x4c8] sm:$0xff]
      %v1032 = vld [vmem:[%s213 + $0x4d0] sm:$0xff]
      %v1033 = vld [vmem:[%s213 + $0x4d8] sm:$0xff]
      %v1034 = vld [vmem:[%s213 + $0x4e0] sm:$0xff]
      %v1035 = vld [vmem:[%s213 + $0x4e8] sm:$0xff]
      %v1036 = vld [vmem:[%s213 + $0x4f0] sm:$0xff]
      %v1037 = vld [vmem:[%s213 + $0x4f8] sm:$0xff]
      %v1038 = vld [vmem:[%s213 + $0x500] sm:$0xff]
      %v1039 = vld [vmem:[%s213 + $0x508] sm:$0xff]
      %v1040 = vld [vmem:[%s213 + $0x510] sm:$0xff]
      %v1041 = vld [vmem:[%s213 + $0x518] sm:$0xff]
      %v1042 = vld [vmem:[%s213 + $0x520] sm:$0xff]
      %v1043 = vld [vmem:[%s213 + $0x528] sm:$0xff]
      %v1044 = vld [vmem:[%s213 + $0x530] sm:$0xff]
      %v1045 = vld [vmem:[%s213 + $0x538] sm:$0xff]
      %v1046 = vld [vmem:[%s213 + $0x540] sm:$0xff]
      %v1047 = vld [vmem:[%s213 + $0x548] sm:$0xff]
      %v1048 = vld [vmem:[%s213 + $0x550] sm:$0xff]
      %v1049 = vld [vmem:[%s213 + $0x558] sm:$0xff]
      %v1050 = vld [vmem:[%s213 + $0x560] sm:$0xff]
      %v1051 = vld [vmem:[%s213 + $0x568] sm:$0xff]
      %v1052 = vld [vmem:[%s213 + $0x570] sm:$0xff]
      %v1053 = vld [vmem:[%s213 + $0x578] sm:$0xff]
      %v1054 = vld [vmem:[%s213 + $0x580] sm:$0xff]
      %v1055 = vld [vmem:[%s213 + $0x588] sm:$0xff]
      %v1056 = vld [vmem:[%s213 + $0x590] sm:$0xff]
      %v1057 = vld [vmem:[%s213 + $0x598] sm:$0xff]
      %v1058 = vld [vmem:[%s213 + $0x5a0] sm:$0xff]
      %v1059 = vld [vmem:[%s213 + $0x5a8] sm:$0xff]
      %v1060 = vld [vmem:[%s213 + $0x5b0] sm:$0xff]
      %v1061 = vld [vmem:[%s213 + $0x5b8] sm:$0xff]
      %v1062 = vld [vmem:[%s213 + $0x5c0] sm:$0xff]
      %v1063 = vld [vmem:[%s213 + $0x5c8] sm:$0xff]
      %v1064 = vld [vmem:[%s213 + $0x5d0] sm:$0xff]
      %v1065 = vld [vmem:[%s213 + $0x5d8] sm:$0xff]
      %v1066 = vld [vmem:[%s213 + $0x5e0] sm:$0xff]
      %v1067 = vld [vmem:[%s213 + $0x5e8] sm:$0xff]
      %v1068 = vld [vmem:[%s213 + $0x5f0] sm:$0xff]
      %v1069 = vld [vmem:[%s213 + $0x5f8] sm:$0xff]
      %v1070 = vld [vmem:[%s213 + $0x600] sm:$0xff]
      %v1071 = vld [vmem:[%s213 + $0x608] sm:$0xff]
      %v1072 = vld [vmem:[%s213 + $0x610] sm:$0xff]
      %v1073 = vld [vmem:[%s213 + $0x618] sm:$0xff]
      %v1074 = vld [vmem:[%s213 + $0x620] sm:$0xff]
      %v1075 = vld [vmem:[%s213 + $0x628] sm:$0xff]
      %v1076 = vld [vmem:[%s213 + $0x630] sm:$0xff]
      %v1077 = vld [vmem:[%s213 + $0x638] sm:$0xff]
      %v1078 = vld [vmem:[%s213 + $0x640] sm:$0xff]
      %v1079 = vld [vmem:[%s213 + $0x648] sm:$0xff]
      %v1080 = vld [vmem:[%s213 + $0x650] sm:$0xff]
      %v1081 = vld [vmem:[%s213 + $0x658] sm:$0xff]
      %v1082 = vld [vmem:[%s213 + $0x660] sm:$0xff]
      %v1083 = vld [vmem:[%s213 + $0x668] sm:$0xff]
      %v1084 = vld [vmem:[%s213 + $0x670] sm:$0xff]
      %v1085 = vld [vmem:[%s213 + $0x678] sm:$0xff]
      %v1086 = vld [vmem:[%s213 + $0x680] sm:$0xff]
      %v1087 = vld [vmem:[%s213 + $0x688] sm:$0xff]
      %v1088 = vld [vmem:[%s213 + $0x690] sm:$0xff]
      %v1089 = vld [vmem:[%s213 + $0x698] sm:$0xff]
      %v1090 = vld [vmem:[%s213 + $0x6a0] sm:$0xff]
      %v1091 = vld [vmem:[%s213 + $0x6a8] sm:$0xff]
      %v1092 = vld [vmem:[%s213 + $0x6b0] sm:$0xff]
      %v1093 = vld [vmem:[%s213 + $0x6b8] sm:$0xff]
      %v1094 = vld [vmem:[%s213 + $0x6c0] sm:$0xff]
      %v1095 = vld [vmem:[%s213 + $0x6c8] sm:$0xff]
      %v1096 = vld [vmem:[%s213 + $0x6d0] sm:$0xff]
      %v1097 = vld [vmem:[%s213 + $0x6d8] sm:$0xff]
      %v1098 = vld [vmem:[%s213 + $0x6e0] sm:$0xff]
      %v1099 = vld [vmem:[%s213 + $0x6e8] sm:$0xff]
      %v1100 = vld [vmem:[%s213 + $0x6f0] sm:$0xff]
      %v1101 = vld [vmem:[%s213 + $0x6f8] sm:$0xff]
      %v1102 = vld [vmem:[%s213 + $0x700] sm:$0xff]
      %v1103 = vld [vmem:[%s213 + $0x708] sm:$0xff]
      %v1104 = vld [vmem:[%s213 + $0x710] sm:$0xff]
      %v1105 = vld [vmem:[%s213 + $0x718] sm:$0xff]
      %v1106 = vld [vmem:[%s213 + $0x720] sm:$0xff]
      %v1107 = vld [vmem:[%s213 + $0x728] sm:$0xff]
      %v1108 = vld [vmem:[%s213 + $0x730] sm:$0xff]
      %v1109 = vld [vmem:[%s213 + $0x738] sm:$0xff]
      %v1110 = vld [vmem:[%s213 + $0x740] sm:$0xff]
      %v1111 = vld [vmem:[%s213 + $0x748] sm:$0xff]
      %v1112 = vld [vmem:[%s213 + $0x750] sm:$0xff]
      %v1113 = vld [vmem:[%s213 + $0x758] sm:$0xff]
      %v1114 = vld [vmem:[%s213 + $0x760] sm:$0xff]
      %v1115 = vld [vmem:[%s213 + $0x768] sm:$0xff]
      %v1116 = vld [vmem:[%s213 + $0x770] sm:$0xff]
      %v1117 = vld [vmem:[%s213 + $0x778] sm:$0xff]
      %v1118 = vld [vmem:[%s213 + $0x780] sm:$0xff]
      %v1119 = vld [vmem:[%s213 + $0x788] sm:$0xff]
      %v1120 = vld [vmem:[%s213 + $0x790] sm:$0xff]
      %v1121 = vld [vmem:[%s213 + $0x798] sm:$0xff]
      %v1122 = vld [vmem:[%s213 + $0x7a0] sm:$0xff]
      %v1123 = vld [vmem:[%s213 + $0x7a8] sm:$0xff]
      %v1124 = vld [vmem:[%s213 + $0x7b0] sm:$0xff]
      %v1125 = vld [vmem:[%s213 + $0x7b8] sm:$0xff]
      %v1126 = vld [vmem:[%s213 + $0x7c0] sm:$0xff]
      %v1127 = vld [vmem:[%s213 + $0x7c8] sm:$0xff]
      %v1128 = vld [vmem:[%s213 + $0x7d0] sm:$0xff]
      %v1129 = vld [vmem:[%s213 + $0x7d8] sm:$0xff]
      %v1130 = vld [vmem:[%s213 + $0x7e0] sm:$0xff]
      %v1131 = vld [vmem:[%s213 + $0x7e8] sm:$0xff]
      %v1132 = vld [vmem:[%s213 + $0x7f0] sm:$0xff]
      %v1133 = vld [vmem:[%s213 + $0x7f8] sm:$0xff]
      %v1134 = vld [vmem:[%s213 + $0x800] sm:$0xff]
      %v1135 = vld [vmem:[%s213 + $0x808] sm:$0xff]
      %v1136 = vld [vmem:[%s213 + $0x810] sm:$0xff]
      %v1137 = vld [vmem:[%s213 + $0x818] sm:$0xff]
      %v1138 = vld [vmem:[%s213 + $0x820] sm:$0xff]
      %v1139 = vld [vmem:[%s213 + $0x828] sm:$0xff]
      %v1140 = vld [vmem:[%s213 + $0x830] sm:$0xff]
      %v1141 = vld [vmem:[%s213 + $0x838] sm:$0xff]
      %v1142 = vld [vmem:[%s213 + $0x840] sm:$0xff]
      %v1143 = vld [vmem:[%s213 + $0x848] sm:$0xff]
      %v1144 = vld [vmem:[%s213 + $0x850] sm:$0xff]
      %v1145 = vld [vmem:[%s213 + $0x858] sm:$0xff]
      %v1146 = vld [vmem:[%s213 + $0x860] sm:$0xff]
      %v1147 = vld [vmem:[%s213 + $0x868] sm:$0xff]
      %v1148 = vld [vmem:[%s213 + $0x870] sm:$0xff]
      %v1149 = vld [vmem:[%s213 + $0x878] sm:$0xff]
      %v1150 = vld [vmem:[%s213 + $0x880] sm:$0xff]
      %v1151 = vld [vmem:[%s213 + $0x888] sm:$0xff]
      %v1152 = vld [vmem:[%s213 + $0x890] sm:$0xff]
      %v1153 = vld [vmem:[%s213 + $0x898] sm:$0xff]
      %v1154 = vld [vmem:[%s213 + $0x8a0] sm:$0xff]
      %v1155 = vld [vmem:[%s213 + $0x8a8] sm:$0xff]
      %v1156 = vld [vmem:[%s213 + $0x8b0] sm:$0xff]
      %v1157 = vld [vmem:[%s213 + $0x8b8] sm:$0xff]
      %v1158 = vld [vmem:[%s213 + $0x8c0] sm:$0xff]
      %v1159 = vld [vmem:[%s213 + $0x8c8] sm:$0xff]
      %v1160 = vld [vmem:[%s213 + $0x8d0] sm:$0xff]
      %v1161 = vld [vmem:[%s213 + $0x8d8] sm:$0xff]
      %v1162 = vld [vmem:[%s213 + $0x8e0] sm:$0xff]
      %v1163 = vld [vmem:[%s213 + $0x8e8] sm:$0xff]
      %v1164 = vld [vmem:[%s213 + $0x8f0] sm:$0xff]
      %v1165 = vld [vmem:[%s213 + $0x8f8] sm:$0xff]
      %v1166 = vld [vmem:[%s213 + $0x900] sm:$0xff]
      %v1167 = vld [vmem:[%s213 + $0x908] sm:$0xff]
      %v1168 = vld [vmem:[%s213 + $0x910] sm:$0xff]
      %v1169 = vld [vmem:[%s213 + $0x918] sm:$0xff]
      %v1170 = vld [vmem:[%s213 + $0x920] sm:$0xff]
      %v1171 = vld [vmem:[%s213 + $0x928] sm:$0xff]
      %v1172 = vld [vmem:[%s213 + $0x930] sm:$0xff]
      %v1173 = vld [vmem:[%s213 + $0x938] sm:$0xff]
      %v1174 = vld [vmem:[%s213 + $0x940] sm:$0xff]
      %v1175 = vld [vmem:[%s213 + $0x948] sm:$0xff]
      %v1176 = vld [vmem:[%s213 + $0x950] sm:$0xff]
      %v1177 = vld [vmem:[%s213 + $0x958] sm:$0xff]
      %v1178 = vld [vmem:[%s213 + $0x960] sm:$0xff]
      %v1179 = vld [vmem:[%s213 + $0x968] sm:$0xff]
      %v1180 = vld [vmem:[%s213 + $0x970] sm:$0xff]
      %v1181 = vld [vmem:[%s213 + $0x978] sm:$0xff]
      %v1182 = vld [vmem:[%s213 + $0x980] sm:$0xff]
      %v1183 = vld [vmem:[%s213 + $0x988] sm:$0xff]
      %v1184 = vld [vmem:[%s213 + $0x990] sm:$0xff]
      %v1185 = vld [vmem:[%s213 + $0x998] sm:$0xff]
      %v1186 = vld [vmem:[%s213 + $0x9a0] sm:$0xff]
      %v1187 = vld [vmem:[%s213 + $0x9a8] sm:$0xff]
      %v1188 = vld [vmem:[%s213 + $0x9b0] sm:$0xff]
      %v1189 = vld [vmem:[%s213 + $0x9b8] sm:$0xff]
      %v1190 = vld [vmem:[%s213 + $0x9c0] sm:$0xff]
      %v1191 = vld [vmem:[%s213 + $0x9c8] sm:$0xff]
      %v1192 = vld [vmem:[%s213 + $0x9d0] sm:$0xff]
      %v1193 = vld [vmem:[%s213 + $0x9d8] sm:$0xff]
      %v1194 = vld [vmem:[%s213 + $0x9e0] sm:$0xff]
      %v1195 = vld [vmem:[%s213 + $0x9e8] sm:$0xff]
      %v1196 = vld [vmem:[%s213 + $0x9f0] sm:$0xff]
      %v1197 = vld [vmem:[%s213 + $0x9f8] sm:$0xff]
      %v1198 = vld [vmem:[%s213 + $0xa00] sm:$0xff]
      %v1199 = vld [vmem:[%s213 + $0xa08] sm:$0xff]
      %v1200 = vld [vmem:[%s213 + $0xa10] sm:$0xff]
      %v1201 = vld [vmem:[%s213 + $0xa18] sm:$0xff]
      %v1202 = vld [vmem:[%s213 + $0xa20] sm:$0xff]
      %v1203 = vld [vmem:[%s213 + $0xa28] sm:$0xff]
      %v1204 = vld [vmem:[%s213 + $0xa30] sm:$0xff]
      %v1205 = vld [vmem:[%s213 + $0xa38] sm:$0xff]
      %v1206 = vld [vmem:[%s213 + $0xa40] sm:$0xff]
      %v1207 = vld [vmem:[%s213 + $0xa48] sm:$0xff]
      %v1208 = vld [vmem:[%s213 + $0xa50] sm:$0xff]
      %v1209 = vld [vmem:[%s213 + $0xa58] sm:$0xff]
      %v1210 = vld [vmem:[%s213 + $0xa60] sm:$0xff]
      %v1211 = vld [vmem:[%s213 + $0xa68] sm:$0xff]
      %v1212 = vld [vmem:[%s213 + $0xa70] sm:$0xff]
      %v1213 = vld [vmem:[%s213 + $0xa78] sm:$0xff]
      %v1214 = vld [vmem:[%s213 + $0xa80] sm:$0xff]
      %v1215 = vld [vmem:[%s213 + $0xa88] sm:$0xff]
      %v1216 = vld [vmem:[%s213 + $0xa90] sm:$0xff]
      %v1217 = vld [vmem:[%s213 + $0xa98] sm:$0xff]
      %v1218 = vld [vmem:[%s213 + $0xaa0] sm:$0xff]
      %v1219 = vld [vmem:[%s213 + $0xaa8] sm:$0xff]
      %v1220 = vld [vmem:[%s213 + $0xab0] sm:$0xff]
      %v1221 = vld [vmem:[%s213 + $0xab8] sm:$0xff]
      %v1222 = vld [vmem:[%s213 + $0xac0] sm:$0xff]
      %v1223 = vld [vmem:[%s213 + $0xac8] sm:$0xff]
      %v1224 = vld [vmem:[%s213 + $0xad0] sm:$0xff]
      %v1225 = vld [vmem:[%s213 + $0xad8] sm:$0xff]
      %v1226 = vld [vmem:[%s213 + $0xae0] sm:$0xff]
      %v1227 = vld [vmem:[%s213 + $0xae8] sm:$0xff]
      %v1228 = vld [vmem:[%s213 + $0xaf0] sm:$0xff]
      %v1229 = vld [vmem:[%s213 + $0xaf8] sm:$0xff]
      %v1230 = vld [vmem:[%s213 + $0xb00] sm:$0xff]
      %v1231 = vld [vmem:[%s213 + $0xb08] sm:$0xff]
      %v1232 = vld [vmem:[%s213 + $0xb10] sm:$0xff]
      %v1233 = vld [vmem:[%s213 + $0xb18] sm:$0xff]
      %v1234 = vld [vmem:[%s213 + $0xb20] sm:$0xff]
      %v1235 = vld [vmem:[%s213 + $0xb28] sm:$0xff]
      %v1236 = vld [vmem:[%s213 + $0xb30] sm:$0xff]
      %v1237 = vld [vmem:[%s213 + $0xb38] sm:$0xff]
      %v1238 = vld [vmem:[%s213 + $0xb40] sm:$0xff]
      %v1239 = vld [vmem:[%s213 + $0xb48] sm:$0xff]
      %v1240 = vld [vmem:[%s213 + $0xb50] sm:$0xff]
      %v1241 = vld [vmem:[%s213 + $0xb58] sm:$0xff]
      %v1242 = vld [vmem:[%s213 + $0xb60] sm:$0xff]
      %v1243 = vld [vmem:[%s213 + $0xb68] sm:$0xff]
      %v1244 = vld [vmem:[%s213 + $0xb70] sm:$0xff]
      %v1245 = vld [vmem:[%s213 + $0xb78] sm:$0xff]
      %v1246 = vld [vmem:[%s213 + $0xb80] sm:$0xff]
      %v1247 = vld [vmem:[%s213 + $0xb88] sm:$0xff]
      %v1248 = vld [vmem:[%s213 + $0xb90] sm:$0xff]
      %v1249 = vld [vmem:[%s213 + $0xb98] sm:$0xff]
      %v1250 = vld [vmem:[%s213 + $0xba0] sm:$0xff]
      %v1251 = vld [vmem:[%s213 + $0xba8] sm:$0xff]
      %v1252 = vld [vmem:[%s213 + $0xbb0] sm:$0xff]
      %v1253 = vld [vmem:[%s213 + $0xbb8] sm:$0xff]
      %v1254 = vld [vmem:[%s213 + $0xbc0] sm:$0xff]
      %v1255 = vld [vmem:[%s213 + $0xbc8] sm:$0xff]
      %v1256 = vld [vmem:[%s213 + $0xbd0] sm:$0xff]
      %v1257 = vld [vmem:[%s213 + $0xbd8] sm:$0xff]
      %v1258 = vld [vmem:[%s213 + $0xbe0] sm:$0xff]
      %v1259 = vld [vmem:[%s213 + $0xbe8] sm:$0xff]
      %v1260 = vld [vmem:[%s213 + $0xbf0] sm:$0xff]
      %v1261 = vld [vmem:[%s213 + $0xbf8] sm:$0xff]
      %v1262 = vld [vmem:[%s213 + $0xc00] sm:$0xff]
      %v1263 = vld [vmem:[%s213 + $0xc08] sm:$0xff]
      %v1264 = vld [vmem:[%s213 + $0xc10] sm:$0xff]
      %v1265 = vld [vmem:[%s213 + $0xc18] sm:$0xff]
      %v1266 = vld [vmem:[%s213 + $0xc20] sm:$0xff]
      %v1267 = vld [vmem:[%s213 + $0xc28] sm:$0xff]
      %v1268 = vld [vmem:[%s213 + $0xc30] sm:$0xff]
      %v1269 = vld [vmem:[%s213 + $0xc38] sm:$0xff]
      %v1270 = vld [vmem:[%s213 + $0xc40] sm:$0xff]
      %v1271 = vld [vmem:[%s213 + $0xc48] sm:$0xff]
      %v1272 = vld [vmem:[%s213 + $0xc50] sm:$0xff]
      %v1273 = vld [vmem:[%s213 + $0xc58] sm:$0xff]
      %v1274 = vld [vmem:[%s213 + $0xc60] sm:$0xff]
      %v1275 = vld [vmem:[%s213 + $0xc68] sm:$0xff]
      %v1276 = vld [vmem:[%s213 + $0xc70] sm:$0xff]
      %v1277 = vld [vmem:[%s213 + $0xc78] sm:$0xff]
      %v1278 = vld [vmem:[%s213 + $0xc80] sm:$0xff]
      %v1279 = vld [vmem:[%s213 + $0xc88] sm:$0xff]
      %v1280 = vld [vmem:[%s213 + $0xc90] sm:$0xff]
      %v1281 = vld [vmem:[%s213 + $0xc98] sm:$0xff]
      %v1282 = vld [vmem:[%s213 + $0xca0] sm:$0xff]
      %v1283 = vld [vmem:[%s213 + $0xca8] sm:$0xff]
      %v1284 = vld [vmem:[%s213 + $0xcb0] sm:$0xff]
      %v1285 = vld [vmem:[%s213 + $0xcb8] sm:$0xff]
      %v1286 = vld [vmem:[%s213 + $0xcc0] sm:$0xff]
      %v1287 = vld [vmem:[%s213 + $0xcc8] sm:$0xff]
      %v1288 = vld [vmem:[%s213 + $0xcd0] sm:$0xff]
      %v1289 = vld [vmem:[%s213 + $0xcd8] sm:$0xff]
      %v1290 = vld [vmem:[%s213 + $0xce0] sm:$0xff]
      %v1291 = vld [vmem:[%s213 + $0xce8] sm:$0xff]
      %v1292 = vld [vmem:[%s213 + $0xcf0] sm:$0xff]
      %v1293 = vld [vmem:[%s213 + $0xcf8] sm:$0xff]
      %v1294 = vld [vmem:[%s213 + $0xd00] sm:$0xff]
      %v1295 = vld [vmem:[%s213 + $0xd08] sm:$0xff]
      %v1296 = vld [vmem:[%s213 + $0xd10] sm:$0xff]
      %v1297 = vld [vmem:[%s213 + $0xd18] sm:$0xff]
      %v1298 = vld [vmem:[%s213 + $0xd20] sm:$0xff]
      %v1299 = vld [vmem:[%s213 + $0xd28] sm:$0xff]
      %v1300 = vld [vmem:[%s213 + $0xd30] sm:$0xff]
      %v1301 = vld [vmem:[%s213 + $0xd38] sm:$0xff]
      %v1302 = vld [vmem:[%s213 + $0xd40] sm:$0xff]
      %v1303 = vld [vmem:[%s213 + $0xd48] sm:$0xff]
      %v1304 = vld [vmem:[%s213 + $0xd50] sm:$0xff]
      %v1305 = vld [vmem:[%s213 + $0xd58] sm:$0xff]
      %v1306 = vld [vmem:[%s213 + $0xd60] sm:$0xff]
      %v1307 = vld [vmem:[%s213 + $0xd68] sm:$0xff]
      %v1308 = vld [vmem:[%s213 + $0xd70] sm:$0xff]
      %v1309 = vld [vmem:[%s213 + $0xd78] sm:$0xff]
      %v1310 = vld [vmem:[%s213 + $0xd80] sm:$0xff]
      %v1311 = vld [vmem:[%s213 + $0xd88] sm:$0xff]
      %v1312 = vld [vmem:[%s213 + $0xd90] sm:$0xff]
      %v1313 = vld [vmem:[%s213 + $0xd98] sm:$0xff]
      %v1314 = vld [vmem:[%s213 + $0xda0] sm:$0xff]
      %v1315 = vld [vmem:[%s213 + $0xda8] sm:$0xff]
      %v1316 = vld [vmem:[%s213 + $0xdb0] sm:$0xff]
      %v1317 = vld [vmem:[%s213 + $0xdb8] sm:$0xff]
      %v1318 = vld [vmem:[%s213 + $0xdc0] sm:$0xff]
      %v1319 = vld [vmem:[%s213 + $0xdc8] sm:$0xff]
      %v1320 = vld [vmem:[%s213 + $0xdd0] sm:$0xff]
      %v1321 = vld [vmem:[%s213 + $0xdd8] sm:$0xff]
      %v1322 = vld [vmem:[%s213 + $0xde0] sm:$0xff]
      %v1323 = vld [vmem:[%s213 + $0xde8] sm:$0xff]
      %v1324 = vld [vmem:[%s213 + $0xdf0] sm:$0xff]
      %v1325 = vld [vmem:[%s213 + $0xdf8] sm:$0xff]
      %v1326 = vld [vmem:[%s213 + $0xe00] sm:$0xff]
      %v1327 = vld [vmem:[%s213 + $0xe08] sm:$0xff]
      %v1328 = vld [vmem:[%s213 + $0xe10] sm:$0xff]
      %v1329 = vld [vmem:[%s213 + $0xe18] sm:$0xff]
      %v1330 = vld [vmem:[%s213 + $0xe20] sm:$0xff]
      %v1331 = vld [vmem:[%s213 + $0xe28] sm:$0xff]
      %v1332 = vld [vmem:[%s213 + $0xe30] sm:$0xff]
      %v1333 = vld [vmem:[%s213 + $0xe38] sm:$0xff]
      %v1334 = vld [vmem:[%s213 + $0xe40] sm:$0xff]
      %v1335 = vld [vmem:[%s213 + $0xe48] sm:$0xff]
      %v1336 = vld [vmem:[%s213 + $0xe50] sm:$0xff]
      %v1337 = vld [vmem:[%s213 + $0xe58] sm:$0xff]
      %v1338 = vld [vmem:[%s213 + $0xe60] sm:$0xff]
      %v1339 = vld [vmem:[%s213 + $0xe68] sm:$0xff]
      %v1340 = vld [vmem:[%s213 + $0xe70] sm:$0xff]
      %v1341 = vld [vmem:[%s213 + $0xe78] sm:$0xff]
      %v1342 = vld [vmem:[%s213 + $0xe80] sm:$0xff]
      %v1343 = vld [vmem:[%s213 + $0xe88] sm:$0xff]
      %v1344 = vld [vmem:[%s213 + $0xe90] sm:$0xff]
      %v1345 = vld [vmem:[%s213 + $0xe98] sm:$0xff]
      %v1346 = vld [vmem:[%s213 + $0xea0] sm:$0xff]
      %v1347 = vld [vmem:[%s213 + $0xea8] sm:$0xff]
      %v1348 = vld [vmem:[%s213 + $0xeb0] sm:$0xff]
      %v1349 = vld [vmem:[%s213 + $0xeb8] sm:$0xff]
      %v1350 = vld [vmem:[%s213 + $0xec0] sm:$0xff]
      %v1351 = vld [vmem:[%s213 + $0xec8] sm:$0xff]
      %v1352 = vld [vmem:[%s213 + $0xed0] sm:$0xff]
      %v1353 = vld [vmem:[%s213 + $0xed8] sm:$0xff]
      %v1354 = vld [vmem:[%s213 + $0xee0] sm:$0xff]
      %v1355 = vld [vmem:[%s213 + $0xee8] sm:$0xff]
      %v1356 = vld [vmem:[%s213 + $0xef0] sm:$0xff]
      %v1357 = vld [vmem:[%s213 + $0xef8] sm:$0xff]
      %v1358 = vld [vmem:[%s213 + $0xf00] sm:$0xff]
      %v1359 = vld [vmem:[%s213 + $0xf08] sm:$0xff]
      %v1360 = vld [vmem:[%s213 + $0xf10] sm:$0xff]
      %v1361 = vld [vmem:[%s213 + $0xf18] sm:$0xff]
      %v1362 = vld [vmem:[%s213 + $0xf20] sm:$0xff]
      %v1363 = vld [vmem:[%s213 + $0xf28] sm:$0xff]
      %v1364 = vld [vmem:[%s213 + $0xf30] sm:$0xff]
      %v1365 = vld [vmem:[%s213 + $0xf38] sm:$0xff]
      %v1366 = vld [vmem:[%s213 + $0xf40] sm:$0xff]
      %v1367 = vld [vmem:[%s213 + $0xf48] sm:$0xff]
      %v1368 = vld [vmem:[%s213 + $0xf50] sm:$0xff]
      %v1369 = vld [vmem:[%s213 + $0xf58] sm:$0xff]
      %v1370 = vld [vmem:[%s213 + $0xf60] sm:$0xff]
      %v1371 = vld [vmem:[%s213 + $0xf68] sm:$0xff]
      %v1372 = vld [vmem:[%s213 + $0xf70] sm:$0xff]
      %v1373 = vld [vmem:[%s213 + $0xf78] sm:$0xff]
      %v1374 = vld [vmem:[%s213 + $0xf80] sm:$0xff]
      %v1375 = vld [vmem:[%s213 + $0xf88] sm:$0xff]
      %v1376 = vld [vmem:[%s213 + $0xf90] sm:$0xff]
      %v1377 = vld [vmem:[%s213 + $0xf98] sm:$0xff]
      %v1378 = vld [vmem:[%s213 + $0xfa0] sm:$0xff]
      %v1379 = vld [vmem:[%s213 + $0xfa8] sm:$0xff]
      %v1380 = vld [vmem:[%s213 + $0xfb0] sm:$0xff]
      %v1381 = vld [vmem:[%s213 + $0xfb8] sm:$0xff]
      %v1382 = vld [vmem:[%s213 + $0xfc0] sm:$0xff]
      %v1383 = vld [vmem:[%s213 + $0xfc8] sm:$0xff]
      %v1384 = vld [vmem:[%s213 + $0xfd0] sm:$0xff]
      %v1385 = vld [vmem:[%s213 + $0xfd8] sm:$0xff]
      %v1386 = vld [vmem:[%s213 + $0xfe0] sm:$0xff]
      %v1387 = vld [vmem:[%s213 + $0xfe8] sm:$0xff]
      %v1388 = vld [vmem:[%s213 + $0xff0] sm:$0xff]
      %v1389 = vld [vmem:[%s213 + $0xff8] sm:$0xff]
      %v1390 = vld [vmem:[%s213 + $0x1000] sm:$0xff]
      %v1391 = vld [vmem:[%s213 + $0x1008] sm:$0xff]
      %v1392 = vld [vmem:[%s213 + $0x1010] sm:$0xff]
      %v1393 = vld [vmem:[%s213 + $0x1018] sm:$0xff]
      %v1394 = vld [vmem:[%s213 + $0x1020] sm:$0xff]
      %v1395 = vld [vmem:[%s213 + $0x1028] sm:$0xff]
      %v1396 = vld [vmem:[%s213 + $0x1030] sm:$0xff]
      %v1397 = vld [vmem:[%s213 + $0x1038] sm:$0xff]
      %v1398 = vld [vmem:[%s213 + $0x1040] sm:$0xff]
      %v1399 = vld [vmem:[%s213 + $0x1048] sm:$0xff]
      %v1400 = vld [vmem:[%s213 + $0x1050] sm:$0xff]
      %v1401 = vld [vmem:[%s213 + $0x1058] sm:$0xff]
      %v1402 = vld [vmem:[%s213 + $0x1060] sm:$0xff]
      %v1403 = vld [vmem:[%s213 + $0x1068] sm:$0xff]
      %v1404 = vld [vmem:[%s213 + $0x1070] sm:$0xff]
      %v1405 = vld [vmem:[%s213 + $0x1078] sm:$0xff]
      %v1406 = vld [vmem:[%s213 + $0x1080] sm:$0xff]
      %v1407 = vld [vmem:[%s213 + $0x1088] sm:$0xff]
      %v1408 = vld [vmem:[%s213 + $0x1090] sm:$0xff]
      %v1409 = vld [vmem:[%s213 + $0x1098] sm:$0xff]
      %v1410 = vld [vmem:[%s213 + $0x10a0] sm:$0xff]
      %v1411 = vld [vmem:[%s213 + $0x10a8] sm:$0xff]
      %v1412 = vld [vmem:[%s213 + $0x10b0] sm:$0xff]
      %v1413 = vld [vmem:[%s213 + $0x10b8] sm:$0xff]
      %v1414 = vld [vmem:[%s213 + $0x10c0] sm:$0xff]
      %v1415 = vld [vmem:[%s213 + $0x10c8] sm:$0xff]
      %v1416 = vld [vmem:[%s213 + $0x10d0] sm:$0xff]
      %v1417 = vld [vmem:[%s213 + $0x10d8] sm:$0xff]
      %v1418 = vld [vmem:[%s213 + $0x10e0] sm:$0xff]
      %v1419 = vld [vmem:[%s213 + $0x10e8] sm:$0xff]
      %v1420 = vld [vmem:[%s213 + $0x10f0] sm:$0xff]
      %v1421 = vld [vmem:[%s213 + $0x10f8] sm:$0xff]
      %v1422 = vld [vmem:[%s213 + $0x1100] sm:$0xff]
      %v1423 = vld [vmem:[%s213 + $0x1108] sm:$0xff]
      %v1424 = vld [vmem:[%s213 + $0x1110] sm:$0xff]
      %v1425 = vld [vmem:[%s213 + $0x1118] sm:$0xff]
      %v1426 = vld [vmem:[%s213 + $0x1120] sm:$0xff]
      %v1427 = vld [vmem:[%s213 + $0x1128] sm:$0xff]
      %v1428 = vld [vmem:[%s213 + $0x1130] sm:$0xff]
      %v1429 = vld [vmem:[%s213 + $0x1138] sm:$0xff]
      %v1430 = vld [vmem:[%s213 + $0x1140] sm:$0xff]
      %v1431 = vld [vmem:[%s213 + $0x1148] sm:$0xff]
      %v1432 = vld [vmem:[%s213 + $0x1150] sm:$0xff]
      %v1433 = vld [vmem:[%s213 + $0x1158] sm:$0xff]
      %v1434 = vld [vmem:[%s213 + $0x1160] sm:$0xff]
      %v1435 = vld [vmem:[%s213 + $0x1168] sm:$0xff]
      %v1436 = vld [vmem:[%s213 + $0x1170] sm:$0xff]
      %v1437 = vld [vmem:[%s213 + $0x1178] sm:$0xff]
      %v1438 = vld [vmem:[%s213 + $0x1180] sm:$0xff]
      %v1439 = vld [vmem:[%s213 + $0x1188] sm:$0xff]
      %v1440 = vld [vmem:[%s213 + $0x1190] sm:$0xff]
      %v1441 = vld [vmem:[%s213 + $0x1198] sm:$0xff]
      %v1442 = vld [vmem:[%s213 + $0x11a0] sm:$0xff]
      %v1443 = vld [vmem:[%s213 + $0x11a8] sm:$0xff]
      %v1444 = vld [vmem:[%s213 + $0x11b0] sm:$0xff]
      %v1445 = vld [vmem:[%s213 + $0x11b8] sm:$0xff]
      %v1446 = vld [vmem:[%s213 + $0x11c0] sm:$0xff]
      %v1447 = vld [vmem:[%s213 + $0x11c8] sm:$0xff]
      %v1448 = vld [vmem:[%s213 + $0x11d0] sm:$0xff]
      %v1449 = vld [vmem:[%s213 + $0x11d8] sm:$0xff]
      %v1450 = vld [vmem:[%s213 + $0x11e0] sm:$0xff]
      %v1451 = vld [vmem:[%s213 + $0x11e8] sm:$0xff]
      %v1452 = vld [vmem:[%s213 + $0x11f0] sm:$0xff]
      %v1453 = vld [vmem:[%s213 + $0x11f8] sm:$0xff]
      %v1454 = vld [vmem:[%s213 + $0x1200] sm:$0xff]
      %v1455 = vld [vmem:[%s213 + $0x1208] sm:$0xff]
      %v1456 = vld [vmem:[%s213 + $0x1210] sm:$0xff]
      %v1457 = vld [vmem:[%s213 + $0x1218] sm:$0xff]
      %v1458 = vld [vmem:[%s213 + $0x1220] sm:$0xff]
      %v1459 = vld [vmem:[%s213 + $0x1228] sm:$0xff]
      %v1460 = vld [vmem:[%s213 + $0x1230] sm:$0xff]
      %v1461 = vld [vmem:[%s213 + $0x1238] sm:$0xff]
      %v1462 = vld [vmem:[%s213 + $0x1240] sm:$0xff]
      %v1463 = vld [vmem:[%s213 + $0x1248] sm:$0xff]
      %v1464 = vld [vmem:[%s213 + $0x1250] sm:$0xff]
      %v1465 = vld [vmem:[%s213 + $0x1258] sm:$0xff]
      %v1466 = vld [vmem:[%s213 + $0x1260] sm:$0xff]
      %v1467 = vld [vmem:[%s213 + $0x1268] sm:$0xff]
      %v1468 = vld [vmem:[%s213 + $0x1270] sm:$0xff]
      %v1469 = vld [vmem:[%s213 + $0x1278] sm:$0xff]
      %v1470 = vld [vmem:[%s213 + $0x1280] sm:$0xff]
      %v1471 = vld [vmem:[%s213 + $0x1288] sm:$0xff]
      %v1472 = vld [vmem:[%s213 + $0x1290] sm:$0xff]
      %v1473 = vld [vmem:[%s213 + $0x1298] sm:$0xff]
      %v1474 = vld [vmem:[%s213 + $0x12a0] sm:$0xff]
      %v1475 = vld [vmem:[%s213 + $0x12a8] sm:$0xff]
      %v1476 = vld [vmem:[%s213 + $0x12b0] sm:$0xff]
      %v1477 = vld [vmem:[%s213 + $0x12b8] sm:$0xff]
      %v1478 = vld [vmem:[%s213 + $0x12c0] sm:$0xff]
      %v1479 = vld [vmem:[%s213 + $0x12c8] sm:$0xff]
      %v1480 = vld [vmem:[%s213 + $0x12d0] sm:$0xff]
      %v1481 = vld [vmem:[%s213 + $0x12d8] sm:$0xff]
      %v1482 = vld [vmem:[%s213 + $0x12e0] sm:$0xff]
      %v1483 = vld [vmem:[%s213 + $0x12e8] sm:$0xff]
      %v1484 = vld [vmem:[%s213 + $0x12f0] sm:$0xff]
      %v1485 = vld [vmem:[%s213 + $0x12f8] sm:$0xff]
      %v1486 = vld [vmem:[%s213 + $0x1300] sm:$0xff]
      %v1487 = vld [vmem:[%s213 + $0x1308] sm:$0xff]
      %v1488 = vld [vmem:[%s213 + $0x1310] sm:$0xff]
      %v1489 = vld [vmem:[%s213 + $0x1318] sm:$0xff]
      %v1490 = vld [vmem:[%s213 + $0x1320] sm:$0xff]
      %v1491 = vld [vmem:[%s213 + $0x1328] sm:$0xff]
      %v1492 = vld [vmem:[%s213 + $0x1330] sm:$0xff]
      %v1493 = vld [vmem:[%s213 + $0x1338] sm:$0xff]
      %v1494 = vld [vmem:[%s213 + $0x1340] sm:$0xff]
      %v1495 = vld [vmem:[%s213 + $0x1348] sm:$0xff]
      %v1496 = vld [vmem:[%s213 + $0x1350] sm:$0xff]
      %v1497 = vld [vmem:[%s213 + $0x1358] sm:$0xff]
      %v1498 = vld [vmem:[%s213 + $0x1360] sm:$0xff]
      %v1499 = vld [vmem:[%s213 + $0x1368] sm:$0xff]
      %v1500 = vld [vmem:[%s213 + $0x1370] sm:$0xff]
      %v1501 = vld [vmem:[%s213 + $0x1378] sm:$0xff]
      %v1502 = vld [vmem:[%s213 + $0x1380] sm:$0xff]
      %v1503 = vld [vmem:[%s213 + $0x1388] sm:$0xff]
      %v1504 = vld [vmem:[%s213 + $0x1390] sm:$0xff]
      %v1505 = vld [vmem:[%s213 + $0x1398] sm:$0xff]
      %v1506 = vld [vmem:[%s213 + $0x13a0] sm:$0xff]
      %v1507 = vld [vmem:[%s213 + $0x13a8] sm:$0xff]
      %v1508 = vld [vmem:[%s213 + $0x13b0] sm:$0xff]
      %v1509 = vld [vmem:[%s213 + $0x13b8] sm:$0xff]
      %v1510 = vld [vmem:[%s213 + $0x13c0] sm:$0xff]
      %v1511 = vld [vmem:[%s213 + $0x13c8] sm:$0xff]
      %v1512 = vld [vmem:[%s213 + $0x13d0] sm:$0xff]
      %v1513 = vld [vmem:[%s213 + $0x13d8] sm:$0xff]
      %v1514 = vld [vmem:[%s213 + $0x13e0] sm:$0xff]
      %v1515 = vld [vmem:[%s213 + $0x13e8] sm:$0xff]
      %v1516 = vld [vmem:[%s213 + $0x13f0] sm:$0xff]
      %v1517 = vld [vmem:[%s213 + $0x13f8] sm:$0xff]
      %v1518 = vld [vmem:[%s213 + $0x1400] sm:$0xff]
      %v1519 = vld [vmem:[%s213 + $0x1408] sm:$0xff]
      %v1520 = vld [vmem:[%s213 + $0x1410] sm:$0xff]
      %v1521 = vld [vmem:[%s213 + $0x1418] sm:$0xff]
      %v1522 = vld [vmem:[%s213 + $0x1420] sm:$0xff]
      %v1523 = vld [vmem:[%s213 + $0x1428] sm:$0xff]
      %v1524 = vld [vmem:[%s213 + $0x1430] sm:$0xff]
      %v1525 = vld [vmem:[%s213 + $0x1438] sm:$0xff]
      %v1526 = vld [vmem:[%s213 + $0x1440] sm:$0xff]
      %v1527 = vld [vmem:[%s213 + $0x1448] sm:$0xff]
      %v1528 = vld [vmem:[%s213 + $0x1450] sm:$0xff]
      %v1529 = vld [vmem:[%s213 + $0x1458] sm:$0xff]
      %v1530 = vld [vmem:[%s213 + $0x1460] sm:$0xff]
      %v1531 = vld [vmem:[%s213 + $0x1468] sm:$0xff]
      %v1532 = vld [vmem:[%s213 + $0x1470] sm:$0xff]
      %v1533 = vld [vmem:[%s213 + $0x1478] sm:$0xff]
      %v1534 = vld [vmem:[%s213 + $0x1480] sm:$0xff]
      %v1535 = vld [vmem:[%s213 + $0x1488] sm:$0xff]
      %v1536 = vld [vmem:[%s213 + $0x1490] sm:$0xff]
      %v1537 = vld [vmem:[%s213 + $0x1498] sm:$0xff]
      %v1538 = vld [vmem:[%s213 + $0x14a0] sm:$0xff]
      %v1539 = vld [vmem:[%s213 + $0x14a8] sm:$0xff]
      %v1540 = vld [vmem:[%s213 + $0x14b0] sm:$0xff]
      %v1541 = vld [vmem:[%s213 + $0x14b8] sm:$0xff]
      %v1542 = vld [vmem:[%s213 + $0x14c0] sm:$0xff]
      %v1543 = vld [vmem:[%s213 + $0x14c8] sm:$0xff]
      %v1544 = vld [vmem:[%s213 + $0x14d0] sm:$0xff]
      %v1545 = vld [vmem:[%s213 + $0x14d8] sm:$0xff]
      %v1546 = vld [vmem:[%s213 + $0x14e0] sm:$0xff]
      %v1547 = vld [vmem:[%s213 + $0x14e8] sm:$0xff]
      %v1548 = vld [vmem:[%s213 + $0x14f0] sm:$0xff]
      %v1549 = vld [vmem:[%s213 + $0x14f8] sm:$0xff]
      %v1550 = vld [vmem:[%s213 + $0x1500] sm:$0xff]
      %v1551 = vld [vmem:[%s213 + $0x1508] sm:$0xff]
      %v1552 = vld [vmem:[%s213 + $0x1510] sm:$0xff]
      %v1553 = vld [vmem:[%s213 + $0x1518] sm:$0xff]
      %v1554 = vld [vmem:[%s213 + $0x1520] sm:$0xff]
      %v1555 = vld [vmem:[%s213 + $0x1528] sm:$0xff]
      %v1556 = vld [vmem:[%s213 + $0x1530] sm:$0xff]
      %v1557 = vld [vmem:[%s213 + $0x1538] sm:$0xff]
      %v1558 = vld [vmem:[%s213 + $0x1540] sm:$0xff]
      %v1559 = vld [vmem:[%s213 + $0x1548] sm:$0xff]
      %v1560 = vld [vmem:[%s213 + $0x1550] sm:$0xff]
      %v1561 = vld [vmem:[%s213 + $0x1558] sm:$0xff]
      %v1562 = vld [vmem:[%s213 + $0x1560] sm:$0xff]
      %v1563 = vld [vmem:[%s213 + $0x1568] sm:$0xff]
      %v1564 = vld [vmem:[%s213 + $0x1570] sm:$0xff]
      %v1565 = vld [vmem:[%s213 + $0x1578] sm:$0xff]
      %v1566 = vld [vmem:[%s213 + $0x1580] sm:$0xff]
      %v1567 = vld [vmem:[%s213 + $0x1588] sm:$0xff]
      %v1568 = vld [vmem:[%s213 + $0x1590] sm:$0xff]
      %v1569 = vld [vmem:[%s213 + $0x1598] sm:$0xff]
      %v1570 = vld [vmem:[%s213 + $0x15a0] sm:$0xff]
      %v1571 = vld [vmem:[%s213 + $0x15a8] sm:$0xff]
      %v1572 = vld [vmem:[%s213 + $0x15b0] sm:$0xff]
      %v1573 = vld [vmem:[%s213 + $0x15b8] sm:$0xff]
      %v1574 = vld [vmem:[%s213 + $0x15c0] sm:$0xff]
      %v1575 = vld [vmem:[%s213 + $0x15c8] sm:$0xff]
      %v1576 = vld [vmem:[%s213 + $0x15d0] sm:$0xff]
      %v1577 = vld [vmem:[%s213 + $0x15d8] sm:$0xff]
      %v1578 = vld [vmem:[%s213 + $0x15e0] sm:$0xff]
      %v1579 = vld [vmem:[%s213 + $0x15e8] sm:$0xff]
      %v1580 = vld [vmem:[%s213 + $0x15f0] sm:$0xff]
      %v1581 = vld [vmem:[%s213 + $0x15f8] sm:$0xff]
      %v1582 = vld [vmem:[%s213 + $0x1600] sm:$0xff]
      %v1583 = vld [vmem:[%s213 + $0x1608] sm:$0xff]
      %v1584 = vld [vmem:[%s213 + $0x1610] sm:$0xff]
      %v1585 = vld [vmem:[%s213 + $0x1618] sm:$0xff]
      %v1586 = vld [vmem:[%s213 + $0x1620] sm:$0xff]
      %v1587 = vld [vmem:[%s213 + $0x1628] sm:$0xff]
      %v1588 = vld [vmem:[%s213 + $0x1630] sm:$0xff]
      %v1589 = vld [vmem:[%s213 + $0x1638] sm:$0xff]
      %v1590 = vld [vmem:[%s213 + $0x1640] sm:$0xff]
      %v1591 = vld [vmem:[%s213 + $0x1648] sm:$0xff]
      %v1592 = vld [vmem:[%s213 + $0x1650] sm:$0xff]
      %v1593 = vld [vmem:[%s213 + $0x1658] sm:$0xff]
      %v1594 = vld [vmem:[%s213 + $0x1660] sm:$0xff]
      %v1595 = vld [vmem:[%s213 + $0x1668] sm:$0xff]
      %v1596 = vld [vmem:[%s213 + $0x1670] sm:$0xff]
      %v1597 = vld [vmem:[%s213 + $0x1678] sm:$0xff]
      %v1598 = vld [vmem:[%s213 + $0x1680] sm:$0xff]
      %v1599 = vld [vmem:[%s213 + $0x1688] sm:$0xff]
      %v1600 = vld [vmem:[%s213 + $0x1690] sm:$0xff]
      %v1601 = vld [vmem:[%s213 + $0x1698] sm:$0xff]
      %v1602 = vld [vmem:[%s213 + $0x16a0] sm:$0xff]
      %v1603 = vld [vmem:[%s213 + $0x16a8] sm:$0xff]
      %v1604 = vld [vmem:[%s213 + $0x16b0] sm:$0xff]
      %v1605 = vld [vmem:[%s213 + $0x16b8] sm:$0xff]
      %v1606 = vld [vmem:[%s213 + $0x16c0] sm:$0xff]
      %v1607 = vld [vmem:[%s213 + $0x16c8] sm:$0xff]
      %v1608 = vld [vmem:[%s213 + $0x16d0] sm:$0xff]
      %v1609 = vld [vmem:[%s213 + $0x16d8] sm:$0xff]
      %v1610 = vld [vmem:[%s213 + $0x16e0] sm:$0xff]
      %v1611 = vld [vmem:[%s213 + $0x16e8] sm:$0xff]
      %v1612 = vld [vmem:[%s213 + $0x16f0] sm:$0xff]
      %v1613 = vld [vmem:[%s213 + $0x16f8] sm:$0xff]
      %v1614 = vld [vmem:[%s213 + $0x1700] sm:$0xff]
      %v1615 = vld [vmem:[%s213 + $0x1708] sm:$0xff]
      %v1616 = vld [vmem:[%s213 + $0x1710] sm:$0xff]
      %v1617 = vld [vmem:[%s213 + $0x1718] sm:$0xff]
      %v1618 = vld [vmem:[%s213 + $0x1720] sm:$0xff]
      %v1619 = vld [vmem:[%s213 + $0x1728] sm:$0xff]
      %v1620 = vld [vmem:[%s213 + $0x1730] sm:$0xff]
      %v1621 = vld [vmem:[%s213 + $0x1738] sm:$0xff]
      %v1622 = vld [vmem:[%s213 + $0x1740] sm:$0xff]
      %v1623 = vld [vmem:[%s213 + $0x1748] sm:$0xff]
      %v1624 = vld [vmem:[%s213 + $0x1750] sm:$0xff]
      %v1625 = vld [vmem:[%s213 + $0x1758] sm:$0xff]
      %v1626 = vld [vmem:[%s213 + $0x1760] sm:$0xff]
      %v1627 = vld [vmem:[%s213 + $0x1768] sm:$0xff]
      %v1628 = vld [vmem:[%s213 + $0x1770] sm:$0xff]
      %v1629 = vld [vmem:[%s213 + $0x1778] sm:$0xff]
      %v1630 = vld [vmem:[%s213 + $0x1780] sm:$0xff]
      %v1631 = vld [vmem:[%s213 + $0x1788] sm:$0xff]
      %v1632 = vld [vmem:[%s213 + $0x1790] sm:$0xff]
      %v1633 = vld [vmem:[%s213 + $0x1798] sm:$0xff]
      %v1634 = vld [vmem:[%s213 + $0x17a0] sm:$0xff]
      %v1635 = vld [vmem:[%s213 + $0x17a8] sm:$0xff]
      %v1636 = vld [vmem:[%s213 + $0x17b0] sm:$0xff]
      %v1637 = vld [vmem:[%s213 + $0x17b8] sm:$0xff]
      %v1638 = vld [vmem:[%s213 + $0x17c0] sm:$0xff]
      %v1639 = vld [vmem:[%s213 + $0x17c8] sm:$0xff]
      %v1640 = vld [vmem:[%s213 + $0x17d0] sm:$0xff]
      %v1641 = vld [vmem:[%s213 + $0x17d8] sm:$0xff]
      %v1642 = vld [vmem:[%s213 + $0x17e0] sm:$0xff]
      %v1643 = vld [vmem:[%s213 + $0x17e8] sm:$0xff]
      %v1644 = vld [vmem:[%s213 + $0x17f0] sm:$0xff]
      %v1645 = vld [vmem:[%s213 + $0x17f8] sm:$0xff]
      %v1646 = vld [vmem:[%s213 + $0x1800] sm:$0xff]
      %v1647 = vld [vmem:[%s213 + $0x1808] sm:$0xff]
      %v1648 = vld [vmem:[%s213 + $0x1810] sm:$0xff]
      %v1649 = vld [vmem:[%s213 + $0x1818] sm:$0xff]
      %v1650 = vld [vmem:[%s213 + $0x1820] sm:$0xff]
      %v1651 = vld [vmem:[%s213 + $0x1828] sm:$0xff]
      %v1652 = vld [vmem:[%s213 + $0x1830] sm:$0xff]
      %v1653 = vld [vmem:[%s213 + $0x1838] sm:$0xff]
      %v1654 = vld [vmem:[%s213 + $0x1840] sm:$0xff]
      %v1655 = vld [vmem:[%s213 + $0x1848] sm:$0xff]
      %v1656 = vld [vmem:[%s213 + $0x1850] sm:$0xff]
      %v1657 = vld [vmem:[%s213 + $0x1858] sm:$0xff]
      %v1658 = vld [vmem:[%s213 + $0x1860] sm:$0xff]
      %v1659 = vld [vmem:[%s213 + $0x1868] sm:$0xff]
      %v1660 = vld [vmem:[%s213 + $0x1870] sm:$0xff]
      %v1661 = vld [vmem:[%s213 + $0x1878] sm:$0xff]
      %v1662 = vld [vmem:[%s213 + $0x1880] sm:$0xff]
      %v1663 = vld [vmem:[%s213 + $0x1888] sm:$0xff]
      %v1664 = vld [vmem:[%s213 + $0x1890] sm:$0xff]
      %v1665 = vld [vmem:[%s213 + $0x1898] sm:$0xff]
      %v1666 = vld [vmem:[%s213 + $0x18a0] sm:$0xff]
      %v1667 = vld [vmem:[%s213 + $0x18a8] sm:$0xff]
      %v1668 = vld [vmem:[%s213 + $0x18b0] sm:$0xff]
      %v1669 = vld [vmem:[%s213 + $0x18b8] sm:$0xff]
      %v1670 = vld [vmem:[%s213 + $0x18c0] sm:$0xff]
      %v1671 = vld [vmem:[%s213 + $0x18c8] sm:$0xff]
      %v1672 = vld [vmem:[%s213 + $0x18d0] sm:$0xff]
      %v1673 = vld [vmem:[%s213 + $0x18d8] sm:$0xff]
      %v1674 = vld [vmem:[%s213 + $0x18e0] sm:$0xff]
      %v1675 = vld [vmem:[%s213 + $0x18e8] sm:$0xff]
      %v1676 = vld [vmem:[%s213 + $0x18f0] sm:$0xff]
      %v1677 = vld [vmem:[%s213 + $0x18f8] sm:$0xff]
      %v1678 = vld [vmem:[%s213 + $0x1900] sm:$0xff]
      %v1679 = vld [vmem:[%s213 + $0x1908] sm:$0xff]
      %v1680 = vld [vmem:[%s213 + $0x1910] sm:$0xff]
      %v1681 = vld [vmem:[%s213 + $0x1918] sm:$0xff]
      %v1682 = vld [vmem:[%s213 + $0x1920] sm:$0xff]
      %v1683 = vld [vmem:[%s213 + $0x1928] sm:$0xff]
      %v1684 = vld [vmem:[%s213 + $0x1930] sm:$0xff]
      %v1685 = vld [vmem:[%s213 + $0x1938] sm:$0xff]
      %v1686 = vld [vmem:[%s213 + $0x1940] sm:$0xff]
      %v1687 = vld [vmem:[%s213 + $0x1948] sm:$0xff]
      %v1688 = vld [vmem:[%s213 + $0x1950] sm:$0xff]
      %v1689 = vld [vmem:[%s213 + $0x1958] sm:$0xff]
      %v1690 = vld [vmem:[%s213 + $0x1960] sm:$0xff]
      %v1691 = vld [vmem:[%s213 + $0x1968] sm:$0xff]
      %v1692 = vld [vmem:[%s213 + $0x1970] sm:$0xff]
      %v1693 = vld [vmem:[%s213 + $0x1978] sm:$0xff]
      %v1694 = vld [vmem:[%s213 + $0x1980] sm:$0xff]
      %v1695 = vld [vmem:[%s213 + $0x1988] sm:$0xff]
      %v1696 = vld [vmem:[%s213 + $0x1990] sm:$0xff]
      %v1697 = vld [vmem:[%s213 + $0x1998] sm:$0xff]
      %v1698 = vld [vmem:[%s213 + $0x19a0] sm:$0xff]
      %v1699 = vld [vmem:[%s213 + $0x19a8] sm:$0xff]
      %v1700 = vld [vmem:[%s213 + $0x19b0] sm:$0xff]
      %v1701 = vld [vmem:[%s213 + $0x19b8] sm:$0xff]
      %v1702 = vld [vmem:[%s213 + $0x19c0] sm:$0xff]
      %v1703 = vld [vmem:[%s213 + $0x19c8] sm:$0xff]
      %v1704 = vld [vmem:[%s213 + $0x19d0] sm:$0xff]
      %v1705 = vld [vmem:[%s213 + $0x19d8] sm:$0xff]
      %v1706 = vld [vmem:[%s213 + $0x19e0] sm:$0xff]
      %v1707 = vld [vmem:[%s213 + $0x19e8] sm:$0xff]
      %v1708 = vld [vmem:[%s213 + $0x19f0] sm:$0xff]
      %v1709 = vld [vmem:[%s213 + $0x19f8] sm:$0xff]
      %v1710 = vld [vmem:[%s213 + $0x1a00] sm:$0xff]
      %v1711 = vld [vmem:[%s213 + $0x1a08] sm:$0xff]
      %v1712 = vld [vmem:[%s213 + $0x1a10] sm:$0xff]
      %v1713 = vld [vmem:[%s213 + $0x1a18] sm:$0xff]
      %v1714 = vld [vmem:[%s213 + $0x1a20] sm:$0xff]
      %v1715 = vld [vmem:[%s213 + $0x1a28] sm:$0xff]
      %v1716 = vld [vmem:[%s213 + $0x1a30] sm:$0xff]
      %v1717 = vld [vmem:[%s213 + $0x1a38] sm:$0xff]
      %v1718 = vld [vmem:[%s213 + $0x1a40] sm:$0xff]
      %v1719 = vld [vmem:[%s213 + $0x1a48] sm:$0xff]
      %v1720 = vld [vmem:[%s213 + $0x1a50] sm:$0xff]
      %v1721 = vld [vmem:[%s213 + $0x1a58] sm:$0xff]
      %v1722 = vld [vmem:[%s213 + $0x1a60] sm:$0xff]
      %v1723 = vld [vmem:[%s213 + $0x1a68] sm:$0xff]
      %v1724 = vld [vmem:[%s213 + $0x1a70] sm:$0xff]
      %v1725 = vld [vmem:[%s213 + $0x1a78] sm:$0xff]
      %v1726 = vld [vmem:[%s213 + $0x1a80] sm:$0xff]
      %v1727 = vld [vmem:[%s213 + $0x1a88] sm:$0xff]
      %v1728 = vld [vmem:[%s213 + $0x1a90] sm:$0xff]
      %v1729 = vld [vmem:[%s213 + $0x1a98] sm:$0xff]
      %v1730 = vld [vmem:[%s213 + $0x1aa0] sm:$0xff]
      %v1731 = vld [vmem:[%s213 + $0x1aa8] sm:$0xff]
      %v1732 = vld [vmem:[%s213 + $0x1ab0] sm:$0xff]
      %v1733 = vld [vmem:[%s213 + $0x1ab8] sm:$0xff]
      %v1734 = vld [vmem:[%s213 + $0x1ac0] sm:$0xff]
      %v1735 = vld [vmem:[%s213 + $0x1ac8] sm:$0xff]
      %v1736 = vld [vmem:[%s213 + $0x1ad0] sm:$0xff]
      %v1737 = vld [vmem:[%s213 + $0x1ad8] sm:$0xff]
      %v1738 = vld [vmem:[%s213 + $0x1ae0] sm:$0xff]
      %v1739 = vld [vmem:[%s213 + $0x1ae8] sm:$0xff]
      %v1740 = vld [vmem:[%s213 + $0x1af0] sm:$0xff]
      %v1741 = vld [vmem:[%s213 + $0x1af8] sm:$0xff]
      %v1742 = vld [vmem:[%s213 + $0x1b00] sm:$0xff]
      %v1743 = vld [vmem:[%s213 + $0x1b08] sm:$0xff]
      %v1744 = vld [vmem:[%s213 + $0x1b10] sm:$0xff]
      %v1745 = vld [vmem:[%s213 + $0x1b18] sm:$0xff]
      %v1746 = vld [vmem:[%s213 + $0x1b20] sm:$0xff]
      %v1747 = vld [vmem:[%s213 + $0x1b28] sm:$0xff]
      %v1748 = vld [vmem:[%s213 + $0x1b30] sm:$0xff]
      %v1749 = vld [vmem:[%s213 + $0x1b38] sm:$0xff]
      %v1750 = vld [vmem:[%s213 + $0x1b40] sm:$0xff]
      %v1751 = vld [vmem:[%s213 + $0x1b48] sm:$0xff]
      %v1752 = vld [vmem:[%s213 + $0x1b50] sm:$0xff]
      %v1753 = vld [vmem:[%s213 + $0x1b58] sm:$0xff]
      %v1754 = vld [vmem:[%s213 + $0x1b60] sm:$0xff]
      %v1755 = vld [vmem:[%s213 + $0x1b68] sm:$0xff]
      %v1756 = vld [vmem:[%s213 + $0x1b70] sm:$0xff]
      %v1757 = vld [vmem:[%s213 + $0x1b78] sm:$0xff]
      %v1758 = vld [vmem:[%s213 + $0x1b80] sm:$0xff]
      %v1759 = vld [vmem:[%s213 + $0x1b88] sm:$0xff]
      %v1760 = vld [vmem:[%s213 + $0x1b90] sm:$0xff]
      %v1761 = vld [vmem:[%s213 + $0x1b98] sm:$0xff]
      %v1762 = vld [vmem:[%s213 + $0x1ba0] sm:$0xff]
      %v1763 = vld [vmem:[%s213 + $0x1ba8] sm:$0xff]
      %v1764 = vld [vmem:[%s213 + $0x1bb0] sm:$0xff]
      %v1765 = vld [vmem:[%s213 + $0x1bb8] sm:$0xff]
      %v1766 = vld [vmem:[%s213 + $0x1bc0] sm:$0xff]
      %v1767 = vld [vmem:[%s213 + $0x1bc8] sm:$0xff]
      %v1768 = vld [vmem:[%s213 + $0x1bd0] sm:$0xff]
      %v1769 = vld [vmem:[%s213 + $0x1bd8] sm:$0xff]
      %v1770 = vld [vmem:[%s213 + $0x1be0] sm:$0xff]
      %v1771 = vld [vmem:[%s213 + $0x1be8] sm:$0xff]
      %v1772 = vld [vmem:[%s213 + $0x1bf0] sm:$0xff]
      %v1773 = vld [vmem:[%s213 + $0x1bf8] sm:$0xff]
      %v1774 = vld [vmem:[%s213 + $0x1c00] sm:$0xff]
      %v1775 = vld [vmem:[%s213 + $0x1c08] sm:$0xff]
      %v1776 = vld [vmem:[%s213 + $0x1c10] sm:$0xff]
      %v1777 = vld [vmem:[%s213 + $0x1c18] sm:$0xff]
      %v1778 = vld [vmem:[%s213 + $0x1c20] sm:$0xff]
      %v1779 = vld [vmem:[%s213 + $0x1c28] sm:$0xff]
      %v1780 = vld [vmem:[%s213 + $0x1c30] sm:$0xff]
      %v1781 = vld [vmem:[%s213 + $0x1c38] sm:$0xff]
      %v1782 = vld [vmem:[%s213 + $0x1c40] sm:$0xff]
      %v1783 = vld [vmem:[%s213 + $0x1c48] sm:$0xff]
      %v1784 = vld [vmem:[%s213 + $0x1c50] sm:$0xff]
      %v1785 = vld [vmem:[%s213 + $0x1c58] sm:$0xff]
      %v1786 = vld [vmem:[%s213 + $0x1c60] sm:$0xff]
      %v1787 = vld [vmem:[%s213 + $0x1c68] sm:$0xff]
      %v1788 = vld [vmem:[%s213 + $0x1c70] sm:$0xff]
      %v1789 = vld [vmem:[%s213 + $0x1c78] sm:$0xff]
      %v1790 = vld [vmem:[%s213 + $0x1c80] sm:$0xff]
      %v1791 = vld [vmem:[%s213 + $0x1c88] sm:$0xff]
      %v1792 = vld [vmem:[%s213 + $0x1c90] sm:$0xff]
      %v1793 = vld [vmem:[%s213 + $0x1c98] sm:$0xff]
      %v1794 = vld [vmem:[%s213 + $0x1ca0] sm:$0xff]
      %v1795 = vld [vmem:[%s213 + $0x1ca8] sm:$0xff]
      %v1796 = vld [vmem:[%s213 + $0x1cb0] sm:$0xff]
      %v1797 = vld [vmem:[%s213 + $0x1cb8] sm:$0xff]
      %v1798 = vld [vmem:[%s213 + $0x1cc0] sm:$0xff]
      %v1799 = vld [vmem:[%s213 + $0x1cc8] sm:$0xff]
      %v1800 = vld [vmem:[%s213 + $0x1cd0] sm:$0xff]
      %v1801 = vld [vmem:[%s213 + $0x1cd8] sm:$0xff]
      %v1802 = vld [vmem:[%s213 + $0x1ce0] sm:$0xff]
      %v1803 = vld [vmem:[%s213 + $0x1ce8] sm:$0xff]
      %v1804 = vld [vmem:[%s213 + $0x1cf0] sm:$0xff]
      %v1805 = vld [vmem:[%s213 + $0x1cf8] sm:$0xff]
      %v1806 = vld [vmem:[%s213 + $0x1d00] sm:$0xff]
      %v1807 = vld [vmem:[%s213 + $0x1d08] sm:$0xff]
      %v1808 = vld [vmem:[%s213 + $0x1d10] sm:$0xff]
      %v1809 = vld [vmem:[%s213 + $0x1d18] sm:$0xff]
      %v1810 = vld [vmem:[%s213 + $0x1d20] sm:$0xff]
      %v1811 = vld [vmem:[%s213 + $0x1d28] sm:$0xff]
      %v1812 = vld [vmem:[%s213 + $0x1d30] sm:$0xff]
      %v1813 = vld [vmem:[%s213 + $0x1d38] sm:$0xff]
      %v1814 = vld [vmem:[%s213 + $0x1d40] sm:$0xff]
      %v1815 = vld [vmem:[%s213 + $0x1d48] sm:$0xff]
      %v1816 = vld [vmem:[%s213 + $0x1d50] sm:$0xff]
      %v1817 = vld [vmem:[%s213 + $0x1d58] sm:$0xff]
      %v1818 = vld [vmem:[%s213 + $0x1d60] sm:$0xff]
      %v1819 = vld [vmem:[%s213 + $0x1d68] sm:$0xff]
      %v1820 = vld [vmem:[%s213 + $0x1d70] sm:$0xff]
      %v1821 = vld [vmem:[%s213 + $0x1d78] sm:$0xff]
      %v1822 = vld [vmem:[%s213 + $0x1d80] sm:$0xff]
      %v1823 = vld [vmem:[%s213 + $0x1d88] sm:$0xff]
      %v1824 = vld [vmem:[%s213 + $0x1d90] sm:$0xff]
      %v1825 = vld [vmem:[%s213 + $0x1d98] sm:$0xff]
      %v1826 = vld [vmem:[%s213 + $0x1da0] sm:$0xff]
      %v1827 = vld [vmem:[%s213 + $0x1da8] sm:$0xff]
      %v1828 = vld [vmem:[%s213 + $0x1db0] sm:$0xff]
      %v1829 = vld [vmem:[%s213 + $0x1db8] sm:$0xff]
      %v1830 = vld [vmem:[%s213 + $0x1dc0] sm:$0xff]
      %v1831 = vld [vmem:[%s213 + $0x1dc8] sm:$0xff]
      %v1832 = vld [vmem:[%s213 + $0x1dd0] sm:$0xff]
      %v1833 = vld [vmem:[%s213 + $0x1dd8] sm:$0xff]
      %v1834 = vld [vmem:[%s213 + $0x1de0] sm:$0xff]
      %v1835 = vld [vmem:[%s213 + $0x1de8] sm:$0xff]
      %v1836 = vld [vmem:[%s213 + $0x1df0] sm:$0xff]
      %v1837 = vld [vmem:[%s213 + $0x1df8] sm:$0xff]
      %v1838 = vld [vmem:[%s213 + $0x1e00] sm:$0xff]
      %v1839 = vld [vmem:[%s213 + $0x1e08] sm:$0xff]
      %v1840 = vld [vmem:[%s213 + $0x1e10] sm:$0xff]
      %v1841 = vld [vmem:[%s213 + $0x1e18] sm:$0xff]
      %v1842 = vld [vmem:[%s213 + $0x1e20] sm:$0xff]
      %v1843 = vld [vmem:[%s213 + $0x1e28] sm:$0xff]
      %v1844 = vld [vmem:[%s213 + $0x1e30] sm:$0xff]
      %v1845 = vld [vmem:[%s213 + $0x1e38] sm:$0xff]
      %v1846 = vld [vmem:[%s213 + $0x1e40] sm:$0xff]
      %v1847 = vld [vmem:[%s213 + $0x1e48] sm:$0xff]
      %v1848 = vld [vmem:[%s213 + $0x1e50] sm:$0xff]
      %v1849 = vld [vmem:[%s213 + $0x1e58] sm:$0xff]
      %v1850 = vld [vmem:[%s213 + $0x1e60] sm:$0xff]
      %v1851 = vld [vmem:[%s213 + $0x1e68] sm:$0xff]
      %v1852 = vld [vmem:[%s213 + $0x1e70] sm:$0xff]
      %v1853 = vld [vmem:[%s213 + $0x1e78] sm:$0xff]
      %v1854 = vld [vmem:[%s213 + $0x1e80] sm:$0xff]
      %v1855 = vld [vmem:[%s213 + $0x1e88] sm:$0xff]
      %v1856 = vld [vmem:[%s213 + $0x1e90] sm:$0xff]
      %v1857 = vld [vmem:[%s213 + $0x1e98] sm:$0xff]
      %v1858 = vld [vmem:[%s213 + $0x1ea0] sm:$0xff]
      %v1859 = vld [vmem:[%s213 + $0x1ea8] sm:$0xff]
      %v1860 = vld [vmem:[%s213 + $0x1eb0] sm:$0xff]
      %v1861 = vld [vmem:[%s213 + $0x1eb8] sm:$0xff]
      %v1862 = vld [vmem:[%s213 + $0x1ec0] sm:$0xff]
      %v1863 = vld [vmem:[%s213 + $0x1ec8] sm:$0xff]
      %v1864 = vld [vmem:[%s213 + $0x1ed0] sm:$0xff]
      %v1865 = vld [vmem:[%s213 + $0x1ed8] sm:$0xff]
      %v1866 = vld [vmem:[%s213 + $0x1ee0] sm:$0xff]
      %v1867 = vld [vmem:[%s213 + $0x1ee8] sm:$0xff]
      %v1868 = vld [vmem:[%s213 + $0x1ef0] sm:$0xff]
      %v1869 = vld [vmem:[%s213 + $0x1ef8] sm:$0xff]
      %v1870 = vld [vmem:[%s213 + $0x1f00] sm:$0xff]
      %v1871 = vld [vmem:[%s213 + $0x1f08] sm:$0xff]
      %v1872 = vld [vmem:[%s213 + $0x1f10] sm:$0xff]
      %v1873 = vld [vmem:[%s213 + $0x1f18] sm:$0xff]
      %v1874 = vld [vmem:[%s213 + $0x1f20] sm:$0xff]
      %v1875 = vld [vmem:[%s213 + $0x1f28] sm:$0xff]
      %v1876 = vld [vmem:[%s213 + $0x1f30] sm:$0xff]
      %v1877 = vld [vmem:[%s213 + $0x1f38] sm:$0xff]
      %v1878 = vld [vmem:[%s213 + $0x1f40] sm:$0xff]
      %v1879 = vld [vmem:[%s213 + $0x1f48] sm:$0xff]
      %v1880 = vld [vmem:[%s213 + $0x1f50] sm:$0xff]
      %v1881 = vld [vmem:[%s213 + $0x1f58] sm:$0xff]
      %v1882 = vld [vmem:[%s213 + $0x1f60] sm:$0xff]
      %v1883 = vld [vmem:[%s213 + $0x1f68] sm:$0xff]
      %v1884 = vld [vmem:[%s213 + $0x1f70] sm:$0xff]
      %v1885 = vld [vmem:[%s213 + $0x1f78] sm:$0xff]
      %v1886 = vld [vmem:[%s213 + $0x1f80] sm:$0xff]
      %v1887 = vld [vmem:[%s213 + $0x1f88] sm:$0xff]
      %v1888 = vld [vmem:[%s213 + $0x1f90] sm:$0xff]
      %v1889 = vld [vmem:[%s213 + $0x1f98] sm:$0xff]
      %v1890 = vld [vmem:[%s213 + $0x1fa0] sm:$0xff]
      %v1891 = vld [vmem:[%s213 + $0x1fa8] sm:$0xff]
      %v1892 = vld [vmem:[%s213 + $0x1fb0] sm:$0xff]
      %v1893 = vld [vmem:[%s213 + $0x1fb8] sm:$0xff]
      %v1894 = vld [vmem:[%s213 + $0x1fc0] sm:$0xff]
      %v1895 = vld [vmem:[%s213 + $0x1fc8] sm:$0xff]
      %v1896 = vld [vmem:[%s213 + $0x1fd0] sm:$0xff]
      %v1897 = vld [vmem:[%s213 + $0x1fd8] sm:$0xff]
      %v1898 = vld [vmem:[%s213 + $0x1fe0] sm:$0xff]
      %v1899 = vld [vmem:[%s213 + $0x1fe8] sm:$0xff]
      %v1900 = vld [vmem:[%s213 + $0x1ff0] sm:$0xff]
      %v1901 = vld [vmem:[%s213 + $0x1ff8] sm:$0xff]
      %v1902 = vld [vmem:[%s213 + $0x2000] sm:$0xff]
      %v1903 = vld [vmem:[%s213 + $0x2008] sm:$0xff]
      %v1904 = vld [vmem:[%s213 + $0x2010] sm:$0xff]
      %v1905 = vld [vmem:[%s213 + $0x2018] sm:$0xff]
      %v1906 = vld [vmem:[%s213 + $0x2020] sm:$0xff]
      %v1907 = vld [vmem:[%s213 + $0x2028] sm:$0xff]
      %v1908 = vld [vmem:[%s213 + $0x2030] sm:$0xff]
      %v1909 = vld [vmem:[%s213 + $0x2038] sm:$0xff]
      %v1910 = vld [vmem:[%s213 + $0x2040] sm:$0xff]
      %v1911 = vld [vmem:[%s213 + $0x2048] sm:$0xff]
      %v1912 = vld [vmem:[%s213 + $0x2050] sm:$0xff]
      %v1913 = vld [vmem:[%s213 + $0x2058] sm:$0xff]
      %v1914 = vld [vmem:[%s213 + $0x2060] sm:$0xff]
      %v1915 = vld [vmem:[%s213 + $0x2068] sm:$0xff]
      %v1916 = vld [vmem:[%s213 + $0x2070] sm:$0xff]
      %v1917 = vld [vmem:[%s213 + $0x2078] sm:$0xff]
      %v1918 = vld [vmem:[%s213 + $0x2080] sm:$0xff]
      %v1919 = vld [vmem:[%s213 + $0x2088] sm:$0xff]
      %v1920 = vld [vmem:[%s213 + $0x2090] sm:$0xff]
      %v1921 = vld [vmem:[%s213 + $0x2098] sm:$0xff]
      %v1922 = vld [vmem:[%s213 + $0x20a0] sm:$0xff]
      %v1923 = vld [vmem:[%s213 + $0x20a8] sm:$0xff]
      %v1924 = vld [vmem:[%s213 + $0x20b0] sm:$0xff]
      %v1925 = vld [vmem:[%s213 + $0x20b8] sm:$0xff]
      %v1926 = vld [vmem:[%s213 + $0x20c0] sm:$0xff]
      %v1927 = vld [vmem:[%s213 + $0x20c8] sm:$0xff]
      %v1928 = vld [vmem:[%s213 + $0x20d0] sm:$0xff]
      %v1929 = vld [vmem:[%s213 + $0x20d8] sm:$0xff]
      %v1930 = vld [vmem:[%s213 + $0x20e0] sm:$0xff]
      %v1931 = vld [vmem:[%s213 + $0x20e8] sm:$0xff]
      %v1932 = vld [vmem:[%s213 + $0x20f0] sm:$0xff]
      %v1933 = vld [vmem:[%s213 + $0x20f8] sm:$0xff]
      %v1934 = vld [vmem:[%s213 + $0x2100] sm:$0xff]
      %v1935 = vld [vmem:[%s213 + $0x2108] sm:$0xff]
      %v1936 = vld [vmem:[%s213 + $0x2110] sm:$0xff]
      %v1937 = vld [vmem:[%s213 + $0x2118] sm:$0xff]
      %v1938 = vld [vmem:[%s213 + $0x2120] sm:$0xff]
      %v1939 = vld [vmem:[%s213 + $0x2128] sm:$0xff]
      %v1940 = vld [vmem:[%s213 + $0x2130] sm:$0xff]
      %v1941 = vld [vmem:[%s213 + $0x2138] sm:$0xff]
      %v1942 = vld [vmem:[%s213 + $0x2140] sm:$0xff]
      %v1943 = vld [vmem:[%s213 + $0x2148] sm:$0xff]
      %v1944 = vld [vmem:[%s213 + $0x2150] sm:$0xff]
      %v1945 = vld [vmem:[%s213 + $0x2158] sm:$0xff]
      %v1946 = vld [vmem:[%s213 + $0x2160] sm:$0xff]
      %v1947 = vld [vmem:[%s213 + $0x2168] sm:$0xff]
      %v1948 = vld [vmem:[%s213 + $0x2170] sm:$0xff]
      %v1949 = vld [vmem:[%s213 + $0x2178] sm:$0xff]
      %v1950 = vld [vmem:[%s213 + $0x2180] sm:$0xff]
      %v1951 = vld [vmem:[%s213 + $0x2188] sm:$0xff]
      %v1952 = vld [vmem:[%s213 + $0x2190] sm:$0xff]
      %v1953 = vld [vmem:[%s213 + $0x2198] sm:$0xff]
      %v1954 = vld [vmem:[%s213 + $0x21a0] sm:$0xff]
      %v1955 = vld [vmem:[%s213 + $0x21a8] sm:$0xff]
      %v1956 = vld [vmem:[%s213 + $0x21b0] sm:$0xff]
      %v1957 = vld [vmem:[%s213 + $0x21b8] sm:$0xff]
      %v1958 = vld [vmem:[%s213 + $0x21c0] sm:$0xff]
      %v1959 = vld [vmem:[%s213 + $0x21c8] sm:$0xff]
      %v1960 = vld [vmem:[%s213 + $0x21d0] sm:$0xff]
      %v1961 = vld [vmem:[%s213 + $0x21d8] sm:$0xff]
      %v1962 = vld [vmem:[%s213 + $0x21e0] sm:$0xff]
      %v1963 = vld [vmem:[%s213 + $0x21e8] sm:$0xff]
      %v1964 = vld [vmem:[%s213 + $0x21f0] sm:$0xff]
      %v1965 = vld [vmem:[%s213 + $0x21f8] sm:$0xff]
      %v1966 = vld [vmem:[%s213 + $0x2200] sm:$0xff]
      %v1967 = vld [vmem:[%s213 + $0x2208] sm:$0xff]
      %v1968 = vld [vmem:[%s213 + $0x2210] sm:$0xff]
      %v1969 = vld [vmem:[%s213 + $0x2218] sm:$0xff]
      %v1970 = vld [vmem:[%s213 + $0x2220] sm:$0xff]
      %v1971 = vld [vmem:[%s213 + $0x2228] sm:$0xff]
      %v1972 = vld [vmem:[%s213 + $0x2230] sm:$0xff]
      %v1973 = vld [vmem:[%s213 + $0x2238] sm:$0xff]
      %v1974 = vld [vmem:[%s213 + $0x2240] sm:$0xff]
      %v1975 = vld [vmem:[%s213 + $0x2248] sm:$0xff]
      %v1976 = vld [vmem:[%s213 + $0x2250] sm:$0xff]
      %v1977 = vld [vmem:[%s213 + $0x2258] sm:$0xff]
      %v1978 = vld [vmem:[%s213 + $0x2260] sm:$0xff]
      %v1979 = vld [vmem:[%s213 + $0x2268] sm:$0xff]
      %v1980 = vld [vmem:[%s213 + $0x2270] sm:$0xff]
      %v1981 = vld [vmem:[%s213 + $0x2278] sm:$0xff]
      %v1982 = vld [vmem:[%s213 + $0x2280] sm:$0xff]
      %v1983 = vld [vmem:[%s213 + $0x2288] sm:$0xff]
      %v1984 = vld [vmem:[%s213 + $0x2290] sm:$0xff]
      %v1985 = vld [vmem:[%s213 + $0x2298] sm:$0xff]
      %v1986 = vld [vmem:[%s213 + $0x22a0] sm:$0xff]
      %v1987 = vld [vmem:[%s213 + $0x22a8] sm:$0xff]
      %v1988 = vld [vmem:[%s213 + $0x22b0] sm:$0xff]
      %v1989 = vld [vmem:[%s213 + $0x22b8] sm:$0xff]
      %v1990 = vld [vmem:[%s213 + $0x22c0] sm:$0xff]
      %v1991 = vld [vmem:[%s213 + $0x22c8] sm:$0xff]
      %v1992 = vld [vmem:[%s213 + $0x22d0] sm:$0xff]
      %v1993 = vld [vmem:[%s213 + $0x22d8] sm:$0xff]
      %v1994 = vld [vmem:[%s213 + $0x22e0] sm:$0xff]
      %v1995 = vld [vmem:[%s213 + $0x22e8] sm:$0xff]
      %v1996 = vld [vmem:[%s213 + $0x22f0] sm:$0xff]
      %v1997 = vld [vmem:[%s213 + $0x22f8] sm:$0xff]
      %v1998 = vld [vmem:[%s213 + $0x2300] sm:$0xff]
      %v1999 = vld [vmem:[%s213 + $0x2308] sm:$0xff]
      %v2000 = vld [vmem:[%s213 + $0x2310] sm:$0xff]
      %v2001 = vld [vmem:[%s213 + $0x2318] sm:$0xff]
      %v2002 = vld [vmem:[%s213 + $0x2320] sm:$0xff]
      %v2003 = vld [vmem:[%s213 + $0x2328] sm:$0xff]
      %v2004 = vld [vmem:[%s213 + $0x2330] sm:$0xff]
      %v2005 = vld [vmem:[%s213 + $0x2338] sm:$0xff]
      %v2006 = vld [vmem:[%s213 + $0x2340] sm:$0xff]
      %v2007 = vld [vmem:[%s213 + $0x2348] sm:$0xff]
      %v2008 = vld [vmem:[%s213 + $0x2350] sm:$0xff]
      %v2009 = vld [vmem:[%s213 + $0x2358] sm:$0xff]
      %v2010 = vld [vmem:[%s213 + $0x2360] sm:$0xff]
      %v2011 = vld [vmem:[%s213 + $0x2368] sm:$0xff]
      %v2012 = vld [vmem:[%s213 + $0x2370] sm:$0xff]
      %v2013 = vld [vmem:[%s213 + $0x2378] sm:$0xff]
      %v2014 = vld [vmem:[%s213 + $0x2380] sm:$0xff]
      %v2015 = vld [vmem:[%s213 + $0x2388] sm:$0xff]
      %v2016 = vld [vmem:[%s213 + $0x2390] sm:$0xff]
      %v2017 = vld [vmem:[%s213 + $0x2398] sm:$0xff]
      %v2018 = vld [vmem:[%s213 + $0x23a0] sm:$0xff]
      %v2019 = vld [vmem:[%s213 + $0x23a8] sm:$0xff]
      %v2020 = vld [vmem:[%s213 + $0x23b0] sm:$0xff]
      %v2021 = vld [vmem:[%s213 + $0x23b8] sm:$0xff]
      %v2022 = vld [vmem:[%s213 + $0x23c0] sm:$0xff]
      %v2023 = vld [vmem:[%s213 + $0x23c8] sm:$0xff]
      %v2024 = vld [vmem:[%s213 + $0x23d0] sm:$0xff]
      %v2025 = vld [vmem:[%s213 + $0x23d8] sm:$0xff]
      %v2026 = vld [vmem:[%s213 + $0x23e0] sm:$0xff]
      %v2027 = vld [vmem:[%s213 + $0x23e8] sm:$0xff]
      %v2028 = vld [vmem:[%s213 + $0x23f0] sm:$0xff]
      %v2029 = vld [vmem:[%s213 + $0x23f8] sm:$0xff]
      %v2030 = vld [vmem:[%s213 + $0x2400] sm:$0xff]
      %v2031 = vld [vmem:[%s213 + $0x2408] sm:$0xff]
      %v2032 = vld [vmem:[%s213 + $0x2410] sm:$0xff]
      %v2033 = vld [vmem:[%s213 + $0x2418] sm:$0xff]
      %v2034 = vld [vmem:[%s213 + $0x2420] sm:$0xff]
      %v2035 = vld [vmem:[%s213 + $0x2428] sm:$0xff]
      %v2036 = vld [vmem:[%s213 + $0x2430] sm:$0xff]
      %v2037 = vld [vmem:[%s213 + $0x2438] sm:$0xff]
      %v2038 = vld [vmem:[%s213 + $0x2440] sm:$0xff]
      %v2039 = vld [vmem:[%s213 + $0x2448] sm:$0xff]
      %v2040 = vld [vmem:[%s213 + $0x2450] sm:$0xff]
      %v2041 = vld [vmem:[%s213 + $0x2458] sm:$0xff]
      %v2042 = vld [vmem:[%s213 + $0x2460] sm:$0xff]
      %v2043 = vld [vmem:[%s213 + $0x2468] sm:$0xff]
      %v2044 = vld [vmem:[%s213 + $0x2470] sm:$0xff]
      %v2045 = vld [vmem:[%s213 + $0x2478] sm:$0xff]
      %v2046 = vld [vmem:[%s213 + $0x2480] sm:$0xff]
      %v2047 = vld [vmem:[%s213 + $0x2488] sm:$0xff]
      %v2048 = vld [vmem:[%s213 + $0x2490] sm:$0xff]
      %v2049 = vld [vmem:[%s213 + $0x2498] sm:$0xff]
      %v2050 = vld [vmem:[%s213 + $0x24a0] sm:$0xff]
      %v2051 = vld [vmem:[%s213 + $0x24a8] sm:$0xff]
      %v2052 = vld [vmem:[%s213 + $0x24b0] sm:$0xff]
      %v2053 = vld [vmem:[%s213 + $0x24b8] sm:$0xff]
      %v2054 = vld [vmem:[%s213 + $0x24c0] sm:$0xff]
      %v2055 = vld [vmem:[%s213 + $0x24c8] sm:$0xff]
      %v2056 = vld [vmem:[%s213 + $0x24d0] sm:$0xff]
      %v2057 = vld [vmem:[%s213 + $0x24d8] sm:$0xff]
      %v2058 = vld [vmem:[%s213 + $0x24e0] sm:$0xff]
      %v2059 = vld [vmem:[%s213 + $0x24e8] sm:$0xff]
      %v2060 = vld [vmem:[%s213 + $0x24f0] sm:$0xff]
      %v2061 = vld [vmem:[%s213 + $0x24f8] sm:$0xff]
      %v2062 = vld [vmem:[%s213 + $0x2500] sm:$0xff]
      %v2063 = vld [vmem:[%s213 + $0x2508] sm:$0xff]
      %v2064 = vld [vmem:[%s213 + $0x2510] sm:$0xff]
      %v2065 = vld [vmem:[%s213 + $0x2518] sm:$0xff]
      %v2066 = vld [vmem:[%s213 + $0x2520] sm:$0xff]
      %v2067 = vld [vmem:[%s213 + $0x2528] sm:$0xff]
      %v2068 = vld [vmem:[%s213 + $0x2530] sm:$0xff]
      %v2069 = vld [vmem:[%s213 + $0x2538] sm:$0xff]
      %v2070 = vld [vmem:[%s213 + $0x2540] sm:$0xff]
      %v2071 = vld [vmem:[%s213 + $0x2548] sm:$0xff]
      %v2072 = vld [vmem:[%s213 + $0x2550] sm:$0xff]
      %v2073 = vld [vmem:[%s213 + $0x2558] sm:$0xff]
      %v2074 = vld [vmem:[%s213 + $0x2560] sm:$0xff]
      %v2075 = vld [vmem:[%s213 + $0x2568] sm:$0xff]
      %v2076 = vld [vmem:[%s213 + $0x2570] sm:$0xff]
      %v2077 = vld [vmem:[%s213 + $0x2578] sm:$0xff]
      %v2078 = vld [vmem:[%s213 + $0x2580] sm:$0xff]
      %v2079 = vld [vmem:[%s213 + $0x2588] sm:$0xff]
      %v2080 = vld [vmem:[%s213 + $0x2590] sm:$0xff]
      %v2081 = vld [vmem:[%s213 + $0x2598] sm:$0xff]
      %v2082 = vld [vmem:[%s213 + $0x25a0] sm:$0xff]
      %v2083 = vld [vmem:[%s213 + $0x25a8] sm:$0xff]
      %v2084 = vld [vmem:[%s213 + $0x25b0] sm:$0xff]
      %v2085 = vld [vmem:[%s213 + $0x25b8] sm:$0xff]
      %v2086 = vld [vmem:[%s213 + $0x25c0] sm:$0xff]
      %v2087 = vld [vmem:[%s213 + $0x25c8] sm:$0xff]
      %v2088 = vld [vmem:[%s213 + $0x25d0] sm:$0xff]
      %v2089 = vld [vmem:[%s213 + $0x25d8] sm:$0xff]
      %v2090 = vld [vmem:[%s213 + $0x25e0] sm:$0xff]
      %v2091 = vld [vmem:[%s213 + $0x25e8] sm:$0xff]
      %v2092 = vld [vmem:[%s213 + $0x25f0] sm:$0xff]
      %v2093 = vld [vmem:[%s213 + $0x25f8] sm:$0xff]
      %v2094 = vld [vmem:[%s213 + $0x2600] sm:$0xff]
      %v2095 = vld [vmem:[%s213 + $0x2608] sm:$0xff]
      %v2096 = vld [vmem:[%s213 + $0x2610] sm:$0xff]
      %v2097 = vld [vmem:[%s213 + $0x2618] sm:$0xff]
      %v2098 = vld [vmem:[%s213 + $0x2620] sm:$0xff]
      %v2099 = vld [vmem:[%s213 + $0x2628] sm:$0xff]
      %v2100 = vld [vmem:[%s213 + $0x2630] sm:$0xff]
      %v2101 = vld [vmem:[%s213 + $0x2638] sm:$0xff]
      %v2102 = vld [vmem:[%s213 + $0x2640] sm:$0xff]
      %v2103 = vld [vmem:[%s213 + $0x2648] sm:$0xff]
      %v2104 = vld [vmem:[%s213 + $0x2650] sm:$0xff]
      %v2105 = vld [vmem:[%s213 + $0x2658] sm:$0xff]
      %v2106 = vld [vmem:[%s213 + $0x2660] sm:$0xff]
      %v2107 = vld [vmem:[%s213 + $0x2668] sm:$0xff]
      %v2108 = vld [vmem:[%s213 + $0x2670] sm:$0xff]
      %v2109 = vld [vmem:[%s213 + $0x2678] sm:$0xff]
      %v2110 = vld [vmem:[%s213 + $0x2680] sm:$0xff]
      %v2111 = vld [vmem:[%s213 + $0x2688] sm:$0xff]
      %v2112 = vld [vmem:[%s213 + $0x2690] sm:$0xff]
      %v2113 = vld [vmem:[%s213 + $0x2698] sm:$0xff]
      %v2114 = vld [vmem:[%s213 + $0x26a0] sm:$0xff]
      %v2115 = vld [vmem:[%s213 + $0x26a8] sm:$0xff]
      %v2116 = vld [vmem:[%s213 + $0x26b0] sm:$0xff]
      %v2117 = vld [vmem:[%s213 + $0x26b8] sm:$0xff]
      %v2118 = vld [vmem:[%s213 + $0x26c0] sm:$0xff]
      %v2119 = vld [vmem:[%s213 + $0x26c8] sm:$0xff]
      %v2120 = vld [vmem:[%s213 + $0x26d0] sm:$0xff]
      %v2121 = vld [vmem:[%s213 + $0x26d8] sm:$0xff]
      %v2122 = vld [vmem:[%s213 + $0x26e0] sm:$0xff]
      %v2123 = vld [vmem:[%s213 + $0x26e8] sm:$0xff]
      %v2124 = vld [vmem:[%s213 + $0x26f0] sm:$0xff]
      %v2125 = vld [vmem:[%s213 + $0x26f8] sm:$0xff]
      %v2126 = vld [vmem:[%s213 + $0x2700] sm:$0xff]
      %v2127 = vld [vmem:[%s213 + $0x2708] sm:$0xff]
      %v2128 = vld [vmem:[%s213 + $0x2710] sm:$0xff]
      %v2129 = vld [vmem:[%s213 + $0x2718] sm:$0xff]
      %v2130 = vld [vmem:[%s213 + $0x2720] sm:$0xff]
      %v2131 = vld [vmem:[%s213 + $0x2728] sm:$0xff]
      %v2132 = vld [vmem:[%s213 + $0x2730] sm:$0xff]
      %v2133 = vld [vmem:[%s213 + $0x2738] sm:$0xff]
      %v2134 = vld [vmem:[%s213 + $0x2740] sm:$0xff]
      %v2135 = vld [vmem:[%s213 + $0x2748] sm:$0xff]
      %v2136 = vld [vmem:[%s213 + $0x2750] sm:$0xff]
      %v2137 = vld [vmem:[%s213 + $0x2758] sm:$0xff]
      %v2138 = vld [vmem:[%s213 + $0x2760] sm:$0xff]
      %v2139 = vld [vmem:[%s213 + $0x2768] sm:$0xff]
      %v2140 = vld [vmem:[%s213 + $0x2770] sm:$0xff]
      %v2141 = vld [vmem:[%s213 + $0x2778] sm:$0xff]
      %v2142 = vld [vmem:[%s213 + $0x2780] sm:$0xff]
      %v2143 = vld [vmem:[%s213 + $0x2788] sm:$0xff]
      %v2144 = vld [vmem:[%s213 + $0x2790] sm:$0xff]
      %v2145 = vld [vmem:[%s213 + $0x2798] sm:$0xff]
      %v2146 = vld [vmem:[%s213 + $0x27a0] sm:$0xff]
      %v2147 = vld [vmem:[%s213 + $0x27a8] sm:$0xff]
      %v2148 = vld [vmem:[%s213 + $0x27b0] sm:$0xff]
      %v2149 = vld [vmem:[%s213 + $0x27b8] sm:$0xff]
      %v2150 = vld [vmem:[%s213 + $0x27c0] sm:$0xff]
      %v2151 = vld [vmem:[%s213 + $0x27c8] sm:$0xff]
      %v2152 = vld [vmem:[%s213 + $0x27d0] sm:$0xff]
      %v2153 = vld [vmem:[%s213 + $0x27d8] sm:$0xff]
      %v2154 = vld [vmem:[%s213 + $0x27e0] sm:$0xff]
      %v2155 = vld [vmem:[%s213 + $0x27e8] sm:$0xff]
      %v2156 = vld [vmem:[%s213 + $0x27f0] sm:$0xff]
      %v2157 = vld [vmem:[%s213 + $0x27f8] sm:$0xff]
      %v2158 = vld [vmem:[%s213 + $0x2800] sm:$0xff]
      %v2159 = vld [vmem:[%s213 + $0x2808] sm:$0xff]
      %v2160 = vld [vmem:[%s213 + $0x2810] sm:$0xff]
      %v2161 = vld [vmem:[%s213 + $0x2818] sm:$0xff]
      %v2162 = vld [vmem:[%s213 + $0x2820] sm:$0xff]
      %v2163 = vld [vmem:[%s213 + $0x2828] sm:$0xff]
      %v2164 = vld [vmem:[%s213 + $0x2830] sm:$0xff]
      %v2165 = vld [vmem:[%s213 + $0x2838] sm:$0xff]
      %v2166 = vld [vmem:[%s213 + $0x2840] sm:$0xff]
      %v2167 = vld [vmem:[%s213 + $0x2848] sm:$0xff]
      %v2168 = vld [vmem:[%s213 + $0x2850] sm:$0xff]
      %v2169 = vld [vmem:[%s213 + $0x2858] sm:$0xff]
      %v2170 = vld [vmem:[%s213 + $0x2860] sm:$0xff]
      %v2171 = vld [vmem:[%s213 + $0x2868] sm:$0xff]
      %v2172 = vld [vmem:[%s213 + $0x2870] sm:$0xff]
      %v2173 = vld [vmem:[%s213 + $0x2878] sm:$0xff]
      %v2174 = vld [vmem:[%s213 + $0x2880] sm:$0xff]
      %v2175 = vld [vmem:[%s213 + $0x2888] sm:$0xff]
      %v2176 = vld [vmem:[%s213 + $0x2890] sm:$0xff]
      %v2177 = vld [vmem:[%s213 + $0x2898] sm:$0xff]
      %v2178 = vld [vmem:[%s213 + $0x28a0] sm:$0xff]
      %v2179 = vld [vmem:[%s213 + $0x28a8] sm:$0xff]
      %v2180 = vld [vmem:[%s213 + $0x28b0] sm:$0xff]
      %v2181 = vld [vmem:[%s213 + $0x28b8] sm:$0xff]
      %v2182 = vld [vmem:[%s213 + $0x28c0] sm:$0xff]
      %v2183 = vld [vmem:[%s213 + $0x28c8] sm:$0xff]
      %v2184 = vld [vmem:[%s213 + $0x28d0] sm:$0xff]
      %v2185 = vld [vmem:[%s213 + $0x28d8] sm:$0xff]
      %v2186 = vld [vmem:[%s213 + $0x28e0] sm:$0xff]
      %v2187 = vld [vmem:[%s213 + $0x28e8] sm:$0xff]
      %v2188 = vld [vmem:[%s213 + $0x28f0] sm:$0xff]
      %v2189 = vld [vmem:[%s213 + $0x28f8] sm:$0xff]
      %v2190 = vld [vmem:[%s213 + $0x2900] sm:$0xff]
      %v2191 = vld [vmem:[%s213 + $0x2908] sm:$0xff]
      %v2192 = vld [vmem:[%s213 + $0x2910] sm:$0xff]
      %v2193 = vld [vmem:[%s213 + $0x2918] sm:$0xff]
      %v2194 = vld [vmem:[%s213 + $0x2920] sm:$0xff]
      %v2195 = vld [vmem:[%s213 + $0x2928] sm:$0xff]
      %v2196 = vld [vmem:[%s213 + $0x2930] sm:$0xff]
      %v2197 = vld [vmem:[%s213 + $0x2938] sm:$0xff]
      %v2198 = vld [vmem:[%s213 + $0x2940] sm:$0xff]
      %v2199 = vld [vmem:[%s213 + $0x2948] sm:$0xff]
      %v2200 = vld [vmem:[%s213 + $0x2950] sm:$0xff]
      %v2201 = vld [vmem:[%s213 + $0x2958] sm:$0xff]
      %v2202 = vld [vmem:[%s213 + $0x2960] sm:$0xff]
      %v2203 = vld [vmem:[%s213 + $0x2968] sm:$0xff]
      %v2204 = vld [vmem:[%s213 + $0x2970] sm:$0xff]
      %v2205 = vld [vmem:[%s213 + $0x2978] sm:$0xff]
      %v2206 = vld [vmem:[%s213 + $0x2980] sm:$0xff]
      %v2207 = vld [vmem:[%s213 + $0x2988] sm:$0xff]
      %v2208 = vld [vmem:[%s213 + $0x2990] sm:$0xff]
      %v2209 = vld [vmem:[%s213 + $0x2998] sm:$0xff]
      %v2210 = vld [vmem:[%s213 + $0x29a0] sm:$0xff]
      %v2211 = vld [vmem:[%s213 + $0x29a8] sm:$0xff]
      %v2212 = vld [vmem:[%s213 + $0x29b0] sm:$0xff]
      %v2213 = vld [vmem:[%s213 + $0x29b8] sm:$0xff]
      %v2214 = vld [vmem:[%s213 + $0x29c0] sm:$0xff]
      %v2215 = vld [vmem:[%s213 + $0x29c8] sm:$0xff]
      %v2216 = vld [vmem:[%s213 + $0x29d0] sm:$0xff]
      %v2217 = vld [vmem:[%s213 + $0x29d8] sm:$0xff]
      %v2218 = vld [vmem:[%s213 + $0x29e0] sm:$0xff]
      %v2219 = vld [vmem:[%s213 + $0x29e8] sm:$0xff]
      %v2220 = vld [vmem:[%s213 + $0x29f0] sm:$0xff]
      %v2221 = vld [vmem:[%s213 + $0x29f8] sm:$0xff]
      %v2222 = vld [vmem:[%s213 + $0x2a00] sm:$0xff]
      %v2223 = vld [vmem:[%s213 + $0x2a08] sm:$0xff]
      %v2224 = vld [vmem:[%s213 + $0x2a10] sm:$0xff]
      %v2225 = vld [vmem:[%s213 + $0x2a18] sm:$0xff]
      %v2226 = vld [vmem:[%s213 + $0x2a20] sm:$0xff]
      %v2227 = vld [vmem:[%s213 + $0x2a28] sm:$0xff]
      %v2228 = vld [vmem:[%s213 + $0x2a30] sm:$0xff]
      %v2229 = vld [vmem:[%s213 + $0x2a38] sm:$0xff]
      %v2230 = vld [vmem:[%s213 + $0x2a40] sm:$0xff]
      %v2231 = vld [vmem:[%s213 + $0x2a48] sm:$0xff]
      %v2232 = vld [vmem:[%s213 + $0x2a50] sm:$0xff]
      %v2233 = vld [vmem:[%s213 + $0x2a58] sm:$0xff]
      %v2234 = vld [vmem:[%s213 + $0x2a60] sm:$0xff]
      %v2235 = vld [vmem:[%s213 + $0x2a68] sm:$0xff]
      %v2236 = vld [vmem:[%s213 + $0x2a70] sm:$0xff]
      %v2237 = vld [vmem:[%s213 + $0x2a78] sm:$0xff]
      %v2238 = vld [vmem:[%s213 + $0x2a80] sm:$0xff]
      %v2239 = vld [vmem:[%s213 + $0x2a88] sm:$0xff]
      %v2240 = vld [vmem:[%s213 + $0x2a90] sm:$0xff]
      %v2241 = vld [vmem:[%s213 + $0x2a98] sm:$0xff]
      %v2242 = vld [vmem:[%s213 + $0x2aa0] sm:$0xff]
      %v2243 = vld [vmem:[%s213 + $0x2aa8] sm:$0xff]
      %v2244 = vld [vmem:[%s213 + $0x2ab0] sm:$0xff]
      %v2245 = vld [vmem:[%s213 + $0x2ab8] sm:$0xff]
      %v2246 = vld [vmem:[%s213 + $0x2ac0] sm:$0xff]
      %v2247 = vld [vmem:[%s213 + $0x2ac8] sm:$0xff]
      %v2248 = vld [vmem:[%s213 + $0x2ad0] sm:$0xff]
      %v2249 = vld [vmem:[%s213 + $0x2ad8] sm:$0xff]
      %v2250 = vld [vmem:[%s213 + $0x2ae0] sm:$0xff]
      %v2251 = vld [vmem:[%s213 + $0x2ae8] sm:$0xff]
      %v2252 = vld [vmem:[%s213 + $0x2af0] sm:$0xff]
      %v2253 = vld [vmem:[%s213 + $0x2af8] sm:$0xff]
      %v2254 = vld [vmem:[%s213 + $0x2b00] sm:$0xff]
      %v2255 = vld [vmem:[%s213 + $0x2b08] sm:$0xff]
      %v2256 = vld [vmem:[%s213 + $0x2b10] sm:$0xff]
      %v2257 = vld [vmem:[%s213 + $0x2b18] sm:$0xff]
      %v2258 = vld [vmem:[%s213 + $0x2b20] sm:$0xff]
      %v2259 = vld [vmem:[%s213 + $0x2b28] sm:$0xff]
      %v2260 = vld [vmem:[%s213 + $0x2b30] sm:$0xff]
      %v2261 = vld [vmem:[%s213 + $0x2b38] sm:$0xff]
      %v2262 = vld [vmem:[%s213 + $0x2b40] sm:$0xff]
      %v2263 = vld [vmem:[%s213 + $0x2b48] sm:$0xff]
      %v2264 = vld [vmem:[%s213 + $0x2b50] sm:$0xff]
      %v2265 = vld [vmem:[%s213 + $0x2b58] sm:$0xff]
      %v2266 = vld [vmem:[%s213 + $0x2b60] sm:$0xff]
      %v2267 = vld [vmem:[%s213 + $0x2b68] sm:$0xff]
      %v2268 = vld [vmem:[%s213 + $0x2b70] sm:$0xff]
      %v2269 = vld [vmem:[%s213 + $0x2b78] sm:$0xff]
      %v2270 = vld [vmem:[%s213 + $0x2b80] sm:$0xff]
      %v2271 = vld [vmem:[%s213 + $0x2b88] sm:$0xff]
      %v2272 = vld [vmem:[%s213 + $0x2b90] sm:$0xff]
      %v2273 = vld [vmem:[%s213 + $0x2b98] sm:$0xff]
      %v2274 = vld [vmem:[%s213 + $0x2ba0] sm:$0xff]
      %v2275 = vld [vmem:[%s213 + $0x2ba8] sm:$0xff]
      %v2276 = vld [vmem:[%s213 + $0x2bb0] sm:$0xff]
      %v2277 = vld [vmem:[%s213 + $0x2bb8] sm:$0xff]
      %v2278 = vld [vmem:[%s213 + $0x2bc0] sm:$0xff]
      %v2279 = vld [vmem:[%s213 + $0x2bc8] sm:$0xff]
      %v2280 = vld [vmem:[%s213 + $0x2bd0] sm:$0xff]
      %v2281 = vld [vmem:[%s213 + $0x2bd8] sm:$0xff]
      %v2282 = vld [vmem:[%s213 + $0x2be0] sm:$0xff]
      %v2283 = vld [vmem:[%s213 + $0x2be8] sm:$0xff]
      %v2284 = vld [vmem:[%s213 + $0x2bf0] sm:$0xff]
      %v2285 = vld [vmem:[%s213 + $0x2bf8] sm:$0xff]
      %v2286 = vld [vmem:[%s213 + $0x2c00] sm:$0xff]
      %v2287 = vld [vmem:[%s213 + $0x2c08] sm:$0xff]
      %v2288 = vld [vmem:[%s213 + $0x2c10] sm:$0xff]
      %v2289 = vld [vmem:[%s213 + $0x2c18] sm:$0xff]
      %v2290 = vld [vmem:[%s213 + $0x2c20] sm:$0xff]
      %v2291 = vld [vmem:[%s213 + $0x2c28] sm:$0xff]
      %v2292 = vld [vmem:[%s213 + $0x2c30] sm:$0xff]
      %v2293 = vld [vmem:[%s213 + $0x2c38] sm:$0xff]
      %v2294 = vld [vmem:[%s213 + $0x2c40] sm:$0xff]
      %v2295 = vld [vmem:[%s213 + $0x2c48] sm:$0xff]
      %v2296 = vld [vmem:[%s213 + $0x2c50] sm:$0xff]
      %v2297 = vld [vmem:[%s213 + $0x2c58] sm:$0xff]
      %v2298 = vld [vmem:[%s213 + $0x2c60] sm:$0xff]
      %v2299 = vld [vmem:[%s213 + $0x2c68] sm:$0xff]
      %v2300 = vld [vmem:[%s213 + $0x2c70] sm:$0xff]
      %v2301 = vld [vmem:[%s213 + $0x2c78] sm:$0xff]
      %v2302 = vld [vmem:[%s213 + $0x2c80] sm:$0xff]
      %v2303 = vld [vmem:[%s213 + $0x2c88] sm:$0xff]
      %v2304 = vld [vmem:[%s213 + $0x2c90] sm:$0xff]
      %v2305 = vld [vmem:[%s213 + $0x2c98] sm:$0xff]
      %v2306 = vld [vmem:[%s213 + $0x2ca0] sm:$0xff]
      %v2307 = vld [vmem:[%s213 + $0x2ca8] sm:$0xff]
      %v2308 = vld [vmem:[%s213 + $0x2cb0] sm:$0xff]
      %v2309 = vld [vmem:[%s213 + $0x2cb8] sm:$0xff]
      %v2310 = vld [vmem:[%s213 + $0x2cc0] sm:$0xff]
      %v2311 = vld [vmem:[%s213 + $0x2cc8] sm:$0xff]
      %v2312 = vld [vmem:[%s213 + $0x2cd0] sm:$0xff]
      %v2313 = vld [vmem:[%s213 + $0x2cd8] sm:$0xff]
      %v2314 = vld [vmem:[%s213 + $0x2ce0] sm:$0xff]
      %v2315 = vld [vmem:[%s213 + $0x2ce8] sm:$0xff]
      %v2316 = vld [vmem:[%s213 + $0x2cf0] sm:$0xff]
      %v2317 = vld [vmem:[%s213 + $0x2cf8] sm:$0xff]
      %v2318 = vld [vmem:[%s213 + $0x2d00] sm:$0xff]
      %v2319 = vld [vmem:[%s213 + $0x2d08] sm:$0xff]
      %v2320 = vld [vmem:[%s213 + $0x2d10] sm:$0xff]
      %v2321 = vld [vmem:[%s213 + $0x2d18] sm:$0xff]
      %v2322 = vld [vmem:[%s213 + $0x2d20] sm:$0xff]
      %v2323 = vld [vmem:[%s213 + $0x2d28] sm:$0xff]
      %v2324 = vld [vmem:[%s213 + $0x2d30] sm:$0xff]
      %v2325 = vld [vmem:[%s213 + $0x2d38] sm:$0xff]
      %v2326 = vld [vmem:[%s213 + $0x2d40] sm:$0xff]
      %v2327 = vld [vmem:[%s213 + $0x2d48] sm:$0xff]
      %v2328 = vld [vmem:[%s213 + $0x2d50] sm:$0xff]
      %v2329 = vld [vmem:[%s213 + $0x2d58] sm:$0xff]
      %v2330 = vld [vmem:[%s213 + $0x2d60] sm:$0xff]
      %v2331 = vld [vmem:[%s213 + $0x2d68] sm:$0xff]
      %v2332 = vld [vmem:[%s213 + $0x2d70] sm:$0xff]
      %v2333 = vld [vmem:[%s213 + $0x2d78] sm:$0xff]
      %v2334 = vld [vmem:[%s213 + $0x2d80] sm:$0xff]
      %v2335 = vld [vmem:[%s213 + $0x2d88] sm:$0xff]
      %v2336 = vld [vmem:[%s213 + $0x2d90] sm:$0xff]
      %v2337 = vld [vmem:[%s213 + $0x2d98] sm:$0xff]
      %v2338 = vld [vmem:[%s213 + $0x2da0] sm:$0xff]
      %v2339 = vld [vmem:[%s213 + $0x2da8] sm:$0xff]
      %v2340 = vld [vmem:[%s213 + $0x2db0] sm:$0xff]
      %v2341 = vld [vmem:[%s213 + $0x2db8] sm:$0xff]
      %v2342 = vld [vmem:[%s213 + $0x2dc0] sm:$0xff]
      %v2343 = vld [vmem:[%s213 + $0x2dc8] sm:$0xff]
      %v2344 = vld [vmem:[%s213 + $0x2dd0] sm:$0xff]
      %v2345 = vld [vmem:[%s213 + $0x2dd8] sm:$0xff]
      %v2346 = vld [vmem:[%s213 + $0x2de0] sm:$0xff]
      %v2347 = vld [vmem:[%s213 + $0x2de8] sm:$0xff]
      %v2348 = vld [vmem:[%s213 + $0x2df0] sm:$0xff]
      %v2349 = vld [vmem:[%s213 + $0x2df8] sm:$0xff]
      %v2350 = vld [vmem:[%s213 + $0x2e00] sm:$0xff]
      %v2351 = vld [vmem:[%s213 + $0x2e08] sm:$0xff]
      %v2352 = vld [vmem:[%s213 + $0x2e10] sm:$0xff]
      %v2353 = vld [vmem:[%s213 + $0x2e18] sm:$0xff]
      %v2354 = vld [vmem:[%s213 + $0x2e20] sm:$0xff]
      %v2355 = vld [vmem:[%s213 + $0x2e28] sm:$0xff]
      %v2356 = vld [vmem:[%s213 + $0x2e30] sm:$0xff]
      %v2357 = vld [vmem:[%s213 + $0x2e38] sm:$0xff]
      %v2358 = vld [vmem:[%s213 + $0x2e40] sm:$0xff]
      %v2359 = vld [vmem:[%s213 + $0x2e48] sm:$0xff]
      %v2360 = vld [vmem:[%s213 + $0x2e50] sm:$0xff]
      %v2361 = vld [vmem:[%s213 + $0x2e58] sm:$0xff]
      %v2362 = vld [vmem:[%s213 + $0x2e60] sm:$0xff]
      %v2363 = vld [vmem:[%s213 + $0x2e68] sm:$0xff]
      %v2364 = vld [vmem:[%s213 + $0x2e70] sm:$0xff]
      %v2365 = vld [vmem:[%s213 + $0x2e78] sm:$0xff]
      %v2366 = vld [vmem:[%s213 + $0x2e80] sm:$0xff]
      %v2367 = vld [vmem:[%s213 + $0x2e88] sm:$0xff]
      %v2368 = vld [vmem:[%s213 + $0x2e90] sm:$0xff]
      %v2369 = vld [vmem:[%s213 + $0x2e98] sm:$0xff]
      %v2370 = vld [vmem:[%s213 + $0x2ea0] sm:$0xff]
      %v2371 = vld [vmem:[%s213 + $0x2ea8] sm:$0xff]
      %v2372 = vld [vmem:[%s213 + $0x2eb0] sm:$0xff]
      %v2373 = vld [vmem:[%s213 + $0x2eb8] sm:$0xff]
      %v2374 = vld [vmem:[%s213 + $0x2ec0] sm:$0xff]
      %v2375 = vld [vmem:[%s213 + $0x2ec8] sm:$0xff]
      %v2376 = vld [vmem:[%s213 + $0x2ed0] sm:$0xff]
      %v2377 = vld [vmem:[%s213 + $0x2ed8] sm:$0xff]
      %v2378 = vld [vmem:[%s213 + $0x2ee0] sm:$0xff]
      %v2379 = vld [vmem:[%s213 + $0x2ee8] sm:$0xff]
      %v2380 = vld [vmem:[%s213 + $0x2ef0] sm:$0xff]
      %v2381 = vld [vmem:[%s213 + $0x2ef8] sm:$0xff]
      %v2382 = vld [vmem:[%s213 + $0x2f00] sm:$0xff]
      %v2383 = vld [vmem:[%s213 + $0x2f08] sm:$0xff]
      %v2384 = vld [vmem:[%s213 + $0x2f10] sm:$0xff]
      %v2385 = vld [vmem:[%s213 + $0x2f18] sm:$0xff]
      %v2386 = vld [vmem:[%s213 + $0x2f20] sm:$0xff]
      %v2387 = vld [vmem:[%s213 + $0x2f28] sm:$0xff]
      %v2388 = vld [vmem:[%s213 + $0x2f30] sm:$0xff]
      %v2389 = vld [vmem:[%s213 + $0x2f38] sm:$0xff]
      %v2390 = vld [vmem:[%s213 + $0x2f40] sm:$0xff]
      %v2391 = vld [vmem:[%s213 + $0x2f48] sm:$0xff]
      %v2392 = vld [vmem:[%s213 + $0x2f50] sm:$0xff]
      %v2393 = vld [vmem:[%s213 + $0x2f58] sm:$0xff]
      %v2394 = vld [vmem:[%s213 + $0x2f60] sm:$0xff]
      %v2395 = vld [vmem:[%s213 + $0x2f68] sm:$0xff]
      %v2396 = vld [vmem:[%s213 + $0x2f70] sm:$0xff]
      %v2397 = vld [vmem:[%s213 + $0x2f78] sm:$0xff]
      %v2398 = vld [vmem:[%s213 + $0x2f80] sm:$0xff]
      %v2399 = vld [vmem:[%s213 + $0x2f88] sm:$0xff]
      %v2400 = vld [vmem:[%s213 + $0x2f90] sm:$0xff]
      %v2401 = vld [vmem:[%s213 + $0x2f98] sm:$0xff]
      %v2402 = vld [vmem:[%s213 + $0x2fa0] sm:$0xff]
      %v2403 = vld [vmem:[%s213 + $0x2fa8] sm:$0xff]
      %v2404 = vld [vmem:[%s213 + $0x2fb0] sm:$0xff]
      %v2405 = vld [vmem:[%s213 + $0x2fb8] sm:$0xff]
      %v2406 = vld [vmem:[%s213 + $0x2fc0] sm:$0xff]
      %v2407 = vld [vmem:[%s213 + $0x2fc8] sm:$0xff]
      %v2408 = vld [vmem:[%s213 + $0x2fd0] sm:$0xff]
      %v2409 = vld [vmem:[%s213 + $0x2fd8] sm:$0xff]
      %v2410 = vld [vmem:[%s213 + $0x2fe0] sm:$0xff]
      %v2411 = vld [vmem:[%s213 + $0x2fe8] sm:$0xff]
      %v2412 = vld [vmem:[%s213 + $0x2ff0] sm:$0xff]
      %v2413 = vld [vmem:[%s213 + $0x2ff8] sm:$0xff]
      %v2414 = vld [vmem:[%s213 + $0x3000] sm:$0xff]
      %v2415 = vld [vmem:[%s213 + $0x3008] sm:$0xff]
      %v2416 = vld [vmem:[%s213 + $0x3010] sm:$0xff]
      %v2417 = vld [vmem:[%s213 + $0x3018] sm:$0xff]
      %v2418 = vld [vmem:[%s213 + $0x3020] sm:$0xff]
      %v2419 = vld [vmem:[%s213 + $0x3028] sm:$0xff]
      %v2420 = vld [vmem:[%s213 + $0x3030] sm:$0xff]
      %v2421 = vld [vmem:[%s213 + $0x3038] sm:$0xff]
      %v2422 = vld [vmem:[%s213 + $0x3040] sm:$0xff]
      %v2423 = vld [vmem:[%s213 + $0x3048] sm:$0xff]
      %v2424 = vld [vmem:[%s213 + $0x3050] sm:$0xff]
      %v2425 = vld [vmem:[%s213 + $0x3058] sm:$0xff]
      %v2426 = vld [vmem:[%s213 + $0x3060] sm:$0xff]
      %v2427 = vld [vmem:[%s213 + $0x3068] sm:$0xff]
      %v2428 = vld [vmem:[%s213 + $0x3070] sm:$0xff]
      %v2429 = vld [vmem:[%s213 + $0x3078] sm:$0xff]
      %v2430 = vld [vmem:[%s213 + $0x3080] sm:$0xff]
      %v2431 = vld [vmem:[%s213 + $0x3088] sm:$0xff]
      %v2432 = vld [vmem:[%s213 + $0x3090] sm:$0xff]
      %v2433 = vld [vmem:[%s213 + $0x3098] sm:$0xff]
      %v2434 = vld [vmem:[%s213 + $0x30a0] sm:$0xff]
      %v2435 = vld [vmem:[%s213 + $0x30a8] sm:$0xff]
      %v2436 = vld [vmem:[%s213 + $0x30b0] sm:$0xff]
      %v2437 = vld [vmem:[%s213 + $0x30b8] sm:$0xff]
      %v2438 = vld [vmem:[%s213 + $0x30c0] sm:$0xff]
      %v2439 = vld [vmem:[%s213 + $0x30c8] sm:$0xff]
      %v2440 = vld [vmem:[%s213 + $0x30d0] sm:$0xff]
      %v2441 = vld [vmem:[%s213 + $0x30d8] sm:$0xff]
      %v2442 = vld [vmem:[%s213 + $0x30e0] sm:$0xff]
      %v2443 = vld [vmem:[%s213 + $0x30e8] sm:$0xff]
      %v2444 = vld [vmem:[%s213 + $0x30f0] sm:$0xff]
      %v2445 = vld [vmem:[%s213 + $0x30f8] sm:$0xff]
      %v2446 = vld [vmem:[%s213 + $0x3100] sm:$0xff]
      %v2447 = vld [vmem:[%s213 + $0x3108] sm:$0xff]
      %v2448 = vld [vmem:[%s213 + $0x3110] sm:$0xff]
      %v2449 = vld [vmem:[%s213 + $0x3118] sm:$0xff]
      %v2450 = vld [vmem:[%s213 + $0x3120] sm:$0xff]
      %v2451 = vld [vmem:[%s213 + $0x3128] sm:$0xff]
      %v2452 = vld [vmem:[%s213 + $0x3130] sm:$0xff]
      %v2453 = vld [vmem:[%s213 + $0x3138] sm:$0xff]
      %v2454 = vld [vmem:[%s213 + $0x3140] sm:$0xff]
      %v2455 = vld [vmem:[%s213 + $0x3148] sm:$0xff]
      %v2456 = vld [vmem:[%s213 + $0x3150] sm:$0xff]
      %v2457 = vld [vmem:[%s213 + $0x3158] sm:$0xff]
      %v2458 = vld [vmem:[%s213 + $0x3160] sm:$0xff]
      %v2459 = vld [vmem:[%s213 + $0x3168] sm:$0xff]
      %v2460 = vld [vmem:[%s213 + $0x3170] sm:$0xff]
      %v2461 = vld [vmem:[%s213 + $0x3178] sm:$0xff]
      %v2462 = vld [vmem:[%s213 + $0x3180] sm:$0xff]
      %v2463 = vld [vmem:[%s213 + $0x3188] sm:$0xff]
      %v2464 = vld [vmem:[%s213 + $0x3190] sm:$0xff]
      %v2465 = vld [vmem:[%s213 + $0x3198] sm:$0xff]
      %v2466 = vld [vmem:[%s213 + $0x31a0] sm:$0xff]
      %v2467 = vld [vmem:[%s213 + $0x31a8] sm:$0xff]
      %v2468 = vld [vmem:[%s213 + $0x31b0] sm:$0xff]
      %v2469 = vld [vmem:[%s213 + $0x31b8] sm:$0xff]
      %v2470 = vld [vmem:[%s213 + $0x31c0] sm:$0xff]
      %v2471 = vld [vmem:[%s213 + $0x31c8] sm:$0xff]
      %v2472 = vld [vmem:[%s213 + $0x31d0] sm:$0xff]
      %v2473 = vld [vmem:[%s213 + $0x31d8] sm:$0xff]
      %v2474 = vld [vmem:[%s213 + $0x31e0] sm:$0xff]
      %v2475 = vld [vmem:[%s213 + $0x31e8] sm:$0xff]
      %v2476 = vld [vmem:[%s213 + $0x31f0] sm:$0xff]
      %v2477 = vld [vmem:[%s213 + $0x31f8] sm:$0xff]
      %2478 = vmatprep.subr.mxu0 %v879
      %2479 = vmatpush1.msra.mxu0 %v878
      %2480 = vmatprep.subr.mxu0 %v904
      %2481 = vmatpush1.msra.mxu0 %v903
      %2482 = vmatprep.subr.mxu0 %v929
      %2483 = vmatpush1.msra.mxu0 %v928
      %2484 = vmatprep.subr.mxu0 %v954
      %2485 = vmatpush1.msra.mxu0 %v953
      %2486 = vmatprep.subr.mxu0 %v979
      %2487 = vmatpush1.msra.mxu0 %v978
      %2488 = vmatprep.subr.mxu0 %v1004
      %2489 = vmatpush1.msra.mxu0 %v1003
      %2490 = vmatprep.subr.mxu0 %v1029
      %2491 = vmatpush1.msra.mxu0 %v1028
      %2492 = vmatprep.subr.mxu0 %v1054
      %2493 = vmatpush1.msra.mxu0 %v1053
      %2494 = vmatprep.subr.mxu0 %v1079
      %2495 = vmatpush1.msra.mxu0 %v1078
      %2496 = vmatprep.subr.mxu0 %v1104
      %2497 = vmatpush1.msra.mxu0 %v1103
      %2498 = vmatprep.subr.mxu0 %v1129
      %2499 = vmatpush1.msra.mxu0 %v1128
      %2500 = vmatprep.subr.mxu0 %v1154
      %2501 = vmatpush1.msra.mxu0 %v1153
      %2502 = vmatprep.subr.mxu0 %v1179
      %2503 = vmatpush1.msra.mxu0 %v1178
      %2504 = vmatprep.subr.mxu0 %v1204
      %2505 = vmatpush1.msra.mxu0 %v1203
      %2506 = vmatprep.subr.mxu0 %v1229
      %2507 = vmatpush1.msra.mxu0 %v1228
      %2508 = vmatprep.subr.mxu0 %v1254
      %2509 = vmatpush1.msra.mxu0 %v1253
      %2510 = vmatprep.subr.mxu0 %v1279
      %2511 = vmatpush1.msra.mxu0 %v1278
      %2512 = vmatprep.subr.mxu0 %v1304
      %2513 = vmatpush1.msra.mxu0 %v1303
      %2514 = vmatprep.subr.mxu0 %v1329
      %2515 = vmatpush1.msra.mxu0 %v1328
      %2516 = vmatprep.subr.mxu0 %v1354
      %2517 = vmatpush1.msra.mxu0 %v1353
      %2518 = vmatprep.subr.mxu0 %v1379
      %2519 = vmatpush1.msra.mxu0 %v1378
      %2520 = vmatprep.subr.mxu0 %v1404
      %2521 = vmatpush1.msra.mxu0 %v1403
      %2522 = vmatprep.subr.mxu0 %v1429
      %2523 = vmatpush1.msra.mxu0 %v1428
      %2524 = vmatprep.subr.mxu0 %v1454
      %2525 = vmatpush1.msra.mxu0 %v1453
      %2526 = vmatprep.subr.mxu0 %v1479
      %2527 = vmatpush1.msra.mxu0 %v1478
      %2528 = vmatprep.subr.mxu0 %v1504
      %2529 = vmatpush1.msra.mxu0 %v1503
      %2530 = vmatprep.subr.mxu0 %v1529
      %2531 = vmatpush1.msra.mxu0 %v1528
      %2532 = vmatprep.subr.mxu0 %v1554
      %2533 = vmatpush1.msra.mxu0 %v1553
      %2534 = vmatprep.subr.mxu0 %v1579
      %2535 = vmatpush1.msra.mxu0 %v1578
      %2536 = vmatprep.subr.mxu0 %v1604
      %2537 = vmatpush1.msra.mxu0 %v1603
      %2538 = vmatprep.subr.mxu0 %v1629
      %2539 = vmatpush1.msra.mxu0 %v1628
      %2540 = vmatprep.subr.mxu0 %v1654
      %2541 = vmatpush1.msra.mxu0 %v1653
      %2542 = vmatprep.mubr.f32.mxu0 %v875
      %2543 = vmatmul.mubr.f32.gmra.mrb[0].mxu0 %v874
      %v2544 = vpop.f32.mrb[0].mxu0
      %v2545 = vadd.f32 0.0, %v2544
      %v2546 = vpop.f32.mrb[0].mxu0
      %v2547 = vadd.f32 0.0, %v2546
      %2548 = vdwg.mxu0
      %2549 = vmatprep.subr.mxu0 %v1679
      %2550 = vmatpush1.msra.mxu0 %v1678
      %2551 = vmatprep.subr.mxu0 %v1704
      %2552 = vmatpush1.msra.mxu0 %v1703
      %2553 = vmatprep.subr.mxu0 %v1729
      %2554 = vmatpush1.msra.mxu0 %v1728
      %2555 = vmatprep.subr.mxu0 %v1754
      %2556 = vmatpush1.msra.mxu0 %v1753
      %2557 = vmatprep.subr.mxu0 %v1779
      %2558 = vmatpush1.msra.mxu0 %v1778
      %2559 = vmatprep.subr.mxu0 %v1804
      %2560 = vmatpush1.msra.mxu0 %v1803
      %2561 = vmatprep.subr.mxu0 %v1829
      %2562 = vmatpush1.msra.mxu0 %v1828
      %2563 = vmatprep.subr.mxu0 %v1854
      %2564 = vmatpush1.msra.mxu0 %v1853
      %2565 = vmatprep.subr.mxu0 %v1879
      %2566 = vmatpush1.msra.mxu0 %v1878
      %2567 = vmatprep.subr.mxu0 %v1904
      %2568 = vmatpush1.msra.mxu0 %v1903
      %2569 = vmatprep.subr.mxu0 %v1929
      %2570 = vmatpush1.msra.mxu0 %v1928
      %2571 = vmatprep.subr.mxu0 %v1954
      %2572 = vmatpush1.msra.mxu0 %v1953
      %2573 = vmatprep.subr.mxu0 %v1979
      %2574 = vmatpush1.msra.mxu0 %v1978
      %2575 = vmatprep.subr.mxu0 %v2004
      %2576 = vmatpush1.msra.mxu0 %v2003
      %2577 = vmatprep.subr.mxu0 %v2029
      %2578 = vmatpush1.msra.mxu0 %v2028
      %2579 = vmatprep.subr.mxu0 %v2054
      %2580 = vmatpush1.msra.mxu0 %v2053
      %2581 = vmatprep.subr.mxu0 %v2079
      %2582 = vmatpush1.msra.mxu0 %v2078
      %2583 = vmatprep.subr.mxu0 %v2104
      %2584 = vmatpush1.msra.mxu0 %v2103
      %2585 = vmatprep.subr.mxu0 %v2129
      %2586 = vmatpush1.msra.mxu0 %v2128
      %2587 = vmatprep.subr.mxu0 %v2154
      %2588 = vmatpush1.msra.mxu0 %v2153
      %2589 = vmatprep.subr.mxu0 %v2179
      %2590 = vmatpush1.msra.mxu0 %v2178
      %2591 = vmatprep.subr.mxu0 %v2204
      %2592 = vmatpush1.msra.mxu0 %v2203
      %2593 = vmatprep.subr.mxu0 %v2229
      %2594 = vmatpush1.msra.mxu0 %v2228
      %2595 = vmatprep.subr.mxu0 %v2254
      %2596 = vmatpush1.msra.mxu0 %v2253
      %2597 = vmatprep.subr.mxu0 %v2279
      %2598 = vmatpush1.msra.mxu0 %v2278
      %2599 = vmatprep.subr.mxu0 %v2304
      %2600 = vmatpush1.msra.mxu0 %v2303
      %2601 = vmatprep.subr.mxu0 %v2329
      %2602 = vmatpush1.msra.mxu0 %v2328
      %2603 = vmatprep.subr.mxu0 %v2354
      %2604 = vmatpush1.msra.mxu0 %v2353
      %2605 = vmatprep.subr.mxu0 %v2379
      %2606 = vmatpush1.msra.mxu0 %v2378
      %2607 = vmatprep.subr.mxu0 %v2404
      %2608 = vmatpush1.msra.mxu0 %v2403
      %2609 = vmatprep.subr.mxu0 %v2429
      %2610 = vmatpush1.msra.mxu0 %v2428
      %2611 = vmatprep.subr.mxu0 %v2454
      %2612 = vmatpush1.msra.mxu0 %v2453
      %2613 = vmatprep.mubr.f32.mxu0 %v877
      %2614 = vmatmul.mubr.f32.gmra.mrb[0].mxu0 %v876
      %v2615 = vpop.f32.mrb[0].mxu0
      %v2616 = vadd.f32 %v2545, %v2615
      %v2617 = vpop.f32.mrb[0].mxu0
      %v2618 = vadd.f32 %v2547, %v2617
      %2619 = vdwg.mxu0
      %2620 = vmatprep.subr.mxu0 %v881
      %2621 = vmatpush1.msra.mxu0 %v880
      %2622 = vmatprep.subr.mxu0 %v906
      %2623 = vmatpush1.msra.mxu0 %v905
      %2624 = vmatprep.subr.mxu0 %v931
      %2625 = vmatpush1.msra.mxu0 %v930
      %2626 = vmatprep.subr.mxu0 %v956
      %2627 = vmatpush1.msra.mxu0 %v955
      %2628 = vmatprep.subr.mxu0 %v981
      %2629 = vmatpush1.msra.mxu0 %v980
      %2630 = vmatprep.subr.mxu0 %v1006
      %2631 = vmatpush1.msra.mxu0 %v1005
      %2632 = vmatprep.subr.mxu0 %v1031
      %2633 = vmatpush1.msra.mxu0 %v1030
      %2634 = vmatprep.subr.mxu0 %v1056
      %2635 = vmatpush1.msra.mxu0 %v1055
      %2636 = vmatprep.subr.mxu0 %v1081
      %2637 = vmatpush1.msra.mxu0 %v1080
      %2638 = vmatprep.subr.mxu0 %v1106
      %2639 = vmatpush1.msra.mxu0 %v1105
      %2640 = vmatprep.subr.mxu0 %v1131
      %2641 = vmatpush1.msra.mxu0 %v1130
      %2642 = vmatprep.subr.mxu0 %v1156
      %2643 = vmatpush1.msra.mxu0 %v1155
      %2644 = vmatprep.subr.mxu0 %v1181
      %2645 = vmatpush1.msra.mxu0 %v1180
      %2646 = vmatprep.subr.mxu0 %v1206
      %2647 = vmatpush1.msra.mxu0 %v1205
      %2648 = vmatprep.subr.mxu0 %v1231
      %2649 = vmatpush1.msra.mxu0 %v1230
      %2650 = vmatprep.subr.mxu0 %v1256
      %2651 = vmatpush1.msra.mxu0 %v1255
      %2652 = vmatprep.subr.mxu0 %v1281
      %2653 = vmatpush1.msra.mxu0 %v1280
      %2654 = vmatprep.subr.mxu0 %v1306
      %2655 = vmatpush1.msra.mxu0 %v1305
      %2656 = vmatprep.subr.mxu0 %v1331
      %2657 = vmatpush1.msra.mxu0 %v1330
      %2658 = vmatprep.subr.mxu0 %v1356
      %2659 = vmatpush1.msra.mxu0 %v1355
      %2660 = vmatprep.subr.mxu0 %v1381
      %2661 = vmatpush1.msra.mxu0 %v1380
      %2662 = vmatprep.subr.mxu0 %v1406
      %2663 = vmatpush1.msra.mxu0 %v1405
      %2664 = vmatprep.subr.mxu0 %v1431
      %2665 = vmatpush1.msra.mxu0 %v1430
      %2666 = vmatprep.subr.mxu0 %v1456
      %2667 = vmatpush1.msra.mxu0 %v1455
      %2668 = vmatprep.subr.mxu0 %v1481
      %2669 = vmatpush1.msra.mxu0 %v1480
      %2670 = vmatprep.subr.mxu0 %v1506
      %2671 = vmatpush1.msra.mxu0 %v1505
      %2672 = vmatprep.subr.mxu0 %v1531
      %2673 = vmatpush1.msra.mxu0 %v1530
      %2674 = vmatprep.subr.mxu0 %v1556
      %2675 = vmatpush1.msra.mxu0 %v1555
      %2676 = vmatprep.subr.mxu0 %v1581
      %2677 = vmatpush1.msra.mxu0 %v1580
      %2678 = vmatprep.subr.mxu0 %v1606
      %2679 = vmatpush1.msra.mxu0 %v1605
      %2680 = vmatprep.subr.mxu0 %v1631
      %2681 = vmatpush1.msra.mxu0 %v1630
      %2682 = vmatprep.subr.mxu0 %v1656
      %2683 = vmatpush1.msra.mxu0 %v1655
      %2684 = vmatprep.mubr.f32.mxu0 %v875
      %2685 = vmatmul.mubr.f32.gmra.mrb[0].mxu0 %v874
      %v2686 = vpop.f32.mrb[0].mxu0
      %v2687 = vadd.f32 0.0, %v2686
      %v2688 = vpop.f32.mrb[0].mxu0
      %v2689 = vadd.f32 0.0, %v2688
      %2690 = vdwg.mxu0
      %2691 = vmatprep.subr.mxu0 %v1681
      %2692 = vmatpush1.msra.mxu0 %v1680
      %2693 = vmatprep.subr.mxu0 %v1706
      %2694 = vmatpush1.msra.mxu0 %v1705
      %2695 = vmatprep.subr.mxu0 %v1731
      %2696 = vmatpush1.msra.mxu0 %v1730
      %2697 = vmatprep.subr.mxu0 %v1756
      %2698 = vmatpush1.msra.mxu0 %v1755
      %2699 = vmatprep.subr.mxu0 %v1781
      %2700 = vmatpush1.msra.mxu0 %v1780
      %2701 = vmatprep.subr.mxu0 %v1806
      %2702 = vmatpush1.msra.mxu0 %v1805
      %2703 = vmatprep.subr.mxu0 %v1831
      %2704 = vmatpush1.msra.mxu0 %v1830
      %2705 = vmatprep.subr.mxu0 %v1856
      %2706 = vmatpush1.msra.mxu0 %v1855
      %2707 = vmatprep.subr.mxu0 %v1881
      %2708 = vmatpush1.msra.mxu0 %v1880
      %2709 = vmatprep.subr.mxu0 %v1906
      %2710 = vmatpush1.msra.mxu0 %v1905
      %2711 = vmatprep.subr.mxu0 %v1931
      %2712 = vmatpush1.msra.mxu0 %v1930
      %2713 = vmatprep.subr.mxu0 %v1956
      %2714 = vmatpush1.msra.mxu0 %v1955
      %2715 = vmatprep.subr.mxu0 %v1981
      %2716 = vmatpush1.msra.mxu0 %v1980
      %2717 = vmatprep.subr.mxu0 %v2006
      %2718 = vmatpush1.msra.mxu0 %v2005
      %2719 = vmatprep.subr.mxu0 %v2031
      %2720 = vmatpush1.msra.mxu0 %v2030
      %2721 = vmatprep.subr.mxu0 %v2056
      %2722 = vmatpush1.msra.mxu0 %v2055
      %2723 = vmatprep.subr.mxu0 %v2081
      %2724 = vmatpush1.msra.mxu0 %v2080
      %2725 = vmatprep.subr.mxu0 %v2106
      %2726 = vmatpush1.msra.mxu0 %v2105
      %2727 = vmatprep.subr.mxu0 %v2131
      %2728 = vmatpush1.msra.mxu0 %v2130
      %2729 = vmatprep.subr.mxu0 %v2156
      %2730 = vmatpush1.msra.mxu0 %v2155
      %2731 = vmatprep.subr.mxu0 %v2181
      %2732 = vmatpush1.msra.mxu0 %v2180
      %2733 = vmatprep.subr.mxu0 %v2206
      %2734 = vmatpush1.msra.mxu0 %v2205
      %2735 = vmatprep.subr.mxu0 %v2231
      %2736 = vmatpush1.msra.mxu0 %v2230
      %2737 = vmatprep.subr.mxu0 %v2256
      %2738 = vmatpush1.msra.mxu0 %v2255
      %2739 = vmatprep.subr.mxu0 %v2281
      %2740 = vmatpush1.msra.mxu0 %v2280
      %2741 = vmatprep.subr.mxu0 %v2306
      %2742 = vmatpush1.msra.mxu0 %v2305
      %2743 = vmatprep.subr.mxu0 %v2331
      %2744 = vmatpush1.msra.mxu0 %v2330
      %2745 = vmatprep.subr.mxu0 %v2356
      %2746 = vmatpush1.msra.mxu0 %v2355
      %2747 = vmatprep.subr.mxu0 %v2381
      %2748 = vmatpush1.msra.mxu0 %v2380
      %2749 = vmatprep.subr.mxu0 %v2406
      %2750 = vmatpush1.msra.mxu0 %v2405
      %2751 = vmatprep.subr.mxu0 %v2431
      %2752 = vmatpush1.msra.mxu0 %v2430
      %2753 = vmatprep.subr.mxu0 %v2456
      %2754 = vmatpush1.msra.mxu0 %v2455
      %2755 = vmatprep.mubr.f32.mxu0 %v877
      %2756 = vmatmul.mubr.f32.gmra.mrb[0].mxu0 %v876
      %v2757 = vpop.f32.mrb[0].mxu0
      %v2758 = vadd.f32 %v2687, %v2757
      %v2759 = vpop.f32.mrb[0].mxu0
      %v2760 = vadd.f32 %v2689, %v2759
      %2761 = vdwg.mxu0
      %2762 = vmatprep.subr.mxu0 %v883
      %2763 = vmatpush1.msra.mxu0 %v882
      %2764 = vmatprep.subr.mxu0 %v908
      %2765 = vmatpush1.msra.mxu0 %v907
      %2766 = vmatprep.subr.mxu0 %v933
      %2767 = vmatpush1.msra.mxu0 %v932
      %2768 = vmatprep.subr.mxu0 %v958
      %2769 = vmatpush1.msra.mxu0 %v957
      %2770 = vmatprep.subr.mxu0 %v983
      %2771 = vmatpush1.msra.mxu0 %v982
      %2772 = vmatprep.subr.mxu0 %v1008
      %2773 = vmatpush1.msra.mxu0 %v1007
      %2774 = vmatprep.subr.mxu0 %v1033
      %2775 = vmatpush1.msra.mxu0 %v1032
      %2776 = vmatprep.subr.mxu0 %v1058
      %2777 = vmatpush1.msra.mxu0 %v1057
      %2778 = vmatprep.subr.mxu0 %v1083
      %2779 = vmatpush1.msra.mxu0 %v1082
      %2780 = vmatprep.subr.mxu0 %v1108
      %2781 = vmatpush1.msra.mxu0 %v1107
      %2782 = vmatprep.subr.mxu0 %v1133
      %2783 = vmatpush1.msra.mxu0 %v1132
      %2784 = vmatprep.subr.mxu0 %v1158
      %2785 = vmatpush1.msra.mxu0 %v1157
      %2786 = vmatprep.subr.mxu0 %v1183
      %2787 = vmatpush1.msra.mxu0 %v1182
      %2788 = vmatprep.subr.mxu0 %v1208
      %2789 = vmatpush1.msra.mxu0 %v1207
      %2790 = vmatprep.subr.mxu0 %v1233
      %2791 = vmatpush1.msra.mxu0 %v1232
      %2792 = vmatprep.subr.mxu0 %v1258
      %2793 = vmatpush1.msra.mxu0 %v1257
      %2794 = vmatprep.subr.mxu0 %v1283
      %2795 = vmatpush1.msra.mxu0 %v1282
      %2796 = vmatprep.subr.mxu0 %v1308
      %2797 = vmatpush1.msra.mxu0 %v1307
      %2798 = vmatprep.subr.mxu0 %v1333
      %2799 = vmatpush1.msra.mxu0 %v1332
      %2800 = vmatprep.subr.mxu0 %v1358
      %2801 = vmatpush1.msra.mxu0 %v1357
      %2802 = vmatprep.subr.mxu0 %v1383
      %2803 = vmatpush1.msra.mxu0 %v1382
      %2804 = vmatprep.subr.mxu0 %v1408
      %2805 = vmatpush1.msra.mxu0 %v1407
      %2806 = vmatprep.subr.mxu0 %v1433
      %2807 = vmatpush1.msra.mxu0 %v1432
      %2808 = vmatprep.subr.mxu0 %v1458
      %2809 = vmatpush1.msra.mxu0 %v1457
      %2810 = vmatprep.subr.mxu0 %v1483
      %2811 = vmatpush1.msra.mxu0 %v1482
      %2812 = vmatprep.subr.mxu0 %v1508
      %2813 = vmatpush1.msra.mxu0 %v1507
      %2814 = vmatprep.subr.mxu0 %v1533
      %2815 = vmatpush1.msra.mxu0 %v1532
      %2816 = vmatprep.subr.mxu0 %v1558
      %2817 = vmatpush1.msra.mxu0 %v1557
      %2818 = vmatprep.subr.mxu0 %v1583
      %2819 = vmatpush1.msra.mxu0 %v1582
      %2820 = vmatprep.subr.mxu0 %v1608
      %2821 = vmatpush1.msra.mxu0 %v1607
      %2822 = vmatprep.subr.mxu0 %v1633
      %2823 = vmatpush1.msra.mxu0 %v1632
      %2824 = vmatprep.subr.mxu0 %v1658
      %2825 = vmatpush1.msra.mxu0 %v1657
      %2826 = vmatprep.mubr.f32.mxu0 %v875
      %2827 = vmatmul.mubr.f32.gmra.mrb[0].mxu0 %v874
      %v2828 = vpop.f32.mrb[0].mxu0
      %v2829 = vadd.f32 0.0, %v2828
      %v2830 = vpop.f32.mrb[0].mxu0
      %v2831 = vadd.f32 0.0, %v2830
      %2832 = vdwg.mxu0
      %2833 = vmatprep.subr.mxu0 %v1683
      %2834 = vmatpush1.msra.mxu0 %v1682
      %2835 = vmatprep.subr.mxu0 %v1708
      %2836 = vmatpush1.msra.mxu0 %v1707
      %2837 = vmatprep.subr.mxu0 %v1733
      %2838 = vmatpush1.msra.mxu0 %v1732
      %2839 = vmatprep.subr.mxu0 %v1758
      %2840 = vmatpush1.msra.mxu0 %v1757
      %2841 = vmatprep.subr.mxu0 %v1783
      %2842 = vmatpush1.msra.mxu0 %v1782
      %2843 = vmatprep.subr.mxu0 %v1808
      %2844 = vmatpush1.msra.mxu0 %v1807
      %2845 = vmatprep.subr.mxu0 %v1833
      %2846 = vmatpush1.msra.mxu0 %v1832
      %2847 = vmatprep.subr.mxu0 %v1858
      %2848 = vmatpush1.msra.mxu0 %v1857
      %2849 = vmatprep.subr.mxu0 %v1883
      %2850 = vmatpush1.msra.mxu0 %v1882
      %2851 = vmatprep.subr.mxu0 %v1908
      %2852 = vmatpush1.msra.mxu0 %v1907
      %2853 = vmatprep.subr.mxu0 %v1933
      %2854 = vmatpush1.msra.mxu0 %v1932
      %2855 = vmatprep.subr.mxu0 %v1958
      %2856 = vmatpush1.msra.mxu0 %v1957
      %2857 = vmatprep.subr.mxu0 %v1983
      %2858 = vmatpush1.msra.mxu0 %v1982
      %2859 = vmatprep.subr.mxu0 %v2008
      %2860 = vmatpush1.msra.mxu0 %v2007
      %2861 = vmatprep.subr.mxu0 %v2033
      %2862 = vmatpush1.msra.mxu0 %v2032
      %2863 = vmatprep.subr.mxu0 %v2058
      %2864 = vmatpush1.msra.mxu0 %v2057
      %2865 = vmatprep.subr.mxu0 %v2083
      %2866 = vmatpush1.msra.mxu0 %v2082
      %2867 = vmatprep.subr.mxu0 %v2108
      %2868 = vmatpush1.msra.mxu0 %v2107
      %2869 = vmatprep.subr.mxu0 %v2133
      %2870 = vmatpush1.msra.mxu0 %v2132
      %2871 = vmatprep.subr.mxu0 %v2158
      %2872 = vmatpush1.msra.mxu0 %v2157
      %2873 = vmatprep.subr.mxu0 %v2183
      %2874 = vmatpush1.msra.mxu0 %v2182
      %2875 = vmatprep.subr.mxu0 %v2208
      %2876 = vmatpush1.msra.mxu0 %v2207
      %2877 = vmatprep.subr.mxu0 %v2233
      %2878 = vmatpush1.msra.mxu0 %v2232
      %2879 = vmatprep.subr.mxu0 %v2258
      %2880 = vmatpush1.msra.mxu0 %v2257
      %2881 = vmatprep.subr.mxu0 %v2283
      %2882 = vmatpush1.msra.mxu0 %v2282
      %2883 = vmatprep.subr.mxu0 %v2308
      %2884 = vmatpush1.msra.mxu0 %v2307
      %2885 = vmatprep.subr.mxu0 %v2333
      %2886 = vmatpush1.msra.mxu0 %v2332
      %2887 = vmatprep.subr.mxu0 %v2358
      %2888 = vmatpush1.msra.mxu0 %v2357
      %2889 = vmatprep.subr.mxu0 %v2383
      %2890 = vmatpush1.msra.mxu0 %v2382
      %2891 = vmatprep.subr.mxu0 %v2408
      %2892 = vmatpush1.msra.mxu0 %v2407
      %2893 = vmatprep.subr.mxu0 %v2433
      %2894 = vmatpush1.msra.mxu0 %v2432
      %2895 = vmatprep.subr.mxu0 %v2458
      %2896 = vmatpush1.msra.mxu0 %v2457
      %2897 = vmatprep.mubr.f32.mxu0 %v877
      %2898 = vmatmul.mubr.f32.gmra.mrb[0].mxu0 %v876
      %v2899 = vpop.f32.mrb[0].mxu0
      %v2900 = vadd.f32 %v2829, %v2899
      %v2901 = vpop.f32.mrb[0].mxu0
      %v2902 = vadd.f32 %v2831, %v2901
      %2903 = vdwg.mxu0
      %2904 = vmatprep.subr.mxu0 %v885
      %2905 = vmatpush1.msra.mxu0 %v884
      %2906 = vmatprep.subr.mxu0 %v910
      %2907 = vmatpush1.msra.mxu0 %v909
      %2908 = vmatprep.subr.mxu0 %v935
      %2909 = vmatpush1.msra.mxu0 %v934
      %2910 = vmatprep.subr.mxu0 %v960
      %2911 = vmatpush1.msra.mxu0 %v959
      %2912 = vmatprep.subr.mxu0 %v985
      %2913 = vmatpush1.msra.mxu0 %v984
      %2914 = vmatprep.subr.mxu0 %v1010
      %2915 = vmatpush1.msra.mxu0 %v1009
      %2916 = vmatprep.subr.mxu0 %v1035
      %2917 = vmatpush1.msra.mxu0 %v1034
      %2918 = vmatprep.subr.mxu0 %v1060
      %2919 = vmatpush1.msra.mxu0 %v1059
      %2920 = vmatprep.subr.mxu0 %v1085
      %2921 = vmatpush1.msra.mxu0 %v1084
      %2922 = vmatprep.subr.mxu0 %v1110
      %2923 = vmatpush1.msra.mxu0 %v1109
      %2924 = vmatprep.subr.mxu0 %v1135
      %2925 = vmatpush1.msra.mxu0 %v1134
      %2926 = vmatprep.subr.mxu0 %v1160
      %2927 = vmatpush1.msra.mxu0 %v1159
      %2928 = vmatprep.subr.mxu0 %v1185
      %2929 = vmatpush1.msra.mxu0 %v1184
      %2930 = vmatprep.subr.mxu0 %v1210
      %2931 = vmatpush1.msra.mxu0 %v1209
      %2932 = vmatprep.subr.mxu0 %v1235
      %2933 = vmatpush1.msra.mxu0 %v1234
      %2934 = vmatprep.subr.mxu0 %v1260
      %2935 = vmatpush1.msra.mxu0 %v1259
      %2936 = vmatprep.subr.mxu0 %v1285
      %2937 = vmatpush1.msra.mxu0 %v1284
      %2938 = vmatprep.subr.mxu0 %v1310
      %2939 = vmatpush1.msra.mxu0 %v1309
      %2940 = vmatprep.subr.mxu0 %v1335
      %2941 = vmatpush1.msra.mxu0 %v1334
      %2942 = vmatprep.subr.mxu0 %v1360
      %2943 = vmatpush1.msra.mxu0 %v1359
      %2944 = vmatprep.subr.mxu0 %v1385
      %2945 = vmatpush1.msra.mxu0 %v1384
      %2946 = vmatprep.subr.mxu0 %v1410
      %2947 = vmatpush1.msra.mxu0 %v1409
      %2948 = vmatprep.subr.mxu0 %v1435
      %2949 = vmatpush1.msra.mxu0 %v1434
      %2950 = vmatprep.subr.mxu0 %v1460
      %2951 = vmatpush1.msra.mxu0 %v1459
      %2952 = vmatprep.subr.mxu0 %v1485
      %2953 = vmatpush1.msra.mxu0 %v1484
      %2954 = vmatprep.subr.mxu0 %v1510
      %2955 = vmatpush1.msra.mxu0 %v1509
      %2956 = vmatprep.subr.mxu0 %v1535
      %2957 = vmatpush1.msra.mxu0 %v1534
      %2958 = vmatprep.subr.mxu0 %v1560
      %2959 = vmatpush1.msra.mxu0 %v1559
      %2960 = vmatprep.subr.mxu0 %v1585
      %2961 = vmatpush1.msra.mxu0 %v1584
      %2962 = vmatprep.subr.mxu0 %v1610
      %2963 = vmatpush1.msra.mxu0 %v1609
      %2964 = vmatprep.subr.mxu0 %v1635
      %2965 = vmatpush1.msra.mxu0 %v1634
      %2966 = vmatprep.subr.mxu0 %v1660
      %2967 = vmatpush1.msra.mxu0 %v1659
      %2968 = vmatprep.mubr.f32.mxu0 %v875
      %2969 = vmatmul.mubr.f32.gmra.mrb[0].mxu0 %v874
      %v2970 = vpop.f32.mrb[0].mxu0
      %v2971 = vadd.f32 0.0, %v2970
      %v2972 = vpop.f32.mrb[0].mxu0
      %v2973 = vadd.f32 0.0, %v2972
      %2974 = vdwg.mxu0
      %2975 = vmatprep.subr.mxu0 %v1685
      %2976 = vmatpush1.msra.mxu0 %v1684
      %2977 = vmatprep.subr.mxu0 %v1710
      %2978 = vmatpush1.msra.mxu0 %v1709
      %2979 = vmatprep.subr.mxu0 %v1735
      %2980 = vmatpush1.msra.mxu0 %v1734
      %2981 = vmatprep.subr.mxu0 %v1760
      %2982 = vmatpush1.msra.mxu0 %v1759
      %2983 = vmatprep.subr.mxu0 %v1785
      %2984 = vmatpush1.msra.mxu0 %v1784
      %2985 = vmatprep.subr.mxu0 %v1810
      %2986 = vmatpush1.msra.mxu0 %v1809
      %2987 = vmatprep.subr.mxu0 %v1835
      %2988 = vmatpush1.msra.mxu0 %v1834
      %2989 = vmatprep.subr.mxu0 %v1860
      %2990 = vmatpush1.msra.mxu0 %v1859
      %2991 = vmatprep.subr.mxu0 %v1885
      %2992 = vmatpush1.msra.mxu0 %v1884
      %2993 = vmatprep.subr.mxu0 %v1910
      %2994 = vmatpush1.msra.mxu0 %v1909
      %2995 = vmatprep.subr.mxu0 %v1935
      %2996 = vmatpush1.msra.mxu0 %v1934
      %2997 = vmatprep.subr.mxu0 %v1960
      %2998 = vmatpush1.msra.mxu0 %v1959
      %2999 = vmatprep.subr.mxu0 %v1985
      %3000 = vmatpush1.msra.mxu0 %v1984
      %3001 = vmatprep.subr.mxu0 %v2010
      %3002 = vmatpush1.msra.mxu0 %v2009
      %3003 = vmatprep.subr.mxu0 %v2035
      %3004 = vmatpush1.msra.mxu0 %v2034
      %3005 = vmatprep.subr.mxu0 %v2060
      %3006 = vmatpush1.msra.mxu0 %v2059
      %3007 = vmatprep.subr.mxu0 %v2085
      %3008 = vmatpush1.msra.mxu0 %v2084
      %3009 = vmatprep.subr.mxu0 %v2110
      %3010 = vmatpush1.msra.mxu0 %v2109
      %3011 = vmatprep.subr.mxu0 %v2135
      %3012 = vmatpush1.msra.mxu0 %v2134
      %3013 = vmatprep.subr.mxu0 %v2160
      %3014 = vmatpush1.msra.mxu0 %v2159
      %3015 = vmatprep.subr.mxu0 %v2185
      %3016 = vmatpush1.msra.mxu0 %v2184
      %3017 = vmatprep.subr.mxu0 %v2210
      %3018 = vmatpush1.msra.mxu0 %v2209
      %3019 = vmatprep.subr.mxu0 %v2235
      %3020 = vmatpush1.msra.mxu0 %v2234
      %3021 = vmatprep.subr.mxu0 %v2260
      %3022 = vmatpush1.msra.mxu0 %v2259
      %3023 = vmatprep.subr.mxu0 %v2285
      %3024 = vmatpush1.msra.mxu0 %v2284
      %3025 = vmatprep.subr.mxu0 %v2310
      %3026 = vmatpush1.msra.mxu0 %v2309
      %3027 = vmatprep.subr.mxu0 %v2335
      %3028 = vmatpush1.msra.mxu0 %v2334
      %3029 = vmatprep.subr.mxu0 %v2360
      %3030 = vmatpush1.msra.mxu0 %v2359
      %3031 = vmatprep.subr.mxu0 %v2385
      %3032 = vmatpush1.msra.mxu0 %v2384
      %3033 = vmatprep.subr.mxu0 %v2410
      %3034 = vmatpush1.msra.mxu0 %v2409
      %3035 = vmatprep.subr.mxu0 %v2435
      %3036 = vmatpush1.msra.mxu0 %v2434
      %3037 = vmatprep.subr.mxu0 %v2460
      %3038 = vmatpush1.msra.mxu0 %v2459
      %3039 = vmatprep.mubr.f32.mxu0 %v877
      %3040 = vmatmul.mubr.f32.gmra.mrb[0].mxu0 %v876
      %v3041 = vpop.f32.mrb[0].mxu0
      %v3042 = vadd.f32 %v2971, %v3041
      %v3043 = vpop.f32.mrb[0].mxu0
      %v3044 = vadd.f32 %v2973, %v3043
      %3045 = vdwg.mxu0
      %3046 = vmatprep.subr.mxu0 %v887
      %3047 = vmatpush1.msra.mxu0 %v886
      %3048 = vmatprep.subr.mxu0 %v912
      %3049 = vmatpush1.msra.mxu0 %v911
      %3050 = vmatprep.subr.mxu0 %v937
      %3051 = vmatpush1.msra.mxu0 %v936
      %3052 = vmatprep.subr.mxu0 %v962
      %3053 = vmatpush1.msra.mxu0 %v961
      %3054 = vmatprep.subr.mxu0 %v987
      %3055 = vmatpush1.msra.mxu0 %v986
      %3056 = vmatprep.subr.mxu0 %v1012
      %3057 = vmatpush1.msra.mxu0 %v1011
      %3058 = vmatprep.subr.mxu0 %v1037
      %3059 = vmatpush1.msra.mxu0 %v1036
      %3060 = vmatprep.subr.mxu0 %v1062
      %3061 = vmatpush1.msra.mxu0 %v1061
      %3062 = vmatprep.subr.mxu0 %v1087
      %3063 = vmatpush1.msra.mxu0 %v1086
      %3064 = vmatprep.subr.mxu0 %v1112
      %3065 = vmatpush1.msra.mxu0 %v1111
      %3066 = vmatprep.subr.mxu0 %v1137
      %3067 = vmatpush1.msra.mxu0 %v1136
      %3068 = vmatprep.subr.mxu0 %v1162
      %3069 = vmatpush1.msra.mxu0 %v1161
      %3070 = vmatprep.subr.mxu0 %v1187
      %3071 = vmatpush1.msra.mxu0 %v1186
      %3072 = vmatprep.subr.mxu0 %v1212
      %3073 = vmatpush1.msra.mxu0 %v1211
      %3074 = vmatprep.subr.mxu0 %v1237
      %3075 = vmatpush1.msra.mxu0 %v1236
      %3076 = vmatprep.subr.mxu0 %v1262
      %3077 = vmatpush1.msra.mxu0 %v1261
      %3078 = vmatprep.subr.mxu0 %v1287
      %3079 = vmatpush1.msra.mxu0 %v1286
      %3080 = vmatprep.subr.mxu0 %v1312
      %3081 = vmatpush1.msra.mxu0 %v1311
      %3082 = vmatprep.subr.mxu0 %v1337
      %3083 = vmatpush1.msra.mxu0 %v1336
      %3084 = vmatprep.subr.mxu0 %v1362
      %3085 = vmatpush1.msra.mxu0 %v1361
      %3086 = vmatprep.subr.mxu0 %v1387
      %3087 = vmatpush1.msra.mxu0 %v1386
      %3088 = vmatprep.subr.mxu0 %v1412
      %3089 = vmatpush1.msra.mxu0 %v1411
      %3090 = vmatprep.subr.mxu0 %v1437
      %3091 = vmatpush1.msra.mxu0 %v1436
      %3092 = vmatprep.subr.mxu0 %v1462
      %3093 = vmatpush1.msra.mxu0 %v1461
      %3094 = vmatprep.subr.mxu0 %v1487
      %3095 = vmatpush1.msra.mxu0 %v1486
      %3096 = vmatprep.subr.mxu0 %v1512
      %3097 = vmatpush1.msra.mxu0 %v1511
      %3098 = vmatprep.subr.mxu0 %v1537
      %3099 = vmatpush1.msra.mxu0 %v1536
      %3100 = vmatprep.subr.mxu0 %v1562
      %3101 = vmatpush1.msra.mxu0 %v1561
      %3102 = vmatprep.subr.mxu0 %v1587
      %3103 = vmatpush1.msra.mxu0 %v1586
      %3104 = vmatprep.subr.mxu0 %v1612
      %3105 = vmatpush1.msra.mxu0 %v1611
      %3106 = vmatprep.subr.mxu0 %v1637
      %3107 = vmatpush1.msra.mxu0 %v1636
      %3108 = vmatprep.subr.mxu0 %v1662
      %3109 = vmatpush1.msra.mxu0 %v1661
      %3110 = vmatprep.mubr.f32.mxu0 %v875
      %3111 = vmatmul.mubr.f32.gmra.mrb[0].mxu0 %v874
      %v3112 = vpop.f32.mrb[0].mxu0
      %v3113 = vadd.f32 0.0, %v3112
      %v3114 = vpop.f32.mrb[0].mxu0
      %v3115 = vadd.f32 0.0, %v3114
      %3116 = vdwg.mxu0
      %3117 = vmatprep.subr.mxu0 %v1687
      %3118 = vmatpush1.msra.mxu0 %v1686
      %3119 = vmatprep.subr.mxu0 %v1712
      %3120 = vmatpush1.msra.mxu0 %v1711
      %3121 = vmatprep.subr.mxu0 %v1737
      %3122 = vmatpush1.msra.mxu0 %v1736
      %3123 = vmatprep.subr.mxu0 %v1762
      %3124 = vmatpush1.msra.mxu0 %v1761
      %3125 = vmatprep.subr.mxu0 %v1787
      %3126 = vmatpush1.msra.mxu0 %v1786
      %3127 = vmatprep.subr.mxu0 %v1812
      %3128 = vmatpush1.msra.mxu0 %v1811
      %3129 = vmatprep.subr.mxu0 %v1837
      %3130 = vmatpush1.msra.mxu0 %v1836
      %3131 = vmatprep.subr.mxu0 %v1862
      %3132 = vmatpush1.msra.mxu0 %v1861
      %3133 = vmatprep.subr.mxu0 %v1887
      %3134 = vmatpush1.msra.mxu0 %v1886
      %3135 = vmatprep.subr.mxu0 %v1912
      %3136 = vmatpush1.msra.mxu0 %v1911
      %3137 = vmatprep.subr.mxu0 %v1937
      %3138 = vmatpush1.msra.mxu0 %v1936
      %3139 = vmatprep.subr.mxu0 %v1962
      %3140 = vmatpush1.msra.mxu0 %v1961
      %3141 = vmatprep.subr.mxu0 %v1987
      %3142 = vmatpush1.msra.mxu0 %v1986
      %3143 = vmatprep.subr.mxu0 %v2012
      %3144 = vmatpush1.msra.mxu0 %v2011
      %3145 = vmatprep.subr.mxu0 %v2037
      %3146 = vmatpush1.msra.mxu0 %v2036
      %3147 = vmatprep.subr.mxu0 %v2062
      %3148 = vmatpush1.msra.mxu0 %v2061
      %3149 = vmatprep.subr.mxu0 %v2087
      %3150 = vmatpush1.msra.mxu0 %v2086
      %3151 = vmatprep.subr.mxu0 %v2112
      %3152 = vmatpush1.msra.mxu0 %v2111
      %3153 = vmatprep.subr.mxu0 %v2137
      %3154 = vmatpush1.msra.mxu0 %v2136
      %3155 = vmatprep.subr.mxu0 %v2162
      %3156 = vmatpush1.msra.mxu0 %v2161
      %3157 = vmatprep.subr.mxu0 %v2187
      %3158 = vmatpush1.msra.mxu0 %v2186
      %3159 = vmatprep.subr.mxu0 %v2212
      %3160 = vmatpush1.msra.mxu0 %v2211
      %3161 = vmatprep.subr.mxu0 %v2237
      %3162 = vmatpush1.msra.mxu0 %v2236
      %3163 = vmatprep.subr.mxu0 %v2262
      %3164 = vmatpush1.msra.mxu0 %v2261
      %3165 = vmatprep.subr.mxu0 %v2287
      %3166 = vmatpush1.msra.mxu0 %v2286
      %3167 = vmatprep.subr.mxu0 %v2312
      %3168 = vmatpush1.msra.mxu0 %v2311
      %3169 = vmatprep.subr.mxu0 %v2337
      %3170 = vmatpush1.msra.mxu0 %v2336
      %3171 = vmatprep.subr.mxu0 %v2362
      %3172 = vmatpush1.msra.mxu0 %v2361
      %3173 = vmatprep.subr.mxu0 %v2387
      %3174 = vmatpush1.msra.mxu0 %v2386
      %3175 = vmatprep.subr.mxu0 %v2412
      %3176 = vmatpush1.msra.mxu0 %v2411
      %3177 = vmatprep.subr.mxu0 %v2437
      %3178 = vmatpush1.msra.mxu0 %v2436
      %3179 = vmatprep.subr.mxu0 %v2462
      %3180 = vmatpush1.msra.mxu0 %v2461
      %3181 = vmatprep.mubr.f32.mxu0 %v877
      %3182 = vmatmul.mubr.f32.gmra.mrb[0].mxu0 %v876
      %v3183 = vpop.f32.mrb[0].mxu0
      %v3184 = vadd.f32 %v3113, %v3183
      %v3185 = vpop.f32.mrb[0].mxu0
      %v3186 = vadd.f32 %v3115, %v3185
      %3187 = vdwg.mxu0
      %3188 = vmatprep.subr.mxu0 %v889
      %3189 = vmatpush1.msra.mxu0 %v888
      %3190 = vmatprep.subr.mxu0 %v914
      %3191 = vmatpush1.msra.mxu0 %v913
      %3192 = vmatprep.subr.mxu0 %v939
      %3193 = vmatpush1.msra.mxu0 %v938
      %3194 = vmatprep.subr.mxu0 %v964
      %3195 = vmatpush1.msra.mxu0 %v963
      %3196 = vmatprep.subr.mxu0 %v989
      %3197 = vmatpush1.msra.mxu0 %v988
      %3198 = vmatprep.subr.mxu0 %v1014
      %3199 = vmatpush1.msra.mxu0 %v1013
      %3200 = vmatprep.subr.mxu0 %v1039
      %3201 = vmatpush1.msra.mxu0 %v1038
      %3202 = vmatprep.subr.mxu0 %v1064
      %3203 = vmatpush1.msra.mxu0 %v1063
      %3204 = vmatprep.subr.mxu0 %v1089
      %3205 = vmatpush1.msra.mxu0 %v1088
      %3206 = vmatprep.subr.mxu0 %v1114
      %3207 = vmatpush1.msra.mxu0 %v1113
      %3208 = vmatprep.subr.mxu0 %v1139
      %3209 = vmatpush1.msra.mxu0 %v1138
      %3210 = vmatprep.subr.mxu0 %v1164
      %3211 = vmatpush1.msra.mxu0 %v1163
      %3212 = vmatprep.subr.mxu0 %v1189
      %3213 = vmatpush1.msra.mxu0 %v1188
      %3214 = vmatprep.subr.mxu0 %v1214
      %3215 = vmatpush1.msra.mxu0 %v1213
      %3216 = vmatprep.subr.mxu0 %v1239
      %3217 = vmatpush1.msra.mxu0 %v1238
      %3218 = vmatprep.subr.mxu0 %v1264
      %3219 = vmatpush1.msra.mxu0 %v1263
      %3220 = vmatprep.subr.mxu0 %v1289
      %3221 = vmatpush1.msra.mxu0 %v1288
      %3222 = vmatprep.subr.mxu0 %v1314
      %3223 = vmatpush1.msra.mxu0 %v1313
      %3224 = vmatprep.subr.mxu0 %v1339
      %3225 = vmatpush1.msra.mxu0 %v1338
      %3226 = vmatprep.subr.mxu0 %v1364
      %3227 = vmatpush1.msra.mxu0 %v1363
      %3228 = vmatprep.subr.mxu0 %v1389
      %3229 = vmatpush1.msra.mxu0 %v1388
      %3230 = vmatprep.subr.mxu0 %v1414
      %3231 = vmatpush1.msra.mxu0 %v1413
      %3232 = vmatprep.subr.mxu0 %v1439
      %3233 = vmatpush1.msra.mxu0 %v1438
      %3234 = vmatprep.subr.mxu0 %v1464
      %3235 = vmatpush1.msra.mxu0 %v1463
      %3236 = vmatprep.subr.mxu0 %v1489
      %3237 = vmatpush1.msra.mxu0 %v1488
      %3238 = vmatprep.subr.mxu0 %v1514
      %3239 = vmatpush1.msra.mxu0 %v1513
      %3240 = vmatprep.subr.mxu0 %v1539
      %3241 = vmatpush1.msra.mxu0 %v1538
      %3242 = vmatprep.subr.mxu0 %v1564
      %3243 = vmatpush1.msra.mxu0 %v1563
      %3244 = vmatprep.subr.mxu0 %v1589
      %3245 = vmatpush1.msra.mxu0 %v1588
      %3246 = vmatprep.subr.mxu0 %v1614
      %3247 = vmatpush1.msra.mxu0 %v1613
      %3248 = vmatprep.subr.mxu0 %v1639
      %3249 = vmatpush1.msra.mxu0 %v1638
      %3250 = vmatprep.subr.mxu0 %v1664
      %3251 = vmatpush1.msra.mxu0 %v1663
      %3252 = vmatprep.mubr.f32.mxu0 %v875
      %3253 = vmatmul.mubr.f32.gmra.mrb[0].mxu0 %v874
      %v3254 = vpop.f32.mrb[0].mxu0
      %v3255 = vadd.f32 0.0, %v3254
      %v3256 = vpop.f32.mrb[0].mxu0
      %v3257 = vadd.f32 0.0, %v3256
      %3258 = vdwg.mxu0
      %3259 = vmatprep.subr.mxu0 %v1689
      %3260 = vmatpush1.msra.mxu0 %v1688
      %3261 = vmatprep.subr.mxu0 %v1714
      %3262 = vmatpush1.msra.mxu0 %v1713
      %3263 = vmatprep.subr.mxu0 %v1739
      %3264 = vmatpush1.msra.mxu0 %v1738
      %3265 = vmatprep.subr.mxu0 %v1764
      %3266 = vmatpush1.msra.mxu0 %v1763
      %3267 = vmatprep.subr.mxu0 %v1789
      %3268 = vmatpush1.msra.mxu0 %v1788
      %3269 = vmatprep.subr.mxu0 %v1814
      %3270 = vmatpush1.msra.mxu0 %v1813
      %3271 = vmatprep.subr.mxu0 %v1839
      %3272 = vmatpush1.msra.mxu0 %v1838
      %3273 = vmatprep.subr.mxu0 %v1864
      %3274 = vmatpush1.msra.mxu0 %v1863
      %3275 = vmatprep.subr.mxu0 %v1889
      %3276 = vmatpush1.msra.mxu0 %v1888
      %3277 = vmatprep.subr.mxu0 %v1914
      %3278 = vmatpush1.msra.mxu0 %v1913
      %3279 = vmatprep.subr.mxu0 %v1939
      %3280 = vmatpush1.msra.mxu0 %v1938
      %3281 = vmatprep.subr.mxu0 %v1964
      %3282 = vmatpush1.msra.mxu0 %v1963
      %3283 = vmatprep.subr.mxu0 %v1989
      %3284 = vmatpush1.msra.mxu0 %v1988
      %3285 = vmatprep.subr.mxu0 %v2014
      %3286 = vmatpush1.msra.mxu0 %v2013
      %3287 = vmatprep.subr.mxu0 %v2039
      %3288 = vmatpush1.msra.mxu0 %v2038
      %3289 = vmatprep.subr.mxu0 %v2064
      %3290 = vmatpush1.msra.mxu0 %v2063
      %3291 = vmatprep.subr.mxu0 %v2089
      %3292 = vmatpush1.msra.mxu0 %v2088
      %3293 = vmatprep.subr.mxu0 %v2114
      %3294 = vmatpush1.msra.mxu0 %v2113
      %3295 = vmatprep.subr.mxu0 %v2139
      %3296 = vmatpush1.msra.mxu0 %v2138
      %3297 = vmatprep.subr.mxu0 %v2164
      %3298 = vmatpush1.msra.mxu0 %v2163
      %3299 = vmatprep.subr.mxu0 %v2189
      %3300 = vmatpush1.msra.mxu0 %v2188
      %3301 = vmatprep.subr.mxu0 %v2214
      %3302 = vmatpush1.msra.mxu0 %v2213
      %3303 = vmatprep.subr.mxu0 %v2239
      %3304 = vmatpush1.msra.mxu0 %v2238
      %3305 = vmatprep.subr.mxu0 %v2264
      %3306 = vmatpush1.msra.mxu0 %v2263
      %3307 = vmatprep.subr.mxu0 %v2289
      %3308 = vmatpush1.msra.mxu0 %v2288
      %3309 = vmatprep.subr.mxu0 %v2314
      %3310 = vmatpush1.msra.mxu0 %v2313
      %3311 = vmatprep.subr.mxu0 %v2339
      %3312 = vmatpush1.msra.mxu0 %v2338
      %3313 = vmatprep.subr.mxu0 %v2364
      %3314 = vmatpush1.msra.mxu0 %v2363
      %3315 = vmatprep.subr.mxu0 %v2389
      %3316 = vmatpush1.msra.mxu0 %v2388
      %3317 = vmatprep.subr.mxu0 %v2414
      %3318 = vmatpush1.msra.mxu0 %v2413
      %3319 = vmatprep.subr.mxu0 %v2439
      %3320 = vmatpush1.msra.mxu0 %v2438
      %3321 = vmatprep.subr.mxu0 %v2464
      %3322 = vmatpush1.msra.mxu0 %v2463
      %3323 = vmatprep.mubr.f32.mxu0 %v877
      %3324 = vmatmul.mubr.f32.gmra.mrb[0].mxu0 %v876
      %v3325 = vpop.f32.mrb[0].mxu0
      %v3326 = vadd.f32 %v3255, %v3325
      %v3327 = vpop.f32.mrb[0].mxu0
      %v3328 = vadd.f32 %v3257, %v3327
      %3329 = vdwg.mxu0
      %3330 = vmatprep.subr.mxu0 %v891
      %3331 = vmatpush1.msra.mxu0 %v890
      %3332 = vmatprep.subr.mxu0 %v916
      %3333 = vmatpush1.msra.mxu0 %v915
      %3334 = vmatprep.subr.mxu0 %v941
      %3335 = vmatpush1.msra.mxu0 %v940
      %3336 = vmatprep.subr.mxu0 %v966
      %3337 = vmatpush1.msra.mxu0 %v965
      %3338 = vmatprep.subr.mxu0 %v991
      %3339 = vmatpush1.msra.mxu0 %v990
      %3340 = vmatprep.subr.mxu0 %v1016
      %3341 = vmatpush1.msra.mxu0 %v1015
      %3342 = vmatprep.subr.mxu0 %v1041
      %3343 = vmatpush1.msra.mxu0 %v1040
      %3344 = vmatprep.subr.mxu0 %v1066
      %3345 = vmatpush1.msra.mxu0 %v1065
      %3346 = vmatprep.subr.mxu0 %v1091
      %3347 = vmatpush1.msra.mxu0 %v1090
      %3348 = vmatprep.subr.mxu0 %v1116
      %3349 = vmatpush1.msra.mxu0 %v1115
      %3350 = vmatprep.subr.mxu0 %v1141
      %3351 = vmatpush1.msra.mxu0 %v1140
      %3352 = vmatprep.subr.mxu0 %v1166
      %3353 = vmatpush1.msra.mxu0 %v1165
      %3354 = vmatprep.subr.mxu0 %v1191
      %3355 = vmatpush1.msra.mxu0 %v1190
      %3356 = vmatprep.subr.mxu0 %v1216
      %3357 = vmatpush1.msra.mxu0 %v1215
      %3358 = vmatprep.subr.mxu0 %v1241
      %3359 = vmatpush1.msra.mxu0 %v1240
      %3360 = vmatprep.subr.mxu0 %v1266
      %3361 = vmatpush1.msra.mxu0 %v1265
      %3362 = vmatprep.subr.mxu0 %v1291
      %3363 = vmatpush1.msra.mxu0 %v1290
      %3364 = vmatprep.subr.mxu0 %v1316
      %3365 = vmatpush1.msra.mxu0 %v1315
      %3366 = vmatprep.subr.mxu0 %v1341
      %3367 = vmatpush1.msra.mxu0 %v1340
      %3368 = vmatprep.subr.mxu0 %v1366
      %3369 = vmatpush1.msra.mxu0 %v1365
      %3370 = vmatprep.subr.mxu0 %v1391
      %3371 = vmatpush1.msra.mxu0 %v1390
      %3372 = vmatprep.subr.mxu0 %v1416
      %3373 = vmatpush1.msra.mxu0 %v1415
      %3374 = vmatprep.subr.mxu0 %v1441
      %3375 = vmatpush1.msra.mxu0 %v1440
      %3376 = vmatprep.subr.mxu0 %v1466
      %3377 = vmatpush1.msra.mxu0 %v1465
      %3378 = vmatprep.subr.mxu0 %v1491
      %3379 = vmatpush1.msra.mxu0 %v1490
      %3380 = vmatprep.subr.mxu0 %v1516
      %3381 = vmatpush1.msra.mxu0 %v1515
      %3382 = vmatprep.subr.mxu0 %v1541
      %3383 = vmatpush1.msra.mxu0 %v1540
      %3384 = vmatprep.subr.mxu0 %v1566
      %3385 = vmatpush1.msra.mxu0 %v1565
      %3386 = vmatprep.subr.mxu0 %v1591
      %3387 = vmatpush1.msra.mxu0 %v1590
      %3388 = vmatprep.subr.mxu0 %v1616
      %3389 = vmatpush1.msra.mxu0 %v1615
      %3390 = vmatprep.subr.mxu0 %v1641
      %3391 = vmatpush1.msra.mxu0 %v1640
      %3392 = vmatprep.subr.mxu0 %v1666
      %3393 = vmatpush1.msra.mxu0 %v1665
      %3394 = vmatprep.mubr.f32.mxu0 %v875
      %3395 = vmatmul.mubr.f32.gmra.mrb[0].mxu0 %v874
      %v3396 = vpop.f32.mrb[0].mxu0
      %v3397 = vadd.f32 0.0, %v3396
      %v3398 = vpop.f32.mrb[0].mxu0
      %v3399 = vadd.f32 0.0, %v3398
      %3400 = vdwg.mxu0
      %3401 = vmatprep.subr.mxu0 %v1691
      %3402 = vmatpush1.msra.mxu0 %v1690
      %3403 = vmatprep.subr.mxu0 %v1716
      %3404 = vmatpush1.msra.mxu0 %v1715
      %3405 = vmatprep.subr.mxu0 %v1741
      %3406 = vmatpush1.msra.mxu0 %v1740
      %3407 = vmatprep.subr.mxu0 %v1766
      %3408 = vmatpush1.msra.mxu0 %v1765
      %3409 = vmatprep.subr.mxu0 %v1791
      %3410 = vmatpush1.msra.mxu0 %v1790
      %3411 = vmatprep.subr.mxu0 %v1816
      %3412 = vmatpush1.msra.mxu0 %v1815
      %3413 = vmatprep.subr.mxu0 %v1841
      %3414 = vmatpush1.msra.mxu0 %v1840
      %3415 = vmatprep.subr.mxu0 %v1866
      %3416 = vmatpush1.msra.mxu0 %v1865
      %3417 = vmatprep.subr.mxu0 %v1891
      %3418 = vmatpush1.msra.mxu0 %v1890
      %3419 = vmatprep.subr.mxu0 %v1916
      %3420 = vmatpush1.msra.mxu0 %v1915
      %3421 = vmatprep.subr.mxu0 %v1941
      %3422 = vmatpush1.msra.mxu0 %v1940
      %3423 = vmatprep.subr.mxu0 %v1966
      %3424 = vmatpush1.msra.mxu0 %v1965
      %3425 = vmatprep.subr.mxu0 %v1991
      %3426 = vmatpush1.msra.mxu0 %v1990
      %3427 = vmatprep.subr.mxu0 %v2016
      %3428 = vmatpush1.msra.mxu0 %v2015
      %3429 = vmatprep.subr.mxu0 %v2041
      %3430 = vmatpush1.msra.mxu0 %v2040
      %3431 = vmatprep.subr.mxu0 %v2066
      %3432 = vmatpush1.msra.mxu0 %v2065
      %3433 = vmatprep.subr.mxu0 %v2091
      %3434 = vmatpush1.msra.mxu0 %v2090
      %3435 = vmatprep.subr.mxu0 %v2116
      %3436 = vmatpush1.msra.mxu0 %v2115
      %3437 = vmatprep.subr.mxu0 %v2141
      %3438 = vmatpush1.msra.mxu0 %v2140
      %3439 = vmatprep.subr.mxu0 %v2166
      %3440 = vmatpush1.msra.mxu0 %v2165
      %3441 = vmatprep.subr.mxu0 %v2191
      %3442 = vmatpush1.msra.mxu0 %v2190
      %3443 = vmatprep.subr.mxu0 %v2216
      %3444 = vmatpush1.msra.mxu0 %v2215
      %3445 = vmatprep.subr.mxu0 %v2241
      %3446 = vmatpush1.msra.mxu0 %v2240
      %3447 = vmatprep.subr.mxu0 %v2266
      %3448 = vmatpush1.msra.mxu0 %v2265
      %3449 = vmatprep.subr.mxu0 %v2291
      %3450 = vmatpush1.msra.mxu0 %v2290
      %3451 = vmatprep.subr.mxu0 %v2316
      %3452 = vmatpush1.msra.mxu0 %v2315
      %3453 = vmatprep.subr.mxu0 %v2341
      %3454 = vmatpush1.msra.mxu0 %v2340
      %3455 = vmatprep.subr.mxu0 %v2366
      %3456 = vmatpush1.msra.mxu0 %v2365
      %3457 = vmatprep.subr.mxu0 %v2391
      %3458 = vmatpush1.msra.mxu0 %v2390
      %3459 = vmatprep.subr.mxu0 %v2416
      %3460 = vmatpush1.msra.mxu0 %v2415
      %3461 = vmatprep.subr.mxu0 %v2441
      %3462 = vmatpush1.msra.mxu0 %v2440
      %3463 = vmatprep.subr.mxu0 %v2466
      %3464 = vmatpush1.msra.mxu0 %v2465
      %3465 = vmatprep.mubr.f32.mxu0 %v877
      %3466 = vmatmul.mubr.f32.gmra.mrb[0].mxu0 %v876
      %v3467 = vpop.f32.mrb[0].mxu0
      %v3468 = vadd.f32 %v3397, %v3467
      %v3469 = vpop.f32.mrb[0].mxu0
      %v3470 = vadd.f32 %v3399, %v3469
      %3471 = vdwg.mxu0
      %3472 = vmatprep.subr.mxu0 %v893
      %3473 = vmatpush1.msra.mxu0 %v892
      %3474 = vmatprep.subr.mxu0 %v918
      %3475 = vmatpush1.msra.mxu0 %v917
      %3476 = vmatprep.subr.mxu0 %v943
      %3477 = vmatpush1.msra.mxu0 %v942
      %3478 = vmatprep.subr.mxu0 %v968
      %3479 = vmatpush1.msra.mxu0 %v967
      %3480 = vmatprep.subr.mxu0 %v993
      %3481 = vmatpush1.msra.mxu0 %v992
      %3482 = vmatprep.subr.mxu0 %v1018
      %3483 = vmatpush1.msra.mxu0 %v1017
      %3484 = vmatprep.subr.mxu0 %v1043
      %3485 = vmatpush1.msra.mxu0 %v1042
      %3486 = vmatprep.subr.mxu0 %v1068
      %3487 = vmatpush1.msra.mxu0 %v1067
      %3488 = vmatprep.subr.mxu0 %v1093
      %3489 = vmatpush1.msra.mxu0 %v1092
      %3490 = vmatprep.subr.mxu0 %v1118
      %3491 = vmatpush1.msra.mxu0 %v1117
      %3492 = vmatprep.subr.mxu0 %v1143
      %3493 = vmatpush1.msra.mxu0 %v1142
      %3494 = vmatprep.subr.mxu0 %v1168
      %3495 = vmatpush1.msra.mxu0 %v1167
      %3496 = vmatprep.subr.mxu0 %v1193
      %3497 = vmatpush1.msra.mxu0 %v1192
      %3498 = vmatprep.subr.mxu0 %v1218
      %3499 = vmatpush1.msra.mxu0 %v1217
      %3500 = vmatprep.subr.mxu0 %v1243
      %3501 = vmatpush1.msra.mxu0 %v1242
      %3502 = vmatprep.subr.mxu0 %v1268
      %3503 = vmatpush1.msra.mxu0 %v1267
      %3504 = vmatprep.subr.mxu0 %v1293
      %3505 = vmatpush1.msra.mxu0 %v1292
      %3506 = vmatprep.subr.mxu0 %v1318
      %3507 = vmatpush1.msra.mxu0 %v1317
      %3508 = vmatprep.subr.mxu0 %v1343
      %3509 = vmatpush1.msra.mxu0 %v1342
      %3510 = vmatprep.subr.mxu0 %v1368
      %3511 = vmatpush1.msra.mxu0 %v1367
      %3512 = vmatprep.subr.mxu0 %v1393
      %3513 = vmatpush1.msra.mxu0 %v1392
      %3514 = vmatprep.subr.mxu0 %v1418
      %3515 = vmatpush1.msra.mxu0 %v1417
      %3516 = vmatprep.subr.mxu0 %v1443
      %3517 = vmatpush1.msra.mxu0 %v1442
      %3518 = vmatprep.subr.mxu0 %v1468
      %3519 = vmatpush1.msra.mxu0 %v1467
      %3520 = vmatprep.subr.mxu0 %v1493
      %3521 = vmatpush1.msra.mxu0 %v1492
      %3522 = vmatprep.subr.mxu0 %v1518
      %3523 = vmatpush1.msra.mxu0 %v1517
      %3524 = vmatprep.subr.mxu0 %v1543
      %3525 = vmatpush1.msra.mxu0 %v1542
      %3526 = vmatprep.subr.mxu0 %v1568
      %3527 = vmatpush1.msra.mxu0 %v1567
      %3528 = vmatprep.subr.mxu0 %v1593
      %3529 = vmatpush1.msra.mxu0 %v1592
      %3530 = vmatprep.subr.mxu0 %v1618
      %3531 = vmatpush1.msra.mxu0 %v1617
      %3532 = vmatprep.subr.mxu0 %v1643
      %3533 = vmatpush1.msra.mxu0 %v1642
      %3534 = vmatprep.subr.mxu0 %v1668
      %3535 = vmatpush1.msra.mxu0 %v1667
      %3536 = vmatprep.mubr.f32.mxu0 %v875
      %3537 = vmatmul.mubr.f32.gmra.mrb[0].mxu0 %v874
      %v3538 = vpop.f32.mrb[0].mxu0
      %v3539 = vadd.f32 0.0, %v3538
      %v3540 = vpop.f32.mrb[0].mxu0
      %v3541 = vadd.f32 0.0, %v3540
      %3542 = vdwg.mxu0
      %3543 = vmatprep.subr.mxu0 %v1693
      %3544 = vmatpush1.msra.mxu0 %v1692
      %3545 = vmatprep.subr.mxu0 %v1718
      %3546 = vmatpush1.msra.mxu0 %v1717
      %3547 = vmatprep.subr.mxu0 %v1743
      %3548 = vmatpush1.msra.mxu0 %v1742
      %3549 = vmatprep.subr.mxu0 %v1768
      %3550 = vmatpush1.msra.mxu0 %v1767
      %3551 = vmatprep.subr.mxu0 %v1793
      %3552 = vmatpush1.msra.mxu0 %v1792
      %3553 = vmatprep.subr.mxu0 %v1818
      %3554 = vmatpush1.msra.mxu0 %v1817
      %3555 = vmatprep.subr.mxu0 %v1843
      %3556 = vmatpush1.msra.mxu0 %v1842
      %3557 = vmatprep.subr.mxu0 %v1868
      %3558 = vmatpush1.msra.mxu0 %v1867
      %3559 = vmatprep.subr.mxu0 %v1893
      %3560 = vmatpush1.msra.mxu0 %v1892
      %3561 = vmatprep.subr.mxu0 %v1918
      %3562 = vmatpush1.msra.mxu0 %v1917
      %3563 = vmatprep.subr.mxu0 %v1943
      %3564 = vmatpush1.msra.mxu0 %v1942
      %3565 = vmatprep.subr.mxu0 %v1968
      %3566 = vmatpush1.msra.mxu0 %v1967
      %3567 = vmatprep.subr.mxu0 %v1993
      %3568 = vmatpush1.msra.mxu0 %v1992
      %3569 = vmatprep.subr.mxu0 %v2018
      %3570 = vmatpush1.msra.mxu0 %v2017
      %3571 = vmatprep.subr.mxu0 %v2043
      %3572 = vmatpush1.msra.mxu0 %v2042
      %3573 = vmatprep.subr.mxu0 %v2068
      %3574 = vmatpush1.msra.mxu0 %v2067
      %3575 = vmatprep.subr.mxu0 %v2093
      %3576 = vmatpush1.msra.mxu0 %v2092
      %3577 = vmatprep.subr.mxu0 %v2118
      %3578 = vmatpush1.msra.mxu0 %v2117
      %3579 = vmatprep.subr.mxu0 %v2143
      %3580 = vmatpush1.msra.mxu0 %v2142
      %3581 = vmatprep.subr.mxu0 %v2168
      %3582 = vmatpush1.msra.mxu0 %v2167
      %3583 = vmatprep.subr.mxu0 %v2193
      %3584 = vmatpush1.msra.mxu0 %v2192
      %3585 = vmatprep.subr.mxu0 %v2218
      %3586 = vmatpush1.msra.mxu0 %v2217
      %3587 = vmatprep.subr.mxu0 %v2243
      %3588 = vmatpush1.msra.mxu0 %v2242
      %3589 = vmatprep.subr.mxu0 %v2268
      %3590 = vmatpush1.msra.mxu0 %v2267
      %3591 = vmatprep.subr.mxu0 %v2293
      %3592 = vmatpush1.msra.mxu0 %v2292
      %3593 = vmatprep.subr.mxu0 %v2318
      %3594 = vmatpush1.msra.mxu0 %v2317
      %3595 = vmatprep.subr.mxu0 %v2343
      %3596 = vmatpush1.msra.mxu0 %v2342
      %3597 = vmatprep.subr.mxu0 %v2368
      %3598 = vmatpush1.msra.mxu0 %v2367
      %3599 = vmatprep.subr.mxu0 %v2393
      %3600 = vmatpush1.msra.mxu0 %v2392
      %3601 = vmatprep.subr.mxu0 %v2418
      %3602 = vmatpush1.msra.mxu0 %v2417
      %3603 = vmatprep.subr.mxu0 %v2443
      %3604 = vmatpush1.msra.mxu0 %v2442
      %3605 = vmatprep.subr.mxu0 %v2468
      %3606 = vmatpush1.msra.mxu0 %v2467
      %3607 = vmatprep.mubr.f32.mxu0 %v877
      %3608 = vmatmul.mubr.f32.gmra.mrb[0].mxu0 %v876
      %v3609 = vpop.f32.mrb[0].mxu0
      %v3610 = vadd.f32 %v3539, %v3609
      %v3611 = vpop.f32.mrb[0].mxu0
      %v3612 = vadd.f32 %v3541, %v3611
      %3613 = vdwg.mxu0
      %3614 = vmatprep.subr.mxu0 %v895
      %3615 = vmatpush1.msra.mxu0 %v894
      %3616 = vmatprep.subr.mxu0 %v920
      %3617 = vmatpush1.msra.mxu0 %v919
      %3618 = vmatprep.subr.mxu0 %v945
      %3619 = vmatpush1.msra.mxu0 %v944
      %3620 = vmatprep.subr.mxu0 %v970
      %3621 = vmatpush1.msra.mxu0 %v969
      %3622 = vmatprep.subr.mxu0 %v995
      %3623 = vmatpush1.msra.mxu0 %v994
      %3624 = vmatprep.subr.mxu0 %v1020
      %3625 = vmatpush1.msra.mxu0 %v1019
      %3626 = vmatprep.subr.mxu0 %v1045
      %3627 = vmatpush1.msra.mxu0 %v1044
      %3628 = vmatprep.subr.mxu0 %v1070
      %3629 = vmatpush1.msra.mxu0 %v1069
      %3630 = vmatprep.subr.mxu0 %v1095
      %3631 = vmatpush1.msra.mxu0 %v1094
      %3632 = vmatprep.subr.mxu0 %v1120
      %3633 = vmatpush1.msra.mxu0 %v1119
      %3634 = vmatprep.subr.mxu0 %v1145
      %3635 = vmatpush1.msra.mxu0 %v1144
      %3636 = vmatprep.subr.mxu0 %v1170
      %3637 = vmatpush1.msra.mxu0 %v1169
      %3638 = vmatprep.subr.mxu0 %v1195
      %3639 = vmatpush1.msra.mxu0 %v1194
      %3640 = vmatprep.subr.mxu0 %v1220
      %3641 = vmatpush1.msra.mxu0 %v1219
      %3642 = vmatprep.subr.mxu0 %v1245
      %3643 = vmatpush1.msra.mxu0 %v1244
      %3644 = vmatprep.subr.mxu0 %v1270
      %3645 = vmatpush1.msra.mxu0 %v1269
      %3646 = vmatprep.subr.mxu0 %v1295
      %3647 = vmatpush1.msra.mxu0 %v1294
      %3648 = vmatprep.subr.mxu0 %v1320
      %3649 = vmatpush1.msra.mxu0 %v1319
      %3650 = vmatprep.subr.mxu0 %v1345
      %3651 = vmatpush1.msra.mxu0 %v1344
      %3652 = vmatprep.subr.mxu0 %v1370
      %3653 = vmatpush1.msra.mxu0 %v1369
      %3654 = vmatprep.subr.mxu0 %v1395
      %3655 = vmatpush1.msra.mxu0 %v1394
      %3656 = vmatprep.subr.mxu0 %v1420
      %3657 = vmatpush1.msra.mxu0 %v1419
      %3658 = vmatprep.subr.mxu0 %v1445
      %3659 = vmatpush1.msra.mxu0 %v1444
      %3660 = vmatprep.subr.mxu0 %v1470
      %3661 = vmatpush1.msra.mxu0 %v1469
      %3662 = vmatprep.subr.mxu0 %v1495
      %3663 = vmatpush1.msra.mxu0 %v1494
      %3664 = vmatprep.subr.mxu0 %v1520
      %3665 = vmatpush1.msra.mxu0 %v1519
      %3666 = vmatprep.subr.mxu0 %v1545
      %3667 = vmatpush1.msra.mxu0 %v1544
      %3668 = vmatprep.subr.mxu0 %v1570
      %3669 = vmatpush1.msra.mxu0 %v1569
      %3670 = vmatprep.subr.mxu0 %v1595
      %3671 = vmatpush1.msra.mxu0 %v1594
      %3672 = vmatprep.subr.mxu0 %v1620
      %3673 = vmatpush1.msra.mxu0 %v1619
      %3674 = vmatprep.subr.mxu0 %v1645
      %3675 = vmatpush1.msra.mxu0 %v1644
      %3676 = vmatprep.subr.mxu0 %v1670
      %3677 = vmatpush1.msra.mxu0 %v1669
      %3678 = vmatprep.mubr.f32.mxu0 %v875
      %3679 = vmatmul.mubr.f32.gmra.mrb[0].mxu0 %v874
      %v3680 = vpop.f32.mrb[0].mxu0
      %v3681 = vadd.f32 0.0, %v3680
      %v3682 = vpop.f32.mrb[0].mxu0
      %v3683 = vadd.f32 0.0, %v3682
      %3684 = vdwg.mxu0
      %3685 = vmatprep.subr.mxu0 %v1695
      %3686 = vmatpush1.msra.mxu0 %v1694
      %3687 = vmatprep.subr.mxu0 %v1720
      %3688 = vmatpush1.msra.mxu0 %v1719
      %3689 = vmatprep.subr.mxu0 %v1745
      %3690 = vmatpush1.msra.mxu0 %v1744
      %3691 = vmatprep.subr.mxu0 %v1770
      %3692 = vmatpush1.msra.mxu0 %v1769
      %3693 = vmatprep.subr.mxu0 %v1795
      %3694 = vmatpush1.msra.mxu0 %v1794
      %3695 = vmatprep.subr.mxu0 %v1820
      %3696 = vmatpush1.msra.mxu0 %v1819
      %3697 = vmatprep.subr.mxu0 %v1845
      %3698 = vmatpush1.msra.mxu0 %v1844
      %3699 = vmatprep.subr.mxu0 %v1870
      %3700 = vmatpush1.msra.mxu0 %v1869
      %3701 = vmatprep.subr.mxu0 %v1895
      %3702 = vmatpush1.msra.mxu0 %v1894
      %3703 = vmatprep.subr.mxu0 %v1920
      %3704 = vmatpush1.msra.mxu0 %v1919
      %3705 = vmatprep.subr.mxu0 %v1945
      %3706 = vmatpush1.msra.mxu0 %v1944
      %3707 = vmatprep.subr.mxu0 %v1970
      %3708 = vmatpush1.msra.mxu0 %v1969
      %3709 = vmatprep.subr.mxu0 %v1995
      %3710 = vmatpush1.msra.mxu0 %v1994
      %3711 = vmatprep.subr.mxu0 %v2020
      %3712 = vmatpush1.msra.mxu0 %v2019
      %3713 = vmatprep.subr.mxu0 %v2045
      %3714 = vmatpush1.msra.mxu0 %v2044
      %3715 = vmatprep.subr.mxu0 %v2070
      %3716 = vmatpush1.msra.mxu0 %v2069
      %3717 = vmatprep.subr.mxu0 %v2095
      %3718 = vmatpush1.msra.mxu0 %v2094
      %3719 = vmatprep.subr.mxu0 %v2120
      %3720 = vmatpush1.msra.mxu0 %v2119
      %3721 = vmatprep.subr.mxu0 %v2145
      %3722 = vmatpush1.msra.mxu0 %v2144
      %3723 = vmatprep.subr.mxu0 %v2170
      %3724 = vmatpush1.msra.mxu0 %v2169
      %3725 = vmatprep.subr.mxu0 %v2195
      %3726 = vmatpush1.msra.mxu0 %v2194
      %3727 = vmatprep.subr.mxu0 %v2220
      %3728 = vmatpush1.msra.mxu0 %v2219
      %3729 = vmatprep.subr.mxu0 %v2245
      %3730 = vmatpush1.msra.mxu0 %v2244
      %3731 = vmatprep.subr.mxu0 %v2270
      %3732 = vmatpush1.msra.mxu0 %v2269
      %3733 = vmatprep.subr.mxu0 %v2295
      %3734 = vmatpush1.msra.mxu0 %v2294
      %3735 = vmatprep.subr.mxu0 %v2320
      %3736 = vmatpush1.msra.mxu0 %v2319
      %3737 = vmatprep.subr.mxu0 %v2345
      %3738 = vmatpush1.msra.mxu0 %v2344
      %3739 = vmatprep.subr.mxu0 %v2370
      %3740 = vmatpush1.msra.mxu0 %v2369
      %3741 = vmatprep.subr.mxu0 %v2395
      %3742 = vmatpush1.msra.mxu0 %v2394
      %3743 = vmatprep.subr.mxu0 %v2420
      %3744 = vmatpush1.msra.mxu0 %v2419
      %3745 = vmatprep.subr.mxu0 %v2445
      %3746 = vmatpush1.msra.mxu0 %v2444
      %3747 = vmatprep.subr.mxu0 %v2470
      %3748 = vmatpush1.msra.mxu0 %v2469
      %3749 = vmatprep.mubr.f32.mxu0 %v877
      %3750 = vmatmul.mubr.f32.gmra.mrb[0].mxu0 %v876
      %v3751 = vpop.f32.mrb[0].mxu0
      %v3752 = vadd.f32 %v3681, %v3751
      %v3753 = vpop.f32.mrb[0].mxu0
      %v3754 = vadd.f32 %v3683, %v3753
      %3755 = vdwg.mxu0
      %3756 = vmatprep.subr.mxu0 %v897
      %3757 = vmatpush1.msra.mxu0 %v896
      %3758 = vmatprep.subr.mxu0 %v922
      %3759 = vmatpush1.msra.mxu0 %v921
      %3760 = vmatprep.subr.mxu0 %v947
      %3761 = vmatpush1.msra.mxu0 %v946
      %3762 = vmatprep.subr.mxu0 %v972
      %3763 = vmatpush1.msra.mxu0 %v971
      %3764 = vmatprep.subr.mxu0 %v997
      %3765 = vmatpush1.msra.mxu0 %v996
      %3766 = vmatprep.subr.mxu0 %v1022
      %3767 = vmatpush1.msra.mxu0 %v1021
      %3768 = vmatprep.subr.mxu0 %v1047
      %3769 = vmatpush1.msra.mxu0 %v1046
      %3770 = vmatprep.subr.mxu0 %v1072
      %3771 = vmatpush1.msra.mxu0 %v1071
      %3772 = vmatprep.subr.mxu0 %v1097
      %3773 = vmatpush1.msra.mxu0 %v1096
      %3774 = vmatprep.subr.mxu0 %v1122
      %3775 = vmatpush1.msra.mxu0 %v1121
      %3776 = vmatprep.subr.mxu0 %v1147
      %3777 = vmatpush1.msra.mxu0 %v1146
      %3778 = vmatprep.subr.mxu0 %v1172
      %3779 = vmatpush1.msra.mxu0 %v1171
      %3780 = vmatprep.subr.mxu0 %v1197
      %3781 = vmatpush1.msra.mxu0 %v1196
      %3782 = vmatprep.subr.mxu0 %v1222
      %3783 = vmatpush1.msra.mxu0 %v1221
      %3784 = vmatprep.subr.mxu0 %v1247
      %3785 = vmatpush1.msra.mxu0 %v1246
      %3786 = vmatprep.subr.mxu0 %v1272
      %3787 = vmatpush1.msra.mxu0 %v1271
      %3788 = vmatprep.subr.mxu0 %v1297
      %3789 = vmatpush1.msra.mxu0 %v1296
      %3790 = vmatprep.subr.mxu0 %v1322
      %3791 = vmatpush1.msra.mxu0 %v1321
      %3792 = vmatprep.subr.mxu0 %v1347
      %3793 = vmatpush1.msra.mxu0 %v1346
      %3794 = vmatprep.subr.mxu0 %v1372
      %3795 = vmatpush1.msra.mxu0 %v1371
      %3796 = vmatprep.subr.mxu0 %v1397
      %3797 = vmatpush1.msra.mxu0 %v1396
      %3798 = vmatprep.subr.mxu0 %v1422
      %3799 = vmatpush1.msra.mxu0 %v1421
      %3800 = vmatprep.subr.mxu0 %v1447
      %3801 = vmatpush1.msra.mxu0 %v1446
      %3802 = vmatprep.subr.mxu0 %v1472
      %3803 = vmatpush1.msra.mxu0 %v1471
      %3804 = vmatprep.subr.mxu0 %v1497
      %3805 = vmatpush1.msra.mxu0 %v1496
      %3806 = vmatprep.subr.mxu0 %v1522
      %3807 = vmatpush1.msra.mxu0 %v1521
      %3808 = vmatprep.subr.mxu0 %v1547
      %3809 = vmatpush1.msra.mxu0 %v1546
      %3810 = vmatprep.subr.mxu0 %v1572
      %3811 = vmatpush1.msra.mxu0 %v1571
      %3812 = vmatprep.subr.mxu0 %v1597
      %3813 = vmatpush1.msra.mxu0 %v1596
      %3814 = vmatprep.subr.mxu0 %v1622
      %3815 = vmatpush1.msra.mxu0 %v1621
      %3816 = vmatprep.subr.mxu0 %v1647
      %3817 = vmatpush1.msra.mxu0 %v1646
      %3818 = vmatprep.subr.mxu0 %v1672
      %3819 = vmatpush1.msra.mxu0 %v1671
      %3820 = vmatprep.mubr.f32.mxu0 %v875
      %3821 = vmatmul.mubr.f32.gmra.mrb[0].mxu0 %v874
      %v3822 = vpop.f32.mrb[0].mxu0
      %v3823 = vadd.f32 0.0, %v3822
      %v3824 = vpop.f32.mrb[0].mxu0
      %v3825 = vadd.f32 0.0, %v3824
      %3826 = vdwg.mxu0
      %3827 = vmatprep.subr.mxu0 %v1697
      %3828 = vmatpush1.msra.mxu0 %v1696
      %3829 = vmatprep.subr.mxu0 %v1722
      %3830 = vmatpush1.msra.mxu0 %v1721
      %3831 = vmatprep.subr.mxu0 %v1747
      %3832 = vmatpush1.msra.mxu0 %v1746
      %3833 = vmatprep.subr.mxu0 %v1772
      %3834 = vmatpush1.msra.mxu0 %v1771
      %3835 = vmatprep.subr.mxu0 %v1797
      %3836 = vmatpush1.msra.mxu0 %v1796
      %3837 = vmatprep.subr.mxu0 %v1822
      %3838 = vmatpush1.msra.mxu0 %v1821
      %3839 = vmatprep.subr.mxu0 %v1847
      %3840 = vmatpush1.msra.mxu0 %v1846
      %3841 = vmatprep.subr.mxu0 %v1872
      %3842 = vmatpush1.msra.mxu0 %v1871
      %3843 = vmatprep.subr.mxu0 %v1897
      %3844 = vmatpush1.msra.mxu0 %v1896
      %3845 = vmatprep.subr.mxu0 %v1922
      %3846 = vmatpush1.msra.mxu0 %v1921
      %3847 = vmatprep.subr.mxu0 %v1947
      %3848 = vmatpush1.msra.mxu0 %v1946
      %3849 = vmatprep.subr.mxu0 %v1972
      %3850 = vmatpush1.msra.mxu0 %v1971
      %3851 = vmatprep.subr.mxu0 %v1997
      %3852 = vmatpush1.msra.mxu0 %v1996
      %3853 = vmatprep.subr.mxu0 %v2022
      %3854 = vmatpush1.msra.mxu0 %v2021
      %3855 = vmatprep.subr.mxu0 %v2047
      %3856 = vmatpush1.msra.mxu0 %v2046
      %3857 = vmatprep.subr.mxu0 %v2072
      %3858 = vmatpush1.msra.mxu0 %v2071
      %3859 = vmatprep.subr.mxu0 %v2097
      %3860 = vmatpush1.msra.mxu0 %v2096
      %3861 = vmatprep.subr.mxu0 %v2122
      %3862 = vmatpush1.msra.mxu0 %v2121
      %3863 = vmatprep.subr.mxu0 %v2147
      %3864 = vmatpush1.msra.mxu0 %v2146
      %3865 = vmatprep.subr.mxu0 %v2172
      %3866 = vmatpush1.msra.mxu0 %v2171
      %3867 = vmatprep.subr.mxu0 %v2197
      %3868 = vmatpush1.msra.mxu0 %v2196
      %3869 = vmatprep.subr.mxu0 %v2222
      %3870 = vmatpush1.msra.mxu0 %v2221
      %3871 = vmatprep.subr.mxu0 %v2247
      %3872 = vmatpush1.msra.mxu0 %v2246
      %3873 = vmatprep.subr.mxu0 %v2272
      %3874 = vmatpush1.msra.mxu0 %v2271
      %3875 = vmatprep.subr.mxu0 %v2297
      %3876 = vmatpush1.msra.mxu0 %v2296
      %3877 = vmatprep.subr.mxu0 %v2322
      %3878 = vmatpush1.msra.mxu0 %v2321
      %3879 = vmatprep.subr.mxu0 %v2347
      %3880 = vmatpush1.msra.mxu0 %v2346
      %3881 = vmatprep.subr.mxu0 %v2372
      %3882 = vmatpush1.msra.mxu0 %v2371
      %3883 = vmatprep.subr.mxu0 %v2397
      %3884 = vmatpush1.msra.mxu0 %v2396
      %3885 = vmatprep.subr.mxu0 %v2422
      %3886 = vmatpush1.msra.mxu0 %v2421
      %3887 = vmatprep.subr.mxu0 %v2447
      %3888 = vmatpush1.msra.mxu0 %v2446
      %3889 = vmatprep.subr.mxu0 %v2472
      %3890 = vmatpush1.msra.mxu0 %v2471
      %3891 = vmatprep.mubr.f32.mxu0 %v877
      %3892 = vmatmul.mubr.f32.gmra.mrb[0].mxu0 %v876
      %v3893 = vpop.f32.mrb[0].mxu0
      %v3894 = vadd.f32 %v3823, %v3893
      %v3895 = vpop.f32.mrb[0].mxu0
      %v3896 = vadd.f32 %v3825, %v3895
      %3897 = vdwg.mxu0
      %3898 = vmatprep.subr.mxu0 %v899
      %3899 = vmatpush1.msra.mxu0 %v898
      %3900 = vmatprep.subr.mxu0 %v924
      %3901 = vmatpush1.msra.mxu0 %v923
      %3902 = vmatprep.subr.mxu0 %v949
      %3903 = vmatpush1.msra.mxu0 %v948
      %3904 = vmatprep.subr.mxu0 %v974
      %3905 = vmatpush1.msra.mxu0 %v973
      %3906 = vmatprep.subr.mxu0 %v999
      %3907 = vmatpush1.msra.mxu0 %v998
      %3908 = vmatprep.subr.mxu0 %v1024
      %3909 = vmatpush1.msra.mxu0 %v1023
      %3910 = vmatprep.subr.mxu0 %v1049
      %3911 = vmatpush1.msra.mxu0 %v1048
      %3912 = vmatprep.subr.mxu0 %v1074
      %3913 = vmatpush1.msra.mxu0 %v1073
      %3914 = vmatprep.subr.mxu0 %v1099
      %3915 = vmatpush1.msra.mxu0 %v1098
      %3916 = vmatprep.subr.mxu0 %v1124
      %3917 = vmatpush1.msra.mxu0 %v1123
      %3918 = vmatprep.subr.mxu0 %v1149
      %3919 = vmatpush1.msra.mxu0 %v1148
      %3920 = vmatprep.subr.mxu0 %v1174
      %3921 = vmatpush1.msra.mxu0 %v1173
      %3922 = vmatprep.subr.mxu0 %v1199
      %3923 = vmatpush1.msra.mxu0 %v1198
      %3924 = vmatprep.subr.mxu0 %v1224
      %3925 = vmatpush1.msra.mxu0 %v1223
      %3926 = vmatprep.subr.mxu0 %v1249
      %3927 = vmatpush1.msra.mxu0 %v1248
      %3928 = vmatprep.subr.mxu0 %v1274
      %3929 = vmatpush1.msra.mxu0 %v1273
      %3930 = vmatprep.subr.mxu0 %v1299
      %3931 = vmatpush1.msra.mxu0 %v1298
      %3932 = vmatprep.subr.mxu0 %v1324
      %3933 = vmatpush1.msra.mxu0 %v1323
      %3934 = vmatprep.subr.mxu0 %v1349
      %3935 = vmatpush1.msra.mxu0 %v1348
      %3936 = vmatprep.subr.mxu0 %v1374
      %3937 = vmatpush1.msra.mxu0 %v1373
      %3938 = vmatprep.subr.mxu0 %v1399
      %3939 = vmatpush1.msra.mxu0 %v1398
      %3940 = vmatprep.subr.mxu0 %v1424
      %3941 = vmatpush1.msra.mxu0 %v1423
      %3942 = vmatprep.subr.mxu0 %v1449
      %3943 = vmatpush1.msra.mxu0 %v1448
      %3944 = vmatprep.subr.mxu0 %v1474
      %3945 = vmatpush1.msra.mxu0 %v1473
      %3946 = vmatprep.subr.mxu0 %v1499
      %3947 = vmatpush1.msra.mxu0 %v1498
      %3948 = vmatprep.subr.mxu0 %v1524
      %3949 = vmatpush1.msra.mxu0 %v1523
      %3950 = vmatprep.subr.mxu0 %v1549
      %3951 = vmatpush1.msra.mxu0 %v1548
      %3952 = vmatprep.subr.mxu0 %v1574
      %3953 = vmatpush1.msra.mxu0 %v1573
      %3954 = vmatprep.subr.mxu0 %v1599
      %3955 = vmatpush1.msra.mxu0 %v1598
      %3956 = vmatprep.subr.mxu0 %v1624
      %3957 = vmatpush1.msra.mxu0 %v1623
      %3958 = vmatprep.subr.mxu0 %v1649
      %3959 = vmatpush1.msra.mxu0 %v1648
      %3960 = vmatprep.subr.mxu0 %v1674
      %3961 = vmatpush1.msra.mxu0 %v1673
      %3962 = vmatprep.mubr.f32.mxu0 %v875
      %3963 = vmatmul.mubr.f32.gmra.mrb[0].mxu0 %v874
      %v3964 = vpop.f32.mrb[0].mxu0
      %v3965 = vadd.f32 0.0, %v3964
      %v3966 = vpop.f32.mrb[0].mxu0
      %v3967 = vadd.f32 0.0, %v3966
      %3968 = vdwg.mxu0
      %3969 = vmatprep.subr.mxu0 %v1699
      %3970 = vmatpush1.msra.mxu0 %v1698
      %3971 = vmatprep.subr.mxu0 %v1724
      %3972 = vmatpush1.msra.mxu0 %v1723
      %3973 = vmatprep.subr.mxu0 %v1749
      %3974 = vmatpush1.msra.mxu0 %v1748
      %3975 = vmatprep.subr.mxu0 %v1774
      %3976 = vmatpush1.msra.mxu0 %v1773
      %3977 = vmatprep.subr.mxu0 %v1799
      %3978 = vmatpush1.msra.mxu0 %v1798
      %3979 = vmatprep.subr.mxu0 %v1824
      %3980 = vmatpush1.msra.mxu0 %v1823
      %3981 = vmatprep.subr.mxu0 %v1849
      %3982 = vmatpush1.msra.mxu0 %v1848
      %3983 = vmatprep.subr.mxu0 %v1874
      %3984 = vmatpush1.msra.mxu0 %v1873
      %3985 = vmatprep.subr.mxu0 %v1899
      %3986 = vmatpush1.msra.mxu0 %v1898
      %3987 = vmatprep.subr.mxu0 %v1924
      %3988 = vmatpush1.msra.mxu0 %v1923
      %3989 = vmatprep.subr.mxu0 %v1949
      %3990 = vmatpush1.msra.mxu0 %v1948
      %3991 = vmatprep.subr.mxu0 %v1974
      %3992 = vmatpush1.msra.mxu0 %v1973
      %3993 = vmatprep.subr.mxu0 %v1999
      %3994 = vmatpush1.msra.mxu0 %v1998
      %3995 = vmatprep.subr.mxu0 %v2024
      %3996 = vmatpush1.msra.mxu0 %v2023
      %3997 = vmatprep.subr.mxu0 %v2049
      %3998 = vmatpush1.msra.mxu0 %v2048
      %3999 = vmatprep.subr.mxu0 %v2074
      %4000 = vmatpush1.msra.mxu0 %v2073
      %4001 = vmatprep.subr.mxu0 %v2099
      %4002 = vmatpush1.msra.mxu0 %v2098
      %4003 = vmatprep.subr.mxu0 %v2124
      %4004 = vmatpush1.msra.mxu0 %v2123
      %4005 = vmatprep.subr.mxu0 %v2149
      %4006 = vmatpush1.msra.mxu0 %v2148
      %4007 = vmatprep.subr.mxu0 %v2174
      %4008 = vmatpush1.msra.mxu0 %v2173
      %4009 = vmatprep.subr.mxu0 %v2199
      %4010 = vmatpush1.msra.mxu0 %v2198
      %4011 = vmatprep.subr.mxu0 %v2224
      %4012 = vmatpush1.msra.mxu0 %v2223
      %4013 = vmatprep.subr.mxu0 %v2249
      %4014 = vmatpush1.msra.mxu0 %v2248
      %4015 = vmatprep.subr.mxu0 %v2274
      %4016 = vmatpush1.msra.mxu0 %v2273
      %4017 = vmatprep.subr.mxu0 %v2299
      %4018 = vmatpush1.msra.mxu0 %v2298
      %4019 = vmatprep.subr.mxu0 %v2324
      %4020 = vmatpush1.msra.mxu0 %v2323
      %4021 = vmatprep.subr.mxu0 %v2349
      %4022 = vmatpush1.msra.mxu0 %v2348
      %4023 = vmatprep.subr.mxu0 %v2374
      %4024 = vmatpush1.msra.mxu0 %v2373
      %4025 = vmatprep.subr.mxu0 %v2399
      %4026 = vmatpush1.msra.mxu0 %v2398
      %4027 = vmatprep.subr.mxu0 %v2424
      %4028 = vmatpush1.msra.mxu0 %v2423
      %4029 = vmatprep.subr.mxu0 %v2449
      %4030 = vmatpush1.msra.mxu0 %v2448
      %4031 = vmatprep.subr.mxu0 %v2474
      %4032 = vmatpush1.msra.mxu0 %v2473
      %4033 = vmatprep.mubr.f32.mxu0 %v877
      %4034 = vmatmul.mubr.f32.gmra.mrb[0].mxu0 %v876
      %v4035 = vpop.f32.mrb[0].mxu0
      %v4036 = vadd.f32 %v3965, %v4035
      %v4037 = vpop.f32.mrb[0].mxu0
      %v4038 = vadd.f32 %v3967, %v4037
      %4039 = vdwg.mxu0
      %4040 = vmatprep.subr.mxu0 %v901
      %4041 = vmatpush1.msra.mxu0 %v900
      %4042 = vmatprep.subr.mxu0 %v926
      %4043 = vmatpush1.msra.mxu0 %v925
      %4044 = vmatprep.subr.mxu0 %v951
      %4045 = vmatpush1.msra.mxu0 %v950
      %4046 = vmatprep.subr.mxu0 %v976
      %4047 = vmatpush1.msra.mxu0 %v975
      %4048 = vmatprep.subr.mxu0 %v1001
      %4049 = vmatpush1.msra.mxu0 %v1000
      %4050 = vmatprep.subr.mxu0 %v1026
      %4051 = vmatpush1.msra.mxu0 %v1025
      %4052 = vmatprep.subr.mxu0 %v1051
      %4053 = vmatpush1.msra.mxu0 %v1050
      %4054 = vmatprep.subr.mxu0 %v1076
      %4055 = vmatpush1.msra.mxu0 %v1075
      %4056 = vmatprep.subr.mxu0 %v1101
      %4057 = vmatpush1.msra.mxu0 %v1100
      %4058 = vmatprep.subr.mxu0 %v1126
      %4059 = vmatpush1.msra.mxu0 %v1125
      %4060 = vmatprep.subr.mxu0 %v1151
      %4061 = vmatpush1.msra.mxu0 %v1150
      %4062 = vmatprep.subr.mxu0 %v1176
      %4063 = vmatpush1.msra.mxu0 %v1175
      %4064 = vmatprep.subr.mxu0 %v1201
      %4065 = vmatpush1.msra.mxu0 %v1200
      %4066 = vmatprep.subr.mxu0 %v1226
      %4067 = vmatpush1.msra.mxu0 %v1225
      %4068 = vmatprep.subr.mxu0 %v1251
      %4069 = vmatpush1.msra.mxu0 %v1250
      %4070 = vmatprep.subr.mxu0 %v1276
      %4071 = vmatpush1.msra.mxu0 %v1275
      %4072 = vmatprep.subr.mxu0 %v1301
      %4073 = vmatpush1.msra.mxu0 %v1300
      %4074 = vmatprep.subr.mxu0 %v1326
      %4075 = vmatpush1.msra.mxu0 %v1325
      %4076 = vmatprep.subr.mxu0 %v1351
      %4077 = vmatpush1.msra.mxu0 %v1350
      %4078 = vmatprep.subr.mxu0 %v1376
      %4079 = vmatpush1.msra.mxu0 %v1375
      %4080 = vmatprep.subr.mxu0 %v1401
      %4081 = vmatpush1.msra.mxu0 %v1400
      %4082 = vmatprep.subr.mxu0 %v1426
      %4083 = vmatpush1.msra.mxu0 %v1425
      %4084 = vmatprep.subr.mxu0 %v1451
      %4085 = vmatpush1.msra.mxu0 %v1450
      %4086 = vmatprep.subr.mxu0 %v1476
      %4087 = vmatpush1.msra.mxu0 %v1475
      %4088 = vmatprep.subr.mxu0 %v1501
      %4089 = vmatpush1.msra.mxu0 %v1500
      %4090 = vmatprep.subr.mxu0 %v1526
      %4091 = vmatpush1.msra.mxu0 %v1525
      %4092 = vmatprep.subr.mxu0 %v1551
      %4093 = vmatpush1.msra.mxu0 %v1550
      %4094 = vmatprep.subr.mxu0 %v1576
      %4095 = vmatpush1.msra.mxu0 %v1575
      %4096 = vmatprep.subr.mxu0 %v1601
      %4097 = vmatpush1.msra.mxu0 %v1600
      %4098 = vmatprep.subr.mxu0 %v1626
      %4099 = vmatpush1.msra.mxu0 %v1625
      %4100 = vmatprep.subr.mxu0 %v1651
      %4101 = vmatpush1.msra.mxu0 %v1650
      %4102 = vmatprep.subr.mxu0 %v1676
      %4103 = vmatpush1.msra.mxu0 %v1675
      %4104 = vmatprep.mubr.f32.mxu0 %v875
      %4105 = vmatmul.mubr.f32.gmra.mrb[0].mxu0 %v874
      %v4106 = vpop.f32.mrb[0].mxu0
      %v4107 = vadd.f32 0.0, %v4106
      %v4108 = vpop.f32.mrb[0].mxu0
      %v4109 = vadd.f32 0.0, %v4108
      %4110 = vdwg.mxu0
      %4111 = vmatprep.subr.mxu0 %v1701
      %4112 = vmatpush1.msra.mxu0 %v1700
      %4113 = vmatprep.subr.mxu0 %v1726
      %4114 = vmatpush1.msra.mxu0 %v1725
      %4115 = vmatprep.subr.mxu0 %v1751
      %4116 = vmatpush1.msra.mxu0 %v1750
      %4117 = vmatprep.subr.mxu0 %v1776
      %4118 = vmatpush1.msra.mxu0 %v1775
      %4119 = vmatprep.subr.mxu0 %v1801
      %4120 = vmatpush1.msra.mxu0 %v1800
      %4121 = vmatprep.subr.mxu0 %v1826
      %4122 = vmatpush1.msra.mxu0 %v1825
      %4123 = vmatprep.subr.mxu0 %v1851
      %4124 = vmatpush1.msra.mxu0 %v1850
      %4125 = vmatprep.subr.mxu0 %v1876
      %4126 = vmatpush1.msra.mxu0 %v1875
      %4127 = vmatprep.subr.mxu0 %v1901
      %4128 = vmatpush1.msra.mxu0 %v1900
      %4129 = vmatprep.subr.mxu0 %v1926
      %4130 = vmatpush1.msra.mxu0 %v1925
      %4131 = vmatprep.subr.mxu0 %v1951
      %4132 = vmatpush1.msra.mxu0 %v1950
      %4133 = vmatprep.subr.mxu0 %v1976
      %4134 = vmatpush1.msra.mxu0 %v1975
      %4135 = vmatprep.subr.mxu0 %v2001
      %4136 = vmatpush1.msra.mxu0 %v2000
      %4137 = vmatprep.subr.mxu0 %v2026
      %4138 = vmatpush1.msra.mxu0 %v2025
      %4139 = vmatprep.subr.mxu0 %v2051
      %4140 = vmatpush1.msra.mxu0 %v2050
      %4141 = vmatprep.subr.mxu0 %v2076
      %4142 = vmatpush1.msra.mxu0 %v2075
      %4143 = vmatprep.subr.mxu0 %v2101
      %4144 = vmatpush1.msra.mxu0 %v2100
      %4145 = vmatprep.subr.mxu0 %v2126
      %4146 = vmatpush1.msra.mxu0 %v2125
      %4147 = vmatprep.subr.mxu0 %v2151
      %4148 = vmatpush1.msra.mxu0 %v2150
      %4149 = vmatprep.subr.mxu0 %v2176
      %4150 = vmatpush1.msra.mxu0 %v2175
      %4151 = vmatprep.subr.mxu0 %v2201
      %4152 = vmatpush1.msra.mxu0 %v2200
      %4153 = vmatprep.subr.mxu0 %v2226
      %4154 = vmatpush1.msra.mxu0 %v2225
      %4155 = vmatprep.subr.mxu0 %v2251
      %4156 = vmatpush1.msra.mxu0 %v2250
      %4157 = vmatprep.subr.mxu0 %v2276
      %4158 = vmatpush1.msra.mxu0 %v2275
      %4159 = vmatprep.subr.mxu0 %v2301
      %4160 = vmatpush1.msra.mxu0 %v2300
      %4161 = vmatprep.subr.mxu0 %v2326
      %4162 = vmatpush1.msra.mxu0 %v2325
      %4163 = vmatprep.subr.mxu0 %v2351
      %4164 = vmatpush1.msra.mxu0 %v2350
      %4165 = vmatprep.subr.mxu0 %v2376
      %4166 = vmatpush1.msra.mxu0 %v2375
      %4167 = vmatprep.subr.mxu0 %v2401
      %4168 = vmatpush1.msra.mxu0 %v2400
      %4169 = vmatprep.subr.mxu0 %v2426
      %4170 = vmatpush1.msra.mxu0 %v2425
      %4171 = vmatprep.subr.mxu0 %v2451
      %4172 = vmatpush1.msra.mxu0 %v2450
      %4173 = vmatprep.subr.mxu0 %v2476
      %4174 = vmatpush1.msra.mxu0 %v2475
      %4175 = vmatprep.mubr.f32.mxu0 %v877
      %4176 = vmatmul.mubr.f32.gmra.mrb[0].mxu0 %v876
      %v4177 = vpop.f32.mrb[0].mxu0
      %v4178 = vadd.f32 %v4107, %v4177
      %v4179 = vpop.f32.mrb[0].mxu0
      %v4180 = vadd.f32 %v4109, %v4179
      %4181 = vdwg.mxu0
      %4182 = vmatprep.subr.mxu0 0.0
      %4183 = vmatpush1.msra.mxu0 %v902
      %4184 = vmatprep.subr.mxu0 0.0
      %4185 = vmatpush1.msra.mxu0 %v927
      %4186 = vmatprep.subr.mxu0 0.0
      %4187 = vmatpush1.msra.mxu0 %v952
      %4188 = vmatprep.subr.mxu0 0.0
      %4189 = vmatpush1.msra.mxu0 %v977
      %4190 = vmatprep.subr.mxu0 0.0
      %4191 = vmatpush1.msra.mxu0 %v1002
      %4192 = vmatprep.subr.mxu0 0.0
      %4193 = vmatpush1.msra.mxu0 %v1027
      %4194 = vmatprep.subr.mxu0 0.0
      %4195 = vmatpush1.msra.mxu0 %v1052
      %4196 = vmatprep.subr.mxu0 0.0
      %4197 = vmatpush1.msra.mxu0 %v1077
      %4198 = vmatprep.subr.mxu0 0.0
      %4199 = vmatpush1.msra.mxu0 %v1102
      %4200 = vmatprep.subr.mxu0 0.0
      %4201 = vmatpush1.msra.mxu0 %v1127
      %4202 = vmatprep.subr.mxu0 0.0
      %4203 = vmatpush1.msra.mxu0 %v1152
      %4204 = vmatprep.subr.mxu0 0.0
      %4205 = vmatpush1.msra.mxu0 %v1177
      %4206 = vmatprep.subr.mxu0 0.0
      %4207 = vmatpush1.msra.mxu0 %v1202
      %4208 = vmatprep.subr.mxu0 0.0
      %4209 = vmatpush1.msra.mxu0 %v1227
      %4210 = vmatprep.subr.mxu0 0.0
      %4211 = vmatpush1.msra.mxu0 %v1252
      %4212 = vmatprep.subr.mxu0 0.0
      %4213 = vmatpush1.msra.mxu0 %v1277
      %4214 = vmatprep.subr.mxu0 0.0
      %4215 = vmatpush1.msra.mxu0 %v1302
      %4216 = vmatprep.subr.mxu0 0.0
      %4217 = vmatpush1.msra.mxu0 %v1327
      %4218 = vmatprep.subr.mxu0 0.0
      %4219 = vmatpush1.msra.mxu0 %v1352
      %4220 = vmatprep.subr.mxu0 0.0
      %4221 = vmatpush1.msra.mxu0 %v1377
      %4222 = vmatprep.subr.mxu0 0.0
      %4223 = vmatpush1.msra.mxu0 %v1402
      %4224 = vmatprep.subr.mxu0 0.0
      %4225 = vmatpush1.msra.mxu0 %v1427
      %4226 = vmatprep.subr.mxu0 0.0
      %4227 = vmatpush1.msra.mxu0 %v1452
      %4228 = vmatprep.subr.mxu0 0.0
      %4229 = vmatpush1.msra.mxu0 %v1477
      %4230 = vmatprep.subr.mxu0 0.0
      %4231 = vmatpush1.msra.mxu0 %v1502
      %4232 = vmatprep.subr.mxu0 0.0
      %4233 = vmatpush1.msra.mxu0 %v1527
      %4234 = vmatprep.subr.mxu0 0.0
      %4235 = vmatpush1.msra.mxu0 %v1552
      %4236 = vmatprep.subr.mxu0 0.0
      %4237 = vmatpush1.msra.mxu0 %v1577
      %4238 = vmatprep.subr.mxu0 0.0
      %4239 = vmatpush1.msra.mxu0 %v1602
      %4240 = vmatprep.subr.mxu0 0.0
      %4241 = vmatpush1.msra.mxu0 %v1627
      %4242 = vmatprep.subr.mxu0 0.0
      %4243 = vmatpush1.msra.mxu0 %v1652
      %4244 = vmatprep.subr.mxu0 0.0
      %4245 = vmatpush1.msra.mxu0 %v1677
      %4246 = vmatprep.mubr.f32.mxu0 %v875
      %4247 = vmatmul.mubr.f32.gmra.mrb[0].mxu0 %v874
      %v4248 = vpop.f32.mrb[0].mxu0
      %v4249 = vadd.f32 0.0, %v4248
      %v4250 = vpop.f32.mrb[0].mxu0
      %4251 = vdwg.mxu0
      %4252 = vmatprep.subr.mxu0 0.0
      %4253 = vmatpush1.msra.mxu0 %v1702
      %4254 = vmatprep.subr.mxu0 0.0
      %4255 = vmatpush1.msra.mxu0 %v1727
      %4256 = vmatprep.subr.mxu0 0.0
      %4257 = vmatpush1.msra.mxu0 %v1752
      %4258 = vmatprep.subr.mxu0 0.0
      %4259 = vmatpush1.msra.mxu0 %v1777
      %4260 = vmatprep.subr.mxu0 0.0
      %4261 = vmatpush1.msra.mxu0 %v1802
      %4262 = vmatprep.subr.mxu0 0.0
      %4263 = vmatpush1.msra.mxu0 %v1827
      %4264 = vmatprep.subr.mxu0 0.0
      %4265 = vmatpush1.msra.mxu0 %v1852
      %4266 = vmatprep.subr.mxu0 0.0
      %4267 = vmatpush1.msra.mxu0 %v1877
      %4268 = vmatprep.subr.mxu0 0.0
      %4269 = vmatpush1.msra.mxu0 %v1902
      %4270 = vmatprep.subr.mxu0 0.0
      %4271 = vmatpush1.msra.mxu0 %v1927
      %4272 = vmatprep.subr.mxu0 0.0
      %4273 = vmatpush1.msra.mxu0 %v1952
      %4274 = vmatprep.subr.mxu0 0.0
      %4275 = vmatpush1.msra.mxu0 %v1977
      %4276 = vmatprep.subr.mxu0 0.0
      %4277 = vmatpush1.msra.mxu0 %v2002
      %4278 = vmatprep.subr.mxu0 0.0
      %4279 = vmatpush1.msra.mxu0 %v2027
      %4280 = vmatprep.subr.mxu0 0.0
      %4281 = vmatpush1.msra.mxu0 %v2052
      %4282 = vmatprep.subr.mxu0 0.0
      %4283 = vmatpush1.msra.mxu0 %v2077
      %4284 = vmatprep.subr.mxu0 0.0
      %4285 = vmatpush1.msra.mxu0 %v2102
      %4286 = vmatprep.subr.mxu0 0.0
      %4287 = vmatpush1.msra.mxu0 %v2127
      %4288 = vmatprep.subr.mxu0 0.0
      %4289 = vmatpush1.msra.mxu0 %v2152
      %4290 = vmatprep.subr.mxu0 0.0
      %4291 = vmatpush1.msra.mxu0 %v2177
      %4292 = vmatprep.subr.mxu0 0.0
      %4293 = vmatpush1.msra.mxu0 %v2202
      %4294 = vmatprep.subr.mxu0 0.0
      %4295 = vmatpush1.msra.mxu0 %v2227
      %4296 = vmatprep.subr.mxu0 0.0
      %4297 = vmatpush1.msra.mxu0 %v2252
      %4298 = vmatprep.subr.mxu0 0.0
      %4299 = vmatpush1.msra.mxu0 %v2277
      %4300 = vmatprep.subr.mxu0 0.0
      %4301 = vmatpush1.msra.mxu0 %v2302
      %4302 = vmatprep.subr.mxu0 0.0
      %4303 = vmatpush1.msra.mxu0 %v2327
      %4304 = vmatprep.subr.mxu0 0.0
      %4305 = vmatpush1.msra.mxu0 %v2352
      %4306 = vmatprep.subr.mxu0 0.0
      %4307 = vmatpush1.msra.mxu0 %v2377
      %4308 = vmatprep.subr.mxu0 0.0
      %4309 = vmatpush1.msra.mxu0 %v2402
      %4310 = vmatprep.subr.mxu0 0.0
      %4311 = vmatpush1.msra.mxu0 %v2427
      %4312 = vmatprep.subr.mxu0 0.0
      %4313 = vmatpush1.msra.mxu0 %v2452
      %4314 = vmatprep.subr.mxu0 0.0
      %4315 = vmatpush1.msra.mxu0 %v2477
      %4316 = vmatprep.mubr.f32.mxu0 %v877
      %4317 = vmatmul.mubr.f32.gmra.mrb[0].mxu0 %v876
      %v4318 = vpop.f32.mrb[0].mxu0
      %v4319 = vadd.f32 %v4249, %v4318
      %v4320 = vpop.f32.mrb[0].mxu0
      %4321 = vdwg.mxu0
      %v4322 = vadd.f32 %v845, %v2616
      %v4323 = vadd.f32 %v846, %v2618
      %v4324 = vadd.f32 %v847, %v2758
      %v4325 = vadd.f32 %v848, %v2760
      %v4326 = vadd.f32 %v849, %v2900
      %v4327 = vadd.f32 %v850, %v2902
      %v4328 = vadd.f32 %v851, %v3042
      %v4329 = vadd.f32 %v852, %v3044
      %v4330 = vadd.f32 %v853, %v3184
      %v4331 = vadd.f32 %v854, %v3186
      %v4332 = vadd.f32 %v855, %v3326
      %v4333 = vadd.f32 %v856, %v3328
      %v4334 = vadd.f32 %v857, %v3468
      %v4335 = vadd.f32 %v858, %v3470
      %v4336 = vadd.f32 %v859, %v3610
      %v4337 = vadd.f32 %v860, %v3612
      %v4338 = vadd.f32 %v861, %v3752
      %v4339 = vadd.f32 %v862, %v3754
      %v4340 = vadd.f32 %v863, %v3894
      %v4341 = vadd.f32 %v864, %v3896
      %v4342 = vadd.f32 %v865, %v4036
      %v4343 = vadd.f32 %v866, %v4038
      %v4344 = vadd.f32 %v867, %v4178
      %v4345 = vadd.f32 %v868, %v4180
      %v4346 = vadd.f32 %v869, %v4319
      %4347 = vst [vmem:[#allocation3] sm:$0xff] %v4322
      %4348 = vst [vmem:[#allocation3 + $0x8] sm:$0xff] %v4323
      %4349 = vst [vmem:[#allocation3 + $0x10] sm:$0xff] %v4324
      %4350 = vst [vmem:[#allocation3 + $0x18] sm:$0xff] %v4325
      %4351 = vst [vmem:[#allocation3 + $0x20] sm:$0xff] %v4326
      %4352 = vst [vmem:[#allocation3 + $0x28] sm:$0xff] %v4327
      %4353 = vst [vmem:[#allocation3 + $0x30] sm:$0xff] %v4328
      %4354 = vst [vmem:[#allocation3 + $0x38] sm:$0xff] %v4329
      %4355 = vst [vmem:[#allocation3 + $0x40] sm:$0xff] %v4330
      %4356 = vst [vmem:[#allocation3 + $0x48] sm:$0xff] %v4331
      %4357 = vst [vmem:[#allocation3 + $0x50] sm:$0xff] %v4332
      %4358 = vst [vmem:[#allocation3 + $0x58] sm:$0xff] %v4333
      %4359 = vst [vmem:[#allocation3 + $0x60] sm:$0xff] %v4334
      %4360 = vst [vmem:[#allocation3 + $0x68] sm:$0xff] %v4335
      %4361 = vst [vmem:[#allocation3 + $0x70] sm:$0xff] %v4336
      %4362 = vst [vmem:[#allocation3 + $0x78] sm:$0xff] %v4337
      %4363 = vst [vmem:[#allocation3 + $0x80] sm:$0xff] %v4338
      %4364 = vst [vmem:[#allocation3 + $0x88] sm:$0xff] %v4339
      %4365 = vst [vmem:[#allocation3 + $0x90] sm:$0xff] %v4340
      %4366 = vst [vmem:[#allocation3 + $0x98] sm:$0xff] %v4341
      %4367 = vst [vmem:[#allocation3 + $0xa0] sm:$0xff] %v4342
      %4368 = vst [vmem:[#allocation3 + $0xa8] sm:$0xff] %v4343
      %4369 = vst [vmem:[#allocation3 + $0xb0] sm:$0xff] %v4344
      %4370 = vst [vmem:[#allocation3 + $0xb8] sm:$0xff] %v4345
      %4371 = vst [vmem:[#allocation3 + $0xc0] sm:$0xff] %v4346
      %p4372 = scmp.eq.s32.totalorder %s16, 1
      // Predicated region
      $region45: #{decoder_forward.4} parent=39 // pred_check
        %p4373 = pneg %p4372
      $region46: #{decoder_forward.4} parent=39 // pred_check_branch
        %4375 = sbr.rel (%p4373) target = $region48
      $region47: #{decoder_forward.4} parent=39 // pred_region
        %v4376 = vld [vmem:[#allocation3] sm:$0xff]
        %v4377 = vld [vmem:[#allocation3 + $0x8] sm:$0xff]
        %v4378 = vld [vmem:[#allocation3 + $0x10] sm:$0xff]
        %v4379 = vld [vmem:[#allocation3 + $0x18] sm:$0xff]
        %v4380 = vld [vmem:[#allocation3 + $0x20] sm:$0xff]
        %v4381 = vld [vmem:[#allocation3 + $0x28] sm:$0xff]
        %v4382 = vld [vmem:[#allocation3 + $0x30] sm:$0xff]
        %v4383 = vld [vmem:[#allocation3 + $0x38] sm:$0xff]
        %v4384 = vld [vmem:[#allocation3 + $0x40] sm:$0xff]
        %v4385 = vld [vmem:[#allocation3 + $0x48] sm:$0xff]
        %v4386 = vld [vmem:[#allocation3 + $0x50] sm:$0xff]
        %v4387 = vld [vmem:[#allocation3 + $0x58] sm:$0xff]
        %v4388 = vld [vmem:[#allocation3 + $0x60] sm:$0xff]
        %v4389 = vld [vmem:[#allocation3 + $0x68] sm:$0xff]
        %v4390 = vld [vmem:[#allocation3 + $0x70] sm:$0xff]
        %v4391 = vld [vmem:[#allocation3 + $0x78] sm:$0xff]
        %v4392 = vld [vmem:[#allocation3 + $0x80] sm:$0xff]
        %v4393 = vld [vmem:[#allocation3 + $0x88] sm:$0xff]
        %v4394 = vld [vmem:[#allocation3 + $0x90] sm:$0xff]
        %v4395 = vld [vmem:[#allocation3 + $0x98] sm:$0xff]
        %v4396 = vld [vmem:[#allocation3 + $0xa0] sm:$0xff]
        %v4397 = vld [vmem:[#allocation3 + $0xa8] sm:$0xff]
        %v4398 = vld [vmem:[#allocation3 + $0xb0] sm:$0xff]
        %v4399 = vld [vmem:[#allocation3 + $0xb8] sm:$0xff]
        %v4400 = vld [vmem:[#allocation3 + $0xc0] sm:$0xff]
        %v4401 = vld [vmem:[%s4] sm:$0xff]
        %v4402 = vld [vmem:[%s4 + $0x8] sm:$0xff]
        %v4403 = vld [vmem:[%s4 + $0x10] sm:$0xff]
        %v4404 = vld [vmem:[%s4 + $0x18] sm:$0x1]
        %v4409 = vlaneseq
        %v4410 = vshrl.u32 %v4409, 7
        %v4411 = vsub.s32 0, %v4410
        %v4412 = vrot.slane %v4401, %v4411
        %v4413 = vlaneseq
        %v4414 = vshrl.u32 %v4413, 7
        %v4415 = vsub.s32 1, %v4414
        %v4416 = vrot.slane %v4401, %v4415
        %v4417 = vlaneseq
        %v4418 = vshrl.u32 %v4417, 7
        %v4419 = vsub.s32 2, %v4418
        %v4420 = vrot.slane %v4401, %v4419
        %v4421 = vlaneseq
        %v4422 = vshrl.u32 %v4421, 7
        %v4423 = vsub.s32 3, %v4422
        %v4424 = vrot.slane %v4401, %v4423
        %v4425 = vlaneseq
        %v4426 = vshrl.u32 %v4425, 7
        %v4427 = vsub.s32 4, %v4426
        %v4428 = vrot.slane %v4401, %v4427
        %v4429 = vlaneseq
        %v4430 = vshrl.u32 %v4429, 7
        %v4431 = vsub.s32 5, %v4430
        %v4432 = vrot.slane %v4401, %v4431
        %v4433 = vlaneseq
        %v4434 = vshrl.u32 %v4433, 7
        %v4435 = vsub.s32 6, %v4434
        %v4436 = vrot.slane %v4401, %v4435
        %v4437 = vlaneseq
        %v4438 = vshrl.u32 %v4437, 7
        %v4439 = vsub.s32 7, %v4438
        %v4440 = vrot.slane %v4401, %v4439
        %v4441 = vlaneseq
        %v4442 = vshrl.u32 %v4441, 7
        %v4443 = vsub.s32 0, %v4442
        %v4444 = vrot.slane %v4402, %v4443
        %v4445 = vlaneseq
        %v4446 = vshrl.u32 %v4445, 7
        %v4447 = vsub.s32 1, %v4446
        %v4448 = vrot.slane %v4402, %v4447
        %v4449 = vlaneseq
        %v4450 = vshrl.u32 %v4449, 7
        %v4451 = vsub.s32 2, %v4450
        %v4452 = vrot.slane %v4402, %v4451
        %v4453 = vlaneseq
        %v4454 = vshrl.u32 %v4453, 7
        %v4455 = vsub.s32 3, %v4454
        %v4456 = vrot.slane %v4402, %v4455
        %v4457 = vlaneseq
        %v4458 = vshrl.u32 %v4457, 7
        %v4459 = vsub.s32 4, %v4458
        %v4460 = vrot.slane %v4402, %v4459
        %v4461 = vlaneseq
        %v4462 = vshrl.u32 %v4461, 7
        %v4463 = vsub.s32 5, %v4462
        %v4464 = vrot.slane %v4402, %v4463
        %v4465 = vlaneseq
        %v4466 = vshrl.u32 %v4465, 7
        %v4467 = vsub.s32 6, %v4466
        %v4468 = vrot.slane %v4402, %v4467
        %v4469 = vlaneseq
        %v4470 = vshrl.u32 %v4469, 7
        %v4471 = vsub.s32 7, %v4470
        %v4472 = vrot.slane %v4402, %v4471
        %v4473 = vlaneseq
        %v4474 = vshrl.u32 %v4473, 7
        %v4475 = vsub.s32 0, %v4474
        %v4476 = vrot.slane %v4403, %v4475
        %v4477 = vlaneseq
        %v4478 = vshrl.u32 %v4477, 7
        %v4479 = vsub.s32 1, %v4478
        %v4480 = vrot.slane %v4403, %v4479
        %v4481 = vlaneseq
        %v4482 = vshrl.u32 %v4481, 7
        %v4483 = vsub.s32 2, %v4482
        %v4484 = vrot.slane %v4403, %v4483
        %v4485 = vlaneseq
        %v4486 = vshrl.u32 %v4485, 7
        %v4487 = vsub.s32 3, %v4486
        %v4488 = vrot.slane %v4403, %v4487
        %v4489 = vlaneseq
        %v4490 = vshrl.u32 %v4489, 7
        %v4491 = vsub.s32 4, %v4490
        %v4492 = vrot.slane %v4403, %v4491
        %v4493 = vlaneseq
        %v4494 = vshrl.u32 %v4493, 7
        %v4495 = vsub.s32 5, %v4494
        %v4496 = vrot.slane %v4403, %v4495
        %v4497 = vlaneseq
        %v4498 = vshrl.u32 %v4497, 7
        %v4499 = vsub.s32 6, %v4498
        %v4500 = vrot.slane %v4403, %v4499
        %v4501 = vlaneseq
        %v4502 = vshrl.u32 %v4501, 7
        %v4503 = vsub.s32 7, %v4502
        %v4504 = vrot.slane %v4403, %v4503
        %v4505 = vlaneseq
        %v4506 = vshrl.u32 %v4505, 7
        %v4507 = vsub.s32 0, %v4506
        %v4508 = vrot.slane %v4404, %v4507
        %v4534 = vadd.f32 %v4376, %v4412
        %v4535 = vadd.f32 %v4377, %v4416
        %v4536 = vadd.f32 %v4378, %v4420
        %v4537 = vadd.f32 %v4379, %v4424
        %v4538 = vadd.f32 %v4380, %v4428
        %v4539 = vadd.f32 %v4381, %v4432
        %v4540 = vadd.f32 %v4382, %v4436
        %v4541 = vadd.f32 %v4383, %v4440
        %v4542 = vadd.f32 %v4384, %v4444
        %v4543 = vadd.f32 %v4385, %v4448
        %v4544 = vadd.f32 %v4386, %v4452
        %v4545 = vadd.f32 %v4387, %v4456
        %v4546 = vadd.f32 %v4388, %v4460
        %v4547 = vadd.f32 %v4389, %v4464
        %v4548 = vadd.f32 %v4390, %v4468
        %v4549 = vadd.f32 %v4391, %v4472
        %v4550 = vadd.f32 %v4392, %v4476
        %v4551 = vadd.f32 %v4393, %v4480
        %v4552 = vadd.f32 %v4394, %v4484
        %v4553 = vadd.f32 %v4395, %v4488
        %v4554 = vadd.f32 %v4396, %v4492
        %v4555 = vadd.f32 %v4397, %v4496
        %v4556 = vadd.f32 %v4398, %v4500
        %v4557 = vadd.f32 %v4399, %v4504
        %v4558 = vadd.f32 %v4400, %v4508
        %v4559 = vmax.f32 %v4534, 0.0
        %v4560 = vmax.f32 %v4535, 0.0
        %v4561 = vmax.f32 %v4536, 0.0
        %v4562 = vmax.f32 %v4537, 0.0
        %v4563 = vmax.f32 %v4538, 0.0
        %v4564 = vmax.f32 %v4539, 0.0
        %v4565 = vmax.f32 %v4540, 0.0
        %v4566 = vmax.f32 %v4541, 0.0
        %v4567 = vmax.f32 %v4542, 0.0
        %v4568 = vmax.f32 %v4543, 0.0
        %v4569 = vmax.f32 %v4544, 0.0
        %v4570 = vmax.f32 %v4545, 0.0
        %v4571 = vmax.f32 %v4546, 0.0
        %v4572 = vmax.f32 %v4547, 0.0
        %v4573 = vmax.f32 %v4548, 0.0
        %v4574 = vmax.f32 %v4549, 0.0
        %v4575 = vmax.f32 %v4550, 0.0
        %v4576 = vmax.f32 %v4551, 0.0
        %v4577 = vmax.f32 %v4552, 0.0
        %v4578 = vmax.f32 %v4553, 0.0
        %v4579 = vmax.f32 %v4554, 0.0
        %v4580 = vmax.f32 %v4555, 0.0
        %v4581 = vmax.f32 %v4556, 0.0
        %v4582 = vmax.f32 %v4557, 0.0
        %v4583 = vmax.f32 %v4558, 0.0
        %4584 = vst [vmem:[%s5] sm:$0xff] %v4559
        %4585 = vst [vmem:[%s5 + $0x8] sm:$0xff] %v4560
        %4586 = vst [vmem:[%s5 + $0x10] sm:$0xff] %v4561
        %4587 = vst [vmem:[%s5 + $0x18] sm:$0xff] %v4562
        %4588 = vst [vmem:[%s5 + $0x20] sm:$0xff] %v4563
        %4589 = vst [vmem:[%s5 + $0x28] sm:$0xff] %v4564
        %4590 = vst [vmem:[%s5 + $0x30] sm:$0xff] %v4565
        %4591 = vst [vmem:[%s5 + $0x38] sm:$0xff] %v4566
        %4592 = vst [vmem:[%s5 + $0x40] sm:$0xff] %v4567
        %4593 = vst [vmem:[%s5 + $0x48] sm:$0xff] %v4568
        %4594 = vst [vmem:[%s5 + $0x50] sm:$0xff] %v4569
        %4595 = vst [vmem:[%s5 + $0x58] sm:$0xff] %v4570
        %4596 = vst [vmem:[%s5 + $0x60] sm:$0xff] %v4571
        %4597 = vst [vmem:[%s5 + $0x68] sm:$0xff] %v4572
        %4598 = vst [vmem:[%s5 + $0x70] sm:$0xff] %v4573
        %4599 = vst [vmem:[%s5 + $0x78] sm:$0xff] %v4574
        %4600 = vst [vmem:[%s5 + $0x80] sm:$0xff] %v4575
        %4601 = vst [vmem:[%s5 + $0x88] sm:$0xff] %v4576
        %4602 = vst [vmem:[%s5 + $0x90] sm:$0xff] %v4577
        %4603 = vst [vmem:[%s5 + $0x98] sm:$0xff] %v4578
        %4604 = vst [vmem:[%s5 + $0xa0] sm:$0xff] %v4579
        %4605 = vst [vmem:[%s5 + $0xa8] sm:$0xff] %v4580
        %4606 = vst [vmem:[%s5 + $0xb0] sm:$0xff] %v4581
        %4607 = vst [vmem:[%s5 + $0xb8] sm:$0xff] %v4582
        %4608 = vst [vmem:[%s5 + $0xc0] sm:$0xff] %v4583
      $region48: #{decoder_forward.4} parent=39 // pred_fallthru
        _
      // Predicated region
      $region49: #{decoder_forward.4} parent=39 // pred_check
        %p4609 = pneg %p139
      $region50: #{decoder_forward.4} parent=39 // pred_check_branch
        %4611 = sbr.rel (%p4609) target = $region52
      $region51: #{decoder_forward.4} parent=39 // pred_region
        _
      $region52: #{decoder_forward.4} parent=39 // pred_fallthru
        _
      // Predicated region
      $region53: #{decoder_forward.4} parent=39 // pred_check
        %p4612 = pneg %p139
      $region54: #{decoder_forward.4} parent=39 // pred_check_branch
        %4614 = sbr.rel (%p4612) target = $region56
      $region55: #{decoder_forward.4} parent=39 // pred_region
        _
      $region56: #{decoder_forward.4} parent=39 // pred_fallthru
        _
    $region40: #{decoder_forward.4} parent=5 // pred_fallthru
      _
    %p4615 = scmp.le.s32.totalorder 2, %s11
    // Predicated region
    $region57: #{decoder_forward.4} parent=5 // pred_check
      %p4616 = pneg %p4615
    $region58: #{decoder_forward.4} parent=5 // pred_check_branch
      %4618 = sbr.rel (%p4616) target = $region60
    $region59: #{decoder_forward.4} parent=5 // pred_region
      %s4619 = ssub.s32 %s11, 2
    $region60: #{decoder_forward.4} parent=5 // pred_fallthru
      _
  $region6: #{decoder_forward.4} parent=0 // loop_footer
    %s15 = sadd.s32 1, %s11
  $region7: #{decoder_forward.4} parent=0 // loop_footer_branch
    %10 = sbr.rel target = $region3
  $region8: #{decoder_forward.4} parent=0 // loop_exit
    _

// kernel: decoder_forward.6
$region0: #{decoder_forward.6}
  #allocation0 [shape = 'u32[]', space=smem, size = 0x4, offset = 0x4, fixed_abs, tag = 'smem constant byte address 0x4 - core index']
  #allocation1 [shape = 'u32[144,128]{1,0:T(1,128)}', space=vmem, size = 0x12000, scoped, tag = 'internal scratch']
  %s0 = inlined_call_operand.vmem [shape: f32[344,64], index: 0, kind: input, shape index: {}]
  %s1 = inlined_call_operand.vmem [shape: f32[64,1152], index: 1, kind: input, shape index: {}]
  %s2 = inlined_call_operand.vmem [shape: f32[344,1152], index: 2, kind: output, shape index: {}]
  %s3 = sld [smem:[#allocation0]]
  $region18: #{decoder_forward.6} parent=0
    _
  %s5 = ssub.s32 1, %s3
  %s6 = scalar_select 0, %s5, %s3
  // Predicated region
  $region2: #{decoder_forward.6} parent=0 // pred_check
    _
  $region3: #{decoder_forward.6} parent=0 // pred_check_branch
    %8 = sbr.rel (0) target = $region5
  $region4: #{decoder_forward.6} parent=0 // pred_region
    _
  $region5: #{decoder_forward.6} parent=0 // pred_fallthru
    _
  // Predicated region
  $region6: #{decoder_forward.6} parent=0 // pred_check
    _
  $region7: #{decoder_forward.6} parent=0 // pred_check_branch
    %10 = sbr.rel (0) target = $region9
  $region8: #{decoder_forward.6} parent=0 // pred_region
    _
  $region9: #{decoder_forward.6} parent=0 // pred_fallthru
    _
  %v11 = vld [vmem:[%s0] sm:$0xff]
  %v12 = vld [vmem:[%s0 + $0x8] sm:$0xff]
  %v13 = vld [vmem:[%s0 + $0x10] sm:$0xff]
  %v14 = vld [vmem:[%s0 + $0x18] sm:$0xff]
  %v15 = vld [vmem:[%s0 + $0x20] sm:$0xff]
  %v16 = vld [vmem:[%s0 + $0x28] sm:$0xff]
  %v17 = vld [vmem:[%s0 + $0x30] sm:$0xff]
  %v18 = vld [vmem:[%s0 + $0x38] sm:$0xff]
  %v19 = vld [vmem:[%s0 + $0x40] sm:$0xff]
  %v20 = vld [vmem:[%s0 + $0x48] sm:$0xff]
  %v21 = vld [vmem:[%s0 + $0x50] sm:$0xff]
  %v22 = vld [vmem:[%s0 + $0x58] sm:$0xff]
  %v23 = vld [vmem:[%s0 + $0x60] sm:$0xff]
  %v24 = vld [vmem:[%s0 + $0x68] sm:$0xff]
  %v25 = vld [vmem:[%s0 + $0x70] sm:$0xff]
  %v26 = vld [vmem:[%s0 + $0x78] sm:$0xff]
  %v27 = vld [vmem:[%s0 + $0x80] sm:$0xff]
  %v28 = vld [vmem:[%s0 + $0x88] sm:$0xff]
  %v29 = vld [vmem:[%s0 + $0x90] sm:$0xff]
  %v30 = vld [vmem:[%s0 + $0x98] sm:$0xff]
  %v31 = vld [vmem:[%s0 + $0xa0] sm:$0xff]
  %v32 = vld [vmem:[%s0 + $0xa8] sm:$0xff]
  %v33 = vld [vmem:[%s0 + $0xb0] sm:$0xff]
  %v34 = vld [vmem:[%s0 + $0xb8] sm:$0xff]
  %v35 = vld [vmem:[%s0 + $0xc0] sm:$0xff]
  %v36 = vld [vmem:[%s0 + $0xc8] sm:$0xff]
  %v37 = vld [vmem:[%s0 + $0xd0] sm:$0xff]
  %v38 = vld [vmem:[%s0 + $0xd8] sm:$0xff]
  %v39 = vld [vmem:[%s0 + $0xe0] sm:$0xff]
  %v40 = vld [vmem:[%s0 + $0xe8] sm:$0xff]
  %v41 = vld [vmem:[%s0 + $0xf0] sm:$0xff]
  %v42 = vld [vmem:[%s0 + $0xf8] sm:$0xff]
  %v43 = vld [vmem:[%s0 + $0x100] sm:$0xff]
  %v44 = vld [vmem:[%s0 + $0x108] sm:$0xff]
  %v45 = vld [vmem:[%s0 + $0x110] sm:$0xff]
  %v46 = vld [vmem:[%s0 + $0x118] sm:$0xff]
  %v47 = vld [vmem:[%s0 + $0x120] sm:$0xff]
  %v48 = vld [vmem:[%s0 + $0x128] sm:$0xff]
  %v49 = vld [vmem:[%s0 + $0x130] sm:$0xff]
  %v50 = vld [vmem:[%s0 + $0x138] sm:$0xff]
  %v51 = vld [vmem:[%s0 + $0x140] sm:$0xff]
  %v52 = vld [vmem:[%s0 + $0x148] sm:$0xff]
  %v53 = vld [vmem:[%s0 + $0x150] sm:$0xff]
  %v54 = vld [vmem:[%s1] sm:$0xff]
  %v55 = vld [vmem:[%s1 + $0x8] sm:$0xff]
  %v56 = vld [vmem:[%s1 + $0x10] sm:$0xff]
  %v57 = vld [vmem:[%s1 + $0x18] sm:$0xff]
  %v58 = vld [vmem:[%s1 + $0x20] sm:$0xff]
  %v59 = vld [vmem:[%s1 + $0x28] sm:$0xff]
  %v60 = vld [vmem:[%s1 + $0x30] sm:$0xff]
  %v61 = vld [vmem:[%s1 + $0x38] sm:$0xff]
  %v62 = vld [vmem:[%s1 + $0x40] sm:$0xff]
  %v63 = vld [vmem:[%s1 + $0x48] sm:$0xff]
  %v64 = vld [vmem:[%s1 + $0x50] sm:$0xff]
  %v65 = vld [vmem:[%s1 + $0x58] sm:$0xff]
  %v66 = vld [vmem:[%s1 + $0x60] sm:$0xff]
  %v67 = vld [vmem:[%s1 + $0x68] sm:$0xff]
  %v68 = vld [vmem:[%s1 + $0x70] sm:$0xff]
  %v69 = vld [vmem:[%s1 + $0x78] sm:$0xff]
  %v70 = vld [vmem:[%s1 + $0x80] sm:$0xff]
  %v71 = vld [vmem:[%s1 + $0x88] sm:$0xff]
  %v72 = vld [vmem:[%s1 + $0x90] sm:$0xff]
  %v73 = vld [vmem:[%s1 + $0x98] sm:$0xff]
  %v74 = vld [vmem:[%s1 + $0xa0] sm:$0xff]
  %v75 = vld [vmem:[%s1 + $0xa8] sm:$0xff]
  %v76 = vld [vmem:[%s1 + $0xb0] sm:$0xff]
  %v77 = vld [vmem:[%s1 + $0xb8] sm:$0xff]
  %v78 = vld [vmem:[%s1 + $0xc0] sm:$0xff]
  %v79 = vld [vmem:[%s1 + $0xc8] sm:$0xff]
  %v80 = vld [vmem:[%s1 + $0xd0] sm:$0xff]
  %v81 = vld [vmem:[%s1 + $0xd8] sm:$0xff]
  %v82 = vld [vmem:[%s1 + $0xe0] sm:$0xff]
  %v83 = vld [vmem:[%s1 + $0xe8] sm:$0xff]
  %v84 = vld [vmem:[%s1 + $0xf0] sm:$0xff]
  %v85 = vld [vmem:[%s1 + $0xf8] sm:$0xff]
  %v86 = vld [vmem:[%s1 + $0x100] sm:$0xff]
  %v87 = vld [vmem:[%s1 + $0x108] sm:$0xff]
  %v88 = vld [vmem:[%s1 + $0x110] sm:$0xff]
  %v89 = vld [vmem:[%s1 + $0x118] sm:$0xff]
  %v90 = vld [vmem:[%s1 + $0x120] sm:$0xff]
  %v91 = vld [vmem:[%s1 + $0x128] sm:$0xff]
  %v92 = vld [vmem:[%s1 + $0x130] sm:$0xff]
  %v93 = vld [vmem:[%s1 + $0x138] sm:$0xff]
  %v94 = vld [vmem:[%s1 + $0x140] sm:$0xff]
  %v95 = vld [vmem:[%s1 + $0x148] sm:$0xff]
  %v96 = vld [vmem:[%s1 + $0x150] sm:$0xff]
  %v97 = vld [vmem:[%s1 + $0x158] sm:$0xff]
  %v98 = vld [vmem:[%s1 + $0x160] sm:$0xff]
  %v99 = vld [vmem:[%s1 + $0x168] sm:$0xff]
  %v100 = vld [vmem:[%s1 + $0x170] sm:$0xff]
  %v101 = vld [vmem:[%s1 + $0x178] sm:$0xff]
  %v102 = vld [vmem:[%s1 + $0x180] sm:$0xff]
  %v103 = vld [vmem:[%s1 + $0x188] sm:$0xff]
  %v104 = vld [vmem:[%s1 + $0x190] sm:$0xff]
  %v105 = vld [vmem:[%s1 + $0x198] sm:$0xff]
  %v106 = vld [vmem:[%s1 + $0x1a0] sm:$0xff]
  %v107 = vld [vmem:[%s1 + $0x1a8] sm:$0xff]
  %v108 = vld [vmem:[%s1 + $0x1b0] sm:$0xff]
  %v109 = vld [vmem:[%s1 + $0x1b8] sm:$0xff]
  %v110 = vld [vmem:[%s1 + $0x1c0] sm:$0xff]
  %v111 = vld [vmem:[%s1 + $0x1c8] sm:$0xff]
  %v112 = vld [vmem:[%s1 + $0x1d0] sm:$0xff]
  %v113 = vld [vmem:[%s1 + $0x1d8] sm:$0xff]
  %v114 = vld [vmem:[%s1 + $0x1e0] sm:$0xff]
  %v115 = vld [vmem:[%s1 + $0x1e8] sm:$0xff]
  %v116 = vld [vmem:[%s1 + $0x1f0] sm:$0xff]
  %v117 = vld [vmem:[%s1 + $0x1f8] sm:$0xff]
  %v118 = vld [vmem:[%s1 + $0x200] sm:$0xff]
  %v119 = vld [vmem:[%s1 + $0x208] sm:$0xff]
  %v120 = vld [vmem:[%s1 + $0x210] sm:$0xff]
  %v121 = vld [vmem:[%s1 + $0x218] sm:$0xff]
  %v122 = vld [vmem:[%s1 + $0x220] sm:$0xff]
  %v123 = vld [vmem:[%s1 + $0x228] sm:$0xff]
  %v124 = vld [vmem:[%s1 + $0x230] sm:$0xff]
  %v125 = vld [vmem:[%s1 + $0x238] sm:$0xff]
  %vm126 = vcmask 523264
  %v128 = vsel %vm126, %v11, 0
  %v131 = vsel %vm126, %v12, 0
  %v134 = vsel %vm126, %v13, 0
  %v137 = vsel %vm126, %v14, 0
  %v140 = vsel %vm126, %v15, 0
  %v143 = vsel %vm126, %v16, 0
  %v146 = vsel %vm126, %v17, 0
  %v149 = vsel %vm126, %v18, 0
  %v152 = vsel %vm126, %v19, 0
  %v155 = vsel %vm126, %v20, 0
  %v158 = vsel %vm126, %v21, 0
  %v161 = vsel %vm126, %v22, 0
  %v164 = vsel %vm126, %v23, 0
  %v167 = vsel %vm126, %v24, 0
  %v170 = vsel %vm126, %v25, 0
  %v173 = vsel %vm126, %v26, 0
  %v176 = vsel %vm126, %v27, 0
  %v179 = vsel %vm126, %v28, 0
  %v182 = vsel %vm126, %v29, 0
  %v185 = vsel %vm126, %v30, 0
  %v188 = vsel %vm126, %v31, 0
  %v191 = vsel %vm126, %v32, 0
  %v194 = vsel %vm126, %v33, 0
  %v197 = vsel %vm126, %v34, 0
  %v200 = vsel %vm126, %v35, 0
  %v203 = vsel %vm126, %v36, 0
  %v206 = vsel %vm126, %v37, 0
  %v209 = vsel %vm126, %v38, 0
  %v212 = vsel %vm126, %v39, 0
  %v215 = vsel %vm126, %v40, 0
  %v218 = vsel %vm126, %v41, 0
  %v221 = vsel %vm126, %v42, 0
  %v224 = vsel %vm126, %v43, 0
  %v227 = vsel %vm126, %v44, 0
  %v230 = vsel %vm126, %v45, 0
  %v233 = vsel %vm126, %v46, 0
  %v236 = vsel %vm126, %v47, 0
  %v239 = vsel %vm126, %v48, 0
  %v242 = vsel %vm126, %v49, 0
  %v245 = vsel %vm126, %v50, 0
  %v248 = vsel %vm126, %v51, 0
  %v251 = vsel %vm126, %v52, 0
  %v254 = vsel %vm126, %v53, 0
  %256 = vmatprep.subr.mxu0 %v55
  %257 = vmatpush1.msra.mxu0 %v54
  %258 = vmatprep.subr.mxu0 %v64
  %259 = vmatpush1.msra.mxu0 %v63
  %260 = vmatprep.subr.mxu0 %v73
  %261 = vmatpush1.msra.mxu0 %v72
  %262 = vmatprep.subr.mxu0 %v82
  %263 = vmatpush1.msra.mxu0 %v81
  %264 = vmatprep.subr.mxu0 %v91
  %265 = vmatpush1.msra.mxu0 %v90
  %266 = vmatprep.subr.mxu0 %v100
  %267 = vmatpush1.msra.mxu0 %v99
  %268 = vmatprep.subr.mxu0 %v109
  %269 = vmatpush1.msra.mxu0 %v108
  %270 = vmatprep.subr.mxu0 %v118
  %271 = vmatpush1.msra.mxu0 %v117
  %272 = vmatprep.subr.mxu0 0.0
  %273 = vmatpush1.msra.mxu0 0.0
  %274 = vmatprep.subr.mxu0 0.0
  %275 = vmatpush1.msra.mxu0 0.0
  %276 = vmatprep.subr.mxu0 0.0
  %277 = vmatpush1.msra.mxu0 0.0
  %278 = vmatprep.subr.mxu0 0.0
  %279 = vmatpush1.msra.mxu0 0.0
  %280 = vmatprep.subr.mxu0 0.0
  %281 = vmatpush1.msra.mxu0 0.0
  %282 = vmatprep.subr.mxu0 0.0
  %283 = vmatpush1.msra.mxu0 0.0
  %284 = vmatprep.subr.mxu0 0.0
  %285 = vmatpush1.msra.mxu0 0.0
  %286 = vmatprep.subr.mxu0 0.0
  %287 = vmatpush1.msra.mxu0 0.0
  %288 = vmatprep.subr.mxu0 0.0
  %289 = vmatpush1.msra.mxu0 0.0
  %290 = vmatprep.subr.mxu0 0.0
  %291 = vmatpush1.msra.mxu0 0.0
  %292 = vmatprep.subr.mxu0 0.0
  %293 = vmatpush1.msra.mxu0 0.0
  %294 = vmatprep.subr.mxu0 0.0
  %295 = vmatpush1.msra.mxu0 0.0
  %296 = vmatprep.subr.mxu0 0.0
  %297 = vmatpush1.msra.mxu0 0.0
  %298 = vmatprep.subr.mxu0 0.0
  %299 = vmatpush1.msra.mxu0 0.0
  %300 = vmatprep.subr.mxu0 0.0
  %301 = vmatpush1.msra.mxu0 0.0
  %302 = vmatprep.subr.mxu0 0.0
  %303 = vmatpush1.msra.mxu0 0.0
  %304 = vmatprep.subr.mxu0 0.0
  %305 = vmatpush1.msra.mxu0 0.0
  %306 = vmatprep.subr.mxu0 0.0
  %307 = vmatpush1.msra.mxu0 0.0
  %308 = vmatprep.subr.mxu0 0.0
  %309 = vmatpush1.msra.mxu0 0.0
  %310 = vmatprep.subr.mxu0 0.0
  %311 = vmatpush1.msra.mxu0 0.0
  %312 = vmatprep.subr.mxu0 0.0
  %313 = vmatpush1.msra.mxu0 0.0
  %314 = vmatprep.subr.mxu0 0.0
  %315 = vmatpush1.msra.mxu0 0.0
  %316 = vmatprep.subr.mxu0 0.0
  %317 = vmatpush1.msra.mxu0 0.0
  %318 = vmatprep.subr.mxu0 0.0
  %319 = vmatpush1.msra.mxu0 0.0
  %320 = vmatprep.mubr.f32.mxu0 0.0
  %321 = vmatmul.mubr.f32.gmra.mrb[0].mxu0 %v128
  %v322 = vpop.f32.mrb[0].mxu0
  %v323 = vadd.f32 0.0, %v322
  %v324 = vpop.f32.mrb[0].mxu0
  %v325 = vadd.f32 0.0, %v324
  %326 = vmatprep.mubr.f32.mxu0 0.0
  %327 = vmatmul.mubr.f32.gmra.mrb[0].mxu0 %v131
  %v328 = vpop.f32.mrb[0].mxu0
  %v329 = vadd.f32 0.0, %v328
  %v330 = vpop.f32.mrb[0].mxu0
  %v331 = vadd.f32 0.0, %v330
  %332 = vmatprep.mubr.f32.mxu0 0.0
  %333 = vmatmul.mubr.f32.gmra.mrb[0].mxu0 %v134
  %v334 = vpop.f32.mrb[0].mxu0
  %v335 = vadd.f32 0.0, %v334
  %v336 = vpop.f32.mrb[0].mxu0
  %v337 = vadd.f32 0.0, %v336
  %338 = vmatprep.mubr.f32.mxu0 0.0
  %339 = vmatmul.mubr.f32.gmra.mrb[0].mxu0 %v137
  %v340 = vpop.f32.mrb[0].mxu0
  %v341 = vadd.f32 0.0, %v340
  %v342 = vpop.f32.mrb[0].mxu0
  %v343 = vadd.f32 0.0, %v342
  %344 = vmatprep.mubr.f32.mxu0 0.0
  %345 = vmatmul.mubr.f32.gmra.mrb[0].mxu0 %v140
  %v346 = vpop.f32.mrb[0].mxu0
  %v347 = vadd.f32 0.0, %v346
  %v348 = vpop.f32.mrb[0].mxu0
  %v349 = vadd.f32 0.0, %v348
  %350 = vmatprep.mubr.f32.mxu0 0.0
  %351 = vmatmul.mubr.f32.gmra.mrb[0].mxu0 %v143
  %v352 = vpop.f32.mrb[0].mxu0
  %v353 = vadd.f32 0.0, %v352
  %v354 = vpop.f32.mrb[0].mxu0
  %v355 = vadd.f32 0.0, %v354
  %356 = vmatprep.mubr.f32.mxu0 0.0
  %357 = vmatmul.mubr.f32.gmra.mrb[0].mxu0 %v146
  %v358 = vpop.f32.mrb[0].mxu0
  %v359 = vadd.f32 0.0, %v358
  %v360 = vpop.f32.mrb[0].mxu0
  %v361 = vadd.f32 0.0, %v360
  %362 = vmatprep.mubr.f32.mxu0 0.0
  %363 = vmatmul.mubr.f32.gmra.mrb[0].mxu0 %v149
  %v364 = vpop.f32.mrb[0].mxu0
  %v365 = vadd.f32 0.0, %v364
  %v366 = vpop.f32.mrb[0].mxu0
  %v367 = vadd.f32 0.0, %v366
  %368 = vmatprep.mubr.f32.mxu0 0.0
  %369 = vmatmul.mubr.f32.gmra.mrb[0].mxu0 %v152
  %v370 = vpop.f32.mrb[0].mxu0
  %v371 = vadd.f32 0.0, %v370
  %v372 = vpop.f32.mrb[0].mxu0
  %v373 = vadd.f32 0.0, %v372
  %374 = vmatprep.mubr.f32.mxu0 0.0
  %375 = vmatmul.mubr.f32.gmra.mrb[0].mxu0 %v155
  %v376 = vpop.f32.mrb[0].mxu0
  %v377 = vadd.f32 0.0, %v376
  %v378 = vpop.f32.mrb[0].mxu0
  %v379 = vadd.f32 0.0, %v378
  %380 = vmatprep.mubr.f32.mxu0 0.0
  %381 = vmatmul.mubr.f32.gmra.mrb[0].mxu0 %v158
  %v382 = vpop.f32.mrb[0].mxu0
  %v383 = vadd.f32 0.0, %v382
  %v384 = vpop.f32.mrb[0].mxu0
  %v385 = vadd.f32 0.0, %v384
  %386 = vmatprep.mubr.f32.mxu0 0.0
  %387 = vmatmul.mubr.f32.gmra.mrb[0].mxu0 %v161
  %v388 = vpop.f32.mrb[0].mxu0
  %v389 = vadd.f32 0.0, %v388
  %v390 = vpop.f32.mrb[0].mxu0
  %v391 = vadd.f32 0.0, %v390
  %392 = vmatprep.mubr.f32.mxu0 0.0
  %393 = vmatmul.mubr.f32.gmra.mrb[0].mxu0 %v164
  %v394 = vpop.f32.mrb[0].mxu0
  %v395 = vadd.f32 0.0, %v394
  %v396 = vpop.f32.mrb[0].mxu0
  %v397 = vadd.f32 0.0, %v396
  %398 = vmatprep.mubr.f32.mxu0 0.0
  %399 = vmatmul.mubr.f32.gmra.mrb[0].mxu0 %v167
  %v400 = vpop.f32.mrb[0].mxu0
  %v401 = vadd.f32 0.0, %v400
  %v402 = vpop.f32.mrb[0].mxu0
  %v403 = vadd.f32 0.0, %v402
  %404 = vmatprep.mubr.f32.mxu0 0.0
  %405 = vmatmul.mubr.f32.gmra.mrb[0].mxu0 %v170
  %v406 = vpop.f32.mrb[0].mxu0
  %v407 = vadd.f32 0.0, %v406
  %v408 = vpop.f32.mrb[0].mxu0
  %v409 = vadd.f32 0.0, %v408
  %410 = vmatprep.mubr.f32.mxu0 0.0
  %411 = vmatmul.mubr.f32.gmra.mrb[0].mxu0 %v173
  %v412 = vpop.f32.mrb[0].mxu0
  %v413 = vadd.f32 0.0, %v412
  %v414 = vpop.f32.mrb[0].mxu0
  %v415 = vadd.f32 0.0, %v414
  %416 = vmatprep.mubr.f32.mxu0 0.0
  %417 = vmatmul.mubr.f32.gmra.mrb[0].mxu0 %v176
  %v418 = vpop.f32.mrb[0].mxu0
  %v419 = vadd.f32 0.0, %v418
  %v420 = vpop.f32.mrb[0].mxu0
  %v421 = vadd.f32 0.0, %v420
  %422 = vmatprep.mubr.f32.mxu0 0.0
  %423 = vmatmul.mubr.f32.gmra.mrb[0].mxu0 %v179
  %v424 = vpop.f32.mrb[0].mxu0
  %v425 = vadd.f32 0.0, %v424
  %v426 = vpop.f32.mrb[0].mxu0
  %v427 = vadd.f32 0.0, %v426
  %428 = vmatprep.mubr.f32.mxu0 0.0
  %429 = vmatmul.mubr.f32.gmra.mrb[0].mxu0 %v182
  %v430 = vpop.f32.mrb[0].mxu0
  %v431 = vadd.f32 0.0, %v430
  %v432 = vpop.f32.mrb[0].mxu0
  %v433 = vadd.f32 0.0, %v432
  %434 = vmatprep.mubr.f32.mxu0 0.0
  %435 = vmatmul.mubr.f32.gmra.mrb[0].mxu0 %v185
  %v436 = vpop.f32.mrb[0].mxu0
  %v437 = vadd.f32 0.0, %v436
  %v438 = vpop.f32.mrb[0].mxu0
  %v439 = vadd.f32 0.0, %v438
  %440 = vmatprep.mubr.f32.mxu0 0.0
  %441 = vmatmul.mubr.f32.gmra.mrb[0].mxu0 %v188
  %v442 = vpop.f32.mrb[0].mxu0
  %v443 = vadd.f32 0.0, %v442
  %v444 = vpop.f32.mrb[0].mxu0
  %v445 = vadd.f32 0.0, %v444
  %446 = vmatprep.mubr.f32.mxu0 0.0
  %447 = vmatmul.mubr.f32.gmra.mrb[0].mxu0 %v191
  %v448 = vpop.f32.mrb[0].mxu0
  %v449 = vadd.f32 0.0, %v448
  %v450 = vpop.f32.mrb[0].mxu0
  %v451 = vadd.f32 0.0, %v450
  %452 = vmatprep.mubr.f32.mxu0 0.0
  %453 = vmatmul.mubr.f32.gmra.mrb[0].mxu0 %v194
  %v454 = vpop.f32.mrb[0].mxu0
  %v455 = vadd.f32 0.0, %v454
  %v456 = vpop.f32.mrb[0].mxu0
  %v457 = vadd.f32 0.0, %v456
  %458 = vmatprep.mubr.f32.mxu0 0.0
  %459 = vmatmul.mubr.f32.gmra.mrb[0].mxu0 %v197
  %v460 = vpop.f32.mrb[0].mxu0
  %v461 = vadd.f32 0.0, %v460
  %v462 = vpop.f32.mrb[0].mxu0
  %v463 = vadd.f32 0.0, %v462
  %464 = vmatprep.mubr.f32.mxu0 0.0
  %465 = vmatmul.mubr.f32.gmra.mrb[0].mxu0 %v200
  %v466 = vpop.f32.mrb[0].mxu0
  %v467 = vadd.f32 0.0, %v466
  %v468 = vpop.f32.mrb[0].mxu0
  %v469 = vadd.f32 0.0, %v468
  %470 = vmatprep.mubr.f32.mxu0 0.0
  %471 = vmatmul.mubr.f32.gmra.mrb[0].mxu0 %v203
  %v472 = vpop.f32.mrb[0].mxu0
  %v473 = vadd.f32 0.0, %v472
  %v474 = vpop.f32.mrb[0].mxu0
  %v475 = vadd.f32 0.0, %v474
  %476 = vmatprep.mubr.f32.mxu0 0.0
  %477 = vmatmul.mubr.f32.gmra.mrb[0].mxu0 %v206
  %v478 = vpop.f32.mrb[0].mxu0
  %v479 = vadd.f32 0.0, %v478
  %v480 = vpop.f32.mrb[0].mxu0
  %v481 = vadd.f32 0.0, %v480
  %482 = vmatprep.mubr.f32.mxu0 0.0
  %483 = vmatmul.mubr.f32.gmra.mrb[0].mxu0 %v209
  %v484 = vpop.f32.mrb[0].mxu0
  %v485 = vadd.f32 0.0, %v484
  %v486 = vpop.f32.mrb[0].mxu0
  %v487 = vadd.f32 0.0, %v486
  %488 = vmatprep.mubr.f32.mxu0 0.0
  %489 = vmatmul.mubr.f32.gmra.mrb[0].mxu0 %v212
  %v490 = vpop.f32.mrb[0].mxu0
  %v491 = vadd.f32 0.0, %v490
  %v492 = vpop.f32.mrb[0].mxu0
  %v493 = vadd.f32 0.0, %v492
  %494 = vmatprep.mubr.f32.mxu0 0.0
  %495 = vmatmul.mubr.f32.gmra.mrb[0].mxu0 %v215
  %v496 = vpop.f32.mrb[0].mxu0
  %v497 = vadd.f32 0.0, %v496
  %v498 = vpop.f32.mrb[0].mxu0
  %v499 = vadd.f32 0.0, %v498
  %500 = vmatprep.mubr.f32.mxu0 0.0
  %501 = vmatmul.mubr.f32.gmra.mrb[0].mxu0 %v218
  %v502 = vpop.f32.mrb[0].mxu0
  %v503 = vadd.f32 0.0, %v502
  %v504 = vpop.f32.mrb[0].mxu0
  %v505 = vadd.f32 0.0, %v504
  %506 = vmatprep.mubr.f32.mxu0 0.0
  %507 = vmatmul.mubr.f32.gmra.mrb[0].mxu0 %v221
  %v508 = vpop.f32.mrb[0].mxu0
  %v509 = vadd.f32 0.0, %v508
  %v510 = vpop.f32.mrb[0].mxu0
  %v511 = vadd.f32 0.0, %v510
  %512 = vmatprep.mubr.f32.mxu0 0.0
  %513 = vmatmul.mubr.f32.gmra.mrb[0].mxu0 %v224
  %v514 = vpop.f32.mrb[0].mxu0
  %v515 = vadd.f32 0.0, %v514
  %v516 = vpop.f32.mrb[0].mxu0
  %v517 = vadd.f32 0.0, %v516
  %518 = vmatprep.mubr.f32.mxu0 0.0
  %519 = vmatmul.mubr.f32.gmra.mrb[0].mxu0 %v227
  %v520 = vpop.f32.mrb[0].mxu0
  %v521 = vadd.f32 0.0, %v520
  %v522 = vpop.f32.mrb[0].mxu0
  %v523 = vadd.f32 0.0, %v522
  %524 = vmatprep.mubr.f32.mxu0 0.0
  %525 = vmatmul.mubr.f32.gmra.mrb[0].mxu0 %v230
  %v526 = vpop.f32.mrb[0].mxu0
  %v527 = vadd.f32 0.0, %v526
  %v528 = vpop.f32.mrb[0].mxu0
  %v529 = vadd.f32 0.0, %v528
  %530 = vmatprep.mubr.f32.mxu0 0.0
  %531 = vmatmul.mubr.f32.gmra.mrb[0].mxu0 %v233
  %v532 = vpop.f32.mrb[0].mxu0
  %v533 = vadd.f32 0.0, %v532
  %v534 = vpop.f32.mrb[0].mxu0
  %v535 = vadd.f32 0.0, %v534
  %536 = vmatprep.mubr.f32.mxu0 0.0
  %537 = vmatmul.mubr.f32.gmra.mrb[0].mxu0 %v236
  %v538 = vpop.f32.mrb[0].mxu0
  %v539 = vadd.f32 0.0, %v538
  %v540 = vpop.f32.mrb[0].mxu0
  %v541 = vadd.f32 0.0, %v540
  %542 = vmatprep.mubr.f32.mxu0 0.0
  %543 = vmatmul.mubr.f32.gmra.mrb[0].mxu0 %v239
  %v544 = vpop.f32.mrb[0].mxu0
  %v545 = vadd.f32 0.0, %v544
  %v546 = vpop.f32.mrb[0].mxu0
  %v547 = vadd.f32 0.0, %v546
  %548 = vmatprep.mubr.f32.mxu0 0.0
  %549 = vmatmul.mubr.f32.gmra.mrb[0].mxu0 %v242
  %v550 = vpop.f32.mrb[0].mxu0
  %v551 = vadd.f32 0.0, %v550
  %v552 = vpop.f32.mrb[0].mxu0
  %v553 = vadd.f32 0.0, %v552
  %554 = vmatprep.mubr.f32.mxu0 0.0
  %555 = vmatmul.mubr.f32.gmra.mrb[0].mxu0 %v245
  %v556 = vpop.f32.mrb[0].mxu0
  %v557 = vadd.f32 0.0, %v556
  %v558 = vpop.f32.mrb[0].mxu0
  %v559 = vadd.f32 0.0, %v558
  %560 = vmatprep.mubr.f32.mxu0 0.0
  %561 = vmatmul.mubr.f32.gmra.mrb[0].mxu0 %v248
  %v562 = vpop.f32.mrb[0].mxu0
  %v563 = vadd.f32 0.0, %v562
  %v564 = vpop.f32.mrb[0].mxu0
  %v565 = vadd.f32 0.0, %v564
  %566 = vmatprep.mubr.f32.mxu0 0.0
  %567 = vmatmul.mubr.f32.gmra.mrb[0].mxu0 %v251
  %v568 = vpop.f32.mrb[0].mxu0
  %v569 = vadd.f32 0.0, %v568
  %v570 = vpop.f32.mrb[0].mxu0
  %v571 = vadd.f32 0.0, %v570
  %572 = vmatprep.mubr.f32.mxu0 0.0
  %573 = vmatmul.mubr.f32.gmra.mrb[0].mxu0 %v254
  %v574 = vpop.f32.mrb[0].mxu0
  %v575 = vadd.f32 0.0, %v574
  %v576 = vpop.f32.mrb[0].mxu0
  %v577 = vadd.f32 0.0, %v576
  %578 = vdwg.mxu0
  %579 = vmatprep.subr.mxu0 %v57
  %580 = vmatpush1.msra.mxu0 %v56
  %581 = vmatprep.subr.mxu0 %v66
  %582 = vmatpush1.msra.mxu0 %v65
  %583 = vmatprep.subr.mxu0 %v75
  %584 = vmatpush1.msra.mxu0 %v74
  %585 = vmatprep.subr.mxu0 %v84
  %586 = vmatpush1.msra.mxu0 %v83
  %587 = vmatprep.subr.mxu0 %v93
  %588 = vmatpush1.msra.mxu0 %v92
  %589 = vmatprep.subr.mxu0 %v102
  %590 = vmatpush1.msra.mxu0 %v101
  %591 = vmatprep.subr.mxu0 %v111
  %592 = vmatpush1.msra.mxu0 %v110
  %593 = vmatprep.subr.mxu0 %v120
  %594 = vmatpush1.msra.mxu0 %v119
  %595 = vmatprep.subr.mxu0 0.0
  %596 = vmatpush1.msra.mxu0 0.0
  %597 = vmatprep.subr.mxu0 0.0
  %598 = vmatpush1.msra.mxu0 0.0
  %599 = vmatprep.subr.mxu0 0.0
  %600 = vmatpush1.msra.mxu0 0.0
  %601 = vmatprep.subr.mxu0 0.0
  %602 = vmatpush1.msra.mxu0 0.0
  %603 = vmatprep.subr.mxu0 0.0
  %604 = vmatpush1.msra.mxu0 0.0
  %605 = vmatprep.subr.mxu0 0.0
  %606 = vmatpush1.msra.mxu0 0.0
  %607 = vmatprep.subr.mxu0 0.0
  %608 = vmatpush1.msra.mxu0 0.0
  %609 = vmatprep.subr.mxu0 0.0
  %610 = vmatpush1.msra.mxu0 0.0
  %611 = vmatprep.subr.mxu0 0.0
  %612 = vmatpush1.msra.mxu0 0.0
  %613 = vmatprep.subr.mxu0 0.0
  %614 = vmatpush1.msra.mxu0 0.0
  %615 = vmatprep.subr.mxu0 0.0
  %616 = vmatpush1.msra.mxu0 0.0
  %617 = vmatprep.subr.mxu0 0.0
  %618 = vmatpush1.msra.mxu0 0.0
  %619 = vmatprep.subr.mxu0 0.0
  %620 = vmatpush1.msra.mxu0 0.0
  %621 = vmatprep.subr.mxu0 0.0
  %622 = vmatpush1.msra.mxu0 0.0
  %623 = vmatprep.subr.mxu0 0.0
  %624 = vmatpush1.msra.mxu0 0.0
  %625 = vmatprep.subr.mxu0 0.0
  %626 = vmatpush1.msra.mxu0 0.0
  %627 = vmatprep.subr.mxu0 0.0
  %628 = vmatpush1.msra.mxu0 0.0
  %629 = vmatprep.subr.mxu0 0.0
  %630 = vmatpush1.msra.mxu0 0.0
  %631 = vmatprep.subr.mxu0 0.0
  %632 = vmatpush1.msra.mxu0 0.0
  %633 = vmatprep.subr.mxu0 0.0
  %634 = vmatpush1.msra.mxu0 0.0
  %635 = vmatprep.subr.mxu0 0.0
  %636 = vmatpush1.msra.mxu0 0.0
  %637 = vmatprep.subr.mxu0 0.0
  %638 = vmatpush1.msra.mxu0 0.0
  %639 = vmatprep.subr.mxu0 0.0
  %640 = vmatpush1.msra.mxu0 0.0
  %641 = vmatprep.subr.mxu0 0.0
  %642 = vmatpush1.msra.mxu0 0.0
  %643 = vmatprep.mubr.f32.mxu0 0.0
  %644 = vmatmul.mubr.f32.gmra.mrb[0].mxu0 %v128
  %v645 = vpop.f32.mrb[0].mxu0
  %v646 = vadd.f32 0.0, %v645
  %v647 = vpop.f32.mrb[0].mxu0
  %v648 = vadd.f32 0.0, %v647
  %649 = vmatprep.mubr.f32.mxu0 0.0
  %650 = vmatmul.mubr.f32.gmra.mrb[0].mxu0 %v131
  %v651 = vpop.f32.mrb[0].mxu0
  %v652 = vadd.f32 0.0, %v651
  %v653 = vpop.f32.mrb[0].mxu0
  %v654 = vadd.f32 0.0, %v653
  %655 = vmatprep.mubr.f32.mxu0 0.0
  %656 = vmatmul.mubr.f32.gmra.mrb[0].mxu0 %v134
  %v657 = vpop.f32.mrb[0].mxu0
  %v658 = vadd.f32 0.0, %v657
  %v659 = vpop.f32.mrb[0].mxu0
  %v660 = vadd.f32 0.0, %v659
  %661 = vmatprep.mubr.f32.mxu0 0.0
  %662 = vmatmul.mubr.f32.gmra.mrb[0].mxu0 %v137
  %v663 = vpop.f32.mrb[0].mxu0
  %v664 = vadd.f32 0.0, %v663
  %v665 = vpop.f32.mrb[0].mxu0
  %v666 = vadd.f32 0.0, %v665
  %667 = vmatprep.mubr.f32.mxu0 0.0
  %668 = vmatmul.mubr.f32.gmra.mrb[0].mxu0 %v140
  %v669 = vpop.f32.mrb[0].mxu0
  %v670 = vadd.f32 0.0, %v669
  %v671 = vpop.f32.mrb[0].mxu0
  %v672 = vadd.f32 0.0, %v671
  %673 = vmatprep.mubr.f32.mxu0 0.0
  %674 = vmatmul.mubr.f32.gmra.mrb[0].mxu0 %v143
  %v675 = vpop.f32.mrb[0].mxu0
  %v676 = vadd.f32 0.0, %v675
  %v677 = vpop.f32.mrb[0].mxu0
  %v678 = vadd.f32 0.0, %v677
  %679 = vmatprep.mubr.f32.mxu0 0.0
  %680 = vmatmul.mubr.f32.gmra.mrb[0].mxu0 %v146
  %v681 = vpop.f32.mrb[0].mxu0
  %v682 = vadd.f32 0.0, %v681
  %v683 = vpop.f32.mrb[0].mxu0
  %v684 = vadd.f32 0.0, %v683
  %685 = vmatprep.mubr.f32.mxu0 0.0
  %686 = vmatmul.mubr.f32.gmra.mrb[0].mxu0 %v149
  %v687 = vpop.f32.mrb[0].mxu0
  %v688 = vadd.f32 0.0, %v687
  %v689 = vpop.f32.mrb[0].mxu0
  %v690 = vadd.f32 0.0, %v689
  %691 = vmatprep.mubr.f32.mxu0 0.0
  %692 = vmatmul.mubr.f32.gmra.mrb[0].mxu0 %v152
  %v693 = vpop.f32.mrb[0].mxu0
  %v694 = vadd.f32 0.0, %v693
  %v695 = vpop.f32.mrb[0].mxu0
  %v696 = vadd.f32 0.0, %v695
  %697 = vmatprep.mubr.f32.mxu0 0.0
  %698 = vmatmul.mubr.f32.gmra.mrb[0].mxu0 %v155
  %v699 = vpop.f32.mrb[0].mxu0
  %v700 = vadd.f32 0.0, %v699
  %v701 = vpop.f32.mrb[0].mxu0
  %v702 = vadd.f32 0.0, %v701
  %703 = vmatprep.mubr.f32.mxu0 0.0
  %704 = vmatmul.mubr.f32.gmra.mrb[0].mxu0 %v158
  %v705 = vpop.f32.mrb[0].mxu0
  %v706 = vadd.f32 0.0, %v705
  %v707 = vpop.f32.mrb[0].mxu0
  %v708 = vadd.f32 0.0, %v707
  %709 = vmatprep.mubr.f32.mxu0 0.0
  %710 = vmatmul.mubr.f32.gmra.mrb[0].mxu0 %v161
  %v711 = vpop.f32.mrb[0].mxu0
  %v712 = vadd.f32 0.0, %v711
  %v713 = vpop.f32.mrb[0].mxu0
  %v714 = vadd.f32 0.0, %v713
  %715 = vmatprep.mubr.f32.mxu0 0.0
  %716 = vmatmul.mubr.f32.gmra.mrb[0].mxu0 %v164
  %v717 = vpop.f32.mrb[0].mxu0
  %v718 = vadd.f32 0.0, %v717
  %v719 = vpop.f32.mrb[0].mxu0
  %v720 = vadd.f32 0.0, %v719
  %721 = vmatprep.mubr.f32.mxu0 0.0
  %722 = vmatmul.mubr.f32.gmra.mrb[0].mxu0 %v167
  %v723 = vpop.f32.mrb[0].mxu0
  %v724 = vadd.f32 0.0, %v723
  %v725 = vpop.f32.mrb[0].mxu0
  %v726 = vadd.f32 0.0, %v725
  %727 = vmatprep.mubr.f32.mxu0 0.0
  %728 = vmatmul.mubr.f32.gmra.mrb[0].mxu0 %v170
  %v729 = vpop.f32.mrb[0].mxu0
  %v730 = vadd.f32 0.0, %v729
  %v731 = vpop.f32.mrb[0].mxu0
  %v732 = vadd.f32 0.0, %v731
  %733 = vmatprep.mubr.f32.mxu0 0.0
  %734 = vmatmul.mubr.f32.gmra.mrb[0].mxu0 %v173
  %v735 = vpop.f32.mrb[0].mxu0
  %v736 = vadd.f32 0.0, %v735
  %v737 = vpop.f32.mrb[0].mxu0
  %v738 = vadd.f32 0.0, %v737
  %739 = vmatprep.mubr.f32.mxu0 0.0
  %740 = vmatmul.mubr.f32.gmra.mrb[0].mxu0 %v176
  %v741 = vpop.f32.mrb[0].mxu0
  %v742 = vadd.f32 0.0, %v741
  %v743 = vpop.f32.mrb[0].mxu0
  %v744 = vadd.f32 0.0, %v743
  %745 = vmatprep.mubr.f32.mxu0 0.0
  %746 = vmatmul.mubr.f32.gmra.mrb[0].mxu0 %v179
  %v747 = vpop.f32.mrb[0].mxu0
  %v748 = vadd.f32 0.0, %v747
  %v749 = vpop.f32.mrb[0].mxu0
  %v750 = vadd.f32 0.0, %v749
  %751 = vmatprep.mubr.f32.mxu0 0.0
  %752 = vmatmul.mubr.f32.gmra.mrb[0].mxu0 %v182
  %v753 = vpop.f32.mrb[0].mxu0
  %v754 = vadd.f32 0.0, %v753
  %v755 = vpop.f32.mrb[0].mxu0
  %v756 = vadd.f32 0.0, %v755
  %757 = vmatprep.mubr.f32.mxu0 0.0
  %758 = vmatmul.mubr.f32.gmra.mrb[0].mxu0 %v185
  %v759 = vpop.f32.mrb[0].mxu0
  %v760 = vadd.f32 0.0, %v759
  %v761 = vpop.f32.mrb[0].mxu0
  %v762 = vadd.f32 0.0, %v761
  %763 = vmatprep.mubr.f32.mxu0 0.0
  %764 = vmatmul.mubr.f32.gmra.mrb[0].mxu0 %v188
  %v765 = vpop.f32.mrb[0].mxu0
  %v766 = vadd.f32 0.0, %v765
  %v767 = vpop.f32.mrb[0].mxu0
  %v768 = vadd.f32 0.0, %v767
  %769 = vmatprep.mubr.f32.mxu0 0.0
  %770 = vmatmul.mubr.f32.gmra.mrb[0].mxu0 %v191
  %v771 = vpop.f32.mrb[0].mxu0
  %v772 = vadd.f32 0.0, %v771
  %v773 = vpop.f32.mrb[0].mxu0
  %v774 = vadd.f32 0.0, %v773
  %775 = vmatprep.mubr.f32.mxu0 0.0
  %776 = vmatmul.mubr.f32.gmra.mrb[0].mxu0 %v194
  %v777 = vpop.f32.mrb[0].mxu0
  %v778 = vadd.f32 0.0, %v777
  %v779 = vpop.f32.mrb[0].mxu0
  %v780 = vadd.f32 0.0, %v779
  %781 = vmatprep.mubr.f32.mxu0 0.0
  %782 = vmatmul.mubr.f32.gmra.mrb[0].mxu0 %v197
  %v783 = vpop.f32.mrb[0].mxu0
  %v784 = vadd.f32 0.0, %v783
  %v785 = vpop.f32.mrb[0].mxu0
  %v786 = vadd.f32 0.0, %v785
  %787 = vmatprep.mubr.f32.mxu0 0.0
  %788 = vmatmul.mubr.f32.gmra.mrb[0].mxu0 %v200
  %v789 = vpop.f32.mrb[0].mxu0
  %v790 = vadd.f32 0.0, %v789
  %v791 = vpop.f32.mrb[0].mxu0
  %v792 = vadd.f32 0.0, %v791
  %793 = vmatprep.mubr.f32.mxu0 0.0
  %794 = vmatmul.mubr.f32.gmra.mrb[0].mxu0 %v203
  %v795 = vpop.f32.mrb[0].mxu0
  %v796 = vadd.f32 0.0, %v795
  %v797 = vpop.f32.mrb[0].mxu0
  %v798 = vadd.f32 0.0, %v797
  %799 = vmatprep.mubr.f32.mxu0 0.0
  %800 = vmatmul.mubr.f32.gmra.mrb[0].mxu0 %v206
  %v801 = vpop.f32.mrb[0].mxu0
  %v802 = vadd.f32 0.0, %v801
  %v803 = vpop.f32.mrb[0].mxu0
  %v804 = vadd.f32 0.0, %v803
  %805 = vmatprep.mubr.f32.mxu0 0.0
  %806 = vmatmul.mubr.f32.gmra.mrb[0].mxu0 %v209
  %v807 = vpop.f32.mrb[0].mxu0
  %v808 = vadd.f32 0.0, %v807
  %v809 = vpop.f32.mrb[0].mxu0
  %v810 = vadd.f32 0.0, %v809
  %811 = vmatprep.mubr.f32.mxu0 0.0
  %812 = vmatmul.mubr.f32.gmra.mrb[0].mxu0 %v212
  %v813 = vpop.f32.mrb[0].mxu0
  %v814 = vadd.f32 0.0, %v813
  %v815 = vpop.f32.mrb[0].mxu0
  %v816 = vadd.f32 0.0, %v815
  %817 = vmatprep.mubr.f32.mxu0 0.0
  %818 = vmatmul.mubr.f32.gmra.mrb[0].mxu0 %v215
  %v819 = vpop.f32.mrb[0].mxu0
  %v820 = vadd.f32 0.0, %v819
  %v821 = vpop.f32.mrb[0].mxu0
  %v822 = vadd.f32 0.0, %v821
  %823 = vmatprep.mubr.f32.mxu0 0.0
  %824 = vmatmul.mubr.f32.gmra.mrb[0].mxu0 %v218
  %v825 = vpop.f32.mrb[0].mxu0
  %v826 = vadd.f32 0.0, %v825
  %v827 = vpop.f32.mrb[0].mxu0
  %v828 = vadd.f32 0.0, %v827
  %829 = vmatprep.mubr.f32.mxu0 0.0
  %830 = vmatmul.mubr.f32.gmra.mrb[0].mxu0 %v221
  %v831 = vpop.f32.mrb[0].mxu0
  %v832 = vadd.f32 0.0, %v831
  %v833 = vpop.f32.mrb[0].mxu0
  %v834 = vadd.f32 0.0, %v833
  %835 = vmatprep.mubr.f32.mxu0 0.0
  %836 = vmatmul.mubr.f32.gmra.mrb[0].mxu0 %v224
  %v837 = vpop.f32.mrb[0].mxu0
  %v838 = vadd.f32 0.0, %v837
  %v839 = vpop.f32.mrb[0].mxu0
  %v840 = vadd.f32 0.0, %v839
  %841 = vmatprep.mubr.f32.mxu0 0.0
  %842 = vmatmul.mubr.f32.gmra.mrb[0].mxu0 %v227
  %v843 = vpop.f32.mrb[0].mxu0
  %v844 = vadd.f32 0.0, %v843
  %v845 = vpop.f32.mrb[0].mxu0
  %v846 = vadd.f32 0.0, %v845
  %847 = vmatprep.mubr.f32.mxu0 0.0
  %848 = vmatmul.mubr.f32.gmra.mrb[0].mxu0 %v230
  %v849 = vpop.f32.mrb[0].mxu0
  %v850 = vadd.f32 0.0, %v849
  %v851 = vpop.f32.mrb[0].mxu0
  %v852 = vadd.f32 0.0, %v851
  %853 = vmatprep.mubr.f32.mxu0 0.0
  %854 = vmatmul.mubr.f32.gmra.mrb[0].mxu0 %v233
  %v855 = vpop.f32.mrb[0].mxu0
  %v856 = vadd.f32 0.0, %v855
  %v857 = vpop.f32.mrb[0].mxu0
  %v858 = vadd.f32 0.0, %v857
  %859 = vmatprep.mubr.f32.mxu0 0.0
  %860 = vmatmul.mubr.f32.gmra.mrb[0].mxu0 %v236
  %v861 = vpop.f32.mrb[0].mxu0
  %v862 = vadd.f32 0.0, %v861
  %v863 = vpop.f32.mrb[0].mxu0
  %v864 = vadd.f32 0.0, %v863
  %865 = vmatprep.mubr.f32.mxu0 0.0
  %866 = vmatmul.mubr.f32.gmra.mrb[0].mxu0 %v239
  %v867 = vpop.f32.mrb[0].mxu0
  %v868 = vadd.f32 0.0, %v867
  %v869 = vpop.f32.mrb[0].mxu0
  %v870 = vadd.f32 0.0, %v869
  %871 = vmatprep.mubr.f32.mxu0 0.0
  %872 = vmatmul.mubr.f32.gmra.mrb[0].mxu0 %v242
  %v873 = vpop.f32.mrb[0].mxu0
  %v874 = vadd.f32 0.0, %v873
  %v875 = vpop.f32.mrb[0].mxu0
  %v876 = vadd.f32 0.0, %v875
  %877 = vmatprep.mubr.f32.mxu0 0.0
  %878 = vmatmul.mubr.f32.gmra.mrb[0].mxu0 %v245
  %v879 = vpop.f32.mrb[0].mxu0
  %v880 = vadd.f32 0.0, %v879
  %v881 = vpop.f32.mrb[0].mxu0
  %v882 = vadd.f32 0.0, %v881
  %883 = vmatprep.mubr.f32.mxu0 0.0
  %884 = vmatmul.mubr.f32.gmra.mrb[0].mxu0 %v248
  %v885 = vpop.f32.mrb[0].mxu0
  %v886 = vadd.f32 0.0, %v885
  %v887 = vpop.f32.mrb[0].mxu0
  %v888 = vadd.f32 0.0, %v887
  %889 = vmatprep.mubr.f32.mxu0 0.0
  %890 = vmatmul.mubr.f32.gmra.mrb[0].mxu0 %v251
  %v891 = vpop.f32.mrb[0].mxu0
  %v892 = vadd.f32 0.0, %v891
  %v893 = vpop.f32.mrb[0].mxu0
  %v894 = vadd.f32 0.0, %v893
  %895 = vmatprep.mubr.f32.mxu0 0.0
  %896 = vmatmul.mubr.f32.gmra.mrb[0].mxu0 %v254
  %v897 = vpop.f32.mrb[0].mxu0
  %v898 = vadd.f32 0.0, %v897
  %v899 = vpop.f32.mrb[0].mxu0
  %v900 = vadd.f32 0.0, %v899
  %901 = vdwg.mxu0
  %902 = vmatprep.subr.mxu0 %v59
  %903 = vmatpush1.msra.mxu0 %v58
  %904 = vmatprep.subr.mxu0 %v68
  %905 = vmatpush1.msra.mxu0 %v67
  %906 = vmatprep.subr.mxu0 %v77
  %907 = vmatpush1.msra.mxu0 %v76
  %908 = vmatprep.subr.mxu0 %v86
  %909 = vmatpush1.msra.mxu0 %v85
  %910 = vmatprep.subr.mxu0 %v95
  %911 = vmatpush1.msra.mxu0 %v94
  %912 = vmatprep.subr.mxu0 %v104
  %913 = vmatpush1.msra.mxu0 %v103
  %914 = vmatprep.subr.mxu0 %v113
  %915 = vmatpush1.msra.mxu0 %v112
  %916 = vmatprep.subr.mxu0 %v122
  %917 = vmatpush1.msra.mxu0 %v121
  %918 = vmatprep.subr.mxu0 0.0
  %919 = vmatpush1.msra.mxu0 0.0
  %920 = vmatprep.subr.mxu0 0.0
  %921 = vmatpush1.msra.mxu0 0.0
  %922 = vmatprep.subr.mxu0 0.0
  %923 = vmatpush1.msra.mxu0 0.0
  %924 = vmatprep.subr.mxu0 0.0
  %925 = vmatpush1.msra.mxu0 0.0
  %926 = vmatprep.subr.mxu0 0.0
  %927 = vmatpush1.msra.mxu0 0.0
  %928 = vmatprep.subr.mxu0 0.0
  %929 = vmatpush1.msra.mxu0 0.0
  %930 = vmatprep.subr.mxu0 0.0
  %931 = vmatpush1.msra.mxu0 0.0
  %932 = vmatprep.subr.mxu0 0.0
  %933 = vmatpush1.msra.mxu0 0.0
  %934 = vmatprep.subr.mxu0 0.0
  %935 = vmatpush1.msra.mxu0 0.0
  %936 = vmatprep.subr.mxu0 0.0
  %937 = vmatpush1.msra.mxu0 0.0
  %938 = vmatprep.subr.mxu0 0.0
  %939 = vmatpush1.msra.mxu0 0.0
  %940 = vmatprep.subr.mxu0 0.0
  %941 = vmatpush1.msra.mxu0 0.0
  %942 = vmatprep.subr.mxu0 0.0
  %943 = vmatpush1.msra.mxu0 0.0
  %944 = vmatprep.subr.mxu0 0.0
  %945 = vmatpush1.msra.mxu0 0.0
  %946 = vmatprep.subr.mxu0 0.0
  %947 = vmatpush1.msra.mxu0 0.0
  %948 = vmatprep.subr.mxu0 0.0
  %949 = vmatpush1.msra.mxu0 0.0
  %950 = vmatprep.subr.mxu0 0.0
  %951 = vmatpush1.msra.mxu0 0.0
  %952 = vmatprep.subr.mxu0 0.0
  %953 = vmatpush1.msra.mxu0 0.0
  %954 = vmatprep.subr.mxu0 0.0
  %955 = vmatpush1.msra.mxu0 0.0
  %956 = vmatprep.subr.mxu0 0.0
  %957 = vmatpush1.msra.mxu0 0.0
  %958 = vmatprep.subr.mxu0 0.0
  %959 = vmatpush1.msra.mxu0 0.0
  %960 = vmatprep.subr.mxu0 0.0
  %961 = vmatpush1.msra.mxu0 0.0
  %962 = vmatprep.subr.mxu0 0.0
  %963 = vmatpush1.msra.mxu0 0.0
  %964 = vmatprep.subr.mxu0 0.0
  %965 = vmatpush1.msra.mxu0 0.0
  %966 = vmatprep.mubr.f32.mxu0 0.0
  %967 = vmatmul.mubr.f32.gmra.mrb[0].mxu0 %v128
  %v968 = vpop.f32.mrb[0].mxu0
  %v969 = vadd.f32 0.0, %v968
  %v970 = vpop.f32.mrb[0].mxu0
  %v971 = vadd.f32 0.0, %v970
  %972 = vmatprep.mubr.f32.mxu0 0.0
  %973 = vmatmul.mubr.f32.gmra.mrb[0].mxu0 %v131
  %v974 = vpop.f32.mrb[0].mxu0
  %v975 = vadd.f32 0.0, %v974
  %v976 = vpop.f32.mrb[0].mxu0
  %v977 = vadd.f32 0.0, %v976
  %978 = vmatprep.mubr.f32.mxu0 0.0
  %979 = vmatmul.mubr.f32.gmra.mrb[0].mxu0 %v134
  %v980 = vpop.f32.mrb[0].mxu0
  %v981 = vadd.f32 0.0, %v980
  %v982 = vpop.f32.mrb[0].mxu0
  %v983 = vadd.f32 0.0, %v982
  %984 = vmatprep.mubr.f32.mxu0 0.0
  %985 = vmatmul.mubr.f32.gmra.mrb[0].mxu0 %v137
  %v986 = vpop.f32.mrb[0].mxu0
  %v987 = vadd.f32 0.0, %v986
  %v988 = vpop.f32.mrb[0].mxu0
  %v989 = vadd.f32 0.0, %v988
  %990 = vmatprep.mubr.f32.mxu0 0.0
  %991 = vmatmul.mubr.f32.gmra.mrb[0].mxu0 %v140
  %v992 = vpop.f32.mrb[0].mxu0
  %v993 = vadd.f32 0.0, %v992
  %v994 = vpop.f32.mrb[0].mxu0
  %v995 = vadd.f32 0.0, %v994
  %996 = vmatprep.mubr.f32.mxu0 0.0
  %997 = vmatmul.mubr.f32.gmra.mrb[0].mxu0 %v143
  %v998 = vpop.f32.mrb[0].mxu0
  %v999 = vadd.f32 0.0, %v998
  %v1000 = vpop.f32.mrb[0].mxu0
  %v1001 = vadd.f32 0.0, %v1000
  %1002 = vmatprep.mubr.f32.mxu0 0.0
  %1003 = vmatmul.mubr.f32.gmra.mrb[0].mxu0 %v146
  %v1004 = vpop.f32.mrb[0].mxu0
  %v1005 = vadd.f32 0.0, %v1004
  %v1006 = vpop.f32.mrb[0].mxu0
  %v1007 = vadd.f32 0.0, %v1006
  %1008 = vmatprep.mubr.f32.mxu0 0.0
  %1009 = vmatmul.mubr.f32.gmra.mrb[0].mxu0 %v149
  %v1010 = vpop.f32.mrb[0].mxu0
  %v1011 = vadd.f32 0.0, %v1010
  %v1012 = vpop.f32.mrb[0].mxu0
  %v1013 = vadd.f32 0.0, %v1012
  %1014 = vmatprep.mubr.f32.mxu0 0.0
  %1015 = vmatmul.mubr.f32.gmra.mrb[0].mxu0 %v152
  %v1016 = vpop.f32.mrb[0].mxu0
  %v1017 = vadd.f32 0.0, %v1016
  %v1018 = vpop.f32.mrb[0].mxu0
  %v1019 = vadd.f32 0.0, %v1018
  %1020 = vmatprep.mubr.f32.mxu0 0.0
  %1021 = vmatmul.mubr.f32.gmra.mrb[0].mxu0 %v155
  %v1022 = vpop.f32.mrb[0].mxu0
  %v1023 = vadd.f32 0.0, %v1022
  %v1024 = vpop.f32.mrb[0].mxu0
  %v1025 = vadd.f32 0.0, %v1024
  %1026 = vmatprep.mubr.f32.mxu0 0.0
  %1027 = vmatmul.mubr.f32.gmra.mrb[0].mxu0 %v158
  %v1028 = vpop.f32.mrb[0].mxu0
  %v1029 = vadd.f32 0.0, %v1028
  %v1030 = vpop.f32.mrb[0].mxu0
  %v1031 = vadd.f32 0.0, %v1030
  %1032 = vmatprep.mubr.f32.mxu0 0.0
  %1033 = vmatmul.mubr.f32.gmra.mrb[0].mxu0 %v161
  %v1034 = vpop.f32.mrb[0].mxu0
  %v1035 = vadd.f32 0.0, %v1034
  %v1036 = vpop.f32.mrb[0].mxu0
  %v1037 = vadd.f32 0.0, %v1036
  %1038 = vmatprep.mubr.f32.mxu0 0.0
  %1039 = vmatmul.mubr.f32.gmra.mrb[0].mxu0 %v164
  %v1040 = vpop.f32.mrb[0].mxu0
  %v1041 = vadd.f32 0.0, %v1040
  %v1042 = vpop.f32.mrb[0].mxu0
  %v1043 = vadd.f32 0.0, %v1042
  %1044 = vmatprep.mubr.f32.mxu0 0.0
  %1045 = vmatmul.mubr.f32.gmra.mrb[0].mxu0 %v167
  %v1046 = vpop.f32.mrb[0].mxu0
  %v1047 = vadd.f32 0.0, %v1046
  %v1048 = vpop.f32.mrb[0].mxu0
  %v1049 = vadd.f32 0.0, %v1048
  %1050 = vmatprep.mubr.f32.mxu0 0.0
  %1051 = vmatmul.mubr.f32.gmra.mrb[0].mxu0 %v170
  %v1052 = vpop.f32.mrb[0].mxu0
  %v1053 = vadd.f32 0.0, %v1052
  %v1054 = vpop.f32.mrb[0].mxu0
  %v1055 = vadd.f32 0.0, %v1054
  %1056 = vmatprep.mubr.f32.mxu0 0.0
  %1057 = vmatmul.mubr.f32.gmra.mrb[0].mxu0 %v173
  %v1058 = vpop.f32.mrb[0].mxu0
  %v1059 = vadd.f32 0.0, %v1058
  %v1060 = vpop.f32.mrb[0].mxu0
  %v1061 = vadd.f32 0.0, %v1060
  %1062 = vmatprep.mubr.f32.mxu0 0.0
  %1063 = vmatmul.mubr.f32.gmra.mrb[0].mxu0 %v176
  %v1064 = vpop.f32.mrb[0].mxu0
  %v1065 = vadd.f32 0.0, %v1064
  %v1066 = vpop.f32.mrb[0].mxu0
  %v1067 = vadd.f32 0.0, %v1066
  %1068 = vmatprep.mubr.f32.mxu0 0.0
  %1069 = vmatmul.mubr.f32.gmra.mrb[0].mxu0 %v179
  %v1070 = vpop.f32.mrb[0].mxu0
  %v1071 = vadd.f32 0.0, %v1070
  %v1072 = vpop.f32.mrb[0].mxu0
  %v1073 = vadd.f32 0.0, %v1072
  %1074 = vmatprep.mubr.f32.mxu0 0.0
  %1075 = vmatmul.mubr.f32.gmra.mrb[0].mxu0 %v182
  %v1076 = vpop.f32.mrb[0].mxu0
  %v1077 = vadd.f32 0.0, %v1076
  %v1078 = vpop.f32.mrb[0].mxu0
  %v1079 = vadd.f32 0.0, %v1078
  %1080 = vmatprep.mubr.f32.mxu0 0.0
  %1081 = vmatmul.mubr.f32.gmra.mrb[0].mxu0 %v185
  %v1082 = vpop.f32.mrb[0].mxu0
  %v1083 = vadd.f32 0.0, %v1082
  %v1084 = vpop.f32.mrb[0].mxu0
  %v1085 = vadd.f32 0.0, %v1084
  %1086 = vmatprep.mubr.f32.mxu0 0.0
  %1087 = vmatmul.mubr.f32.gmra.mrb[0].mxu0 %v188
  %v1088 = vpop.f32.mrb[0].mxu0
  %v1089 = vadd.f32 0.0, %v1088
  %v1090 = vpop.f32.mrb[0].mxu0
  %v1091 = vadd.f32 0.0, %v1090
  %1092 = vmatprep.mubr.f32.mxu0 0.0
  %1093 = vmatmul.mubr.f32.gmra.mrb[0].mxu0 %v191
  %v1094 = vpop.f32.mrb[0].mxu0
  %v1095 = vadd.f32 0.0, %v1094
  %v1096 = vpop.f32.mrb[0].mxu0
  %v1097 = vadd.f32 0.0, %v1096
  %1098 = vmatprep.mubr.f32.mxu0 0.0
  %1099 = vmatmul.mubr.f32.gmra.mrb[0].mxu0 %v194
  %v1100 = vpop.f32.mrb[0].mxu0
  %v1101 = vadd.f32 0.0, %v1100
  %v1102 = vpop.f32.mrb[0].mxu0
  %v1103 = vadd.f32 0.0, %v1102
  %1104 = vmatprep.mubr.f32.mxu0 0.0
  %1105 = vmatmul.mubr.f32.gmra.mrb[0].mxu0 %v197
  %v1106 = vpop.f32.mrb[0].mxu0
  %v1107 = vadd.f32 0.0, %v1106
  %v1108 = vpop.f32.mrb[0].mxu0
  %v1109 = vadd.f32 0.0, %v1108
  %1110 = vmatprep.mubr.f32.mxu0 0.0
  %1111 = vmatmul.mubr.f32.gmra.mrb[0].mxu0 %v200
  %v1112 = vpop.f32.mrb[0].mxu0
  %v1113 = vadd.f32 0.0, %v1112
  %v1114 = vpop.f32.mrb[0].mxu0
  %v1115 = vadd.f32 0.0, %v1114
  %1116 = vmatprep.mubr.f32.mxu0 0.0
  %1117 = vmatmul.mubr.f32.gmra.mrb[0].mxu0 %v203
  %v1118 = vpop.f32.mrb[0].mxu0
  %v1119 = vadd.f32 0.0, %v1118
  %v1120 = vpop.f32.mrb[0].mxu0
  %v1121 = vadd.f32 0.0, %v1120
  %1122 = vmatprep.mubr.f32.mxu0 0.0
  %1123 = vmatmul.mubr.f32.gmra.mrb[0].mxu0 %v206
  %v1124 = vpop.f32.mrb[0].mxu0
  %v1125 = vadd.f32 0.0, %v1124
  %v1126 = vpop.f32.mrb[0].mxu0
  %v1127 = vadd.f32 0.0, %v1126
  %1128 = vmatprep.mubr.f32.mxu0 0.0
  %1129 = vmatmul.mubr.f32.gmra.mrb[0].mxu0 %v209
  %v1130 = vpop.f32.mrb[0].mxu0
  %v1131 = vadd.f32 0.0, %v1130
  %v1132 = vpop.f32.mrb[0].mxu0
  %v1133 = vadd.f32 0.0, %v1132
  %1134 = vmatprep.mubr.f32.mxu0 0.0
  %1135 = vmatmul.mubr.f32.gmra.mrb[0].mxu0 %v212
  %v1136 = vpop.f32.mrb[0].mxu0
  %v1137 = vadd.f32 0.0, %v1136
  %v1138 = vpop.f32.mrb[0].mxu0
  %v1139 = vadd.f32 0.0, %v1138
  %1140 = vmatprep.mubr.f32.mxu0 0.0
  %1141 = vmatmul.mubr.f32.gmra.mrb[0].mxu0 %v215
  %v1142 = vpop.f32.mrb[0].mxu0
  %v1143 = vadd.f32 0.0, %v1142
  %v1144 = vpop.f32.mrb[0].mxu0
  %v1145 = vadd.f32 0.0, %v1144
  %1146 = vmatprep.mubr.f32.mxu0 0.0
  %1147 = vmatmul.mubr.f32.gmra.mrb[0].mxu0 %v218
  %v1148 = vpop.f32.mrb[0].mxu0
  %v1149 = vadd.f32 0.0, %v1148
  %v1150 = vpop.f32.mrb[0].mxu0
  %v1151 = vadd.f32 0.0, %v1150
  %1152 = vmatprep.mubr.f32.mxu0 0.0
  %1153 = vmatmul.mubr.f32.gmra.mrb[0].mxu0 %v221
  %v1154 = vpop.f32.mrb[0].mxu0
  %v1155 = vadd.f32 0.0, %v1154
  %v1156 = vpop.f32.mrb[0].mxu0
  %v1157 = vadd.f32 0.0, %v1156
  %1158 = vmatprep.mubr.f32.mxu0 0.0
  %1159 = vmatmul.mubr.f32.gmra.mrb[0].mxu0 %v224
  %v1160 = vpop.f32.mrb[0].mxu0
  %v1161 = vadd.f32 0.0, %v1160
  %v1162 = vpop.f32.mrb[0].mxu0
  %v1163 = vadd.f32 0.0, %v1162
  %1164 = vmatprep.mubr.f32.mxu0 0.0
  %1165 = vmatmul.mubr.f32.gmra.mrb[0].mxu0 %v227
  %v1166 = vpop.f32.mrb[0].mxu0
  %v1167 = vadd.f32 0.0, %v1166
  %v1168 = vpop.f32.mrb[0].mxu0
  %v1169 = vadd.f32 0.0, %v1168
  %1170 = vmatprep.mubr.f32.mxu0 0.0
  %1171 = vmatmul.mubr.f32.gmra.mrb[0].mxu0 %v230
  %v1172 = vpop.f32.mrb[0].mxu0
  %v1173 = vadd.f32 0.0, %v1172
  %v1174 = vpop.f32.mrb[0].mxu0
  %v1175 = vadd.f32 0.0, %v1174
  %1176 = vmatprep.mubr.f32.mxu0 0.0
  %1177 = vmatmul.mubr.f32.gmra.mrb[0].mxu0 %v233
  %v1178 = vpop.f32.mrb[0].mxu0
  %v1179 = vadd.f32 0.0, %v1178
  %v1180 = vpop.f32.mrb[0].mxu0
  %v1181 = vadd.f32 0.0, %v1180
  %1182 = vmatprep.mubr.f32.mxu0 0.0
  %1183 = vmatmul.mubr.f32.gmra.mrb[0].mxu0 %v236
  %v1184 = vpop.f32.mrb[0].mxu0
  %v1185 = vadd.f32 0.0, %v1184
  %v1186 = vpop.f32.mrb[0].mxu0
  %v1187 = vadd.f32 0.0, %v1186
  %1188 = vmatprep.mubr.f32.mxu0 0.0
  %1189 = vmatmul.mubr.f32.gmra.mrb[0].mxu0 %v239
  %v1190 = vpop.f32.mrb[0].mxu0
  %v1191 = vadd.f32 0.0, %v1190
  %v1192 = vpop.f32.mrb[0].mxu0
  %v1193 = vadd.f32 0.0, %v1192
  %1194 = vmatprep.mubr.f32.mxu0 0.0
  %1195 = vmatmul.mubr.f32.gmra.mrb[0].mxu0 %v242
  %v1196 = vpop.f32.mrb[0].mxu0
  %v1197 = vadd.f32 0.0, %v1196
  %v1198 = vpop.f32.mrb[0].mxu0
  %v1199 = vadd.f32 0.0, %v1198
  %1200 = vmatprep.mubr.f32.mxu0 0.0
  %1201 = vmatmul.mubr.f32.gmra.mrb[0].mxu0 %v245
  %v1202 = vpop.f32.mrb[0].mxu0
  %v1203 = vadd.f32 0.0, %v1202
  %v1204 = vpop.f32.mrb[0].mxu0
  %v1205 = vadd.f32 0.0, %v1204
  %1206 = vmatprep.mubr.f32.mxu0 0.0
  %1207 = vmatmul.mubr.f32.gmra.mrb[0].mxu0 %v248
  %v1208 = vpop.f32.mrb[0].mxu0
  %v1209 = vadd.f32 0.0, %v1208
  %v1210 = vpop.f32.mrb[0].mxu0
  %v1211 = vadd.f32 0.0, %v1210
  %1212 = vmatprep.mubr.f32.mxu0 0.0
  %1213 = vmatmul.mubr.f32.gmra.mrb[0].mxu0 %v251
  %v1214 = vpop.f32.mrb[0].mxu0
  %v1215 = vadd.f32 0.0, %v1214
  %v1216 = vpop.f32.mrb[0].mxu0
  %v1217 = vadd.f32 0.0, %v1216
  %1218 = vmatprep.mubr.f32.mxu0 0.0
  %1219 = vmatmul.mubr.f32.gmra.mrb[0].mxu0 %v254
  %v1220 = vpop.f32.mrb[0].mxu0
  %v1221 = vadd.f32 0.0, %v1220
  %v1222 = vpop.f32.mrb[0].mxu0
  %v1223 = vadd.f32 0.0, %v1222
  %1224 = vdwg.mxu0
  %1225 = vmatprep.subr.mxu0 %v61
  %1226 = vmatpush1.msra.mxu0 %v60
  %1227 = vmatprep.subr.mxu0 %v70
  %1228 = vmatpush1.msra.mxu0 %v69
  %1229 = vmatprep.subr.mxu0 %v79
  %1230 = vmatpush1.msra.mxu0 %v78
  %1231 = vmatprep.subr.mxu0 %v88
  %1232 = vmatpush1.msra.mxu0 %v87
  %1233 = vmatprep.subr.mxu0 %v97
  %1234 = vmatpush1.msra.mxu0 %v96
  %1235 = vmatprep.subr.mxu0 %v106
  %1236 = vmatpush1.msra.mxu0 %v105
  %1237 = vmatprep.subr.mxu0 %v115
  %1238 = vmatpush1.msra.mxu0 %v114
  %1239 = vmatprep.subr.mxu0 %v124
  %1240 = vmatpush1.msra.mxu0 %v123
  %1241 = vmatprep.subr.mxu0 0.0
  %1242 = vmatpush1.msra.mxu0 0.0
  %1243 = vmatprep.subr.mxu0 0.0
  %1244 = vmatpush1.msra.mxu0 0.0
  %1245 = vmatprep.subr.mxu0 0.0
  %1246 = vmatpush1.msra.mxu0 0.0
  %1247 = vmatprep.subr.mxu0 0.0
  %1248 = vmatpush1.msra.mxu0 0.0
  %1249 = vmatprep.subr.mxu0 0.0
  %1250 = vmatpush1.msra.mxu0 0.0
  %1251 = vmatprep.subr.mxu0 0.0
  %1252 = vmatpush1.msra.mxu0 0.0
  %1253 = vmatprep.subr.mxu0 0.0
  %1254 = vmatpush1.msra.mxu0 0.0
  %1255 = vmatprep.subr.mxu0 0.0
  %1256 = vmatpush1.msra.mxu0 0.0
  %1257 = vmatprep.subr.mxu0 0.0
  %1258 = vmatpush1.msra.mxu0 0.0
  %1259 = vmatprep.subr.mxu0 0.0
  %1260 = vmatpush1.msra.mxu0 0.0
  %1261 = vmatprep.subr.mxu0 0.0
  %1262 = vmatpush1.msra.mxu0 0.0
  %1263 = vmatprep.subr.mxu0 0.0
  %1264 = vmatpush1.msra.mxu0 0.0
  %1265 = vmatprep.subr.mxu0 0.0
  %1266 = vmatpush1.msra.mxu0 0.0
  %1267 = vmatprep.subr.mxu0 0.0
  %1268 = vmatpush1.msra.mxu0 0.0
  %1269 = vmatprep.subr.mxu0 0.0
  %1270 = vmatpush1.msra.mxu0 0.0
  %1271 = vmatprep.subr.mxu0 0.0
  %1272 = vmatpush1.msra.mxu0 0.0
  %1273 = vmatprep.subr.mxu0 0.0
  %1274 = vmatpush1.msra.mxu0 0.0
  %1275 = vmatprep.subr.mxu0 0.0
  %1276 = vmatpush1.msra.mxu0 0.0
  %1277 = vmatprep.subr.mxu0 0.0
  %1278 = vmatpush1.msra.mxu0 0.0
  %1279 = vmatprep.subr.mxu0 0.0
  %1280 = vmatpush1.msra.mxu0 0.0
  %1281 = vmatprep.subr.mxu0 0.0
  %1282 = vmatpush1.msra.mxu0 0.0
  %1283 = vmatprep.subr.mxu0 0.0
  %1284 = vmatpush1.msra.mxu0 0.0
  %1285 = vmatprep.subr.mxu0 0.0
  %1286 = vmatpush1.msra.mxu0 0.0
  %1287 = vmatprep.subr.mxu0 0.0
  %1288 = vmatpush1.msra.mxu0 0.0
  %1289 = vmatprep.mubr.f32.mxu0 0.0
  %1290 = vmatmul.mubr.f32.gmra.mrb[0].mxu0 %v128
  %v1291 = vpop.f32.mrb[0].mxu0
  %v1292 = vadd.f32 0.0, %v1291
  %v1293 = vpop.f32.mrb[0].mxu0
  %v1294 = vadd.f32 0.0, %v1293
  %1295 = vmatprep.mubr.f32.mxu0 0.0
  %1296 = vmatmul.mubr.f32.gmra.mrb[0].mxu0 %v131
  %v1297 = vpop.f32.mrb[0].mxu0
  %v1298 = vadd.f32 0.0, %v1297
  %v1299 = vpop.f32.mrb[0].mxu0
  %v1300 = vadd.f32 0.0, %v1299
  %1301 = vmatprep.mubr.f32.mxu0 0.0
  %1302 = vmatmul.mubr.f32.gmra.mrb[0].mxu0 %v134
  %v1303 = vpop.f32.mrb[0].mxu0
  %v1304 = vadd.f32 0.0, %v1303
  %v1305 = vpop.f32.mrb[0].mxu0
  %v1306 = vadd.f32 0.0, %v1305
  %1307 = vmatprep.mubr.f32.mxu0 0.0
  %1308 = vmatmul.mubr.f32.gmra.mrb[0].mxu0 %v137
  %v1309 = vpop.f32.mrb[0].mxu0
  %v1310 = vadd.f32 0.0, %v1309
  %v1311 = vpop.f32.mrb[0].mxu0
  %v1312 = vadd.f32 0.0, %v1311
  %1313 = vmatprep.mubr.f32.mxu0 0.0
  %1314 = vmatmul.mubr.f32.gmra.mrb[0].mxu0 %v140
  %v1315 = vpop.f32.mrb[0].mxu0
  %v1316 = vadd.f32 0.0, %v1315
  %v1317 = vpop.f32.mrb[0].mxu0
  %v1318 = vadd.f32 0.0, %v1317
  %1319 = vmatprep.mubr.f32.mxu0 0.0
  %1320 = vmatmul.mubr.f32.gmra.mrb[0].mxu0 %v143
  %v1321 = vpop.f32.mrb[0].mxu0
  %v1322 = vadd.f32 0.0, %v1321
  %v1323 = vpop.f32.mrb[0].mxu0
  %v1324 = vadd.f32 0.0, %v1323
  %1325 = vmatprep.mubr.f32.mxu0 0.0
  %1326 = vmatmul.mubr.f32.gmra.mrb[0].mxu0 %v146
  %v1327 = vpop.f32.mrb[0].mxu0
  %v1328 = vadd.f32 0.0, %v1327
  %v1329 = vpop.f32.mrb[0].mxu0
  %v1330 = vadd.f32 0.0, %v1329
  %1331 = vmatprep.mubr.f32.mxu0 0.0
  %1332 = vmatmul.mubr.f32.gmra.mrb[0].mxu0 %v149
  %v1333 = vpop.f32.mrb[0].mxu0
  %v1334 = vadd.f32 0.0, %v1333
  %v1335 = vpop.f32.mrb[0].mxu0
  %v1336 = vadd.f32 0.0, %v1335
  %1337 = vmatprep.mubr.f32.mxu0 0.0
  %1338 = vmatmul.mubr.f32.gmra.mrb[0].mxu0 %v152
  %v1339 = vpop.f32.mrb[0].mxu0
  %v1340 = vadd.f32 0.0, %v1339
  %v1341 = vpop.f32.mrb[0].mxu0
  %v1342 = vadd.f32 0.0, %v1341
  %1343 = vmatprep.mubr.f32.mxu0 0.0
  %1344 = vmatmul.mubr.f32.gmra.mrb[0].mxu0 %v155
  %v1345 = vpop.f32.mrb[0].mxu0
  %v1346 = vadd.f32 0.0, %v1345
  %v1347 = vpop.f32.mrb[0].mxu0
  %v1348 = vadd.f32 0.0, %v1347
  %1349 = vmatprep.mubr.f32.mxu0 0.0
  %1350 = vmatmul.mubr.f32.gmra.mrb[0].mxu0 %v158
  %v1351 = vpop.f32.mrb[0].mxu0
  %v1352 = vadd.f32 0.0, %v1351
  %v1353 = vpop.f32.mrb[0].mxu0
  %v1354 = vadd.f32 0.0, %v1353
  %1355 = vmatprep.mubr.f32.mxu0 0.0
  %1356 = vmatmul.mubr.f32.gmra.mrb[0].mxu0 %v161
  %v1357 = vpop.f32.mrb[0].mxu0
  %v1358 = vadd.f32 0.0, %v1357
  %v1359 = vpop.f32.mrb[0].mxu0
  %v1360 = vadd.f32 0.0, %v1359
  %1361 = vmatprep.mubr.f32.mxu0 0.0
  %1362 = vmatmul.mubr.f32.gmra.mrb[0].mxu0 %v164
  %v1363 = vpop.f32.mrb[0].mxu0
  %v1364 = vadd.f32 0.0, %v1363
  %v1365 = vpop.f32.mrb[0].mxu0
  %v1366 = vadd.f32 0.0, %v1365
  %1367 = vmatprep.mubr.f32.mxu0 0.0
  %1368 = vmatmul.mubr.f32.gmra.mrb[0].mxu0 %v167
  %v1369 = vpop.f32.mrb[0].mxu0
  %v1370 = vadd.f32 0.0, %v1369
  %v1371 = vpop.f32.mrb[0].mxu0
  %v1372 = vadd.f32 0.0, %v1371
  %1373 = vmatprep.mubr.f32.mxu0 0.0
  %1374 = vmatmul.mubr.f32.gmra.mrb[0].mxu0 %v170
  %v1375 = vpop.f32.mrb[0].mxu0
  %v1376 = vadd.f32 0.0, %v1375
  %v1377 = vpop.f32.mrb[0].mxu0
  %v1378 = vadd.f32 0.0, %v1377
  %1379 = vmatprep.mubr.f32.mxu0 0.0
  %1380 = vmatmul.mubr.f32.gmra.mrb[0].mxu0 %v173
  %v1381 = vpop.f32.mrb[0].mxu0
  %v1382 = vadd.f32 0.0, %v1381
  %v1383 = vpop.f32.mrb[0].mxu0
  %v1384 = vadd.f32 0.0, %v1383
  %1385 = vmatprep.mubr.f32.mxu0 0.0
  %1386 = vmatmul.mubr.f32.gmra.mrb[0].mxu0 %v176
  %v1387 = vpop.f32.mrb[0].mxu0
  %v1388 = vadd.f32 0.0, %v1387
  %v1389 = vpop.f32.mrb[0].mxu0
  %v1390 = vadd.f32 0.0, %v1389
  %1391 = vmatprep.mubr.f32.mxu0 0.0
  %1392 = vmatmul.mubr.f32.gmra.mrb[0].mxu0 %v179
  %v1393 = vpop.f32.mrb[0].mxu0
  %v1394 = vadd.f32 0.0, %v1393
  %v1395 = vpop.f32.mrb[0].mxu0
  %v1396 = vadd.f32 0.0, %v1395
  %1397 = vmatprep.mubr.f32.mxu0 0.0
  %1398 = vmatmul.mubr.f32.gmra.mrb[0].mxu0 %v182
  %v1399 = vpop.f32.mrb[0].mxu0
  %v1400 = vadd.f32 0.0, %v1399
  %v1401 = vpop.f32.mrb[0].mxu0
  %v1402 = vadd.f32 0.0, %v1401
  %1403 = vmatprep.mubr.f32.mxu0 0.0
  %1404 = vmatmul.mubr.f32.gmra.mrb[0].mxu0 %v185
  %v1405 = vpop.f32.mrb[0].mxu0
  %v1406 = vadd.f32 0.0, %v1405
  %v1407 = vpop.f32.mrb[0].mxu0
  %v1408 = vadd.f32 0.0, %v1407
  %1409 = vmatprep.mubr.f32.mxu0 0.0
  %1410 = vmatmul.mubr.f32.gmra.mrb[0].mxu0 %v188
  %v1411 = vpop.f32.mrb[0].mxu0
  %v1412 = vadd.f32 0.0, %v1411
  %v1413 = vpop.f32.mrb[0].mxu0
  %v1414 = vadd.f32 0.0, %v1413
  %1415 = vmatprep.mubr.f32.mxu0 0.0
  %1416 = vmatmul.mubr.f32.gmra.mrb[0].mxu0 %v191
  %v1417 = vpop.f32.mrb[0].mxu0
  %v1418 = vadd.f32 0.0, %v1417
  %v1419 = vpop.f32.mrb[0].mxu0
  %v1420 = vadd.f32 0.0, %v1419
  %1421 = vmatprep.mubr.f32.mxu0 0.0
  %1422 = vmatmul.mubr.f32.gmra.mrb[0].mxu0 %v194
  %v1423 = vpop.f32.mrb[0].mxu0
  %v1424 = vadd.f32 0.0, %v1423
  %v1425 = vpop.f32.mrb[0].mxu0
  %v1426 = vadd.f32 0.0, %v1425
  %1427 = vmatprep.mubr.f32.mxu0 0.0
  %1428 = vmatmul.mubr.f32.gmra.mrb[0].mxu0 %v197
  %v1429 = vpop.f32.mrb[0].mxu0
  %v1430 = vadd.f32 0.0, %v1429
  %v1431 = vpop.f32.mrb[0].mxu0
  %v1432 = vadd.f32 0.0, %v1431
  %1433 = vmatprep.mubr.f32.mxu0 0.0
  %1434 = vmatmul.mubr.f32.gmra.mrb[0].mxu0 %v200
  %v1435 = vpop.f32.mrb[0].mxu0
  %v1436 = vadd.f32 0.0, %v1435
  %v1437 = vpop.f32.mrb[0].mxu0
  %v1438 = vadd.f32 0.0, %v1437
  %1439 = vmatprep.mubr.f32.mxu0 0.0
  %1440 = vmatmul.mubr.f32.gmra.mrb[0].mxu0 %v203
  %v1441 = vpop.f32.mrb[0].mxu0
  %v1442 = vadd.f32 0.0, %v1441
  %v1443 = vpop.f32.mrb[0].mxu0
  %v1444 = vadd.f32 0.0, %v1443
  %1445 = vmatprep.mubr.f32.mxu0 0.0
  %1446 = vmatmul.mubr.f32.gmra.mrb[0].mxu0 %v206
  %v1447 = vpop.f32.mrb[0].mxu0
  %v1448 = vadd.f32 0.0, %v1447
  %v1449 = vpop.f32.mrb[0].mxu0
  %v1450 = vadd.f32 0.0, %v1449
  %1451 = vmatprep.mubr.f32.mxu0 0.0
  %1452 = vmatmul.mubr.f32.gmra.mrb[0].mxu0 %v209
  %v1453 = vpop.f32.mrb[0].mxu0
  %v1454 = vadd.f32 0.0, %v1453
  %v1455 = vpop.f32.mrb[0].mxu0
  %v1456 = vadd.f32 0.0, %v1455
  %1457 = vmatprep.mubr.f32.mxu0 0.0
  %1458 = vmatmul.mubr.f32.gmra.mrb[0].mxu0 %v212
  %v1459 = vpop.f32.mrb[0].mxu0
  %v1460 = vadd.f32 0.0, %v1459
  %v1461 = vpop.f32.mrb[0].mxu0
  %v1462 = vadd.f32 0.0, %v1461
  %1463 = vmatprep.mubr.f32.mxu0 0.0
  %1464 = vmatmul.mubr.f32.gmra.mrb[0].mxu0 %v215
  %v1465 = vpop.f32.mrb[0].mxu0
  %v1466 = vadd.f32 0.0, %v1465
  %v1467 = vpop.f32.mrb[0].mxu0
  %v1468 = vadd.f32 0.0, %v1467
  %1469 = vmatprep.mubr.f32.mxu0 0.0
  %1470 = vmatmul.mubr.f32.gmra.mrb[0].mxu0 %v218
  %v1471 = vpop.f32.mrb[0].mxu0
  %v1472 = vadd.f32 0.0, %v1471
  %v1473 = vpop.f32.mrb[0].mxu0
  %v1474 = vadd.f32 0.0, %v1473
  %1475 = vmatprep.mubr.f32.mxu0 0.0
  %1476 = vmatmul.mubr.f32.gmra.mrb[0].mxu0 %v221
  %v1477 = vpop.f32.mrb[0].mxu0
  %v1478 = vadd.f32 0.0, %v1477
  %v1479 = vpop.f32.mrb[0].mxu0
  %v1480 = vadd.f32 0.0, %v1479
  %1481 = vmatprep.mubr.f32.mxu0 0.0
  %1482 = vmatmul.mubr.f32.gmra.mrb[0].mxu0 %v224
  %v1483 = vpop.f32.mrb[0].mxu0
  %v1484 = vadd.f32 0.0, %v1483
  %v1485 = vpop.f32.mrb[0].mxu0
  %v1486 = vadd.f32 0.0, %v1485
  %1487 = vmatprep.mubr.f32.mxu0 0.0
  %1488 = vmatmul.mubr.f32.gmra.mrb[0].mxu0 %v227
  %v1489 = vpop.f32.mrb[0].mxu0
  %v1490 = vadd.f32 0.0, %v1489
  %v1491 = vpop.f32.mrb[0].mxu0
  %v1492 = vadd.f32 0.0, %v1491
  %1493 = vmatprep.mubr.f32.mxu0 0.0
  %1494 = vmatmul.mubr.f32.gmra.mrb[0].mxu0 %v230
  %v1495 = vpop.f32.mrb[0].mxu0
  %v1496 = vadd.f32 0.0, %v1495
  %v1497 = vpop.f32.mrb[0].mxu0
  %v1498 = vadd.f32 0.0, %v1497
  %1499 = vmatprep.mubr.f32.mxu0 0.0
  %1500 = vmatmul.mubr.f32.gmra.mrb[0].mxu0 %v233
  %v1501 = vpop.f32.mrb[0].mxu0
  %v1502 = vadd.f32 0.0, %v1501
  %v1503 = vpop.f32.mrb[0].mxu0
  %v1504 = vadd.f32 0.0, %v1503
  %1505 = vmatprep.mubr.f32.mxu0 0.0
  %1506 = vmatmul.mubr.f32.gmra.mrb[0].mxu0 %v236
  %v1507 = vpop.f32.mrb[0].mxu0
  %v1508 = vadd.f32 0.0, %v1507
  %v1509 = vpop.f32.mrb[0].mxu0
  %v1510 = vadd.f32 0.0, %v1509
  %1511 = vmatprep.mubr.f32.mxu0 0.0
  %1512 = vmatmul.mubr.f32.gmra.mrb[0].mxu0 %v239
  %v1513 = vpop.f32.mrb[0].mxu0
  %v1514 = vadd.f32 0.0, %v1513
  %v1515 = vpop.f32.mrb[0].mxu0
  %v1516 = vadd.f32 0.0, %v1515
  %1517 = vmatprep.mubr.f32.mxu0 0.0
  %1518 = vmatmul.mubr.f32.gmra.mrb[0].mxu0 %v242
  %v1519 = vpop.f32.mrb[0].mxu0
  %v1520 = vadd.f32 0.0, %v1519
  %v1521 = vpop.f32.mrb[0].mxu0
  %v1522 = vadd.f32 0.0, %v1521
  %1523 = vmatprep.mubr.f32.mxu0 0.0
  %1524 = vmatmul.mubr.f32.gmra.mrb[0].mxu0 %v245
  %v1525 = vpop.f32.mrb[0].mxu0
  %v1526 = vadd.f32 0.0, %v1525
  %v1527 = vpop.f32.mrb[0].mxu0
  %v1528 = vadd.f32 0.0, %v1527
  %1529 = vmatprep.mubr.f32.mxu0 0.0
  %1530 = vmatmul.mubr.f32.gmra.mrb[0].mxu0 %v248
  %v1531 = vpop.f32.mrb[0].mxu0
  %v1532 = vadd.f32 0.0, %v1531
  %v1533 = vpop.f32.mrb[0].mxu0
  %v1534 = vadd.f32 0.0, %v1533
  %1535 = vmatprep.mubr.f32.mxu0 0.0
  %1536 = vmatmul.mubr.f32.gmra.mrb[0].mxu0 %v251
  %v1537 = vpop.f32.mrb[0].mxu0
  %v1538 = vadd.f32 0.0, %v1537
  %v1539 = vpop.f32.mrb[0].mxu0
  %v1540 = vadd.f32 0.0, %v1539
  %1541 = vmatprep.mubr.f32.mxu0 0.0
  %1542 = vmatmul.mubr.f32.gmra.mrb[0].mxu0 %v254
  %v1543 = vpop.f32.mrb[0].mxu0
  %v1544 = vadd.f32 0.0, %v1543
  %v1545 = vpop.f32.mrb[0].mxu0
  %v1546 = vadd.f32 0.0, %v1545
  %1547 = vdwg.mxu0
  %1548 = vmatprep.subr.mxu0 0.0
  %1549 = vmatpush1.msra.mxu0 %v62
  %1550 = vmatprep.subr.mxu0 0.0
  %1551 = vmatpush1.msra.mxu0 %v71
  %1552 = vmatprep.subr.mxu0 0.0
  %1553 = vmatpush1.msra.mxu0 %v80
  %1554 = vmatprep.subr.mxu0 0.0
  %1555 = vmatpush1.msra.mxu0 %v89
  %1556 = vmatprep.subr.mxu0 0.0
  %1557 = vmatpush1.msra.mxu0 %v98
  %1558 = vmatprep.subr.mxu0 0.0
  %1559 = vmatpush1.msra.mxu0 %v107
  %1560 = vmatprep.subr.mxu0 0.0
  %1561 = vmatpush1.msra.mxu0 %v116
  %1562 = vmatprep.subr.mxu0 0.0
  %1563 = vmatpush1.msra.mxu0 %v125
  %1564 = vmatprep.subr.mxu0 0.0
  %1565 = vmatpush1.msra.mxu0 0.0
  %1566 = vmatprep.subr.mxu0 0.0
  %1567 = vmatpush1.msra.mxu0 0.0
  %1568 = vmatprep.subr.mxu0 0.0
  %1569 = vmatpush1.msra.mxu0 0.0
  %1570 = vmatprep.subr.mxu0 0.0
  %1571 = vmatpush1.msra.mxu0 0.0
  %1572 = vmatprep.subr.mxu0 0.0
  %1573 = vmatpush1.msra.mxu0 0.0
  %1574 = vmatprep.subr.mxu0 0.0
  %1575 = vmatpush1.msra.mxu0 0.0
  %1576 = vmatprep.subr.mxu0 0.0
  %1577 = vmatpush1.msra.mxu0 0.0
  %1578 = vmatprep.subr.mxu0 0.0
  %1579 = vmatpush1.msra.mxu0 0.0
  %1580 = vmatprep.subr.mxu0 0.0
  %1581 = vmatpush1.msra.mxu0 0.0
  %1582 = vmatprep.subr.mxu0 0.0
  %1583 = vmatpush1.msra.mxu0 0.0
  %1584 = vmatprep.subr.mxu0 0.0
  %1585 = vmatpush1.msra.mxu0 0.0
  %1586 = vmatprep.subr.mxu0 0.0
  %1587 = vmatpush1.msra.mxu0 0.0
  %1588 = vmatprep.subr.mxu0 0.0
  %1589 = vmatpush1.msra.mxu0 0.0
  %1590 = vmatprep.subr.mxu0 0.0
  %1591 = vmatpush1.msra.mxu0 0.0
  %1592 = vmatprep.subr.mxu0 0.0
  %1593 = vmatpush1.msra.mxu0 0.0
  %1594 = vmatprep.subr.mxu0 0.0
  %1595 = vmatpush1.msra.mxu0 0.0
  %1596 = vmatprep.subr.mxu0 0.0
  %1597 = vmatpush1.msra.mxu0 0.0
  %1598 = vmatprep.subr.mxu0 0.0
  %1599 = vmatpush1.msra.mxu0 0.0
  %1600 = vmatprep.subr.mxu0 0.0
  %1601 = vmatpush1.msra.mxu0 0.0
  %1602 = vmatprep.subr.mxu0 0.0
  %1603 = vmatpush1.msra.mxu0 0.0
  %1604 = vmatprep.subr.mxu0 0.0
  %1605 = vmatpush1.msra.mxu0 0.0
  %1606 = vmatprep.subr.mxu0 0.0
  %1607 = vmatpush1.msra.mxu0 0.0
  %1608 = vmatprep.subr.mxu0 0.0
  %1609 = vmatpush1.msra.mxu0 0.0
  %1610 = vmatprep.subr.mxu0 0.0
  %1611 = vmatpush1.msra.mxu0 0.0
  %1612 = vmatprep.mubr.f32.mxu0 0.0
  %1613 = vmatmul.mubr.f32.gmra.mrb[0].mxu0 %v128
  %v1614 = vpop.f32.mrb[0].mxu0
  %v1615 = vadd.f32 0.0, %v1614
  %v1616 = vpop.f32.mrb[0].mxu0
  %1617 = vmatprep.mubr.f32.mxu0 0.0
  %1618 = vmatmul.mubr.f32.gmra.mrb[0].mxu0 %v131
  %v1619 = vpop.f32.mrb[0].mxu0
  %v1620 = vadd.f32 0.0, %v1619
  %v1621 = vpop.f32.mrb[0].mxu0
  %1622 = vmatprep.mubr.f32.mxu0 0.0
  %1623 = vmatmul.mubr.f32.gmra.mrb[0].mxu0 %v134
  %v1624 = vpop.f32.mrb[0].mxu0
  %v1625 = vadd.f32 0.0, %v1624
  %v1626 = vpop.f32.mrb[0].mxu0
  %1627 = vmatprep.mubr.f32.mxu0 0.0
  %1628 = vmatmul.mubr.f32.gmra.mrb[0].mxu0 %v137
  %v1629 = vpop.f32.mrb[0].mxu0
  %v1630 = vadd.f32 0.0, %v1629
  %v1631 = vpop.f32.mrb[0].mxu0
  %1632 = vmatprep.mubr.f32.mxu0 0.0
  %1633 = vmatmul.mubr.f32.gmra.mrb[0].mxu0 %v140
  %v1634 = vpop.f32.mrb[0].mxu0
  %v1635 = vadd.f32 0.0, %v1634
  %v1636 = vpop.f32.mrb[0].mxu0
  %1637 = vmatprep.mubr.f32.mxu0 0.0
  %1638 = vmatmul.mubr.f32.gmra.mrb[0].mxu0 %v143
  %v1639 = vpop.f32.mrb[0].mxu0
  %v1640 = vadd.f32 0.0, %v1639
  %v1641 = vpop.f32.mrb[0].mxu0
  %1642 = vmatprep.mubr.f32.mxu0 0.0
  %1643 = vmatmul.mubr.f32.gmra.mrb[0].mxu0 %v146
  %v1644 = vpop.f32.mrb[0].mxu0
  %v1645 = vadd.f32 0.0, %v1644
  %v1646 = vpop.f32.mrb[0].mxu0
  %1647 = vmatprep.mubr.f32.mxu0 0.0
  %1648 = vmatmul.mubr.f32.gmra.mrb[0].mxu0 %v149
  %v1649 = vpop.f32.mrb[0].mxu0
  %v1650 = vadd.f32 0.0, %v1649
  %v1651 = vpop.f32.mrb[0].mxu0
  %1652 = vmatprep.mubr.f32.mxu0 0.0
  %1653 = vmatmul.mubr.f32.gmra.mrb[0].mxu0 %v152
  %v1654 = vpop.f32.mrb[0].mxu0
  %v1655 = vadd.f32 0.0, %v1654
  %v1656 = vpop.f32.mrb[0].mxu0
  %1657 = vmatprep.mubr.f32.mxu0 0.0
  %1658 = vmatmul.mubr.f32.gmra.mrb[0].mxu0 %v155
  %v1659 = vpop.f32.mrb[0].mxu0
  %v1660 = vadd.f32 0.0, %v1659
  %v1661 = vpop.f32.mrb[0].mxu0
  %1662 = vmatprep.mubr.f32.mxu0 0.0
  %1663 = vmatmul.mubr.f32.gmra.mrb[0].mxu0 %v158
  %v1664 = vpop.f32.mrb[0].mxu0
  %v1665 = vadd.f32 0.0, %v1664
  %v1666 = vpop.f32.mrb[0].mxu0
  %1667 = vmatprep.mubr.f32.mxu0 0.0
  %1668 = vmatmul.mubr.f32.gmra.mrb[0].mxu0 %v161
  %v1669 = vpop.f32.mrb[0].mxu0
  %v1670 = vadd.f32 0.0, %v1669
  %v1671 = vpop.f32.mrb[0].mxu0
  %1672 = vmatprep.mubr.f32.mxu0 0.0
  %1673 = vmatmul.mubr.f32.gmra.mrb[0].mxu0 %v164
  %v1674 = vpop.f32.mrb[0].mxu0
  %v1675 = vadd.f32 0.0, %v1674
  %v1676 = vpop.f32.mrb[0].mxu0
  %1677 = vmatprep.mubr.f32.mxu0 0.0
  %1678 = vmatmul.mubr.f32.gmra.mrb[0].mxu0 %v167
  %v1679 = vpop.f32.mrb[0].mxu0
  %v1680 = vadd.f32 0.0, %v1679
  %v1681 = vpop.f32.mrb[0].mxu0
  %1682 = vmatprep.mubr.f32.mxu0 0.0
  %1683 = vmatmul.mubr.f32.gmra.mrb[0].mxu0 %v170
  %v1684 = vpop.f32.mrb[0].mxu0
  %v1685 = vadd.f32 0.0, %v1684
  %v1686 = vpop.f32.mrb[0].mxu0
  %1687 = vmatprep.mubr.f32.mxu0 0.0
  %1688 = vmatmul.mubr.f32.gmra.mrb[0].mxu0 %v173
  %v1689 = vpop.f32.mrb[0].mxu0
  %v1690 = vadd.f32 0.0, %v1689
  %v1691 = vpop.f32.mrb[0].mxu0
  %1692 = vmatprep.mubr.f32.mxu0 0.0
  %1693 = vmatmul.mubr.f32.gmra.mrb[0].mxu0 %v176
  %v1694 = vpop.f32.mrb[0].mxu0
  %v1695 = vadd.f32 0.0, %v1694
  %v1696 = vpop.f32.mrb[0].mxu0
  %1697 = vmatprep.mubr.f32.mxu0 0.0
  %1698 = vmatmul.mubr.f32.gmra.mrb[0].mxu0 %v179
  %v1699 = vpop.f32.mrb[0].mxu0
  %v1700 = vadd.f32 0.0, %v1699
  %v1701 = vpop.f32.mrb[0].mxu0
  %1702 = vmatprep.mubr.f32.mxu0 0.0
  %1703 = vmatmul.mubr.f32.gmra.mrb[0].mxu0 %v182
  %v1704 = vpop.f32.mrb[0].mxu0
  %v1705 = vadd.f32 0.0, %v1704
  %v1706 = vpop.f32.mrb[0].mxu0
  %1707 = vmatprep.mubr.f32.mxu0 0.0
  %1708 = vmatmul.mubr.f32.gmra.mrb[0].mxu0 %v185
  %v1709 = vpop.f32.mrb[0].mxu0
  %v1710 = vadd.f32 0.0, %v1709
  %v1711 = vpop.f32.mrb[0].mxu0
  %1712 = vmatprep.mubr.f32.mxu0 0.0
  %1713 = vmatmul.mubr.f32.gmra.mrb[0].mxu0 %v188
  %v1714 = vpop.f32.mrb[0].mxu0
  %v1715 = vadd.f32 0.0, %v1714
  %v1716 = vpop.f32.mrb[0].mxu0
  %1717 = vmatprep.mubr.f32.mxu0 0.0
  %1718 = vmatmul.mubr.f32.gmra.mrb[0].mxu0 %v191
  %v1719 = vpop.f32.mrb[0].mxu0
  %v1720 = vadd.f32 0.0, %v1719
  %v1721 = vpop.f32.mrb[0].mxu0
  %1722 = vmatprep.mubr.f32.mxu0 0.0
  %1723 = vmatmul.mubr.f32.gmra.mrb[0].mxu0 %v194
  %v1724 = vpop.f32.mrb[0].mxu0
  %v1725 = vadd.f32 0.0, %v1724
  %v1726 = vpop.f32.mrb[0].mxu0
  %1727 = vmatprep.mubr.f32.mxu0 0.0
  %1728 = vmatmul.mubr.f32.gmra.mrb[0].mxu0 %v197
  %v1729 = vpop.f32.mrb[0].mxu0
  %v1730 = vadd.f32 0.0, %v1729
  %v1731 = vpop.f32.mrb[0].mxu0
  %1732 = vmatprep.mubr.f32.mxu0 0.0
  %1733 = vmatmul.mubr.f32.gmra.mrb[0].mxu0 %v200
  %v1734 = vpop.f32.mrb[0].mxu0
  %v1735 = vadd.f32 0.0, %v1734
  %v1736 = vpop.f32.mrb[0].mxu0
  %1737 = vmatprep.mubr.f32.mxu0 0.0
  %1738 = vmatmul.mubr.f32.gmra.mrb[0].mxu0 %v203
  %v1739 = vpop.f32.mrb[0].mxu0
  %v1740 = vadd.f32 0.0, %v1739
  %v1741 = vpop.f32.mrb[0].mxu0
  %1742 = vmatprep.mubr.f32.mxu0 0.0
  %1743 = vmatmul.mubr.f32.gmra.mrb[0].mxu0 %v206
  %v1744 = vpop.f32.mrb[0].mxu0
  %v1745 = vadd.f32 0.0, %v1744
  %v1746 = vpop.f32.mrb[0].mxu0
  %1747 = vmatprep.mubr.f32.mxu0 0.0
  %1748 = vmatmul.mubr.f32.gmra.mrb[0].mxu0 %v209
  %v1749 = vpop.f32.mrb[0].mxu0
  %v1750 = vadd.f32 0.0, %v1749
  %v1751 = vpop.f32.mrb[0].mxu0
  %1752 = vmatprep.mubr.f32.mxu0 0.0
  %1753 = vmatmul.mubr.f32.gmra.mrb[0].mxu0 %v212
  %v1754 = vpop.f32.mrb[0].mxu0
  %v1755 = vadd.f32 0.0, %v1754
  %v1756 = vpop.f32.mrb[0].mxu0
  %1757 = vmatprep.mubr.f32.mxu0 0.0
  %1758 = vmatmul.mubr.f32.gmra.mrb[0].mxu0 %v215
  %v1759 = vpop.f32.mrb[0].mxu0
  %v1760 = vadd.f32 0.0, %v1759
  %v1761 = vpop.f32.mrb[0].mxu0
  %1762 = vmatprep.mubr.f32.mxu0 0.0
  %1763 = vmatmul.mubr.f32.gmra.mrb[0].mxu0 %v218
  %v1764 = vpop.f32.mrb[0].mxu0
  %v1765 = vadd.f32 0.0, %v1764
  %v1766 = vpop.f32.mrb[0].mxu0
  %1767 = vmatprep.mubr.f32.mxu0 0.0
  %1768 = vmatmul.mubr.f32.gmra.mrb[0].mxu0 %v221
  %v1769 = vpop.f32.mrb[0].mxu0
  %v1770 = vadd.f32 0.0, %v1769
  %v1771 = vpop.f32.mrb[0].mxu0
  %1772 = vmatprep.mubr.f32.mxu0 0.0
  %1773 = vmatmul.mubr.f32.gmra.mrb[0].mxu0 %v224
  %v1774 = vpop.f32.mrb[0].mxu0
  %v1775 = vadd.f32 0.0, %v1774
  %v1776 = vpop.f32.mrb[0].mxu0
  %1777 = vmatprep.mubr.f32.mxu0 0.0
  %1778 = vmatmul.mubr.f32.gmra.mrb[0].mxu0 %v227
  %v1779 = vpop.f32.mrb[0].mxu0
  %v1780 = vadd.f32 0.0, %v1779
  %v1781 = vpop.f32.mrb[0].mxu0
  %1782 = vmatprep.mubr.f32.mxu0 0.0
  %1783 = vmatmul.mubr.f32.gmra.mrb[0].mxu0 %v230
  %v1784 = vpop.f32.mrb[0].mxu0
  %v1785 = vadd.f32 0.0, %v1784
  %v1786 = vpop.f32.mrb[0].mxu0
  %1787 = vmatprep.mubr.f32.mxu0 0.0
  %1788 = vmatmul.mubr.f32.gmra.mrb[0].mxu0 %v233
  %v1789 = vpop.f32.mrb[0].mxu0
  %v1790 = vadd.f32 0.0, %v1789
  %v1791 = vpop.f32.mrb[0].mxu0
  %1792 = vmatprep.mubr.f32.mxu0 0.0
  %1793 = vmatmul.mubr.f32.gmra.mrb[0].mxu0 %v236
  %v1794 = vpop.f32.mrb[0].mxu0
  %v1795 = vadd.f32 0.0, %v1794
  %v1796 = vpop.f32.mrb[0].mxu0
  %1797 = vmatprep.mubr.f32.mxu0 0.0
  %1798 = vmatmul.mubr.f32.gmra.mrb[0].mxu0 %v239
  %v1799 = vpop.f32.mrb[0].mxu0
  %v1800 = vadd.f32 0.0, %v1799
  %v1801 = vpop.f32.mrb[0].mxu0
  %1802 = vmatprep.mubr.f32.mxu0 0.0
  %1803 = vmatmul.mubr.f32.gmra.mrb[0].mxu0 %v242
  %v1804 = vpop.f32.mrb[0].mxu0
  %v1805 = vadd.f32 0.0, %v1804
  %v1806 = vpop.f32.mrb[0].mxu0
  %1807 = vmatprep.mubr.f32.mxu0 0.0
  %1808 = vmatmul.mubr.f32.gmra.mrb[0].mxu0 %v245
  %v1809 = vpop.f32.mrb[0].mxu0
  %v1810 = vadd.f32 0.0, %v1809
  %v1811 = vpop.f32.mrb[0].mxu0
  %1812 = vmatprep.mubr.f32.mxu0 0.0
  %1813 = vmatmul.mubr.f32.gmra.mrb[0].mxu0 %v248
  %v1814 = vpop.f32.mrb[0].mxu0
  %v1815 = vadd.f32 0.0, %v1814
  %v1816 = vpop.f32.mrb[0].mxu0
  %1817 = vmatprep.mubr.f32.mxu0 0.0
  %1818 = vmatmul.mubr.f32.gmra.mrb[0].mxu0 %v251
  %v1819 = vpop.f32.mrb[0].mxu0
  %v1820 = vadd.f32 0.0, %v1819
  %v1821 = vpop.f32.mrb[0].mxu0
  %1822 = vmatprep.mubr.f32.mxu0 0.0
  %1823 = vmatmul.mubr.f32.gmra.mrb[0].mxu0 %v254
  %v1824 = vpop.f32.mrb[0].mxu0
  %v1825 = vadd.f32 0.0, %v1824
  %v1826 = vpop.f32.mrb[0].mxu0
  %1827 = vdwg.mxu0
  %1828 = vst [vmem:[%s2] sm:$0xff] %v323
  %1829 = vst [vmem:[%s2 + $0x8] sm:$0xff] %v325
  %1830 = vst [vmem:[%s2 + $0x10] sm:$0xff] %v646
  %1831 = vst [vmem:[%s2 + $0x18] sm:$0xff] %v648
  %1832 = vst [vmem:[%s2 + $0x20] sm:$0xff] %v969
  %1833 = vst [vmem:[%s2 + $0x28] sm:$0xff] %v971
  %1834 = vst [vmem:[%s2 + $0x30] sm:$0xff] %v1292
  %1835 = vst [vmem:[%s2 + $0x38] sm:$0xff] %v1294
  %1836 = vst [vmem:[%s2 + $0x40] sm:$0xff] %v1615
  %1837 = vst [vmem:[%s2 + $0x48] sm:$0xff] %v329
  %1838 = vst [vmem:[%s2 + $0x50] sm:$0xff] %v331
  %1839 = vst [vmem:[%s2 + $0x58] sm:$0xff] %v652
  %1840 = vst [vmem:[%s2 + $0x60] sm:$0xff] %v654
  %1841 = vst [vmem:[%s2 + $0x68] sm:$0xff] %v975
  %1842 = vst [vmem:[%s2 + $0x70] sm:$0xff] %v977
  %1843 = vst [vmem:[%s2 + $0x78] sm:$0xff] %v1298
  %1844 = vst [vmem:[%s2 + $0x80] sm:$0xff] %v1300
  %1845 = vst [vmem:[%s2 + $0x88] sm:$0xff] %v1620
  %1846 = vst [vmem:[%s2 + $0x90] sm:$0xff] %v335
  %1847 = vst [vmem:[%s2 + $0x98] sm:$0xff] %v337
  %1848 = vst [vmem:[%s2 + $0xa0] sm:$0xff] %v658
  %1849 = vst [vmem:[%s2 + $0xa8] sm:$0xff] %v660
  %1850 = vst [vmem:[%s2 + $0xb0] sm:$0xff] %v981
  %1851 = vst [vmem:[%s2 + $0xb8] sm:$0xff] %v983
  %1852 = vst [vmem:[%s2 + $0xc0] sm:$0xff] %v1304
  %1853 = vst [vmem:[%s2 + $0xc8] sm:$0xff] %v1306
  %1854 = vst [vmem:[%s2 + $0xd0] sm:$0xff] %v1625
  %1855 = vst [vmem:[%s2 + $0xd8] sm:$0xff] %v341
  %1856 = vst [vmem:[%s2 + $0xe0] sm:$0xff] %v343
  %1857 = vst [vmem:[%s2 + $0xe8] sm:$0xff] %v664
  %1858 = vst [vmem:[%s2 + $0xf0] sm:$0xff] %v666
  %1859 = vst [vmem:[%s2 + $0xf8] sm:$0xff] %v987
  %1860 = vst [vmem:[%s2 + $0x100] sm:$0xff] %v989
  %1861 = vst [vmem:[%s2 + $0x108] sm:$0xff] %v1310
  %1862 = vst [vmem:[%s2 + $0x110] sm:$0xff] %v1312
  %1863 = vst [vmem:[%s2 + $0x118] sm:$0xff] %v1630
  %1864 = vst [vmem:[%s2 + $0x120] sm:$0xff] %v347
  %1865 = vst [vmem:[%s2 + $0x128] sm:$0xff] %v349
  %1866 = vst [vmem:[%s2 + $0x130] sm:$0xff] %v670
  %1867 = vst [vmem:[%s2 + $0x138] sm:$0xff] %v672
  %1868 = vst [vmem:[%s2 + $0x140] sm:$0xff] %v993
  %1869 = vst [vmem:[%s2 + $0x148] sm:$0xff] %v995
  %1870 = vst [vmem:[%s2 + $0x150] sm:$0xff] %v1316
  %1871 = vst [vmem:[%s2 + $0x158] sm:$0xff] %v1318
  %1872 = vst [vmem:[%s2 + $0x160] sm:$0xff] %v1635
  %1873 = vst [vmem:[%s2 + $0x168] sm:$0xff] %v353
  %1874 = vst [vmem:[%s2 + $0x170] sm:$0xff] %v355
  %1875 = vst [vmem:[%s2 + $0x178] sm:$0xff] %v676
  %1876 = vst [vmem:[%s2 + $0x180] sm:$0xff] %v678
  %1877 = vst [vmem:[%s2 + $0x188] sm:$0xff] %v999
  %1878 = vst [vmem:[%s2 + $0x190] sm:$0xff] %v1001
  %1879 = vst [vmem:[%s2 + $0x198] sm:$0xff] %v1322
  %1880 = vst [vmem:[%s2 + $0x1a0] sm:$0xff] %v1324
  %1881 = vst [vmem:[%s2 + $0x1a8] sm:$0xff] %v1640
  %1882 = vst [vmem:[%s2 + $0x1b0] sm:$0xff] %v359
  %1883 = vst [vmem:[%s2 + $0x1b8] sm:$0xff] %v361
  %1884 = vst [vmem:[%s2 + $0x1c0] sm:$0xff] %v682
  %1885 = vst [vmem:[%s2 + $0x1c8] sm:$0xff] %v684
  %1886 = vst [vmem:[%s2 + $0x1d0] sm:$0xff] %v1005
  %1887 = vst [vmem:[%s2 + $0x1d8] sm:$0xff] %v1007
  %1888 = vst [vmem:[%s2 + $0x1e0] sm:$0xff] %v1328
  %1889 = vst [vmem:[%s2 + $0x1e8] sm:$0xff] %v1330
  %1890 = vst [vmem:[%s2 + $0x1f0] sm:$0xff] %v1645
  %1891 = vst [vmem:[%s2 + $0x1f8] sm:$0xff] %v365
  %1892 = vst [vmem:[%s2 + $0x200] sm:$0xff] %v367
  %1893 = vst [vmem:[%s2 + $0x208] sm:$0xff] %v688
  %1894 = vst [vmem:[%s2 + $0x210] sm:$0xff] %v690
  %1895 = vst [vmem:[%s2 + $0x218] sm:$0xff] %v1011
  %1896 = vst [vmem:[%s2 + $0x220] sm:$0xff] %v1013
  %1897 = vst [vmem:[%s2 + $0x228] sm:$0xff] %v1334
  %1898 = vst [vmem:[%s2 + $0x230] sm:$0xff] %v1336
  %1899 = vst [vmem:[%s2 + $0x238] sm:$0xff] %v1650
  %1900 = vst [vmem:[%s2 + $0x240] sm:$0xff] %v371
  %1901 = vst [vmem:[%s2 + $0x248] sm:$0xff] %v373
  %1902 = vst [vmem:[%s2 + $0x250] sm:$0xff] %v694
  %1903 = vst [vmem:[%s2 + $0x258] sm:$0xff] %v696
  %1904 = vst [vmem:[%s2 + $0x260] sm:$0xff] %v1017
  %1905 = vst [vmem:[%s2 + $0x268] sm:$0xff] %v1019
  %1906 = vst [vmem:[%s2 + $0x270] sm:$0xff] %v1340
  %1907 = vst [vmem:[%s2 + $0x278] sm:$0xff] %v1342
  %1908 = vst [vmem:[%s2 + $0x280] sm:$0xff] %v1655
  %1909 = vst [vmem:[%s2 + $0x288] sm:$0xff] %v377
  %1910 = vst [vmem:[%s2 + $0x290] sm:$0xff] %v379
  %1911 = vst [vmem:[%s2 + $0x298] sm:$0xff] %v700
  %1912 = vst [vmem:[%s2 + $0x2a0] sm:$0xff] %v702
  %1913 = vst [vmem:[%s2 + $0x2a8] sm:$0xff] %v1023
  %1914 = vst [vmem:[%s2 + $0x2b0] sm:$0xff] %v1025
  %1915 = vst [vmem:[%s2 + $0x2b8] sm:$0xff] %v1346
  %1916 = vst [vmem:[%s2 + $0x2c0] sm:$0xff] %v1348
  %1917 = vst [vmem:[%s2 + $0x2c8] sm:$0xff] %v1660
  %1918 = vst [vmem:[%s2 + $0x2d0] sm:$0xff] %v383
  %1919 = vst [vmem:[%s2 + $0x2d8] sm:$0xff] %v385
  %1920 = vst [vmem:[%s2 + $0x2e0] sm:$0xff] %v706
  %1921 = vst [vmem:[%s2 + $0x2e8] sm:$0xff] %v708
  %1922 = vst [vmem:[%s2 + $0x2f0] sm:$0xff] %v1029
  %1923 = vst [vmem:[%s2 + $0x2f8] sm:$0xff] %v1031
  %1924 = vst [vmem:[%s2 + $0x300] sm:$0xff] %v1352
  %1925 = vst [vmem:[%s2 + $0x308] sm:$0xff] %v1354
  %1926 = vst [vmem:[%s2 + $0x310] sm:$0xff] %v1665
  %1927 = vst [vmem:[%s2 + $0x318] sm:$0xff] %v389
  %1928 = vst [vmem:[%s2 + $0x320] sm:$0xff] %v391
  %1929 = vst [vmem:[%s2 + $0x328] sm:$0xff] %v712
  %1930 = vst [vmem:[%s2 + $0x330] sm:$0xff] %v714
  %1931 = vst [vmem:[%s2 + $0x338] sm:$0xff] %v1035
  %1932 = vst [vmem:[%s2 + $0x340] sm:$0xff] %v1037
  %1933 = vst [vmem:[%s2 + $0x348] sm:$0xff] %v1358
  %1934 = vst [vmem:[%s2 + $0x350] sm:$0xff] %v1360
  %1935 = vst [vmem:[%s2 + $0x358] sm:$0xff] %v1670
  %1936 = vst [vmem:[%s2 + $0x360] sm:$0xff] %v395
  %1937 = vst [vmem:[%s2 + $0x368] sm:$0xff] %v397
  %1938 = vst [vmem:[%s2 + $0x370] sm:$0xff] %v718
  %1939 = vst [vmem:[%s2 + $0x378] sm:$0xff] %v720
  %1940 = vst [vmem:[%s2 + $0x380] sm:$0xff] %v1041
  %1941 = vst [vmem:[%s2 + $0x388] sm:$0xff] %v1043
  %1942 = vst [vmem:[%s2 + $0x390] sm:$0xff] %v1364
  %1943 = vst [vmem:[%s2 + $0x398] sm:$0xff] %v1366
  %1944 = vst [vmem:[%s2 + $0x3a0] sm:$0xff] %v1675
  %1945 = vst [vmem:[%s2 + $0x3a8] sm:$0xff] %v401
  %1946 = vst [vmem:[%s2 + $0x3b0] sm:$0xff] %v403
  %1947 = vst [vmem:[%s2 + $0x3b8] sm:$0xff] %v724
  %1948 = vst [vmem:[%s2 + $0x3c0] sm:$0xff] %v726
  %1949 = vst [vmem:[%s2 + $0x3c8] sm:$0xff] %v1047
  %1950 = vst [vmem:[%s2 + $0x3d0] sm:$0xff] %v1049
  %1951 = vst [vmem:[%s2 + $0x3d8] sm:$0xff] %v1370
  %1952 = vst [vmem:[%s2 + $0x3e0] sm:$0xff] %v1372
  %1953 = vst [vmem:[%s2 + $0x3e8] sm:$0xff] %v1680
  %1954 = vst [vmem:[%s2 + $0x3f0] sm:$0xff] %v407
  %1955 = vst [vmem:[%s2 + $0x3f8] sm:$0xff] %v409
  %1956 = vst [vmem:[%s2 + $0x400] sm:$0xff] %v730
  %1957 = vst [vmem:[%s2 + $0x408] sm:$0xff] %v732
  %1958 = vst [vmem:[%s2 + $0x410] sm:$0xff] %v1053
  %1959 = vst [vmem:[%s2 + $0x418] sm:$0xff] %v1055
  %1960 = vst [vmem:[%s2 + $0x420] sm:$0xff] %v1376
  %1961 = vst [vmem:[%s2 + $0x428] sm:$0xff] %v1378
  %1962 = vst [vmem:[%s2 + $0x430] sm:$0xff] %v1685
  %1963 = vst [vmem:[%s2 + $0x438] sm:$0xff] %v413
  %1964 = vst [vmem:[%s2 + $0x440] sm:$0xff] %v415
  %1965 = vst [vmem:[%s2 + $0x448] sm:$0xff] %v736
  %1966 = vst [vmem:[%s2 + $0x450] sm:$0xff] %v738
  %1967 = vst [vmem:[%s2 + $0x458] sm:$0xff] %v1059
  %1968 = vst [vmem:[%s2 + $0x460] sm:$0xff] %v1061
  %1969 = vst [vmem:[%s2 + $0x468] sm:$0xff] %v1382
  %1970 = vst [vmem:[%s2 + $0x470] sm:$0xff] %v1384
  %1971 = vst [vmem:[%s2 + $0x478] sm:$0xff] %v1690
  %1972 = vst [vmem:[%s2 + $0x480] sm:$0xff] %v419
  %1973 = vst [vmem:[%s2 + $0x488] sm:$0xff] %v421
  %1974 = vst [vmem:[%s2 + $0x490] sm:$0xff] %v742
  %1975 = vst [vmem:[%s2 + $0x498] sm:$0xff] %v744
  %1976 = vst [vmem:[%s2 + $0x4a0] sm:$0xff] %v1065
  %1977 = vst [vmem:[%s2 + $0x4a8] sm:$0xff] %v1067
  %1978 = vst [vmem:[%s2 + $0x4b0] sm:$0xff] %v1388
  %1979 = vst [vmem:[%s2 + $0x4b8] sm:$0xff] %v1390
  %1980 = vst [vmem:[%s2 + $0x4c0] sm:$0xff] %v1695
  %1981 = vst [vmem:[%s2 + $0x4c8] sm:$0xff] %v425
  %1982 = vst [vmem:[%s2 + $0x4d0] sm:$0xff] %v427
  %1983 = vst [vmem:[%s2 + $0x4d8] sm:$0xff] %v748
  %1984 = vst [vmem:[%s2 + $0x4e0] sm:$0xff] %v750
  %1985 = vst [vmem:[%s2 + $0x4e8] sm:$0xff] %v1071
  %1986 = vst [vmem:[%s2 + $0x4f0] sm:$0xff] %v1073
  %1987 = vst [vmem:[%s2 + $0x4f8] sm:$0xff] %v1394
  %1988 = vst [vmem:[%s2 + $0x500] sm:$0xff] %v1396
  %1989 = vst [vmem:[%s2 + $0x508] sm:$0xff] %v1700
  %1990 = vst [vmem:[%s2 + $0x510] sm:$0xff] %v431
  %1991 = vst [vmem:[%s2 + $0x518] sm:$0xff] %v433
  %1992 = vst [vmem:[%s2 + $0x520] sm:$0xff] %v754
  %1993 = vst [vmem:[%s2 + $0x528] sm:$0xff] %v756
  %1994 = vst [vmem:[%s2 + $0x530] sm:$0xff] %v1077
  %1995 = vst [vmem:[%s2 + $0x538] sm:$0xff] %v1079
  %1996 = vst [vmem:[%s2 + $0x540] sm:$0xff] %v1400
  %1997 = vst [vmem:[%s2 + $0x548] sm:$0xff] %v1402
  %1998 = vst [vmem:[%s2 + $0x550] sm:$0xff] %v1705
  %1999 = vst [vmem:[%s2 + $0x558] sm:$0xff] %v437
  %2000 = vst [vmem:[%s2 + $0x560] sm:$0xff] %v439
  %2001 = vst [vmem:[%s2 + $0x568] sm:$0xff] %v760
  %2002 = vst [vmem:[%s2 + $0x570] sm:$0xff] %v762
  %2003 = vst [vmem:[%s2 + $0x578] sm:$0xff] %v1083
  %2004 = vst [vmem:[%s2 + $0x580] sm:$0xff] %v1085
  %2005 = vst [vmem:[%s2 + $0x588] sm:$0xff] %v1406
  %2006 = vst [vmem:[%s2 + $0x590] sm:$0xff] %v1408
  %2007 = vst [vmem:[%s2 + $0x598] sm:$0xff] %v1710
  %2008 = vst [vmem:[%s2 + $0x5a0] sm:$0xff] %v443
  %2009 = vst [vmem:[%s2 + $0x5a8] sm:$0xff] %v445
  %2010 = vst [vmem:[%s2 + $0x5b0] sm:$0xff] %v766
  %2011 = vst [vmem:[%s2 + $0x5b8] sm:$0xff] %v768
  %2012 = vst [vmem:[%s2 + $0x5c0] sm:$0xff] %v1089
  %2013 = vst [vmem:[%s2 + $0x5c8] sm:$0xff] %v1091
  %2014 = vst [vmem:[%s2 + $0x5d0] sm:$0xff] %v1412
  %2015 = vst [vmem:[%s2 + $0x5d8] sm:$0xff] %v1414
  %2016 = vst [vmem:[%s2 + $0x5e0] sm:$0xff] %v1715
  %2017 = vst [vmem:[%s2 + $0x5e8] sm:$0xff] %v449
  %2018 = vst [vmem:[%s2 + $0x5f0] sm:$0xff] %v451
  %2019 = vst [vmem:[%s2 + $0x5f8] sm:$0xff] %v772
  %2020 = vst [vmem:[%s2 + $0x600] sm:$0xff] %v774
  %2021 = vst [vmem:[%s2 + $0x608] sm:$0xff] %v1095
  %2022 = vst [vmem:[%s2 + $0x610] sm:$0xff] %v1097
  %2023 = vst [vmem:[%s2 + $0x618] sm:$0xff] %v1418
  %2024 = vst [vmem:[%s2 + $0x620] sm:$0xff] %v1420
  %2025 = vst [vmem:[%s2 + $0x628] sm:$0xff] %v1720
  %2026 = vst [vmem:[%s2 + $0x630] sm:$0xff] %v455
  %2027 = vst [vmem:[%s2 + $0x638] sm:$0xff] %v457
  %2028 = vst [vmem:[%s2 + $0x640] sm:$0xff] %v778
  %2029 = vst [vmem:[%s2 + $0x648] sm:$0xff] %v780
  %2030 = vst [vmem:[%s2 + $0x650] sm:$0xff] %v1101
  %2031 = vst [vmem:[%s2 + $0x658] sm:$0xff] %v1103
  %2032 = vst [vmem:[%s2 + $0x660] sm:$0xff] %v1424
  %2033 = vst [vmem:[%s2 + $0x668] sm:$0xff] %v1426
  %2034 = vst [vmem:[%s2 + $0x670] sm:$0xff] %v1725
  %2035 = vst [vmem:[%s2 + $0x678] sm:$0xff] %v461
  %2036 = vst [vmem:[%s2 + $0x680] sm:$0xff] %v463
  %2037 = vst [vmem:[%s2 + $0x688] sm:$0xff] %v784
  %2038 = vst [vmem:[%s2 + $0x690] sm:$0xff] %v786
  %2039 = vst [vmem:[%s2 + $0x698] sm:$0xff] %v1107
  %2040 = vst [vmem:[%s2 + $0x6a0] sm:$0xff] %v1109
  %2041 = vst [vmem:[%s2 + $0x6a8] sm:$0xff] %v1430
  %2042 = vst [vmem:[%s2 + $0x6b0] sm:$0xff] %v1432
  %2043 = vst [vmem:[%s2 + $0x6b8] sm:$0xff] %v1730
  %2044 = vst [vmem:[%s2 + $0x6c0] sm:$0xff] %v467
  %2045 = vst [vmem:[%s2 + $0x6c8] sm:$0xff] %v469
  %2046 = vst [vmem:[%s2 + $0x6d0] sm:$0xff] %v790
  %2047 = vst [vmem:[%s2 + $0x6d8] sm:$0xff] %v792
  %2048 = vst [vmem:[%s2 + $0x6e0] sm:$0xff] %v1113
  %2049 = vst [vmem:[%s2 + $0x6e8] sm:$0xff] %v1115
  %2050 = vst [vmem:[%s2 + $0x6f0] sm:$0xff] %v1436
  %2051 = vst [vmem:[%s2 + $0x6f8] sm:$0xff] %v1438
  %2052 = vst [vmem:[%s2 + $0x700] sm:$0xff] %v1735
  %2053 = vst [vmem:[%s2 + $0x708] sm:$0xff] %v473
  %2054 = vst [vmem:[%s2 + $0x710] sm:$0xff] %v475
  %2055 = vst [vmem:[%s2 + $0x718] sm:$0xff] %v796
  %2056 = vst [vmem:[%s2 + $0x720] sm:$0xff] %v798
  %2057 = vst [vmem:[%s2 + $0x728] sm:$0xff] %v1119
  %2058 = vst [vmem:[%s2 + $0x730] sm:$0xff] %v1121
  %2059 = vst [vmem:[%s2 + $0x738] sm:$0xff] %v1442
  %2060 = vst [vmem:[%s2 + $0x740] sm:$0xff] %v1444
  %2061 = vst [vmem:[%s2 + $0x748] sm:$0xff] %v1740
  %2062 = vst [vmem:[%s2 + $0x750] sm:$0xff] %v479
  %2063 = vst [vmem:[%s2 + $0x758] sm:$0xff] %v481
  %2064 = vst [vmem:[%s2 + $0x760] sm:$0xff] %v802
  %2065 = vst [vmem:[%s2 + $0x768] sm:$0xff] %v804
  %2066 = vst [vmem:[%s2 + $0x770] sm:$0xff] %v1125
  %2067 = vst [vmem:[%s2 + $0x778] sm:$0xff] %v1127
  %2068 = vst [vmem:[%s2 + $0x780] sm:$0xff] %v1448
  %2069 = vst [vmem:[%s2 + $0x788] sm:$0xff] %v1450
  %2070 = vst [vmem:[%s2 + $0x790] sm:$0xff] %v1745
  %2071 = vst [vmem:[%s2 + $0x798] sm:$0xff] %v485
  %2072 = vst [vmem:[%s2 + $0x7a0] sm:$0xff] %v487
  %2073 = vst [vmem:[%s2 + $0x7a8] sm:$0xff] %v808
  %2074 = vst [vmem:[%s2 + $0x7b0] sm:$0xff] %v810
  %2075 = vst [vmem:[%s2 + $0x7b8] sm:$0xff] %v1131
  %2076 = vst [vmem:[%s2 + $0x7c0] sm:$0xff] %v1133
  %2077 = vst [vmem:[%s2 + $0x7c8] sm:$0xff] %v1454
  %2078 = vst [vmem:[%s2 + $0x7d0] sm:$0xff] %v1456
  %2079 = vst [vmem:[%s2 + $0x7d8] sm:$0xff] %v1750
  %2080 = vst [vmem:[%s2 + $0x7e0] sm:$0xff] %v491
  %2081 = vst [vmem:[%s2 + $0x7e8] sm:$0xff] %v493
  %2082 = vst [vmem:[%s2 + $0x7f0] sm:$0xff] %v814
  %2083 = vst [vmem:[%s2 + $0x7f8] sm:$0xff] %v816
  %2084 = vst [vmem:[%s2 + $0x800] sm:$0xff] %v1137
  %2085 = vst [vmem:[%s2 + $0x808] sm:$0xff] %v1139
  %2086 = vst [vmem:[%s2 + $0x810] sm:$0xff] %v1460
  %2087 = vst [vmem:[%s2 + $0x818] sm:$0xff] %v1462
  %2088 = vst [vmem:[%s2 + $0x820] sm:$0xff] %v1755
  %2089 = vst [vmem:[%s2 + $0x828] sm:$0xff] %v497
  %2090 = vst [vmem:[%s2 + $0x830] sm:$0xff] %v499
  %2091 = vst [vmem:[%s2 + $0x838] sm:$0xff] %v820
  %2092 = vst [vmem:[%s2 + $0x840] sm:$0xff] %v822
  %2093 = vst [vmem:[%s2 + $0x848] sm:$0xff] %v1143
  %2094 = vst [vmem:[%s2 + $0x850] sm:$0xff] %v1145
  %2095 = vst [vmem:[%s2 + $0x858] sm:$0xff] %v1466
  %2096 = vst [vmem:[%s2 + $0x860] sm:$0xff] %v1468
  %2097 = vst [vmem:[%s2 + $0x868] sm:$0xff] %v1760
  %2098 = vst [vmem:[%s2 + $0x870] sm:$0xff] %v503
  %2099 = vst [vmem:[%s2 + $0x878] sm:$0xff] %v505
  %2100 = vst [vmem:[%s2 + $0x880] sm:$0xff] %v826
  %2101 = vst [vmem:[%s2 + $0x888] sm:$0xff] %v828
  %2102 = vst [vmem:[%s2 + $0x890] sm:$0xff] %v1149
  %2103 = vst [vmem:[%s2 + $0x898] sm:$0xff] %v1151
  %2104 = vst [vmem:[%s2 + $0x8a0] sm:$0xff] %v1472
  %2105 = vst [vmem:[%s2 + $0x8a8] sm:$0xff] %v1474
  %2106 = vst [vmem:[%s2 + $0x8b0] sm:$0xff] %v1765
  %2107 = vst [vmem:[%s2 + $0x8b8] sm:$0xff] %v509
  %2108 = vst [vmem:[%s2 + $0x8c0] sm:$0xff] %v511
  %2109 = vst [vmem:[%s2 + $0x8c8] sm:$0xff] %v832
  %2110 = vst [vmem:[%s2 + $0x8d0] sm:$0xff] %v834
  %2111 = vst [vmem:[%s2 + $0x8d8] sm:$0xff] %v1155
  %2112 = vst [vmem:[%s2 + $0x8e0] sm:$0xff] %v1157
  %2113 = vst [vmem:[%s2 + $0x8e8] sm:$0xff] %v1478
  %2114 = vst [vmem:[%s2 + $0x8f0] sm:$0xff] %v1480
  %2115 = vst [vmem:[%s2 + $0x8f8] sm:$0xff] %v1770
  %2116 = vst [vmem:[%s2 + $0x900] sm:$0xff] %v515
  %2117 = vst [vmem:[%s2 + $0x908] sm:$0xff] %v517
  %2118 = vst [vmem:[%s2 + $0x910] sm:$0xff] %v838
  %2119 = vst [vmem:[%s2 + $0x918] sm:$0xff] %v840
  %2120 = vst [vmem:[%s2 + $0x920] sm:$0xff] %v1161
  %2121 = vst [vmem:[%s2 + $0x928] sm:$0xff] %v1163
  %2122 = vst [vmem:[%s2 + $0x930] sm:$0xff] %v1484
  %2123 = vst [vmem:[%s2 + $0x938] sm:$0xff] %v1486
  %2124 = vst [vmem:[%s2 + $0x940] sm:$0xff] %v1775
  %2125 = vst [vmem:[%s2 + $0x948] sm:$0xff] %v521
  %2126 = vst [vmem:[%s2 + $0x950] sm:$0xff] %v523
  %2127 = vst [vmem:[%s2 + $0x958] sm:$0xff] %v844
  %2128 = vst [vmem:[%s2 + $0x960] sm:$0xff] %v846
  %2129 = vst [vmem:[%s2 + $0x968] sm:$0xff] %v1167
  %2130 = vst [vmem:[%s2 + $0x970] sm:$0xff] %v1169
  %2131 = vst [vmem:[%s2 + $0x978] sm:$0xff] %v1490
  %2132 = vst [vmem:[%s2 + $0x980] sm:$0xff] %v1492
  %2133 = vst [vmem:[%s2 + $0x988] sm:$0xff] %v1780
  %2134 = vst [vmem:[%s2 + $0x990] sm:$0xff] %v527
  %2135 = vst [vmem:[%s2 + $0x998] sm:$0xff] %v529
  %2136 = vst [vmem:[%s2 + $0x9a0] sm:$0xff] %v850
  %2137 = vst [vmem:[%s2 + $0x9a8] sm:$0xff] %v852
  %2138 = vst [vmem:[%s2 + $0x9b0] sm:$0xff] %v1173
  %2139 = vst [vmem:[%s2 + $0x9b8] sm:$0xff] %v1175
  %2140 = vst [vmem:[%s2 + $0x9c0] sm:$0xff] %v1496
  %2141 = vst [vmem:[%s2 + $0x9c8] sm:$0xff] %v1498
  %2142 = vst [vmem:[%s2 + $0x9d0] sm:$0xff] %v1785
  %2143 = vst [vmem:[%s2 + $0x9d8] sm:$0xff] %v533
  %2144 = vst [vmem:[%s2 + $0x9e0] sm:$0xff] %v535
  %2145 = vst [vmem:[%s2 + $0x9e8] sm:$0xff] %v856
  %2146 = vst [vmem:[%s2 + $0x9f0] sm:$0xff] %v858
  %2147 = vst [vmem:[%s2 + $0x9f8] sm:$0xff] %v1179
  %2148 = vst [vmem:[%s2 + $0xa00] sm:$0xff] %v1181
  %2149 = vst [vmem:[%s2 + $0xa08] sm:$0xff] %v1502
  %2150 = vst [vmem:[%s2 + $0xa10] sm:$0xff] %v1504
  %2151 = vst [vmem:[%s2 + $0xa18] sm:$0xff] %v1790
  %2152 = vst [vmem:[%s2 + $0xa20] sm:$0xff] %v539
  %2153 = vst [vmem:[%s2 + $0xa28] sm:$0xff] %v541
  %2154 = vst [vmem:[%s2 + $0xa30] sm:$0xff] %v862
  %2155 = vst [vmem:[%s2 + $0xa38] sm:$0xff] %v864
  %2156 = vst [vmem:[%s2 + $0xa40] sm:$0xff] %v1185
  %2157 = vst [vmem:[%s2 + $0xa48] sm:$0xff] %v1187
  %2158 = vst [vmem:[%s2 + $0xa50] sm:$0xff] %v1508
  %2159 = vst [vmem:[%s2 + $0xa58] sm:$0xff] %v1510
  %2160 = vst [vmem:[%s2 + $0xa60] sm:$0xff] %v1795
  %2161 = vst [vmem:[%s2 + $0xa68] sm:$0xff] %v545
  %2162 = vst [vmem:[%s2 + $0xa70] sm:$0xff] %v547
  %2163 = vst [vmem:[%s2 + $0xa78] sm:$0xff] %v868
  %2164 = vst [vmem:[%s2 + $0xa80] sm:$0xff] %v870
  %2165 = vst [vmem:[%s2 + $0xa88] sm:$0xff] %v1191
  %2166 = vst [vmem:[%s2 + $0xa90] sm:$0xff] %v1193
  %2167 = vst [vmem:[%s2 + $0xa98] sm:$0xff] %v1514
  %2168 = vst [vmem:[%s2 + $0xaa0] sm:$0xff] %v1516
  %2169 = vst [vmem:[%s2 + $0xaa8] sm:$0xff] %v1800
  %2170 = vst [vmem:[%s2 + $0xab0] sm:$0xff] %v551
  %2171 = vst [vmem:[%s2 + $0xab8] sm:$0xff] %v553
  %2172 = vst [vmem:[%s2 + $0xac0] sm:$0xff] %v874
  %2173 = vst [vmem:[%s2 + $0xac8] sm:$0xff] %v876
  %2174 = vst [vmem:[%s2 + $0xad0] sm:$0xff] %v1197
  %2175 = vst [vmem:[%s2 + $0xad8] sm:$0xff] %v1199
  %2176 = vst [vmem:[%s2 + $0xae0] sm:$0xff] %v1520
  %2177 = vst [vmem:[%s2 + $0xae8] sm:$0xff] %v1522
  %2178 = vst [vmem:[%s2 + $0xaf0] sm:$0xff] %v1805
  %2179 = vst [vmem:[%s2 + $0xaf8] sm:$0xff] %v557
  %2180 = vst [vmem:[%s2 + $0xb00] sm:$0xff] %v559
  %2181 = vst [vmem:[%s2 + $0xb08] sm:$0xff] %v880
  %2182 = vst [vmem:[%s2 + $0xb10] sm:$0xff] %v882
  %2183 = vst [vmem:[%s2 + $0xb18] sm:$0xff] %v1203
  %2184 = vst [vmem:[%s2 + $0xb20] sm:$0xff] %v1205
  %2185 = vst [vmem:[%s2 + $0xb28] sm:$0xff] %v1526
  %2186 = vst [vmem:[%s2 + $0xb30] sm:$0xff] %v1528
  %2187 = vst [vmem:[%s2 + $0xb38] sm:$0xff] %v1810
  %2188 = vst [vmem:[%s2 + $0xb40] sm:$0xff] %v563
  %2189 = vst [vmem:[%s2 + $0xb48] sm:$0xff] %v565
  %2190 = vst [vmem:[%s2 + $0xb50] sm:$0xff] %v886
  %2191 = vst [vmem:[%s2 + $0xb58] sm:$0xff] %v888
  %2192 = vst [vmem:[%s2 + $0xb60] sm:$0xff] %v1209
  %2193 = vst [vmem:[%s2 + $0xb68] sm:$0xff] %v1211
  %2194 = vst [vmem:[%s2 + $0xb70] sm:$0xff] %v1532
  %2195 = vst [vmem:[%s2 + $0xb78] sm:$0xff] %v1534
  %2196 = vst [vmem:[%s2 + $0xb80] sm:$0xff] %v1815
  %2197 = vst [vmem:[%s2 + $0xb88] sm:$0xff] %v569
  %2198 = vst [vmem:[%s2 + $0xb90] sm:$0xff] %v571
  %2199 = vst [vmem:[%s2 + $0xb98] sm:$0xff] %v892
  %2200 = vst [vmem:[%s2 + $0xba0] sm:$0xff] %v894
  %2201 = vst [vmem:[%s2 + $0xba8] sm:$0xff] %v1215
  %2202 = vst [vmem:[%s2 + $0xbb0] sm:$0xff] %v1217
  %2203 = vst [vmem:[%s2 + $0xbb8] sm:$0xff] %v1538
  %2204 = vst [vmem:[%s2 + $0xbc0] sm:$0xff] %v1540
  %2205 = vst [vmem:[%s2 + $0xbc8] sm:$0xff] %v1820
  %2206 = vst [vmem:[%s2 + $0xbd0] sm:$0xff] %v575
  %2207 = vst [vmem:[%s2 + $0xbd8] sm:$0xff] %v577
  %2208 = vst [vmem:[%s2 + $0xbe0] sm:$0xff] %v898
  %2209 = vst [vmem:[%s2 + $0xbe8] sm:$0xff] %v900
  %2210 = vst [vmem:[%s2 + $0xbf0] sm:$0xff] %v1221
  %2211 = vst [vmem:[%s2 + $0xbf8] sm:$0xff] %v1223
  %2212 = vst [vmem:[%s2 + $0xc00] sm:$0xff] %v1544
  %2213 = vst [vmem:[%s2 + $0xc08] sm:$0xff] %v1546
  %2214 = vst [vmem:[%s2 + $0xc10] sm:$0xff] %v1825
  // Predicated region
  $region10: #{decoder_forward.6} parent=0 // pred_check
    _
  $region11: #{decoder_forward.6} parent=0 // pred_check_branch
    %2216 = sbr.rel (0) target = $region13
  $region12: #{decoder_forward.6} parent=0 // pred_region
    _
  $region13: #{decoder_forward.6} parent=0 // pred_fallthru
    _
  // Predicated region
  $region14: #{decoder_forward.6} parent=0 // pred_check
    _
  $region15: #{decoder_forward.6} parent=0 // pred_check_branch
    %2218 = sbr.rel (0) target = $region17
  $region16: #{decoder_forward.6} parent=0 // pred_region
    _
  $region17: #{decoder_forward.6} parent=0 // pred_fallthru
    _

// kernel: decoder_forward.7
$region0: #{decoder_forward.7}
  #allocation0 [shape = 'u32[]', space=smem, size = 0x4, offset = 0x4, fixed_abs, tag = 'smem constant byte address 0x4 - core index']
  #allocation1 [shape = 'u32[144,128]{1,0:T(1,128)}', space=vmem, size = 0x12000, scoped, tag = 'internal scratch']
  %s0 = inlined_call_operand.vmem [shape: f32[2048,32], index: 0, kind: input, shape index: {}]
  %s1 = inlined_call_operand.vmem [shape: f32[32,128], index: 1, kind: input, shape index: {}]
  %s2 = inlined_call_operand.vmem [shape: f32[2048,128], index: 2, kind: output, shape index: {}]
  %s3 = sld [smem:[#allocation0]]
  $region41: #{decoder_forward.7} parent=0
    _
  %s5 = ssub.s32 1, %s3
  %s6 = scalar_select 0, %s5, %s3
  loop: start=0, step=1, limit=4
  $region2: #{decoder_forward.7} parent=0 // loop_pre_header
    _
  $region3: #{decoder_forward.7} parent=0 // loop_header
    %s8 = sphi 0, %s12
    %p9 = scmp.ge.s32.totalorder %s8, 4
    %s18 = sphi 0, %s20
    %s21 = sphi 0, %s18
    %s22 = sphi 0, %s21
    %s38 = sphi 0, %s22
    %s42 = sphi 0, %s42
    %s44 = sphi 0, %s42
    %s45 = sphi 0, %s44
    %s59 = sphi 0, %s45
    %s65 = sphi 0, %s67
    %s68 = sphi 0, %s65
    %s69 = sphi 0, %s68
    %s85 = sphi 0, %s69
  $region4: #{decoder_forward.7} parent=0 // loop_header_branch
    %11 = sbr.rel (%p9) target = $region8
  $region5: #{decoder_forward.7} parent=0 // loop_body
    %s13 = ssub.s32 %s8, 1
    %s14 = ssub.s32 %s8, 2
    %s15 = sadd.s32 %s8, 1
    %s16 = ssub.s32 %s8, %s15
    %p17 = scmp.eq.s32.totalorder %s16, 0
    %s19 = sadd.s32 %s18, 1
    %s20 = scalar_select %p17, %s18, %s19
    %p23 = pneg %p17
    %p24 = scmp.eq.s32.totalorder %s8, 1
    %p25 = por %p23, %p24
    %p26 = scmp.ne.s32.totalorder %s18, %s21
    %p27 = scmp.eq.s32.totalorder %s8, 0
    %p28 = por %p26, %p27
    %p29 = scmp.ne.s32.totalorder %s18, %s21
    %p30 = scmp.eq.s32.totalorder %s13, 1
    %p31 = por %p29, %p30
    %p32 = scmp.ne.s32.totalorder %s21, %s22
    %p33 = scmp.eq.s32.totalorder %s13, 0
    %p34 = por %p32, %p33
    %p35 = scmp.ne.s32.totalorder %s21, %s22
    %p36 = scmp.eq.s32.totalorder %s14, 1
    %p37 = por %p35, %p36
    %p39 = scmp.ne.s32.totalorder %s22, %s38
    %p40 = scmp.eq.s32.totalorder %s14, 0
    %p41 = por %p39, %p40
    %s43 = sadd.s32 %s42, 1
    %p46 = scmp.eq.s32.totalorder %s8, 1
    %p47 = scmp.ne.s32.totalorder %s42, %s44
    %p48 = scmp.eq.s32.totalorder %s8, 0
    %p49 = por %p47, %p48
    %p50 = scmp.ne.s32.totalorder %s42, %s44
    %p51 = scmp.eq.s32.totalorder %s13, 1
    %p52 = por %p50, %p51
    %p53 = scmp.ne.s32.totalorder %s44, %s45
    %p54 = scmp.eq.s32.totalorder %s13, 0
    %p55 = por %p53, %p54
    %p56 = scmp.ne.s32.totalorder %s44, %s45
    %p57 = scmp.eq.s32.totalorder %s14, 1
    %p58 = por %p56, %p57
    %p60 = scmp.ne.s32.totalorder %s45, %s59
    %p61 = scmp.eq.s32.totalorder %s14, 0
    %p62 = por %p60, %p61
    %s63 = ssub.s32 %s8, %s15
    %p64 = scmp.eq.s32.totalorder %s63, 0
    %s66 = sadd.s32 %s65, 1
    %s67 = scalar_select %p64, %s65, %s66
    %p70 = pneg %p64
    %p71 = scmp.eq.s32.totalorder %s8, 1
    %p72 = por %p70, %p71
    %p73 = scmp.ne.s32.totalorder %s65, %s68
    %p74 = scmp.eq.s32.totalorder %s8, 0
    %p75 = por %p73, %p74
    %p76 = scmp.ne.s32.totalorder %s65, %s68
    %p77 = scmp.eq.s32.totalorder %s13, 1
    %p78 = por %p76, %p77
    %p79 = scmp.ne.s32.totalorder %s68, %s69
    %p80 = scmp.eq.s32.totalorder %s13, 0
    %p81 = por %p79, %p80
    %p82 = scmp.ne.s32.totalorder %s68, %s69
    %p83 = scmp.eq.s32.totalorder %s14, 1
    %p84 = por %p82, %p83
    %p86 = scmp.ne.s32.totalorder %s69, %s85
    %p87 = scmp.eq.s32.totalorder %s14, 0
    %p88 = por %p86, %p87
    %p89 = scmp.le.s32.totalorder 1, %s8
    %p90 = scmp.lt.s32.totalorder %s8, 3
    %p91 = pnand %p89, %p90
    %p92 = pneg %p91
    // Predicated region
    $region9: #{decoder_forward.7} parent=5 // pred_check
      _
    $region10: #{decoder_forward.7} parent=5 // pred_check_branch
      %94 = sbr.rel (%p91) target = $region12
    $region11: #{decoder_forward.7} parent=5 // pred_region
      %s95 = ssub.s32 %s8, 1
      // Predicated region
      $region13: #{decoder_forward.7} parent=11 // pred_check
        %p96 = pneg %p55
      $region14: #{decoder_forward.7} parent=11 // pred_check_branch
        %98 = sbr.rel (%p96) target = $region16
      $region15: #{decoder_forward.7} parent=11 // pred_region
        _
      $region16: #{decoder_forward.7} parent=11 // pred_fallthru
        _
    $region12: #{decoder_forward.7} parent=5 // pred_fallthru
      _
    %p99 = scmp.lt.s32.totalorder %s8, 2
    // Predicated region
    $region17: #{decoder_forward.7} parent=5 // pred_check
      %p100 = pneg %p99
    $region18: #{decoder_forward.7} parent=5 // pred_check_branch
      %102 = sbr.rel (%p100) target = $region20
    $region19: #{decoder_forward.7} parent=5 // pred_region
      // Predicated region
      $region21: #{decoder_forward.7} parent=19 // pred_check
        %p103 = pneg %p28
      $region22: #{decoder_forward.7} parent=19 // pred_check_branch
        %105 = sbr.rel (%p103) target = $region24
      $region23: #{decoder_forward.7} parent=19 // pred_region
        %s106 = smul.u32 128, %s8
        %p107 = scmp.lt.s32.totalorder %s106, 255
        %s108 = scalar_select %p107, %s106, 255
        %s109 = smul.addr %s108, 8
        %s110 = scalar_lea.vmem %s0, %s109
        %s111 = smul.u32 128, %s8
      $region24: #{decoder_forward.7} parent=19 // pred_fallthru
        _
    $region20: #{decoder_forward.7} parent=5 // pred_fallthru
      _
    %p112 = scmp.le.s32.totalorder 1, %s8
    %p113 = scmp.lt.s32.totalorder %s8, 3
    %p114 = pnand %p112, %p113
    %p115 = pneg %p114
    // Predicated region
    $region25: #{decoder_forward.7} parent=5 // pred_check
      _
    $region26: #{decoder_forward.7} parent=5 // pred_check_branch
      %117 = sbr.rel (%p114) target = $region28
    $region27: #{decoder_forward.7} parent=5 // pred_region
      %s118 = ssub.s32 %s8, 1
      %s119 = smul.u32 128, %s13
      %p120 = scmp.lt.s32.totalorder %s119, 255
      %s121 = scalar_select %p120, %s119, 255
      %s122 = smul.addr %s121, 8
      %s123 = scalar_lea.vmem %s0, %s122
      %p124 = pneg %p34
      %p125 = pneg %p31
      %p126 = pneg %p55
      %p127 = pneg %p52
      %p128 = pneg %p81
      %p129 = pneg %p78
      %s130 = smul.u32 128, %s13
      %p131 = scmp.lt.s32.totalorder %s130, 255
      %s132 = scalar_select %p131, %s130, 255
      %s133 = smul.addr %s132, 8
      %s134 = scalar_lea.vmem %s2, %s133
      %s135 = smul.u32 128, %s13
      %p136 = scmp.lt.s32.totalorder %s135, 255
      %s137 = scalar_select %p136, %s135, 255
      %s138 = smul.addr %s137, 8
      %s139 = scalar_lea.vmem %s0, %s138
      %s140 = smul.u32 128, %s13
      %s141 = smul.u32 128, %s13
      %p142 = scmp.lt.s32.totalorder %s141, 255
      %s143 = scalar_select %p142, %s141, 255
      %s144 = smul.addr %s143, 8
      %s145 = scalar_lea.vmem %s2, %s144
      %s146 = smul.u32 128, %s13
      %v147 = vld [vmem:[%s139] sm:$0xff]
      %v148 = vld [vmem:[%s139 + $0x8] sm:$0xff]
      %v149 = vld [vmem:[%s139 + $0x10] sm:$0xff]
      %v150 = vld [vmem:[%s139 + $0x18] sm:$0xff]
      %v151 = vld [vmem:[%s139 + $0x20] sm:$0xff]
      %v152 = vld [vmem:[%s139 + $0x28] sm:$0xff]
      %v153 = vld [vmem:[%s139 + $0x30] sm:$0xff]
      %v154 = vld [vmem:[%s139 + $0x38] sm:$0xff]
      %v155 = vld [vmem:[%s139 + $0x40] sm:$0xff]
      %v156 = vld [vmem:[%s139 + $0x48] sm:$0xff]
      %v157 = vld [vmem:[%s139 + $0x50] sm:$0xff]
      %v158 = vld [vmem:[%s139 + $0x58] sm:$0xff]
      %v159 = vld [vmem:[%s139 + $0x60] sm:$0xff]
      %v160 = vld [vmem:[%s139 + $0x68] sm:$0xff]
      %v161 = vld [vmem:[%s139 + $0x70] sm:$0xff]
      %v162 = vld [vmem:[%s139 + $0x78] sm:$0xff]
      %v163 = vld [vmem:[%s139 + $0x80] sm:$0xff]
      %v164 = vld [vmem:[%s139 + $0x88] sm:$0xff]
      %v165 = vld [vmem:[%s139 + $0x90] sm:$0xff]
      %v166 = vld [vmem:[%s139 + $0x98] sm:$0xff]
      %v167 = vld [vmem:[%s139 + $0xa0] sm:$0xff]
      %v168 = vld [vmem:[%s139 + $0xa8] sm:$0xff]
      %v169 = vld [vmem:[%s139 + $0xb0] sm:$0xff]
      %v170 = vld [vmem:[%s139 + $0xb8] sm:$0xff]
      %v171 = vld [vmem:[%s139 + $0xc0] sm:$0xff]
      %v172 = vld [vmem:[%s139 + $0xc8] sm:$0xff]
      %v173 = vld [vmem:[%s139 + $0xd0] sm:$0xff]
      %v174 = vld [vmem:[%s139 + $0xd8] sm:$0xff]
      %v175 = vld [vmem:[%s139 + $0xe0] sm:$0xff]
      %v176 = vld [vmem:[%s139 + $0xe8] sm:$0xff]
      %v177 = vld [vmem:[%s139 + $0xf0] sm:$0xff]
      %v178 = vld [vmem:[%s139 + $0xf8] sm:$0xff]
      %v179 = vld [vmem:[%s139 + $0x100] sm:$0xff]
      %v180 = vld [vmem:[%s139 + $0x108] sm:$0xff]
      %v181 = vld [vmem:[%s139 + $0x110] sm:$0xff]
      %v182 = vld [vmem:[%s139 + $0x118] sm:$0xff]
      %v183 = vld [vmem:[%s139 + $0x120] sm:$0xff]
      %v184 = vld [vmem:[%s139 + $0x128] sm:$0xff]
      %v185 = vld [vmem:[%s139 + $0x130] sm:$0xff]
      %v186 = vld [vmem:[%s139 + $0x138] sm:$0xff]
      %v187 = vld [vmem:[%s139 + $0x140] sm:$0xff]
      %v188 = vld [vmem:[%s139 + $0x148] sm:$0xff]
      %v189 = vld [vmem:[%s139 + $0x150] sm:$0xff]
      %v190 = vld [vmem:[%s139 + $0x158] sm:$0xff]
      %v191 = vld [vmem:[%s139 + $0x160] sm:$0xff]
      %v192 = vld [vmem:[%s139 + $0x168] sm:$0xff]
      %v193 = vld [vmem:[%s139 + $0x170] sm:$0xff]
      %v194 = vld [vmem:[%s139 + $0x178] sm:$0xff]
      %v195 = vld [vmem:[%s139 + $0x180] sm:$0xff]
      %v196 = vld [vmem:[%s139 + $0x188] sm:$0xff]
      %v197 = vld [vmem:[%s139 + $0x190] sm:$0xff]
      %v198 = vld [vmem:[%s139 + $0x198] sm:$0xff]
      %v199 = vld [vmem:[%s139 + $0x1a0] sm:$0xff]
      %v200 = vld [vmem:[%s139 + $0x1a8] sm:$0xff]
      %v201 = vld [vmem:[%s139 + $0x1b0] sm:$0xff]
      %v202 = vld [vmem:[%s139 + $0x1b8] sm:$0xff]
      %v203 = vld [vmem:[%s139 + $0x1c0] sm:$0xff]
      %v204 = vld [vmem:[%s139 + $0x1c8] sm:$0xff]
      %v205 = vld [vmem:[%s139 + $0x1d0] sm:$0xff]
      %v206 = vld [vmem:[%s139 + $0x1d8] sm:$0xff]
      %v207 = vld [vmem:[%s139 + $0x1e0] sm:$0xff]
      %v208 = vld [vmem:[%s139 + $0x1e8] sm:$0xff]
      %v209 = vld [vmem:[%s139 + $0x1f0] sm:$0xff]
      %v210 = vld [vmem:[%s139 + $0x1f8] sm:$0xff]
      %v211 = vld [vmem:[%s139 + $0x200] sm:$0xff]
      %v212 = vld [vmem:[%s139 + $0x208] sm:$0xff]
      %v213 = vld [vmem:[%s139 + $0x210] sm:$0xff]
      %v214 = vld [vmem:[%s139 + $0x218] sm:$0xff]
      %v215 = vld [vmem:[%s139 + $0x220] sm:$0xff]
      %v216 = vld [vmem:[%s139 + $0x228] sm:$0xff]
      %v217 = vld [vmem:[%s139 + $0x230] sm:$0xff]
      %v218 = vld [vmem:[%s139 + $0x238] sm:$0xff]
      %v219 = vld [vmem:[%s139 + $0x240] sm:$0xff]
      %v220 = vld [vmem:[%s139 + $0x248] sm:$0xff]
      %v221 = vld [vmem:[%s139 + $0x250] sm:$0xff]
      %v222 = vld [vmem:[%s139 + $0x258] sm:$0xff]
      %v223 = vld [vmem:[%s139 + $0x260] sm:$0xff]
      %v224 = vld [vmem:[%s139 + $0x268] sm:$0xff]
      %v225 = vld [vmem:[%s139 + $0x270] sm:$0xff]
      %v226 = vld [vmem:[%s139 + $0x278] sm:$0xff]
      %v227 = vld [vmem:[%s139 + $0x280] sm:$0xff]
      %v228 = vld [vmem:[%s139 + $0x288] sm:$0xff]
      %v229 = vld [vmem:[%s139 + $0x290] sm:$0xff]
      %v230 = vld [vmem:[%s139 + $0x298] sm:$0xff]
      %v231 = vld [vmem:[%s139 + $0x2a0] sm:$0xff]
      %v232 = vld [vmem:[%s139 + $0x2a8] sm:$0xff]
      %v233 = vld [vmem:[%s139 + $0x2b0] sm:$0xff]
      %v234 = vld [vmem:[%s139 + $0x2b8] sm:$0xff]
      %v235 = vld [vmem:[%s139 + $0x2c0] sm:$0xff]
      %v236 = vld [vmem:[%s139 + $0x2c8] sm:$0xff]
      %v237 = vld [vmem:[%s139 + $0x2d0] sm:$0xff]
      %v238 = vld [vmem:[%s139 + $0x2d8] sm:$0xff]
      %v239 = vld [vmem:[%s139 + $0x2e0] sm:$0xff]
      %v240 = vld [vmem:[%s139 + $0x2e8] sm:$0xff]
      %v241 = vld [vmem:[%s139 + $0x2f0] sm:$0xff]
      %v242 = vld [vmem:[%s139 + $0x2f8] sm:$0xff]
      %v243 = vld [vmem:[%s139 + $0x300] sm:$0xff]
      %v244 = vld [vmem:[%s139 + $0x308] sm:$0xff]
      %v245 = vld [vmem:[%s139 + $0x310] sm:$0xff]
      %v246 = vld [vmem:[%s139 + $0x318] sm:$0xff]
      %v247 = vld [vmem:[%s139 + $0x320] sm:$0xff]
      %v248 = vld [vmem:[%s139 + $0x328] sm:$0xff]
      %v249 = vld [vmem:[%s139 + $0x330] sm:$0xff]
      %v250 = vld [vmem:[%s139 + $0x338] sm:$0xff]
      %v251 = vld [vmem:[%s139 + $0x340] sm:$0xff]
      %v252 = vld [vmem:[%s139 + $0x348] sm:$0xff]
      %v253 = vld [vmem:[%s139 + $0x350] sm:$0xff]
      %v254 = vld [vmem:[%s139 + $0x358] sm:$0xff]
      %v255 = vld [vmem:[%s139 + $0x360] sm:$0xff]
      %v256 = vld [vmem:[%s139 + $0x368] sm:$0xff]
      %v257 = vld [vmem:[%s139 + $0x370] sm:$0xff]
      %v258 = vld [vmem:[%s139 + $0x378] sm:$0xff]
      %v259 = vld [vmem:[%s139 + $0x380] sm:$0xff]
      %v260 = vld [vmem:[%s139 + $0x388] sm:$0xff]
      %v261 = vld [vmem:[%s139 + $0x390] sm:$0xff]
      %v262 = vld [vmem:[%s139 + $0x398] sm:$0xff]
      %v263 = vld [vmem:[%s139 + $0x3a0] sm:$0xff]
      %v264 = vld [vmem:[%s139 + $0x3a8] sm:$0xff]
      %v265 = vld [vmem:[%s139 + $0x3b0] sm:$0xff]
      %v266 = vld [vmem:[%s139 + $0x3b8] sm:$0xff]
      %v267 = vld [vmem:[%s139 + $0x3c0] sm:$0xff]
      %v268 = vld [vmem:[%s139 + $0x3c8] sm:$0xff]
      %v269 = vld [vmem:[%s139 + $0x3d0] sm:$0xff]
      %v270 = vld [vmem:[%s139 + $0x3d8] sm:$0xff]
      %v271 = vld [vmem:[%s139 + $0x3e0] sm:$0xff]
      %v272 = vld [vmem:[%s139 + $0x3e8] sm:$0xff]
      %v273 = vld [vmem:[%s139 + $0x3f0] sm:$0xff]
      %v274 = vld [vmem:[%s139 + $0x3f8] sm:$0xff]
      %v275 = vld [vmem:[%s1] sm:$0xff]
      %v276 = vld [vmem:[%s1 + $0x8] sm:$0xff]
      %v277 = vld [vmem:[%s1 + $0x10] sm:$0xff]
      %v278 = vld [vmem:[%s1 + $0x18] sm:$0xff]
      %vm279 = vcmask 261120
      %v281 = vsel %vm279, %v147, 0
      %v284 = vsel %vm279, %v148, 0
      %v287 = vsel %vm279, %v149, 0
      %v290 = vsel %vm279, %v150, 0
      %v293 = vsel %vm279, %v151, 0
      %v296 = vsel %vm279, %v152, 0
      %v299 = vsel %vm279, %v153, 0
      %v302 = vsel %vm279, %v154, 0
      %v305 = vsel %vm279, %v155, 0
      %v308 = vsel %vm279, %v156, 0
      %v311 = vsel %vm279, %v157, 0
      %v314 = vsel %vm279, %v158, 0
      %v317 = vsel %vm279, %v159, 0
      %v320 = vsel %vm279, %v160, 0
      %v323 = vsel %vm279, %v161, 0
      %v326 = vsel %vm279, %v162, 0
      %v329 = vsel %vm279, %v163, 0
      %v332 = vsel %vm279, %v164, 0
      %v335 = vsel %vm279, %v165, 0
      %v338 = vsel %vm279, %v166, 0
      %v341 = vsel %vm279, %v167, 0
      %v344 = vsel %vm279, %v168, 0
      %v347 = vsel %vm279, %v169, 0
      %v350 = vsel %vm279, %v170, 0
      %v353 = vsel %vm279, %v171, 0
      %v356 = vsel %vm279, %v172, 0
      %v359 = vsel %vm279, %v173, 0
      %v362 = vsel %vm279, %v174, 0
      %v365 = vsel %vm279, %v175, 0
      %v368 = vsel %vm279, %v176, 0
      %v371 = vsel %vm279, %v177, 0
      %v374 = vsel %vm279, %v178, 0
      %v377 = vsel %vm279, %v179, 0
      %v380 = vsel %vm279, %v180, 0
      %v383 = vsel %vm279, %v181, 0
      %v386 = vsel %vm279, %v182, 0
      %v389 = vsel %vm279, %v183, 0
      %v392 = vsel %vm279, %v184, 0
      %v395 = vsel %vm279, %v185, 0
      %v398 = vsel %vm279, %v186, 0
      %v401 = vsel %vm279, %v187, 0
      %v404 = vsel %vm279, %v188, 0
      %v407 = vsel %vm279, %v189, 0
      %v410 = vsel %vm279, %v190, 0
      %v413 = vsel %vm279, %v191, 0
      %v416 = vsel %vm279, %v192, 0
      %v419 = vsel %vm279, %v193, 0
      %v422 = vsel %vm279, %v194, 0
      %v425 = vsel %vm279, %v195, 0
      %v428 = vsel %vm279, %v196, 0
      %v431 = vsel %vm279, %v197, 0
      %v434 = vsel %vm279, %v198, 0
      %v437 = vsel %vm279, %v199, 0
      %v440 = vsel %vm279, %v200, 0
      %v443 = vsel %vm279, %v201, 0
      %v446 = vsel %vm279, %v202, 0
      %v449 = vsel %vm279, %v203, 0
      %v452 = vsel %vm279, %v204, 0
      %v455 = vsel %vm279, %v205, 0
      %v458 = vsel %vm279, %v206, 0
      %v461 = vsel %vm279, %v207, 0
      %v464 = vsel %vm279, %v208, 0
      %v467 = vsel %vm279, %v209, 0
      %v470 = vsel %vm279, %v210, 0
      %v473 = vsel %vm279, %v211, 0
      %v476 = vsel %vm279, %v212, 0
      %v479 = vsel %vm279, %v213, 0
      %v482 = vsel %vm279, %v214, 0
      %v485 = vsel %vm279, %v215, 0
      %v488 = vsel %vm279, %v216, 0
      %v491 = vsel %vm279, %v217, 0
      %v494 = vsel %vm279, %v218, 0
      %v497 = vsel %vm279, %v219, 0
      %v500 = vsel %vm279, %v220, 0
      %v503 = vsel %vm279, %v221, 0
      %v506 = vsel %vm279, %v222, 0
      %v509 = vsel %vm279, %v223, 0
      %v512 = vsel %vm279, %v224, 0
      %v515 = vsel %vm279, %v225, 0
      %v518 = vsel %vm279, %v226, 0
      %v521 = vsel %vm279, %v227, 0
      %v524 = vsel %vm279, %v228, 0
      %v527 = vsel %vm279, %v229, 0
      %v530 = vsel %vm279, %v230, 0
      %v533 = vsel %vm279, %v231, 0
      %v536 = vsel %vm279, %v232, 0
      %v539 = vsel %vm279, %v233, 0
      %v542 = vsel %vm279, %v234, 0
      %v545 = vsel %vm279, %v235, 0
      %v548 = vsel %vm279, %v236, 0
      %v551 = vsel %vm279, %v237, 0
      %v554 = vsel %vm279, %v238, 0
      %v557 = vsel %vm279, %v239, 0
      %v560 = vsel %vm279, %v240, 0
      %v563 = vsel %vm279, %v241, 0
      %v566 = vsel %vm279, %v242, 0
      %v569 = vsel %vm279, %v243, 0
      %v572 = vsel %vm279, %v244, 0
      %v575 = vsel %vm279, %v245, 0
      %v578 = vsel %vm279, %v246, 0
      %v581 = vsel %vm279, %v247, 0
      %v584 = vsel %vm279, %v248, 0
      %v587 = vsel %vm279, %v249, 0
      %v590 = vsel %vm279, %v250, 0
      %v593 = vsel %vm279, %v251, 0
      %v596 = vsel %vm279, %v252, 0
      %v599 = vsel %vm279, %v253, 0
      %v602 = vsel %vm279, %v254, 0
      %v605 = vsel %vm279, %v255, 0
      %v608 = vsel %vm279, %v256, 0
      %v611 = vsel %vm279, %v257, 0
      %v614 = vsel %vm279, %v258, 0
      %v617 = vsel %vm279, %v259, 0
      %v620 = vsel %vm279, %v260, 0
      %v623 = vsel %vm279, %v261, 0
      %v626 = vsel %vm279, %v262, 0
      %v629 = vsel %vm279, %v263, 0
      %v632 = vsel %vm279, %v264, 0
      %v635 = vsel %vm279, %v265, 0
      %v638 = vsel %vm279, %v266, 0
      %v641 = vsel %vm279, %v267, 0
      %v644 = vsel %vm279, %v268, 0
      %v647 = vsel %vm279, %v269, 0
      %v650 = vsel %vm279, %v270, 0
      %v653 = vsel %vm279, %v271, 0
      %v656 = vsel %vm279, %v272, 0
      %v659 = vsel %vm279, %v273, 0
      %v662 = vsel %vm279, %v274, 0
      %664 = vmatprep.subr.mxu0 0.0
      %665 = vmatpush1.msra.mxu0 %v275
      %666 = vmatprep.subr.mxu0 0.0
      %667 = vmatpush1.msra.mxu0 %v276
      %668 = vmatprep.subr.mxu0 0.0
      %669 = vmatpush1.msra.mxu0 %v277
      %670 = vmatprep.subr.mxu0 0.0
      %671 = vmatpush1.msra.mxu0 %v278
      %672 = vmatprep.subr.mxu0 0.0
      %673 = vmatpush1.msra.mxu0 0.0
      %674 = vmatprep.subr.mxu0 0.0
      %675 = vmatpush1.msra.mxu0 0.0
      %676 = vmatprep.subr.mxu0 0.0
      %677 = vmatpush1.msra.mxu0 0.0
      %678 = vmatprep.subr.mxu0 0.0
      %679 = vmatpush1.msra.mxu0 0.0
      %680 = vmatprep.subr.mxu0 0.0
      %681 = vmatpush1.msra.mxu0 0.0
      %682 = vmatprep.subr.mxu0 0.0
      %683 = vmatpush1.msra.mxu0 0.0
      %684 = vmatprep.subr.mxu0 0.0
      %685 = vmatpush1.msra.mxu0 0.0
      %686 = vmatprep.subr.mxu0 0.0
      %687 = vmatpush1.msra.mxu0 0.0
      %688 = vmatprep.subr.mxu0 0.0
      %689 = vmatpush1.msra.mxu0 0.0
      %690 = vmatprep.subr.mxu0 0.0
      %691 = vmatpush1.msra.mxu0 0.0
      %692 = vmatprep.subr.mxu0 0.0
      %693 = vmatpush1.msra.mxu0 0.0
      %694 = vmatprep.subr.mxu0 0.0
      %695 = vmatpush1.msra.mxu0 0.0
      %696 = vmatprep.subr.mxu0 0.0
      %697 = vmatpush1.msra.mxu0 0.0
      %698 = vmatprep.subr.mxu0 0.0
      %699 = vmatpush1.msra.mxu0 0.0
      %700 = vmatprep.subr.mxu0 0.0
      %701 = vmatpush1.msra.mxu0 0.0
      %702 = vmatprep.subr.mxu0 0.0
      %703 = vmatpush1.msra.mxu0 0.0
      %704 = vmatprep.subr.mxu0 0.0
      %705 = vmatpush1.msra.mxu0 0.0
      %706 = vmatprep.subr.mxu0 0.0
      %707 = vmatpush1.msra.mxu0 0.0
      %708 = vmatprep.subr.mxu0 0.0
      %709 = vmatpush1.msra.mxu0 0.0
      %710 = vmatprep.subr.mxu0 0.0
      %711 = vmatpush1.msra.mxu0 0.0
      %712 = vmatprep.subr.mxu0 0.0
      %713 = vmatpush1.msra.mxu0 0.0
      %714 = vmatprep.subr.mxu0 0.0
      %715 = vmatpush1.msra.mxu0 0.0
      %716 = vmatprep.subr.mxu0 0.0
      %717 = vmatpush1.msra.mxu0 0.0
      %718 = vmatprep.subr.mxu0 0.0
      %719 = vmatpush1.msra.mxu0 0.0
      %720 = vmatprep.subr.mxu0 0.0
      %721 = vmatpush1.msra.mxu0 0.0
      %722 = vmatprep.subr.mxu0 0.0
      %723 = vmatpush1.msra.mxu0 0.0
      %724 = vmatprep.subr.mxu0 0.0
      %725 = vmatpush1.msra.mxu0 0.0
      %726 = vmatprep.subr.mxu0 0.0
      %727 = vmatpush1.msra.mxu0 0.0
      %728 = vmatprep.mubr.f32.mxu0 0.0
      %729 = vmatmul.mubr.f32.gmra.mrb[0].mxu0 %v281
      %v730 = vpop.f32.mrb[0].mxu0
      %v731 = vadd.f32 0.0, %v730
      %v732 = vpop.f32.mrb[0].mxu0
      %733 = vmatprep.mubr.f32.mxu0 0.0
      %734 = vmatmul.mubr.f32.gmra.mrb[0].mxu0 %v284
      %v735 = vpop.f32.mrb[0].mxu0
      %v736 = vadd.f32 0.0, %v735
      %v737 = vpop.f32.mrb[0].mxu0
      %738 = vmatprep.mubr.f32.mxu0 0.0
      %739 = vmatmul.mubr.f32.gmra.mrb[0].mxu0 %v287
      %v740 = vpop.f32.mrb[0].mxu0
      %v741 = vadd.f32 0.0, %v740
      %v742 = vpop.f32.mrb[0].mxu0
      %743 = vmatprep.mubr.f32.mxu0 0.0
      %744 = vmatmul.mubr.f32.gmra.mrb[0].mxu0 %v290
      %v745 = vpop.f32.mrb[0].mxu0
      %v746 = vadd.f32 0.0, %v745
      %v747 = vpop.f32.mrb[0].mxu0
      %748 = vmatprep.mubr.f32.mxu0 0.0
      %749 = vmatmul.mubr.f32.gmra.mrb[0].mxu0 %v293
      %v750 = vpop.f32.mrb[0].mxu0
      %v751 = vadd.f32 0.0, %v750
      %v752 = vpop.f32.mrb[0].mxu0
      %753 = vmatprep.mubr.f32.mxu0 0.0
      %754 = vmatmul.mubr.f32.gmra.mrb[0].mxu0 %v296
      %v755 = vpop.f32.mrb[0].mxu0
      %v756 = vadd.f32 0.0, %v755
      %v757 = vpop.f32.mrb[0].mxu0
      %758 = vmatprep.mubr.f32.mxu0 0.0
      %759 = vmatmul.mubr.f32.gmra.mrb[0].mxu0 %v299
      %v760 = vpop.f32.mrb[0].mxu0
      %v761 = vadd.f32 0.0, %v760
      %v762 = vpop.f32.mrb[0].mxu0
      %763 = vmatprep.mubr.f32.mxu0 0.0
      %764 = vmatmul.mubr.f32.gmra.mrb[0].mxu0 %v302
      %v765 = vpop.f32.mrb[0].mxu0
      %v766 = vadd.f32 0.0, %v765
      %v767 = vpop.f32.mrb[0].mxu0
      %768 = vmatprep.mubr.f32.mxu0 0.0
      %769 = vmatmul.mubr.f32.gmra.mrb[0].mxu0 %v305
      %v770 = vpop.f32.mrb[0].mxu0
      %v771 = vadd.f32 0.0, %v770
      %v772 = vpop.f32.mrb[0].mxu0
      %773 = vmatprep.mubr.f32.mxu0 0.0
      %774 = vmatmul.mubr.f32.gmra.mrb[0].mxu0 %v308
      %v775 = vpop.f32.mrb[0].mxu0
      %v776 = vadd.f32 0.0, %v775
      %v777 = vpop.f32.mrb[0].mxu0
      %778 = vmatprep.mubr.f32.mxu0 0.0
      %779 = vmatmul.mubr.f32.gmra.mrb[0].mxu0 %v311
      %v780 = vpop.f32.mrb[0].mxu0
      %v781 = vadd.f32 0.0, %v780
      %v782 = vpop.f32.mrb[0].mxu0
      %783 = vmatprep.mubr.f32.mxu0 0.0
      %784 = vmatmul.mubr.f32.gmra.mrb[0].mxu0 %v314
      %v785 = vpop.f32.mrb[0].mxu0
      %v786 = vadd.f32 0.0, %v785
      %v787 = vpop.f32.mrb[0].mxu0
      %788 = vmatprep.mubr.f32.mxu0 0.0
      %789 = vmatmul.mubr.f32.gmra.mrb[0].mxu0 %v317
      %v790 = vpop.f32.mrb[0].mxu0
      %v791 = vadd.f32 0.0, %v790
      %v792 = vpop.f32.mrb[0].mxu0
      %793 = vmatprep.mubr.f32.mxu0 0.0
      %794 = vmatmul.mubr.f32.gmra.mrb[0].mxu0 %v320
      %v795 = vpop.f32.mrb[0].mxu0
      %v796 = vadd.f32 0.0, %v795
      %v797 = vpop.f32.mrb[0].mxu0
      %798 = vmatprep.mubr.f32.mxu0 0.0
      %799 = vmatmul.mubr.f32.gmra.mrb[0].mxu0 %v323
      %v800 = vpop.f32.mrb[0].mxu0
      %v801 = vadd.f32 0.0, %v800
      %v802 = vpop.f32.mrb[0].mxu0
      %803 = vmatprep.mubr.f32.mxu0 0.0
      %804 = vmatmul.mubr.f32.gmra.mrb[0].mxu0 %v326
      %v805 = vpop.f32.mrb[0].mxu0
      %v806 = vadd.f32 0.0, %v805
      %v807 = vpop.f32.mrb[0].mxu0
      %808 = vmatprep.mubr.f32.mxu0 0.0
      %809 = vmatmul.mubr.f32.gmra.mrb[0].mxu0 %v329
      %v810 = vpop.f32.mrb[0].mxu0
      %v811 = vadd.f32 0.0, %v810
      %v812 = vpop.f32.mrb[0].mxu0
      %813 = vmatprep.mubr.f32.mxu0 0.0
      %814 = vmatmul.mubr.f32.gmra.mrb[0].mxu0 %v332
      %v815 = vpop.f32.mrb[0].mxu0
      %v816 = vadd.f32 0.0, %v815
      %v817 = vpop.f32.mrb[0].mxu0
      %818 = vmatprep.mubr.f32.mxu0 0.0
      %819 = vmatmul.mubr.f32.gmra.mrb[0].mxu0 %v335
      %v820 = vpop.f32.mrb[0].mxu0
      %v821 = vadd.f32 0.0, %v820
      %v822 = vpop.f32.mrb[0].mxu0
      %823 = vmatprep.mubr.f32.mxu0 0.0
      %824 = vmatmul.mubr.f32.gmra.mrb[0].mxu0 %v338
      %v825 = vpop.f32.mrb[0].mxu0
      %v826 = vadd.f32 0.0, %v825
      %v827 = vpop.f32.mrb[0].mxu0
      %828 = vmatprep.mubr.f32.mxu0 0.0
      %829 = vmatmul.mubr.f32.gmra.mrb[0].mxu0 %v341
      %v830 = vpop.f32.mrb[0].mxu0
      %v831 = vadd.f32 0.0, %v830
      %v832 = vpop.f32.mrb[0].mxu0
      %833 = vmatprep.mubr.f32.mxu0 0.0
      %834 = vmatmul.mubr.f32.gmra.mrb[0].mxu0 %v344
      %v835 = vpop.f32.mrb[0].mxu0
      %v836 = vadd.f32 0.0, %v835
      %v837 = vpop.f32.mrb[0].mxu0
      %838 = vmatprep.mubr.f32.mxu0 0.0
      %839 = vmatmul.mubr.f32.gmra.mrb[0].mxu0 %v347
      %v840 = vpop.f32.mrb[0].mxu0
      %v841 = vadd.f32 0.0, %v840
      %v842 = vpop.f32.mrb[0].mxu0
      %843 = vmatprep.mubr.f32.mxu0 0.0
      %844 = vmatmul.mubr.f32.gmra.mrb[0].mxu0 %v350
      %v845 = vpop.f32.mrb[0].mxu0
      %v846 = vadd.f32 0.0, %v845
      %v847 = vpop.f32.mrb[0].mxu0
      %848 = vmatprep.mubr.f32.mxu0 0.0
      %849 = vmatmul.mubr.f32.gmra.mrb[0].mxu0 %v353
      %v850 = vpop.f32.mrb[0].mxu0
      %v851 = vadd.f32 0.0, %v850
      %v852 = vpop.f32.mrb[0].mxu0
      %853 = vmatprep.mubr.f32.mxu0 0.0
      %854 = vmatmul.mubr.f32.gmra.mrb[0].mxu0 %v356
      %v855 = vpop.f32.mrb[0].mxu0
      %v856 = vadd.f32 0.0, %v855
      %v857 = vpop.f32.mrb[0].mxu0
      %858 = vmatprep.mubr.f32.mxu0 0.0
      %859 = vmatmul.mubr.f32.gmra.mrb[0].mxu0 %v359
      %v860 = vpop.f32.mrb[0].mxu0
      %v861 = vadd.f32 0.0, %v860
      %v862 = vpop.f32.mrb[0].mxu0
      %863 = vmatprep.mubr.f32.mxu0 0.0
      %864 = vmatmul.mubr.f32.gmra.mrb[0].mxu0 %v362
      %v865 = vpop.f32.mrb[0].mxu0
      %v866 = vadd.f32 0.0, %v865
      %v867 = vpop.f32.mrb[0].mxu0
      %868 = vmatprep.mubr.f32.mxu0 0.0
      %869 = vmatmul.mubr.f32.gmra.mrb[0].mxu0 %v365
      %v870 = vpop.f32.mrb[0].mxu0
      %v871 = vadd.f32 0.0, %v870
      %v872 = vpop.f32.mrb[0].mxu0
      %873 = vmatprep.mubr.f32.mxu0 0.0
      %874 = vmatmul.mubr.f32.gmra.mrb[0].mxu0 %v368
      %v875 = vpop.f32.mrb[0].mxu0
      %v876 = vadd.f32 0.0, %v875
      %v877 = vpop.f32.mrb[0].mxu0
      %878 = vmatprep.mubr.f32.mxu0 0.0
      %879 = vmatmul.mubr.f32.gmra.mrb[0].mxu0 %v371
      %v880 = vpop.f32.mrb[0].mxu0
      %v881 = vadd.f32 0.0, %v880
      %v882 = vpop.f32.mrb[0].mxu0
      %883 = vmatprep.mubr.f32.mxu0 0.0
      %884 = vmatmul.mubr.f32.gmra.mrb[0].mxu0 %v374
      %v885 = vpop.f32.mrb[0].mxu0
      %v886 = vadd.f32 0.0, %v885
      %v887 = vpop.f32.mrb[0].mxu0
      %888 = vmatprep.mubr.f32.mxu0 0.0
      %889 = vmatmul.mubr.f32.gmra.mrb[0].mxu0 %v377
      %v890 = vpop.f32.mrb[0].mxu0
      %v891 = vadd.f32 0.0, %v890
      %v892 = vpop.f32.mrb[0].mxu0
      %893 = vmatprep.mubr.f32.mxu0 0.0
      %894 = vmatmul.mubr.f32.gmra.mrb[0].mxu0 %v380
      %v895 = vpop.f32.mrb[0].mxu0
      %v896 = vadd.f32 0.0, %v895
      %v897 = vpop.f32.mrb[0].mxu0
      %898 = vmatprep.mubr.f32.mxu0 0.0
      %899 = vmatmul.mubr.f32.gmra.mrb[0].mxu0 %v383
      %v900 = vpop.f32.mrb[0].mxu0
      %v901 = vadd.f32 0.0, %v900
      %v902 = vpop.f32.mrb[0].mxu0
      %903 = vmatprep.mubr.f32.mxu0 0.0
      %904 = vmatmul.mubr.f32.gmra.mrb[0].mxu0 %v386
      %v905 = vpop.f32.mrb[0].mxu0
      %v906 = vadd.f32 0.0, %v905
      %v907 = vpop.f32.mrb[0].mxu0
      %908 = vmatprep.mubr.f32.mxu0 0.0
      %909 = vmatmul.mubr.f32.gmra.mrb[0].mxu0 %v389
      %v910 = vpop.f32.mrb[0].mxu0
      %v911 = vadd.f32 0.0, %v910
      %v912 = vpop.f32.mrb[0].mxu0
      %913 = vmatprep.mubr.f32.mxu0 0.0
      %914 = vmatmul.mubr.f32.gmra.mrb[0].mxu0 %v392
      %v915 = vpop.f32.mrb[0].mxu0
      %v916 = vadd.f32 0.0, %v915
      %v917 = vpop.f32.mrb[0].mxu0
      %918 = vmatprep.mubr.f32.mxu0 0.0
      %919 = vmatmul.mubr.f32.gmra.mrb[0].mxu0 %v395
      %v920 = vpop.f32.mrb[0].mxu0
      %v921 = vadd.f32 0.0, %v920
      %v922 = vpop.f32.mrb[0].mxu0
      %923 = vmatprep.mubr.f32.mxu0 0.0
      %924 = vmatmul.mubr.f32.gmra.mrb[0].mxu0 %v398
      %v925 = vpop.f32.mrb[0].mxu0
      %v926 = vadd.f32 0.0, %v925
      %v927 = vpop.f32.mrb[0].mxu0
      %928 = vmatprep.mubr.f32.mxu0 0.0
      %929 = vmatmul.mubr.f32.gmra.mrb[0].mxu0 %v401
      %v930 = vpop.f32.mrb[0].mxu0
      %v931 = vadd.f32 0.0, %v930
      %v932 = vpop.f32.mrb[0].mxu0
      %933 = vmatprep.mubr.f32.mxu0 0.0
      %934 = vmatmul.mubr.f32.gmra.mrb[0].mxu0 %v404
      %v935 = vpop.f32.mrb[0].mxu0
      %v936 = vadd.f32 0.0, %v935
      %v937 = vpop.f32.mrb[0].mxu0
      %938 = vmatprep.mubr.f32.mxu0 0.0
      %939 = vmatmul.mubr.f32.gmra.mrb[0].mxu0 %v407
      %v940 = vpop.f32.mrb[0].mxu0
      %v941 = vadd.f32 0.0, %v940
      %v942 = vpop.f32.mrb[0].mxu0
      %943 = vmatprep.mubr.f32.mxu0 0.0
      %944 = vmatmul.mubr.f32.gmra.mrb[0].mxu0 %v410
      %v945 = vpop.f32.mrb[0].mxu0
      %v946 = vadd.f32 0.0, %v945
      %v947 = vpop.f32.mrb[0].mxu0
      %948 = vmatprep.mubr.f32.mxu0 0.0
      %949 = vmatmul.mubr.f32.gmra.mrb[0].mxu0 %v413
      %v950 = vpop.f32.mrb[0].mxu0
      %v951 = vadd.f32 0.0, %v950
      %v952 = vpop.f32.mrb[0].mxu0
      %953 = vmatprep.mubr.f32.mxu0 0.0
      %954 = vmatmul.mubr.f32.gmra.mrb[0].mxu0 %v416
      %v955 = vpop.f32.mrb[0].mxu0
      %v956 = vadd.f32 0.0, %v955
      %v957 = vpop.f32.mrb[0].mxu0
      %958 = vmatprep.mubr.f32.mxu0 0.0
      %959 = vmatmul.mubr.f32.gmra.mrb[0].mxu0 %v419
      %v960 = vpop.f32.mrb[0].mxu0
      %v961 = vadd.f32 0.0, %v960
      %v962 = vpop.f32.mrb[0].mxu0
      %963 = vmatprep.mubr.f32.mxu0 0.0
      %964 = vmatmul.mubr.f32.gmra.mrb[0].mxu0 %v422
      %v965 = vpop.f32.mrb[0].mxu0
      %v966 = vadd.f32 0.0, %v965
      %v967 = vpop.f32.mrb[0].mxu0
      %968 = vmatprep.mubr.f32.mxu0 0.0
      %969 = vmatmul.mubr.f32.gmra.mrb[0].mxu0 %v425
      %v970 = vpop.f32.mrb[0].mxu0
      %v971 = vadd.f32 0.0, %v970
      %v972 = vpop.f32.mrb[0].mxu0
      %973 = vmatprep.mubr.f32.mxu0 0.0
      %974 = vmatmul.mubr.f32.gmra.mrb[0].mxu0 %v428
      %v975 = vpop.f32.mrb[0].mxu0
      %v976 = vadd.f32 0.0, %v975
      %v977 = vpop.f32.mrb[0].mxu0
      %978 = vmatprep.mubr.f32.mxu0 0.0
      %979 = vmatmul.mubr.f32.gmra.mrb[0].mxu0 %v431
      %v980 = vpop.f32.mrb[0].mxu0
      %v981 = vadd.f32 0.0, %v980
      %v982 = vpop.f32.mrb[0].mxu0
      %983 = vmatprep.mubr.f32.mxu0 0.0
      %984 = vmatmul.mubr.f32.gmra.mrb[0].mxu0 %v434
      %v985 = vpop.f32.mrb[0].mxu0
      %v986 = vadd.f32 0.0, %v985
      %v987 = vpop.f32.mrb[0].mxu0
      %988 = vmatprep.mubr.f32.mxu0 0.0
      %989 = vmatmul.mubr.f32.gmra.mrb[0].mxu0 %v437
      %v990 = vpop.f32.mrb[0].mxu0
      %v991 = vadd.f32 0.0, %v990
      %v992 = vpop.f32.mrb[0].mxu0
      %993 = vmatprep.mubr.f32.mxu0 0.0
      %994 = vmatmul.mubr.f32.gmra.mrb[0].mxu0 %v440
      %v995 = vpop.f32.mrb[0].mxu0
      %v996 = vadd.f32 0.0, %v995
      %v997 = vpop.f32.mrb[0].mxu0
      %998 = vmatprep.mubr.f32.mxu0 0.0
      %999 = vmatmul.mubr.f32.gmra.mrb[0].mxu0 %v443
      %v1000 = vpop.f32.mrb[0].mxu0
      %v1001 = vadd.f32 0.0, %v1000
      %v1002 = vpop.f32.mrb[0].mxu0
      %1003 = vmatprep.mubr.f32.mxu0 0.0
      %1004 = vmatmul.mubr.f32.gmra.mrb[0].mxu0 %v446
      %v1005 = vpop.f32.mrb[0].mxu0
      %v1006 = vadd.f32 0.0, %v1005
      %v1007 = vpop.f32.mrb[0].mxu0
      %1008 = vmatprep.mubr.f32.mxu0 0.0
      %1009 = vmatmul.mubr.f32.gmra.mrb[0].mxu0 %v449
      %v1010 = vpop.f32.mrb[0].mxu0
      %v1011 = vadd.f32 0.0, %v1010
      %v1012 = vpop.f32.mrb[0].mxu0
      %1013 = vmatprep.mubr.f32.mxu0 0.0
      %1014 = vmatmul.mubr.f32.gmra.mrb[0].mxu0 %v452
      %v1015 = vpop.f32.mrb[0].mxu0
      %v1016 = vadd.f32 0.0, %v1015
      %v1017 = vpop.f32.mrb[0].mxu0
      %1018 = vmatprep.mubr.f32.mxu0 0.0
      %1019 = vmatmul.mubr.f32.gmra.mrb[0].mxu0 %v455
      %v1020 = vpop.f32.mrb[0].mxu0
      %v1021 = vadd.f32 0.0, %v1020
      %v1022 = vpop.f32.mrb[0].mxu0
      %1023 = vmatprep.mubr.f32.mxu0 0.0
      %1024 = vmatmul.mubr.f32.gmra.mrb[0].mxu0 %v458
      %v1025 = vpop.f32.mrb[0].mxu0
      %v1026 = vadd.f32 0.0, %v1025
      %v1027 = vpop.f32.mrb[0].mxu0
      %1028 = vmatprep.mubr.f32.mxu0 0.0
      %1029 = vmatmul.mubr.f32.gmra.mrb[0].mxu0 %v461
      %v1030 = vpop.f32.mrb[0].mxu0
      %v1031 = vadd.f32 0.0, %v1030
      %v1032 = vpop.f32.mrb[0].mxu0
      %1033 = vmatprep.mubr.f32.mxu0 0.0
      %1034 = vmatmul.mubr.f32.gmra.mrb[0].mxu0 %v464
      %v1035 = vpop.f32.mrb[0].mxu0
      %v1036 = vadd.f32 0.0, %v1035
      %v1037 = vpop.f32.mrb[0].mxu0
      %1038 = vmatprep.mubr.f32.mxu0 0.0
      %1039 = vmatmul.mubr.f32.gmra.mrb[0].mxu0 %v467
      %v1040 = vpop.f32.mrb[0].mxu0
      %v1041 = vadd.f32 0.0, %v1040
      %v1042 = vpop.f32.mrb[0].mxu0
      %1043 = vmatprep.mubr.f32.mxu0 0.0
      %1044 = vmatmul.mubr.f32.gmra.mrb[0].mxu0 %v470
      %v1045 = vpop.f32.mrb[0].mxu0
      %v1046 = vadd.f32 0.0, %v1045
      %v1047 = vpop.f32.mrb[0].mxu0
      %1048 = vmatprep.mubr.f32.mxu0 0.0
      %1049 = vmatmul.mubr.f32.gmra.mrb[0].mxu0 %v473
      %v1050 = vpop.f32.mrb[0].mxu0
      %v1051 = vadd.f32 0.0, %v1050
      %v1052 = vpop.f32.mrb[0].mxu0
      %1053 = vmatprep.mubr.f32.mxu0 0.0
      %1054 = vmatmul.mubr.f32.gmra.mrb[0].mxu0 %v476
      %v1055 = vpop.f32.mrb[0].mxu0
      %v1056 = vadd.f32 0.0, %v1055
      %v1057 = vpop.f32.mrb[0].mxu0
      %1058 = vmatprep.mubr.f32.mxu0 0.0
      %1059 = vmatmul.mubr.f32.gmra.mrb[0].mxu0 %v479
      %v1060 = vpop.f32.mrb[0].mxu0
      %v1061 = vadd.f32 0.0, %v1060
      %v1062 = vpop.f32.mrb[0].mxu0
      %1063 = vmatprep.mubr.f32.mxu0 0.0
      %1064 = vmatmul.mubr.f32.gmra.mrb[0].mxu0 %v482
      %v1065 = vpop.f32.mrb[0].mxu0
      %v1066 = vadd.f32 0.0, %v1065
      %v1067 = vpop.f32.mrb[0].mxu0
      %1068 = vmatprep.mubr.f32.mxu0 0.0
      %1069 = vmatmul.mubr.f32.gmra.mrb[0].mxu0 %v485
      %v1070 = vpop.f32.mrb[0].mxu0
      %v1071 = vadd.f32 0.0, %v1070
      %v1072 = vpop.f32.mrb[0].mxu0
      %1073 = vmatprep.mubr.f32.mxu0 0.0
      %1074 = vmatmul.mubr.f32.gmra.mrb[0].mxu0 %v488
      %v1075 = vpop.f32.mrb[0].mxu0
      %v1076 = vadd.f32 0.0, %v1075
      %v1077 = vpop.f32.mrb[0].mxu0
      %1078 = vmatprep.mubr.f32.mxu0 0.0
      %1079 = vmatmul.mubr.f32.gmra.mrb[0].mxu0 %v491
      %v1080 = vpop.f32.mrb[0].mxu0
      %v1081 = vadd.f32 0.0, %v1080
      %v1082 = vpop.f32.mrb[0].mxu0
      %1083 = vmatprep.mubr.f32.mxu0 0.0
      %1084 = vmatmul.mubr.f32.gmra.mrb[0].mxu0 %v494
      %v1085 = vpop.f32.mrb[0].mxu0
      %v1086 = vadd.f32 0.0, %v1085
      %v1087 = vpop.f32.mrb[0].mxu0
      %1088 = vmatprep.mubr.f32.mxu0 0.0
      %1089 = vmatmul.mubr.f32.gmra.mrb[0].mxu0 %v497
      %v1090 = vpop.f32.mrb[0].mxu0
      %v1091 = vadd.f32 0.0, %v1090
      %v1092 = vpop.f32.mrb[0].mxu0
      %1093 = vmatprep.mubr.f32.mxu0 0.0
      %1094 = vmatmul.mubr.f32.gmra.mrb[0].mxu0 %v500
      %v1095 = vpop.f32.mrb[0].mxu0
      %v1096 = vadd.f32 0.0, %v1095
      %v1097 = vpop.f32.mrb[0].mxu0
      %1098 = vmatprep.mubr.f32.mxu0 0.0
      %1099 = vmatmul.mubr.f32.gmra.mrb[0].mxu0 %v503
      %v1100 = vpop.f32.mrb[0].mxu0
      %v1101 = vadd.f32 0.0, %v1100
      %v1102 = vpop.f32.mrb[0].mxu0
      %1103 = vmatprep.mubr.f32.mxu0 0.0
      %1104 = vmatmul.mubr.f32.gmra.mrb[0].mxu0 %v506
      %v1105 = vpop.f32.mrb[0].mxu0
      %v1106 = vadd.f32 0.0, %v1105
      %v1107 = vpop.f32.mrb[0].mxu0
      %1108 = vmatprep.mubr.f32.mxu0 0.0
      %1109 = vmatmul.mubr.f32.gmra.mrb[0].mxu0 %v509
      %v1110 = vpop.f32.mrb[0].mxu0
      %v1111 = vadd.f32 0.0, %v1110
      %v1112 = vpop.f32.mrb[0].mxu0
      %1113 = vmatprep.mubr.f32.mxu0 0.0
      %1114 = vmatmul.mubr.f32.gmra.mrb[0].mxu0 %v512
      %v1115 = vpop.f32.mrb[0].mxu0
      %v1116 = vadd.f32 0.0, %v1115
      %v1117 = vpop.f32.mrb[0].mxu0
      %1118 = vmatprep.mubr.f32.mxu0 0.0
      %1119 = vmatmul.mubr.f32.gmra.mrb[0].mxu0 %v515
      %v1120 = vpop.f32.mrb[0].mxu0
      %v1121 = vadd.f32 0.0, %v1120
      %v1122 = vpop.f32.mrb[0].mxu0
      %1123 = vmatprep.mubr.f32.mxu0 0.0
      %1124 = vmatmul.mubr.f32.gmra.mrb[0].mxu0 %v518
      %v1125 = vpop.f32.mrb[0].mxu0
      %v1126 = vadd.f32 0.0, %v1125
      %v1127 = vpop.f32.mrb[0].mxu0
      %1128 = vmatprep.mubr.f32.mxu0 0.0
      %1129 = vmatmul.mubr.f32.gmra.mrb[0].mxu0 %v521
      %v1130 = vpop.f32.mrb[0].mxu0
      %v1131 = vadd.f32 0.0, %v1130
      %v1132 = vpop.f32.mrb[0].mxu0
      %1133 = vmatprep.mubr.f32.mxu0 0.0
      %1134 = vmatmul.mubr.f32.gmra.mrb[0].mxu0 %v524
      %v1135 = vpop.f32.mrb[0].mxu0
      %v1136 = vadd.f32 0.0, %v1135
      %v1137 = vpop.f32.mrb[0].mxu0
      %1138 = vmatprep.mubr.f32.mxu0 0.0
      %1139 = vmatmul.mubr.f32.gmra.mrb[0].mxu0 %v527
      %v1140 = vpop.f32.mrb[0].mxu0
      %v1141 = vadd.f32 0.0, %v1140
      %v1142 = vpop.f32.mrb[0].mxu0
      %1143 = vmatprep.mubr.f32.mxu0 0.0
      %1144 = vmatmul.mubr.f32.gmra.mrb[0].mxu0 %v530
      %v1145 = vpop.f32.mrb[0].mxu0
      %v1146 = vadd.f32 0.0, %v1145
      %v1147 = vpop.f32.mrb[0].mxu0
      %1148 = vmatprep.mubr.f32.mxu0 0.0
      %1149 = vmatmul.mubr.f32.gmra.mrb[0].mxu0 %v533
      %v1150 = vpop.f32.mrb[0].mxu0
      %v1151 = vadd.f32 0.0, %v1150
      %v1152 = vpop.f32.mrb[0].mxu0
      %1153 = vmatprep.mubr.f32.mxu0 0.0
      %1154 = vmatmul.mubr.f32.gmra.mrb[0].mxu0 %v536
      %v1155 = vpop.f32.mrb[0].mxu0
      %v1156 = vadd.f32 0.0, %v1155
      %v1157 = vpop.f32.mrb[0].mxu0
      %1158 = vmatprep.mubr.f32.mxu0 0.0
      %1159 = vmatmul.mubr.f32.gmra.mrb[0].mxu0 %v539
      %v1160 = vpop.f32.mrb[0].mxu0
      %v1161 = vadd.f32 0.0, %v1160
      %v1162 = vpop.f32.mrb[0].mxu0
      %1163 = vmatprep.mubr.f32.mxu0 0.0
      %1164 = vmatmul.mubr.f32.gmra.mrb[0].mxu0 %v542
      %v1165 = vpop.f32.mrb[0].mxu0
      %v1166 = vadd.f32 0.0, %v1165
      %v1167 = vpop.f32.mrb[0].mxu0
      %1168 = vmatprep.mubr.f32.mxu0 0.0
      %1169 = vmatmul.mubr.f32.gmra.mrb[0].mxu0 %v545
      %v1170 = vpop.f32.mrb[0].mxu0
      %v1171 = vadd.f32 0.0, %v1170
      %v1172 = vpop.f32.mrb[0].mxu0
      %1173 = vmatprep.mubr.f32.mxu0 0.0
      %1174 = vmatmul.mubr.f32.gmra.mrb[0].mxu0 %v548
      %v1175 = vpop.f32.mrb[0].mxu0
      %v1176 = vadd.f32 0.0, %v1175
      %v1177 = vpop.f32.mrb[0].mxu0
      %1178 = vmatprep.mubr.f32.mxu0 0.0
      %1179 = vmatmul.mubr.f32.gmra.mrb[0].mxu0 %v551
      %v1180 = vpop.f32.mrb[0].mxu0
      %v1181 = vadd.f32 0.0, %v1180
      %v1182 = vpop.f32.mrb[0].mxu0
      %1183 = vmatprep.mubr.f32.mxu0 0.0
      %1184 = vmatmul.mubr.f32.gmra.mrb[0].mxu0 %v554
      %v1185 = vpop.f32.mrb[0].mxu0
      %v1186 = vadd.f32 0.0, %v1185
      %v1187 = vpop.f32.mrb[0].mxu0
      %1188 = vmatprep.mubr.f32.mxu0 0.0
      %1189 = vmatmul.mubr.f32.gmra.mrb[0].mxu0 %v557
      %v1190 = vpop.f32.mrb[0].mxu0
      %v1191 = vadd.f32 0.0, %v1190
      %v1192 = vpop.f32.mrb[0].mxu0
      %1193 = vmatprep.mubr.f32.mxu0 0.0
      %1194 = vmatmul.mubr.f32.gmra.mrb[0].mxu0 %v560
      %v1195 = vpop.f32.mrb[0].mxu0
      %v1196 = vadd.f32 0.0, %v1195
      %v1197 = vpop.f32.mrb[0].mxu0
      %1198 = vmatprep.mubr.f32.mxu0 0.0
      %1199 = vmatmul.mubr.f32.gmra.mrb[0].mxu0 %v563
      %v1200 = vpop.f32.mrb[0].mxu0
      %v1201 = vadd.f32 0.0, %v1200
      %v1202 = vpop.f32.mrb[0].mxu0
      %1203 = vmatprep.mubr.f32.mxu0 0.0
      %1204 = vmatmul.mubr.f32.gmra.mrb[0].mxu0 %v566
      %v1205 = vpop.f32.mrb[0].mxu0
      %v1206 = vadd.f32 0.0, %v1205
      %v1207 = vpop.f32.mrb[0].mxu0
      %1208 = vmatprep.mubr.f32.mxu0 0.0
      %1209 = vmatmul.mubr.f32.gmra.mrb[0].mxu0 %v569
      %v1210 = vpop.f32.mrb[0].mxu0
      %v1211 = vadd.f32 0.0, %v1210
      %v1212 = vpop.f32.mrb[0].mxu0
      %1213 = vmatprep.mubr.f32.mxu0 0.0
      %1214 = vmatmul.mubr.f32.gmra.mrb[0].mxu0 %v572
      %v1215 = vpop.f32.mrb[0].mxu0
      %v1216 = vadd.f32 0.0, %v1215
      %v1217 = vpop.f32.mrb[0].mxu0
      %1218 = vmatprep.mubr.f32.mxu0 0.0
      %1219 = vmatmul.mubr.f32.gmra.mrb[0].mxu0 %v575
      %v1220 = vpop.f32.mrb[0].mxu0
      %v1221 = vadd.f32 0.0, %v1220
      %v1222 = vpop.f32.mrb[0].mxu0
      %1223 = vmatprep.mubr.f32.mxu0 0.0
      %1224 = vmatmul.mubr.f32.gmra.mrb[0].mxu0 %v578
      %v1225 = vpop.f32.mrb[0].mxu0
      %v1226 = vadd.f32 0.0, %v1225
      %v1227 = vpop.f32.mrb[0].mxu0
      %1228 = vmatprep.mubr.f32.mxu0 0.0
      %1229 = vmatmul.mubr.f32.gmra.mrb[0].mxu0 %v581
      %v1230 = vpop.f32.mrb[0].mxu0
      %v1231 = vadd.f32 0.0, %v1230
      %v1232 = vpop.f32.mrb[0].mxu0
      %1233 = vmatprep.mubr.f32.mxu0 0.0
      %1234 = vmatmul.mubr.f32.gmra.mrb[0].mxu0 %v584
      %v1235 = vpop.f32.mrb[0].mxu0
      %v1236 = vadd.f32 0.0, %v1235
      %v1237 = vpop.f32.mrb[0].mxu0
      %1238 = vmatprep.mubr.f32.mxu0 0.0
      %1239 = vmatmul.mubr.f32.gmra.mrb[0].mxu0 %v587
      %v1240 = vpop.f32.mrb[0].mxu0
      %v1241 = vadd.f32 0.0, %v1240
      %v1242 = vpop.f32.mrb[0].mxu0
      %1243 = vmatprep.mubr.f32.mxu0 0.0
      %1244 = vmatmul.mubr.f32.gmra.mrb[0].mxu0 %v590
      %v1245 = vpop.f32.mrb[0].mxu0
      %v1246 = vadd.f32 0.0, %v1245
      %v1247 = vpop.f32.mrb[0].mxu0
      %1248 = vmatprep.mubr.f32.mxu0 0.0
      %1249 = vmatmul.mubr.f32.gmra.mrb[0].mxu0 %v593
      %v1250 = vpop.f32.mrb[0].mxu0
      %v1251 = vadd.f32 0.0, %v1250
      %v1252 = vpop.f32.mrb[0].mxu0
      %1253 = vmatprep.mubr.f32.mxu0 0.0
      %1254 = vmatmul.mubr.f32.gmra.mrb[0].mxu0 %v596
      %v1255 = vpop.f32.mrb[0].mxu0
      %v1256 = vadd.f32 0.0, %v1255
      %v1257 = vpop.f32.mrb[0].mxu0
      %1258 = vmatprep.mubr.f32.mxu0 0.0
      %1259 = vmatmul.mubr.f32.gmra.mrb[0].mxu0 %v599
      %v1260 = vpop.f32.mrb[0].mxu0
      %v1261 = vadd.f32 0.0, %v1260
      %v1262 = vpop.f32.mrb[0].mxu0
      %1263 = vmatprep.mubr.f32.mxu0 0.0
      %1264 = vmatmul.mubr.f32.gmra.mrb[0].mxu0 %v602
      %v1265 = vpop.f32.mrb[0].mxu0
      %v1266 = vadd.f32 0.0, %v1265
      %v1267 = vpop.f32.mrb[0].mxu0
      %1268 = vmatprep.mubr.f32.mxu0 0.0
      %1269 = vmatmul.mubr.f32.gmra.mrb[0].mxu0 %v605
      %v1270 = vpop.f32.mrb[0].mxu0
      %v1271 = vadd.f32 0.0, %v1270
      %v1272 = vpop.f32.mrb[0].mxu0
      %1273 = vmatprep.mubr.f32.mxu0 0.0
      %1274 = vmatmul.mubr.f32.gmra.mrb[0].mxu0 %v608
      %v1275 = vpop.f32.mrb[0].mxu0
      %v1276 = vadd.f32 0.0, %v1275
      %v1277 = vpop.f32.mrb[0].mxu0
      %1278 = vmatprep.mubr.f32.mxu0 0.0
      %1279 = vmatmul.mubr.f32.gmra.mrb[0].mxu0 %v611
      %v1280 = vpop.f32.mrb[0].mxu0
      %v1281 = vadd.f32 0.0, %v1280
      %v1282 = vpop.f32.mrb[0].mxu0
      %1283 = vmatprep.mubr.f32.mxu0 0.0
      %1284 = vmatmul.mubr.f32.gmra.mrb[0].mxu0 %v614
      %v1285 = vpop.f32.mrb[0].mxu0
      %v1286 = vadd.f32 0.0, %v1285
      %v1287 = vpop.f32.mrb[0].mxu0
      %1288 = vmatprep.mubr.f32.mxu0 0.0
      %1289 = vmatmul.mubr.f32.gmra.mrb[0].mxu0 %v617
      %v1290 = vpop.f32.mrb[0].mxu0
      %v1291 = vadd.f32 0.0, %v1290
      %v1292 = vpop.f32.mrb[0].mxu0
      %1293 = vmatprep.mubr.f32.mxu0 0.0
      %1294 = vmatmul.mubr.f32.gmra.mrb[0].mxu0 %v620
      %v1295 = vpop.f32.mrb[0].mxu0
      %v1296 = vadd.f32 0.0, %v1295
      %v1297 = vpop.f32.mrb[0].mxu0
      %1298 = vmatprep.mubr.f32.mxu0 0.0
      %1299 = vmatmul.mubr.f32.gmra.mrb[0].mxu0 %v623
      %v1300 = vpop.f32.mrb[0].mxu0
      %v1301 = vadd.f32 0.0, %v1300
      %v1302 = vpop.f32.mrb[0].mxu0
      %1303 = vmatprep.mubr.f32.mxu0 0.0
      %1304 = vmatmul.mubr.f32.gmra.mrb[0].mxu0 %v626
      %v1305 = vpop.f32.mrb[0].mxu0
      %v1306 = vadd.f32 0.0, %v1305
      %v1307 = vpop.f32.mrb[0].mxu0
      %1308 = vmatprep.mubr.f32.mxu0 0.0
      %1309 = vmatmul.mubr.f32.gmra.mrb[0].mxu0 %v629
      %v1310 = vpop.f32.mrb[0].mxu0
      %v1311 = vadd.f32 0.0, %v1310
      %v1312 = vpop.f32.mrb[0].mxu0
      %1313 = vmatprep.mubr.f32.mxu0 0.0
      %1314 = vmatmul.mubr.f32.gmra.mrb[0].mxu0 %v632
      %v1315 = vpop.f32.mrb[0].mxu0
      %v1316 = vadd.f32 0.0, %v1315
      %v1317 = vpop.f32.mrb[0].mxu0
      %1318 = vmatprep.mubr.f32.mxu0 0.0
      %1319 = vmatmul.mubr.f32.gmra.mrb[0].mxu0 %v635
      %v1320 = vpop.f32.mrb[0].mxu0
      %v1321 = vadd.f32 0.0, %v1320
      %v1322 = vpop.f32.mrb[0].mxu0
      %1323 = vmatprep.mubr.f32.mxu0 0.0
      %1324 = vmatmul.mubr.f32.gmra.mrb[0].mxu0 %v638
      %v1325 = vpop.f32.mrb[0].mxu0
      %v1326 = vadd.f32 0.0, %v1325
      %v1327 = vpop.f32.mrb[0].mxu0
      %1328 = vmatprep.mubr.f32.mxu0 0.0
      %1329 = vmatmul.mubr.f32.gmra.mrb[0].mxu0 %v641
      %v1330 = vpop.f32.mrb[0].mxu0
      %v1331 = vadd.f32 0.0, %v1330
      %v1332 = vpop.f32.mrb[0].mxu0
      %1333 = vmatprep.mubr.f32.mxu0 0.0
      %1334 = vmatmul.mubr.f32.gmra.mrb[0].mxu0 %v644
      %v1335 = vpop.f32.mrb[0].mxu0
      %v1336 = vadd.f32 0.0, %v1335
      %v1337 = vpop.f32.mrb[0].mxu0
      %1338 = vmatprep.mubr.f32.mxu0 0.0
      %1339 = vmatmul.mubr.f32.gmra.mrb[0].mxu0 %v647
      %v1340 = vpop.f32.mrb[0].mxu0
      %v1341 = vadd.f32 0.0, %v1340
      %v1342 = vpop.f32.mrb[0].mxu0
      %1343 = vmatprep.mubr.f32.mxu0 0.0
      %1344 = vmatmul.mubr.f32.gmra.mrb[0].mxu0 %v650
      %v1345 = vpop.f32.mrb[0].mxu0
      %v1346 = vadd.f32 0.0, %v1345
      %v1347 = vpop.f32.mrb[0].mxu0
      %1348 = vmatprep.mubr.f32.mxu0 0.0
      %1349 = vmatmul.mubr.f32.gmra.mrb[0].mxu0 %v653
      %v1350 = vpop.f32.mrb[0].mxu0
      %v1351 = vadd.f32 0.0, %v1350
      %v1352 = vpop.f32.mrb[0].mxu0
      %1353 = vmatprep.mubr.f32.mxu0 0.0
      %1354 = vmatmul.mubr.f32.gmra.mrb[0].mxu0 %v656
      %v1355 = vpop.f32.mrb[0].mxu0
      %v1356 = vadd.f32 0.0, %v1355
      %v1357 = vpop.f32.mrb[0].mxu0
      %1358 = vmatprep.mubr.f32.mxu0 0.0
      %1359 = vmatmul.mubr.f32.gmra.mrb[0].mxu0 %v659
      %v1360 = vpop.f32.mrb[0].mxu0
      %v1361 = vadd.f32 0.0, %v1360
      %v1362 = vpop.f32.mrb[0].mxu0
      %1363 = vmatprep.mubr.f32.mxu0 0.0
      %1364 = vmatmul.mubr.f32.gmra.mrb[0].mxu0 %v662
      %v1365 = vpop.f32.mrb[0].mxu0
      %v1366 = vadd.f32 0.0, %v1365
      %v1367 = vpop.f32.mrb[0].mxu0
      %1368 = vdwg.mxu0
      %1369 = vst [vmem:[%s145] sm:$0xff] %v731
      %1370 = vst [vmem:[%s145 + $0x8] sm:$0xff] %v736
      %1371 = vst [vmem:[%s145 + $0x10] sm:$0xff] %v741
      %1372 = vst [vmem:[%s145 + $0x18] sm:$0xff] %v746
      %1373 = vst [vmem:[%s145 + $0x20] sm:$0xff] %v751
      %1374 = vst [vmem:[%s145 + $0x28] sm:$0xff] %v756
      %1375 = vst [vmem:[%s145 + $0x30] sm:$0xff] %v761
      %1376 = vst [vmem:[%s145 + $0x38] sm:$0xff] %v766
      %1377 = vst [vmem:[%s145 + $0x40] sm:$0xff] %v771
      %1378 = vst [vmem:[%s145 + $0x48] sm:$0xff] %v776
      %1379 = vst [vmem:[%s145 + $0x50] sm:$0xff] %v781
      %1380 = vst [vmem:[%s145 + $0x58] sm:$0xff] %v786
      %1381 = vst [vmem:[%s145 + $0x60] sm:$0xff] %v791
      %1382 = vst [vmem:[%s145 + $0x68] sm:$0xff] %v796
      %1383 = vst [vmem:[%s145 + $0x70] sm:$0xff] %v801
      %1384 = vst [vmem:[%s145 + $0x78] sm:$0xff] %v806
      %1385 = vst [vmem:[%s145 + $0x80] sm:$0xff] %v811
      %1386 = vst [vmem:[%s145 + $0x88] sm:$0xff] %v816
      %1387 = vst [vmem:[%s145 + $0x90] sm:$0xff] %v821
      %1388 = vst [vmem:[%s145 + $0x98] sm:$0xff] %v826
      %1389 = vst [vmem:[%s145 + $0xa0] sm:$0xff] %v831
      %1390 = vst [vmem:[%s145 + $0xa8] sm:$0xff] %v836
      %1391 = vst [vmem:[%s145 + $0xb0] sm:$0xff] %v841
      %1392 = vst [vmem:[%s145 + $0xb8] sm:$0xff] %v846
      %1393 = vst [vmem:[%s145 + $0xc0] sm:$0xff] %v851
      %1394 = vst [vmem:[%s145 + $0xc8] sm:$0xff] %v856
      %1395 = vst [vmem:[%s145 + $0xd0] sm:$0xff] %v861
      %1396 = vst [vmem:[%s145 + $0xd8] sm:$0xff] %v866
      %1397 = vst [vmem:[%s145 + $0xe0] sm:$0xff] %v871
      %1398 = vst [vmem:[%s145 + $0xe8] sm:$0xff] %v876
      %1399 = vst [vmem:[%s145 + $0xf0] sm:$0xff] %v881
      %1400 = vst [vmem:[%s145 + $0xf8] sm:$0xff] %v886
      %1401 = vst [vmem:[%s145 + $0x100] sm:$0xff] %v891
      %1402 = vst [vmem:[%s145 + $0x108] sm:$0xff] %v896
      %1403 = vst [vmem:[%s145 + $0x110] sm:$0xff] %v901
      %1404 = vst [vmem:[%s145 + $0x118] sm:$0xff] %v906
      %1405 = vst [vmem:[%s145 + $0x120] sm:$0xff] %v911
      %1406 = vst [vmem:[%s145 + $0x128] sm:$0xff] %v916
      %1407 = vst [vmem:[%s145 + $0x130] sm:$0xff] %v921
      %1408 = vst [vmem:[%s145 + $0x138] sm:$0xff] %v926
      %1409 = vst [vmem:[%s145 + $0x140] sm:$0xff] %v931
      %1410 = vst [vmem:[%s145 + $0x148] sm:$0xff] %v936
      %1411 = vst [vmem:[%s145 + $0x150] sm:$0xff] %v941
      %1412 = vst [vmem:[%s145 + $0x158] sm:$0xff] %v946
      %1413 = vst [vmem:[%s145 + $0x160] sm:$0xff] %v951
      %1414 = vst [vmem:[%s145 + $0x168] sm:$0xff] %v956
      %1415 = vst [vmem:[%s145 + $0x170] sm:$0xff] %v961
      %1416 = vst [vmem:[%s145 + $0x178] sm:$0xff] %v966
      %1417 = vst [vmem:[%s145 + $0x180] sm:$0xff] %v971
      %1418 = vst [vmem:[%s145 + $0x188] sm:$0xff] %v976
      %1419 = vst [vmem:[%s145 + $0x190] sm:$0xff] %v981
      %1420 = vst [vmem:[%s145 + $0x198] sm:$0xff] %v986
      %1421 = vst [vmem:[%s145 + $0x1a0] sm:$0xff] %v991
      %1422 = vst [vmem:[%s145 + $0x1a8] sm:$0xff] %v996
      %1423 = vst [vmem:[%s145 + $0x1b0] sm:$0xff] %v1001
      %1424 = vst [vmem:[%s145 + $0x1b8] sm:$0xff] %v1006
      %1425 = vst [vmem:[%s145 + $0x1c0] sm:$0xff] %v1011
      %1426 = vst [vmem:[%s145 + $0x1c8] sm:$0xff] %v1016
      %1427 = vst [vmem:[%s145 + $0x1d0] sm:$0xff] %v1021
      %1428 = vst [vmem:[%s145 + $0x1d8] sm:$0xff] %v1026
      %1429 = vst [vmem:[%s145 + $0x1e0] sm:$0xff] %v1031
      %1430 = vst [vmem:[%s145 + $0x1e8] sm:$0xff] %v1036
      %1431 = vst [vmem:[%s145 + $0x1f0] sm:$0xff] %v1041
      %1432 = vst [vmem:[%s145 + $0x1f8] sm:$0xff] %v1046
      %1433 = vst [vmem:[%s145 + $0x200] sm:$0xff] %v1051
      %1434 = vst [vmem:[%s145 + $0x208] sm:$0xff] %v1056
      %1435 = vst [vmem:[%s145 + $0x210] sm:$0xff] %v1061
      %1436 = vst [vmem:[%s145 + $0x218] sm:$0xff] %v1066
      %1437 = vst [vmem:[%s145 + $0x220] sm:$0xff] %v1071
      %1438 = vst [vmem:[%s145 + $0x228] sm:$0xff] %v1076
      %1439 = vst [vmem:[%s145 + $0x230] sm:$0xff] %v1081
      %1440 = vst [vmem:[%s145 + $0x238] sm:$0xff] %v1086
      %1441 = vst [vmem:[%s145 + $0x240] sm:$0xff] %v1091
      %1442 = vst [vmem:[%s145 + $0x248] sm:$0xff] %v1096
      %1443 = vst [vmem:[%s145 + $0x250] sm:$0xff] %v1101
      %1444 = vst [vmem:[%s145 + $0x258] sm:$0xff] %v1106
      %1445 = vst [vmem:[%s145 + $0x260] sm:$0xff] %v1111
      %1446 = vst [vmem:[%s145 + $0x268] sm:$0xff] %v1116
      %1447 = vst [vmem:[%s145 + $0x270] sm:$0xff] %v1121
      %1448 = vst [vmem:[%s145 + $0x278] sm:$0xff] %v1126
      %1449 = vst [vmem:[%s145 + $0x280] sm:$0xff] %v1131
      %1450 = vst [vmem:[%s145 + $0x288] sm:$0xff] %v1136
      %1451 = vst [vmem:[%s145 + $0x290] sm:$0xff] %v1141
      %1452 = vst [vmem:[%s145 + $0x298] sm:$0xff] %v1146
      %1453 = vst [vmem:[%s145 + $0x2a0] sm:$0xff] %v1151
      %1454 = vst [vmem:[%s145 + $0x2a8] sm:$0xff] %v1156
      %1455 = vst [vmem:[%s145 + $0x2b0] sm:$0xff] %v1161
      %1456 = vst [vmem:[%s145 + $0x2b8] sm:$0xff] %v1166
      %1457 = vst [vmem:[%s145 + $0x2c0] sm:$0xff] %v1171
      %1458 = vst [vmem:[%s145 + $0x2c8] sm:$0xff] %v1176
      %1459 = vst [vmem:[%s145 + $0x2d0] sm:$0xff] %v1181
      %1460 = vst [vmem:[%s145 + $0x2d8] sm:$0xff] %v1186
      %1461 = vst [vmem:[%s145 + $0x2e0] sm:$0xff] %v1191
      %1462 = vst [vmem:[%s145 + $0x2e8] sm:$0xff] %v1196
      %1463 = vst [vmem:[%s145 + $0x2f0] sm:$0xff] %v1201
      %1464 = vst [vmem:[%s145 + $0x2f8] sm:$0xff] %v1206
      %1465 = vst [vmem:[%s145 + $0x300] sm:$0xff] %v1211
      %1466 = vst [vmem:[%s145 + $0x308] sm:$0xff] %v1216
      %1467 = vst [vmem:[%s145 + $0x310] sm:$0xff] %v1221
      %1468 = vst [vmem:[%s145 + $0x318] sm:$0xff] %v1226
      %1469 = vst [vmem:[%s145 + $0x320] sm:$0xff] %v1231
      %1470 = vst [vmem:[%s145 + $0x328] sm:$0xff] %v1236
      %1471 = vst [vmem:[%s145 + $0x330] sm:$0xff] %v1241
      %1472 = vst [vmem:[%s145 + $0x338] sm:$0xff] %v1246
      %1473 = vst [vmem:[%s145 + $0x340] sm:$0xff] %v1251
      %1474 = vst [vmem:[%s145 + $0x348] sm:$0xff] %v1256
      %1475 = vst [vmem:[%s145 + $0x350] sm:$0xff] %v1261
      %1476 = vst [vmem:[%s145 + $0x358] sm:$0xff] %v1266
      %1477 = vst [vmem:[%s145 + $0x360] sm:$0xff] %v1271
      %1478 = vst [vmem:[%s145 + $0x368] sm:$0xff] %v1276
      %1479 = vst [vmem:[%s145 + $0x370] sm:$0xff] %v1281
      %1480 = vst [vmem:[%s145 + $0x378] sm:$0xff] %v1286
      %1481 = vst [vmem:[%s145 + $0x380] sm:$0xff] %v1291
      %1482 = vst [vmem:[%s145 + $0x388] sm:$0xff] %v1296
      %1483 = vst [vmem:[%s145 + $0x390] sm:$0xff] %v1301
      %1484 = vst [vmem:[%s145 + $0x398] sm:$0xff] %v1306
      %1485 = vst [vmem:[%s145 + $0x3a0] sm:$0xff] %v1311
      %1486 = vst [vmem:[%s145 + $0x3a8] sm:$0xff] %v1316
      %1487 = vst [vmem:[%s145 + $0x3b0] sm:$0xff] %v1321
      %1488 = vst [vmem:[%s145 + $0x3b8] sm:$0xff] %v1326
      %1489 = vst [vmem:[%s145 + $0x3c0] sm:$0xff] %v1331
      %1490 = vst [vmem:[%s145 + $0x3c8] sm:$0xff] %v1336
      %1491 = vst [vmem:[%s145 + $0x3d0] sm:$0xff] %v1341
      %1492 = vst [vmem:[%s145 + $0x3d8] sm:$0xff] %v1346
      %1493 = vst [vmem:[%s145 + $0x3e0] sm:$0xff] %v1351
      %1494 = vst [vmem:[%s145 + $0x3e8] sm:$0xff] %v1356
      %1495 = vst [vmem:[%s145 + $0x3f0] sm:$0xff] %v1361
      %1496 = vst [vmem:[%s145 + $0x3f8] sm:$0xff] %v1366
      %s1497 = smul.u32 128, %s13
      %p1498 = scmp.lt.s32.totalorder %s1497, 255
      %s1499 = scalar_select %p1498, %s1497, 255
      %s1500 = smul.addr %s1499, 8
      %s1501 = scalar_lea.vmem %s2, %s1500
      // Predicated region
      $region29: #{decoder_forward.7} parent=27 // pred_check
        %p1502 = pneg %p78
      $region30: #{decoder_forward.7} parent=27 // pred_check_branch
        %1504 = sbr.rel (%p1502) target = $region32
      $region31: #{decoder_forward.7} parent=27 // pred_region
        %s1505 = smul.u32 128, %s13
      $region32: #{decoder_forward.7} parent=27 // pred_fallthru
        _
    $region28: #{decoder_forward.7} parent=5 // pred_fallthru
      _
    %p1506 = scmp.le.s32.totalorder 2, %s8
    // Predicated region
    $region33: #{decoder_forward.7} parent=5 // pred_check
      %p1507 = pneg %p1506
    $region34: #{decoder_forward.7} parent=5 // pred_check_branch
      %1509 = sbr.rel (%p1507) target = $region36
    $region35: #{decoder_forward.7} parent=5 // pred_region
      %s1510 = ssub.s32 %s8, 2
      // Predicated region
      $region37: #{decoder_forward.7} parent=35 // pred_check
        %p1511 = pneg %p84
      $region38: #{decoder_forward.7} parent=35 // pred_check_branch
        %1513 = sbr.rel (%p1511) target = $region40
      $region39: #{decoder_forward.7} parent=35 // pred_region
        %s1514 = smul.u32 128, %s14
        %p1515 = scmp.lt.s32.totalorder %s1514, 255
        %s1516 = scalar_select %p1515, %s1514, 255
        %s1517 = smul.addr %s1516, 8
        %s1518 = scalar_lea.vmem %s2, %s1517
      $region40: #{decoder_forward.7} parent=35 // pred_fallthru
        _
    $region36: #{decoder_forward.7} parent=5 // pred_fallthru
      _
  $region6: #{decoder_forward.7} parent=0 // loop_footer
    %s12 = sadd.s32 1, %s8
  $region7: #{decoder_forward.7} parent=0 // loop_footer_branch
    %7 = sbr.rel target = $region3
  $region8: #{decoder_forward.7} parent=0 // loop_exit
    _

</llo_original>
